<compile_context>
chip_gen: v6e
topology: v6e:2x2x1
jax: 0.10.0
libtpu: 0.0.40
codegen_flags: <defaults>
</compile_context>

<pallas_src>
import functools

import numpy as np
import jax
import jax.numpy as jnp
from jax import lax
from jax.experimental import pallas as pl
from jax.experimental.pallas import tpu as pltpu

# ----- scaled-down config (vit_base_patch16_224 analogue) -----
IMG = 32          # (224 in the real model)
PATCH = 8         # (16)
IN_CH = 3
EMBED = 32        # (768)
DEPTH = 2         # (12)
HEADS = 4         # (12)
HEAD_DIM = EMBED // HEADS
MLP_HIDDEN = 4 * EMBED
NUM_CLASSES = 6   # HMS EEG classes
NC_PAD = 8        # class dim padded for dense stores
NUM_PATCHES = (IMG // PATCH) ** 2      # 16
NUM_TOKENS = NUM_PATCHES + 1           # 17 (cls token stored LAST, at row 16)
NT_PAD = 24                            # tokens padded to multiple of 8 sublanes
PATCH_DIM = IN_CH * PATCH * PATCH      # 192
LN_EPS = 1e-6
ATTN_SCALE = HEAD_DIM ** -0.5

# packed small-vector array layout: 4 rows per depth + 1 final row, 128 lanes each.
#   row 4d+0: [norm1_w | norm1_b | norm2_w | norm2_b]          (EMBED each)
#   row 4d+1: [qkv_b (3*EMBED) | proj_b (EMBED)]
#   row 4d+2: [fc1_b (MLP_HIDDEN)]
#   row 4d+3: [fc2_b (EMBED) | zeros]
#   row 4D  : [norm_w | norm_b | head_b (padded to NC_PAD) | zeros]
VEC_COLS = 128
VEC_ROWS = 4 * DEPTH + 1


# ---------------- fused Pallas kernel ----------------

def _layernorm(x, g, b):
    mean = jnp.mean(x, axis=-1, keepdims=True)
    var = jnp.mean(jnp.square(x - mean), axis=-1, keepdims=True)
    return (x - mean) * lax.rsqrt(var + LN_EPS) * g + b


def _gelu(x):
    # exact (erf) GELU, as in timm's default nn.GELU
    return 0.5 * x * (1.0 + lax.erf(x * jnp.float32(0.7071067811865476)))


def _vit_kernel(
    patches_ref,        # (Bb, NUM_PATCHES, PATCH_DIM)
    attn_bias_ref,      # (Bb*NT_PAD, Bb*NT_PAD)  additive mask: 0 valid / -1e30 masked
    patch_w_ref,        # (PATCH_DIM, EMBED)
    tok_bias_ref,       # (NT_PAD, EMBED)  pos+patch_bias rows, cls row, zero pad rows
    qkv_w_ref,          # (DEPTH, EMBED, 3*EMBED)
    proj_w_ref,         # (DEPTH, EMBED, EMBED)
    fc1_w_ref,          # (DEPTH, EMBED, MLP_HIDDEN)
    fc2_w_ref,          # (DEPTH, MLP_HIDDEN, EMBED)
    head_w_ref,         # (EMBED, NC_PAD)
    vec_ref,            # (VEC_ROWS, VEC_COLS) packed small vectors
    out_ref,            # (Bb, NT_PAD, NC_PAD)
    x_scr,              # VMEM scratch (Bb, NT_PAD, EMBED)
    *, bb,
):
    f32 = jnp.float32
    m = bb * NT_PAD

    # ---- patch embedding: one big matmul over every image in the batch block ----
    pe = jnp.dot(patches_ref[...].reshape(bb * NUM_PATCHES, PATCH_DIM),
                 patch_w_ref[...], preferred_element_type=f32)
    pe = pe.reshape(bb, NUM_PATCHES, EMBED)
    tok_bias = tok_bias_ref[...]
    # rows 0..15: patch tokens (+pos+bias), row 16: cls (+pos), rows 17..23: zeros.
    x_scr[:, 0:NUM_PATCHES, :] = pe + tok_bias[0:NUM_PATCHES, :]
    x_scr[:, NUM_PATCHES:NT_PAD, :] = jnp.broadcast_to(
        tok_bias[NUM_PATCHES:NT_PAD, :], (bb, NT_PAD - NUM_PATCHES, EMBED))
    x = x_scr[...].reshape(m, EMBED)

    attn_bias = attn_bias_ref[...]   # loaded once, reused by every depth/head

    for d in range(DEPTH):
        r = 4 * d
        n1w = vec_ref[r:r + 1, 0:EMBED]
        n1b = vec_ref[r:r + 1, EMBED:2 * EMBED]
        n2w = vec_ref[r:r + 1, 2 * EMBED:3 * EMBED]
        n2b = vec_ref[r:r + 1, 3 * EMBED:4 * EMBED]
        qkvb = vec_ref[r + 1:r + 2, 0:3 * EMBED]
        projb = vec_ref[r + 1:r + 2, 3 * EMBED:4 * EMBED]
        fc1b = vec_ref[r + 2:r + 3, 0:MLP_HIDDEN]
        fc2b = vec_ref[r + 3:r + 4, 0:EMBED]

        # ---- multi-head self-attention (pre-norm) ----
        h = _layernorm(x, n1w, n1b)
        qkv = jnp.dot(h, qkv_w_ref[d], preferred_element_type=f32) + qkvb   # (m, 96)
        heads_out = []
        for hd in range(HEADS):
            q = qkv[:, hd * HEAD_DIM:(hd + 1) * HEAD_DIM]
            k = qkv[:, EMBED + hd * HEAD_DIM:EMBED + (hd + 1) * HEAD_DIM]
            v = qkv[:, 2 * EMBED + hd * HEAD_DIM:2 * EMBED + (hd + 1) * HEAD_DIM]
            # full-slab scores; cross-image & padded-key entries killed by attn_bias
            s = lax.dot_general(q * jnp.float32(ATTN_SCALE), k,
                                dimension_numbers=(((1,), (1,)), ((), ())),
                                preferred_element_type=f32)                 # (m, m)
            s = s + attn_bias
            s = s - jnp.max(s, axis=-1, keepdims=True)
            p = jnp.exp(s)
            p = p / jnp.sum(p, axis=-1, keepdims=True)   # exact division for parity
            heads_out.append(jnp.dot(p, v, preferred_element_type=f32))     # (m, dh)
        o = jnp.concatenate(heads_out, axis=-1)                              # (m, E)
        x = x + jnp.dot(o, proj_w_ref[d], preferred_element_type=f32) + projb

        # ---- MLP (pre-norm) ----
        h = _layernorm(x, n2w, n2b)
        g = jnp.dot(h, fc1_w_ref[d], preferred_element_type=f32) + fc1b
        g = _gelu(g)
        x = x + jnp.dot(g, fc2_w_ref[d], preferred_element_type=f32) + fc2b

    # ---- final LayerNorm + head on the whole slab (cls row sliced host-side) ----
    rf = 4 * DEPTH
    nfw = vec_ref[rf:rf + 1, 0:EMBED]
    nfb = vec_ref[rf:rf + 1, EMBED:2 * EMBED]
    hb = vec_ref[rf:rf + 1, 2 * EMBED:2 * EMBED + NC_PAD]
    xf = _layernorm(x, nfw, nfb)
    logits = jnp.dot(xf, head_w_ref[...], preferred_element_type=f32) + hb  # (m, 8)
    out_ref[...] = logits.reshape(bb, NT_PAD, NC_PAD)


# ---------------- host-side glue ----------------

def _full_spec(shape):
    nd = len(shape)
    return pl.BlockSpec(shape, lambda g, _nd=nd: (0,) * _nd)


def _pick_batch_block(batch):
    # Largest divisor of `batch` (capped at 8 because attention scores are computed on
    # a cross-image masked slab, O(Bb^2)) that still leaves >= 2 grid steps so both
    # v7x TensorCores get work.  v5e/v6e have a single TC and just want a big block.
    for bb in (8, 4, 2, 1):
        if batch % bb == 0 and (batch // bb >= 2 or bb == 1):
            return bb
    return 1


def _pack_weights(params):
    """Pack PyTorch-layout params into a few kernel-friendly, depth-stacked arrays."""
    blocks = params["blocks"]
    qkv_w = jnp.stack([b["qkv_w"] for b in blocks])     # (D, E, 3E)  [q|k|v] head-major
    proj_w = jnp.stack([b["proj_w"] for b in blocks])   # (D, E, E)
    fc1_w = jnp.stack([b["fc1_w"] for b in blocks])     # (D, E, 4E)
    fc2_w = jnp.stack([b["fc2_w"] for b in blocks])     # (D, 4E, E)

    vec = jnp.zeros((VEC_ROWS, VEC_COLS), jnp.float32)
    for d, b in enumerate(blocks):
        r = 4 * d
        vec = vec.at[r, 0:EMBED].set(b["norm1_w"])
        vec = vec.at[r, EMBED:2 * EMBED].set(b["norm1_b"])
        vec = vec.at[r, 2 * EMBED:3 * EMBED].set(b["norm2_w"])
        vec = vec.at[r, 3 * EMBED:4 * EMBED].set(b["norm2_b"])
        vec = vec.at[r + 1, 0:3 * EMBED].set(b["qkv_b"])
        vec = vec.at[r + 1, 3 * EMBED:4 * EMBED].set(b["proj_b"])
        vec = vec.at[r + 2, 0:MLP_HIDDEN].set(b["fc1_b"])
        vec = vec.at[r + 3, 0:EMBED].set(b["fc2_b"])
    rf = 4 * DEPTH
    vec = vec.at[rf, 0:EMBED].set(params["norm_w"])
    vec = vec.at[rf, EMBED:2 * EMBED].set(params["norm_b"])
    vec = vec.at[rf, 2 * EMBED:2 * EMBED + NUM_CLASSES].set(params["head_b"])

    # tok_bias rows 0..15 = pos[1..16] + patch conv bias; row 16 = cls + pos[0]; rest 0.
    tok_bias = jnp.zeros((NT_PAD, EMBED), jnp.float32)
    tok_bias = tok_bias.at[0:NUM_PATCHES].set(params["pos_embed"][0, 1:] + params["patch_b"])
    tok_bias = tok_bias.at[NUM_PATCHES].set(params["cls_token"][0, 0] + params["pos_embed"][0, 0])

    head_w = jnp.zeros((EMBED, NC_PAD), jnp.float32)
    head_w = head_w.at[:, 0:NUM_CLASSES].set(params["head_w"])

    return dict(patch_w=params["patch_w"], tok_bias=tok_bias, qkv_w=qkv_w,
                proj_w=proj_w, fc1_w=fc1_w, fc2_w=fc2_w, head_w=head_w, vec=vec)


_WEIGHT_ORDER = ["patch_w", "tok_bias", "qkv_w", "proj_w", "fc1_w", "fc2_w",
                 "head_w", "vec"]


def spectrogram_vit_forward(x, params):
    """x: (B, 3, IMG, IMG) NCHW float32 -> logits (B, NUM_CLASSES)."""
    B = x.shape[0]
    bb = _pick_batch_block(B)
    nb = B // bb
    m = bb * NT_PAD

    # im2col for the patch-embed conv: (B, C, H, W) -> (B, num_patches, C*P*P).
    hp = IMG // PATCH
    p = x.reshape(B, IN_CH, hp, PATCH, hp, PATCH)
    p = p.transpose(0, 2, 4, 1, 3, 5).reshape(B, NUM_PATCHES, PATCH_DIM)

    # Additive attention mask for the flattened batch-block slab: a key column is
    # valid only if it belongs to the same image as the query row and its token index
    # is a real (non-padded) token.  Built host-side (trace-time constant).
    ids = np.arange(m)
    img = ids // NT_PAD
    tid = ids % NT_PAD
    valid = (img[:, None] == img[None, :]) & (tid[None, :] < NUM_TOKENS)
    attn_bias = jnp.asarray(np.where(valid, 0.0, -1e30), dtype=jnp.float32)

    w = _pack_weights(params)
    weights = [w[name] for name in _WEIGHT_ORDER]

    in_specs = [pl.BlockSpec((bb, NUM_PATCHES, PATCH_DIM), lambda g: (g, 0, 0)),
                _full_spec(attn_bias.shape)]
    in_specs += [_full_spec(a.shape) for a in weights]

    out = pl.pallas_call(
        functools.partial(_vit_kernel, bb=bb),
        grid=(nb,),
        in_specs=in_specs,
        out_specs=pl.BlockSpec((None, bb, NT_PAD, NC_PAD), lambda g: (g, 0, 0, 0)),
        out_shape=jax.ShapeDtypeStruct((nb, bb, NT_PAD, NC_PAD), jnp.float32),
        scratch_shapes=[pltpu.VMEM((bb, NT_PAD, EMBED), jnp.float32)],
        compiler_params=pltpu.CompilerParams(
            dimension_semantics=("parallel",)),
    )(p, attn_bias, *weights)

    out = out.reshape(B, NT_PAD, NC_PAD)
    return out[:, NUM_PATCHES, :NUM_CLASSES]   # cls-token row, real classes only


# ---------------- parameter init (same structure/semantics as the torch module) ----------------

def init_params(key):
    def nrm(k, shape, std=0.02):
        return std * jax.random.normal(k, shape, jnp.float32)

    keys = iter(jax.random.split(key, 64))
    params = {
        # patch-embed conv (EMBED, C, P, P) stored pre-flattened as (C*P*P, EMBED)
        "patch_w": nrm(next(keys), (PATCH_DIM, EMBED)),
        "patch_b": nrm(next(keys), (EMBED,)),
        "cls_token": nrm(next(keys), (1, 1, EMBED)),
        "pos_embed": nrm(next(keys), (1, NUM_TOKENS, EMBED)),
        "norm_w": jnp.ones((EMBED,), jnp.float32),
        "norm_b": jnp.zeros((EMBED,), jnp.float32),
        "head_w": nrm(next(keys), (EMBED, NUM_CLASSES)),
        "head_b": jnp.zeros((NUM_CLASSES,), jnp.float32),
        "blocks": [],
    }
    for _ in range(DEPTH):
        params["blocks"].append({
            "norm1_w": jnp.ones((EMBED,), jnp.float32),
            "norm1_b": jnp.zeros((EMBED,), jnp.float32),
            "qkv_w": nrm(next(keys), (EMBED, 3 * EMBED)),
            "qkv_b": nrm(next(keys), (3 * EMBED,)),
            "proj_w": nrm(next(keys), (EMBED, EMBED)),
            "proj_b": nrm(next(keys), (EMBED,)),
            "norm2_w": jnp.ones((EMBED,), jnp.float32),
            "norm2_b": jnp.zeros((EMBED,), jnp.float32),
            "fc1_w": nrm(next(keys), (EMBED, MLP_HIDDEN)),
            "fc1_b": nrm(next(keys), (MLP_HIDDEN,)),
            "fc2_w": nrm(next(keys), (MLP_HIDDEN, EMBED)),
            "fc2_b": nrm(next(keys), (EMBED,)),
        })
    return params


if __name__ == "__main__":
    key = jax.random.PRNGKey(0)
    k_x, k_p = jax.random.split(key)
    batch = 8
    x = jax.random.normal(k_x, (batch, IN_CH, IMG, IMG), jnp.float32)
    params = init_params(k_p)

    fwd = jax.jit(spectrogram_vit_forward)
    logits = fwd(x, params)
    jax.block_until_ready(logits)

    assert logits.shape == (batch, NUM_CLASSES), logits.shape
    assert jnp.all(jnp.isfinite(logits))
    print("KERNEL_OK")
</pallas_src>

<mosaic_0001>
module attributes {stable_mosaic.version = 11 : i64} {
  func.func @_vit_kernel(%arg0: i32, %arg1: memref<4x16x192xf32, #tpu.memory_space<vmem>>, %arg2: memref<96x96xf32, #tpu.memory_space<vmem>>, %arg3: memref<192x32xf32, #tpu.memory_space<vmem>>, %arg4: memref<24x32xf32, #tpu.memory_space<vmem>>, %arg5: memref<2x32x96xf32, #tpu.memory_space<vmem>>, %arg6: memref<2x32x32xf32, #tpu.memory_space<vmem>>, %arg7: memref<2x32x128xf32, #tpu.memory_space<vmem>>, %arg8: memref<2x128x32xf32, #tpu.memory_space<vmem>>, %arg9: memref<32x8xf32, #tpu.memory_space<vmem>>, %arg10: memref<9x128xf32, #tpu.memory_space<vmem>>, %arg11: memref<1x4x24x8xf32, #tpu.memory_space<vmem>>, %arg12: memref<4x24x32xf32, #tpu.memory_space<vmem>>) attributes {dimension_semantics = [#tpu.dimension_semantics<parallel>], iteration_bounds = array<i64: 2>, scalar_prefetch = 0 : i64, scratch_operands = 1 : i64, tpu.core_type = #tpu.core_type<tc>, window_params = [{transform_indices = @transform_0, window_bounds = array<i64: 4, 16, 192>}, {pipeline_mode = #tpu.pipeline_mode<synchronous>, transform_indices = @transform_1, window_bounds = array<i64: 96, 96>}, {pipeline_mode = #tpu.pipeline_mode<synchronous>, transform_indices = @transform_2, window_bounds = array<i64: 192, 32>}, {pipeline_mode = #tpu.pipeline_mode<synchronous>, transform_indices = @transform_3, window_bounds = array<i64: 24, 32>}, {pipeline_mode = #tpu.pipeline_mode<synchronous>, transform_indices = @transform_4, window_bounds = array<i64: 2, 32, 96>}, {pipeline_mode = #tpu.pipeline_mode<synchronous>, transform_indices = @transform_5, window_bounds = array<i64: 2, 32, 32>}, {pipeline_mode = #tpu.pipeline_mode<synchronous>, transform_indices = @transform_6, window_bounds = array<i64: 2, 32, 128>}, {pipeline_mode = #tpu.pipeline_mode<synchronous>, transform_indices = @transform_7, window_bounds = array<i64: 2, 128, 32>}, {pipeline_mode = #tpu.pipeline_mode<synchronous>, transform_indices = @transform_8, window_bounds = array<i64: 32, 8>}, {pipeline_mode = #tpu.pipeline_mode<synchronous>, transform_indices = @transform_9, window_bounds = array<i64: 9, 128>}, {transform_indices = @transform_10, window_bounds = array<i64: 1, 4, 24, 8>}]} {
    %c0 = arith.constant 0 : index
    %c0_0 = arith.constant 0 : index
    %c0_1 = arith.constant 0 : index
    %0 = vector.load %arg1[%c0, %c0_0, %c0_1] : memref<4x16x192xf32, #tpu.memory_space<vmem>>, vector<4x16x192xf32>
    %1 = vector.shape_cast %0 : vector<4x16x192xf32> to vector<64x192xf32>
    %c0_2 = arith.constant 0 : index
    %c0_3 = arith.constant 0 : index
    %2 = vector.load %arg3[%c0_2, %c0_3] : memref<192x32xf32, #tpu.memory_space<vmem>>, vector<192x32xf32>
    %cst = arith.constant dense<0.000000e+00> : vector<64x32xf32>
    %3 = tpu.matmul %1, %2, %cst {dimension_numbers = #tpu.dot_dimension_numbers<[1], [0], [0], [1], [0, 0, 1, 1], [], []>} : vector<64x192xf32>, vector<192x32xf32>, vector<64x32xf32> -> vector<64x32xf32>
    %4 = vector.shape_cast %3 : vector<64x32xf32> to vector<4x16x32xf32>
    %c0_4 = arith.constant 0 : index
    %c0_5 = arith.constant 0 : index
    %5 = vector.load %arg4[%c0_4, %c0_5] : memref<24x32xf32, #tpu.memory_space<vmem>>, vector<24x32xf32>
    %6 = vector.extract_strided_slice %5 {offsets = [0, 0], sizes = [16, 32], strides = [1, 1]} : vector<24x32xf32> to vector<16x32xf32>
    %7 = vector.shape_cast %6 : vector<16x32xf32> to vector<1x16x32xf32>
    %8 = vector.broadcast %7 : vector<1x16x32xf32> to vector<4x16x32xf32>
    %9 = arith.addf %4, %8 : vector<4x16x32xf32>
    %c0_6 = arith.constant 0 : index
    %c0_7 = arith.constant 0 : index
    %c0_8 = arith.constant 0 : index
    %10 = vector.load %arg12[%c0_6, %c0_7, %c0_8] : memref<4x24x32xf32, #tpu.memory_space<vmem>>, vector<4x16x32xf32>
    tpu.vector_store %arg12[%c0_6, %c0_7, %c0_8], %9 {strides = array<i32>} : memref<4x24x32xf32, #tpu.memory_space<vmem>>, vector<4x16x32xf32>,
    %11 = vector.extract_strided_slice %5 {offsets = [16, 0], sizes = [8, 32], strides = [1, 1]} : vector<24x32xf32> to vector<8x32xf32>
    %12 = vector.shape_cast %11 : vector<8x32xf32> to vector<1x8x32xf32>
    %13 = vector.broadcast %12 : vector<1x8x32xf32> to vector<4x8x32xf32>
    %c0_9 = arith.constant 0 : index
    %c16 = arith.constant 16 : index
    %c0_10 = arith.constant 0 : index
    %14 = vector.load %arg12[%c0_9, %c16, %c0_10] : memref<4x24x32xf32, #tpu.memory_space<vmem>>, vector<4x8x32xf32>
    tpu.vector_store %arg12[%c0_9, %c16, %c0_10], %13 {strides = array<i32>} : memref<4x24x32xf32, #tpu.memory_space<vmem>>, vector<4x8x32xf32>,
    %c0_11 = arith.constant 0 : index
    %c0_12 = arith.constant 0 : index
    %c0_13 = arith.constant 0 : index
    %15 = vector.load %arg12[%c0_11, %c0_12, %c0_13] : memref<4x24x32xf32, #tpu.memory_space<vmem>>, vector<4x24x32xf32>
    %16 = vector.shape_cast %15 : vector<4x24x32xf32> to vector<96x32xf32>
    %c0_14 = arith.constant 0 : index
    %c0_15 = arith.constant 0 : index
    %17 = vector.load %arg2[%c0_14, %c0_15] : memref<96x96xf32, #tpu.memory_space<vmem>>, vector<96x96xf32>
    %c0_16 = arith.constant 0 : index
    %c0_17 = arith.constant 0 : index
    %18 = vector.load %arg10[%c0_16, %c0_17] : memref<9x128xf32, #tpu.memory_space<vmem>>, vector<1x32xf32>
    %c0_18 = arith.constant 0 : index
    %c32 = arith.constant 32 : index
    %19 = vector.load %arg10[%c0_18, %c32] : memref<9x128xf32, #tpu.memory_space<vmem>>, vector<1x32xf32>
    %c0_19 = arith.constant 0 : index
    %c64 = arith.constant 64 : index
    %20 = vector.load %arg10[%c0_19, %c64] : memref<9x128xf32, #tpu.memory_space<vmem>>, vector<1x32xf32>
    %c0_20 = arith.constant 0 : index
    %c96 = arith.constant 96 : index
    %21 = vector.load %arg10[%c0_20, %c96] : memref<9x128xf32, #tpu.memory_space<vmem>>, vector<1x32xf32>
    %c1 = arith.constant 1 : index
    %c0_21 = arith.constant 0 : index
    %22 = vector.load %arg10[%c1, %c0_21] : memref<9x128xf32, #tpu.memory_space<vmem>>, vector<1x96xf32>
    %c1_22 = arith.constant 1 : index
    %c96_23 = arith.constant 96 : index
    %23 = vector.load %arg10[%c1_22, %c96_23] : memref<9x128xf32, #tpu.memory_space<vmem>>, vector<1x32xf32>
    %c2 = arith.constant 2 : index
    %c0_24 = arith.constant 0 : index
    %24 = vector.load %arg10[%c2, %c0_24] : memref<9x128xf32, #tpu.memory_space<vmem>>, vector<1x128xf32>
    %c3 = arith.constant 3 : index
    %c0_25 = arith.constant 0 : index
    %25 = vector.load %arg10[%c3, %c0_25] : memref<9x128xf32, #tpu.memory_space<vmem>>, vector<1x32xf32>
    %cst_26 = arith.constant dense<0.000000e+00> : vector<96xf32>
    %26 = vector.multi_reduction <add>, %16, %cst_26 [1] : vector<96x32xf32> to vector<96xf32>
    %27 = vector.shape_cast %26 : vector<96xf32> to vector<96x1xf32>
    %cst_27 = arith.constant 3.200000e+01 : f32
    %28 = vector.broadcast %cst_27 : f32 to vector<96x1xf32>
    %29 = arith.divf %27, %28 : vector<96x1xf32>
    %30 = vector.broadcast %29 : vector<96x1xf32> to vector<96x32xf32>
    %31 = arith.subf %16, %30 : vector<96x32xf32>
    %32 = arith.mulf %31, %31 : vector<96x32xf32>
    %cst_28 = arith.constant dense<0.000000e+00> : vector<96xf32>
    %33 = vector.multi_reduction <add>, %32, %cst_28 [1] : vector<96x32xf32> to vector<96xf32>
    %34 = vector.shape_cast %33 : vector<96xf32> to vector<96x1xf32>
    %cst_29 = arith.constant 3.200000e+01 : f32
    %35 = vector.broadcast %cst_29 : f32 to vector<96x1xf32>
    %36 = arith.divf %34, %35 : vector<96x1xf32>
    %37 = vector.broadcast %29 : vector<96x1xf32> to vector<96x32xf32>
    %38 = arith.subf %16, %37 : vector<96x32xf32>
    %cst_30 = arith.constant 9.99999997E-7 : f32
    %39 = vector.broadcast %cst_30 : f32 to vector<96x1xf32>
    %40 = arith.addf %36, %39 : vector<96x1xf32>
    %41 = math.rsqrt %40 : vector<96x1xf32>
    %42 = vector.broadcast %41 : vector<96x1xf32> to vector<96x32xf32>
    %43 = arith.mulf %38, %42 : vector<96x32xf32>
    %44 = vector.broadcast %18 : vector<1x32xf32> to vector<96x32xf32>
    %45 = arith.mulf %43, %44 : vector<96x32xf32>
    %46 = vector.broadcast %19 : vector<1x32xf32> to vector<96x32xf32>
    %47 = arith.addf %45, %46 : vector<96x32xf32>
    %c0_31 = arith.constant 0 : index
    %c0_32 = arith.constant 0 : index
    %c0_33 = arith.constant 0 : index
    %48 = vector.load %arg5[%c0_31, %c0_32, %c0_33] : memref<2x32x96xf32, #tpu.memory_space<vmem>>, vector<1x32x96xf32>
    %49 = vector.shape_cast %48 : vector<1x32x96xf32> to vector<32x96xf32>
    %cst_34 = arith.constant dense<0.000000e+00> : vector<96x96xf32>
    %50 = tpu.matmul %47, %49, %cst_34 {dimension_numbers = #tpu.dot_dimension_numbers<[1], [0], [0], [1], [0, 0, 1, 1], [], []>} : vector<96x32xf32>, vector<32x96xf32>, vector<96x96xf32> -> vector<96x96xf32>
    %51 = vector.broadcast %22 : vector<1x96xf32> to vector<96x96xf32>
    %52 = arith.addf %50, %51 : vector<96x96xf32>
    %53 = vector.extract_strided_slice %52 {offsets = [0, 0], sizes = [96, 8], strides = [1, 1]} : vector<96x96xf32> to vector<96x8xf32>
    %54 = vector.extract_strided_slice %52 {offsets = [0, 32], sizes = [96, 8], strides = [1, 1]} : vector<96x96xf32> to vector<96x8xf32>
    %55 = vector.extract_strided_slice %52 {offsets = [0, 64], sizes = [96, 8], strides = [1, 1]} : vector<96x96xf32> to vector<96x8xf32>
    %cst_35 = arith.constant 0.353553385 : f32
    %56 = vector.broadcast %cst_35 : f32 to vector<96x8xf32>
    %57 = arith.mulf %53, %56 : vector<96x8xf32>
    %cst_36 = arith.constant dense<0.000000e+00> : vector<96x96xf32>
    %58 = tpu.matmul %57, %54, %cst_36 {dimension_numbers = #tpu.dot_dimension_numbers<[1], [1], [0], [0], [0, 0, 1, 0], [], []>} : vector<96x8xf32>, vector<96x8xf32>, vector<96x96xf32> -> vector<96x96xf32>
    %59 = arith.addf %58, %17 : vector<96x96xf32>
    %cst_37 = arith.constant dense<0xFF800000> : vector<96xf32>
    %60 = vector.multi_reduction <maximumf>, %59, %cst_37 [1] : vector<96x96xf32> to vector<96xf32>
    %61 = vector.shape_cast %60 : vector<96xf32> to vector<96x1xf32>
    %62 = vector.broadcast %61 : vector<96x1xf32> to vector<96x96xf32>
    %63 = arith.subf %59, %62 : vector<96x96xf32>
    %64 = math.exp %63 : vector<96x96xf32>
    %cst_38 = arith.constant dense<0.000000e+00> : vector<96xf32>
    %65 = vector.multi_reduction <add>, %64, %cst_38 [1] : vector<96x96xf32> to vector<96xf32>
    %66 = vector.shape_cast %65 : vector<96xf32> to vector<96x1xf32>
    %67 = vector.broadcast %66 : vector<96x1xf32> to vector<96x96xf32>
    %68 = arith.divf %64, %67 : vector<96x96xf32>
    %cst_39 = arith.constant dense<0.000000e+00> : vector<96x8xf32>
    %69 = tpu.matmul %68, %55, %cst_39 {dimension_numbers = #tpu.dot_dimension_numbers<[1], [0], [0], [1], [0, 0, 1, 1], [], []>} : vector<96x96xf32>, vector<96x8xf32>, vector<96x8xf32> -> vector<96x8xf32>
    %70 = vector.extract_strided_slice %52 {offsets = [0, 8], sizes = [96, 8], strides = [1, 1]} : vector<96x96xf32> to vector<96x8xf32>
    %71 = vector.extract_strided_slice %52 {offsets = [0, 40], sizes = [96, 8], strides = [1, 1]} : vector<96x96xf32> to vector<96x8xf32>
    %72 = vector.extract_strided_slice %52 {offsets = [0, 72], sizes = [96, 8], strides = [1, 1]} : vector<96x96xf32> to vector<96x8xf32>
    %cst_40 = arith.constant 0.353553385 : f32
    %73 = vector.broadcast %cst_40 : f32 to vector<96x8xf32>
    %74 = arith.mulf %70, %73 : vector<96x8xf32>
    %cst_41 = arith.constant dense<0.000000e+00> : vector<96x96xf32>
    %75 = tpu.matmul %74, %71, %cst_41 {dimension_numbers = #tpu.dot_dimension_numbers<[1], [1], [0], [0], [0, 0, 1, 0], [], []>} : vector<96x8xf32>, vector<96x8xf32>, vector<96x96xf32> -> vector<96x96xf32>
    %76 = arith.addf %75, %17 : vector<96x96xf32>
    %cst_42 = arith.constant dense<0xFF800000> : vector<96xf32>
    %77 = vector.multi_reduction <maximumf>, %76, %cst_42 [1] : vector<96x96xf32> to vector<96xf32>
    %78 = vector.shape_cast %77 : vector<96xf32> to vector<96x1xf32>
    %79 = vector.broadcast %78 : vector<96x1xf32> to vector<96x96xf32>
    %80 = arith.subf %76, %79 : vector<96x96xf32>
    %81 = math.exp %80 : vector<96x96xf32>
    %cst_43 = arith.constant dense<0.000000e+00> : vector<96xf32>
    %82 = vector.multi_reduction <add>, %81, %cst_43 [1] : vector<96x96xf32> to vector<96xf32>
    %83 = vector.shape_cast %82 : vector<96xf32> to vector<96x1xf32>
    %84 = vector.broadcast %83 : vector<96x1xf32> to vector<96x96xf32>
    %85 = arith.divf %81, %84 : vector<96x96xf32>
    %cst_44 = arith.constant dense<0.000000e+00> : vector<96x8xf32>
    %86 = tpu.matmul %85, %72, %cst_44 {dimension_numbers = #tpu.dot_dimension_numbers<[1], [0], [0], [1], [0, 0, 1, 1], [], []>} : vector<96x96xf32>, vector<96x8xf32>, vector<96x8xf32> -> vector<96x8xf32>
    %87 = vector.extract_strided_slice %52 {offsets = [0, 16], sizes = [96, 8], strides = [1, 1]} : vector<96x96xf32> to vector<96x8xf32>
    %88 = vector.extract_strided_slice %52 {offsets = [0, 48], sizes = [96, 8], strides = [1, 1]} : vector<96x96xf32> to vector<96x8xf32>
    %89 = vector.extract_strided_slice %52 {offsets = [0, 80], sizes = [96, 8], strides = [1, 1]} : vector<96x96xf32> to vector<96x8xf32>
    %cst_45 = arith.constant 0.353553385 : f32
    %90 = vector.broadcast %cst_45 : f32 to vector<96x8xf32>
    %91 = arith.mulf %87, %90 : vector<96x8xf32>
    %cst_46 = arith.constant dense<0.000000e+00> : vector<96x96xf32>
    %92 = tpu.matmul %91, %88, %cst_46 {dimension_numbers = #tpu.dot_dimension_numbers<[1], [1], [0], [0], [0, 0, 1, 0], [], []>} : vector<96x8xf32>, vector<96x8xf32>, vector<96x96xf32> -> vector<96x96xf32>
    %93 = arith.addf %92, %17 : vector<96x96xf32>
    %cst_47 = arith.constant dense<0xFF800000> : vector<96xf32>
    %94 = vector.multi_reduction <maximumf>, %93, %cst_47 [1] : vector<96x96xf32> to vector<96xf32>
    %95 = vector.shape_cast %94 : vector<96xf32> to vector<96x1xf32>
    %96 = vector.broadcast %95 : vector<96x1xf32> to vector<96x96xf32>
    %97 = arith.subf %93, %96 : vector<96x96xf32>
    %98 = math.exp %97 : vector<96x96xf32>
    %cst_48 = arith.constant dense<0.000000e+00> : vector<96xf32>
    %99 = vector.multi_reduction <add>, %98, %cst_48 [1] : vector<96x96xf32> to vector<96xf32>
    %100 = vector.shape_cast %99 : vector<96xf32> to vector<96x1xf32>
    %101 = vector.broadcast %100 : vector<96x1xf32> to vector<96x96xf32>
    %102 = arith.divf %98, %101 : vector<96x96xf32>
    %cst_49 = arith.constant dense<0.000000e+00> : vector<96x8xf32>
    %103 = tpu.matmul %102, %89, %cst_49 {dimension_numbers = #tpu.dot_dimension_numbers<[1], [0], [0], [1], [0, 0, 1, 1], [], []>} : vector<96x96xf32>, vector<96x8xf32>, vector<96x8xf32> -> vector<96x8xf32>
    %104 = vector.extract_strided_slice %52 {offsets = [0, 24], sizes = [96, 8], strides = [1, 1]} : vector<96x96xf32> to vector<96x8xf32>
    %105 = vector.extract_strided_slice %52 {offsets = [0, 56], sizes = [96, 8], strides = [1, 1]} : vector<96x96xf32> to vector<96x8xf32>
    %106 = vector.extract_strided_slice %52 {offsets = [0, 88], sizes = [96, 8], strides = [1, 1]} : vector<96x96xf32> to vector<96x8xf32>
    %cst_50 = arith.constant 0.353553385 : f32
    %107 = vector.broadcast %cst_50 : f32 to vector<96x8xf32>
    %108 = arith.mulf %104, %107 : vector<96x8xf32>
    %cst_51 = arith.constant dense<0.000000e+00> : vector<96x96xf32>
    %109 = tpu.matmul %108, %105, %cst_51 {dimension_numbers = #tpu.dot_dimension_numbers<[1], [1], [0], [0], [0, 0, 1, 0], [], []>} : vector<96x8xf32>, vector<96x8xf32>, vector<96x96xf32> -> vector<96x96xf32>
    %110 = arith.addf %109, %17 : vector<96x96xf32>
    %cst_52 = arith.constant dense<0xFF800000> : vector<96xf32>
    %111 = vector.multi_reduction <maximumf>, %110, %cst_52 [1] : vector<96x96xf32> to vector<96xf32>
    %112 = vector.shape_cast %111 : vector<96xf32> to vector<96x1xf32>
    %113 = vector.broadcast %112 : vector<96x1xf32> to vector<96x96xf32>
    %114 = arith.subf %110, %113 : vector<96x96xf32>
    %115 = math.exp %114 : vector<96x96xf32>
    %cst_53 = arith.constant dense<0.000000e+00> : vector<96xf32>
    %116 = vector.multi_reduction <add>, %115, %cst_53 [1] : vector<96x96xf32> to vector<96xf32>
    %117 = vector.shape_cast %116 : vector<96xf32> to vector<96x1xf32>
    %118 = vector.broadcast %117 : vector<96x1xf32> to vector<96x96xf32>
    %119 = arith.divf %115, %118 : vector<96x96xf32>
    %cst_54 = arith.constant dense<0.000000e+00> : vector<96x8xf32>
    %120 = tpu.matmul %119, %106, %cst_54 {dimension_numbers = #tpu.dot_dimension_numbers<[1], [0], [0], [1], [0, 0, 1, 1], [], []>} : vector<96x96xf32>, vector<96x8xf32>, vector<96x8xf32> -> vector<96x8xf32>
    %121 = tpu.concatenate %69, %86, %103, %120 in 1 : vector<96x8xf32>, vector<96x8xf32>, vector<96x8xf32>, vector<96x8xf32> -> vector<96x32xf32>
    %c0_55 = arith.constant 0 : index
    %c0_56 = arith.constant 0 : index
    %c0_57 = arith.constant 0 : index
    %122 = vector.load %arg6[%c0_55, %c0_56, %c0_57] : memref<2x32x32xf32, #tpu.memory_space<vmem>>, vector<1x32x32xf32>
    %123 = vector.shape_cast %122 : vector<1x32x32xf32> to vector<32x32xf32>
    %cst_58 = arith.constant dense<0.000000e+00> : vector<96x32xf32>
    %124 = tpu.matmul %121, %123, %cst_58 {dimension_numbers = #tpu.dot_dimension_numbers<[1], [0], [0], [1], [0, 0, 1, 1], [], []>} : vector<96x32xf32>, vector<32x32xf32>, vector<96x32xf32> -> vector<96x32xf32>
    %125 = arith.addf %16, %124 : vector<96x32xf32>
    %126 = vector.broadcast %23 : vector<1x32xf32> to vector<96x32xf32>
    %127 = arith.addf %125, %126 : vector<96x32xf32>
    %cst_59 = arith.constant dense<0.000000e+00> : vector<96xf32>
    %128 = vector.multi_reduction <add>, %127, %cst_59 [1] : vector<96x32xf32> to vector<96xf32>
    %129 = vector.shape_cast %128 : vector<96xf32> to vector<96x1xf32>
    %cst_60 = arith.constant 3.200000e+01 : f32
    %130 = vector.broadcast %cst_60 : f32 to vector<96x1xf32>
    %131 = arith.divf %129, %130 : vector<96x1xf32>
    %132 = vector.broadcast %131 : vector<96x1xf32> to vector<96x32xf32>
    %133 = arith.subf %127, %132 : vector<96x32xf32>
    %134 = arith.mulf %133, %133 : vector<96x32xf32>
    %cst_61 = arith.constant dense<0.000000e+00> : vector<96xf32>
    %135 = vector.multi_reduction <add>, %134, %cst_61 [1] : vector<96x32xf32> to vector<96xf32>
    %136 = vector.shape_cast %135 : vector<96xf32> to vector<96x1xf32>
    %cst_62 = arith.constant 3.200000e+01 : f32
    %137 = vector.broadcast %cst_62 : f32 to vector<96x1xf32>
    %138 = arith.divf %136, %137 : vector<96x1xf32>
    %139 = vector.broadcast %131 : vector<96x1xf32> to vector<96x32xf32>
    %140 = arith.subf %127, %139 : vector<96x32xf32>
    %cst_63 = arith.constant 9.99999997E-7 : f32
    %141 = vector.broadcast %cst_63 : f32 to vector<96x1xf32>
    %142 = arith.addf %138, %141 : vector<96x1xf32>
    %143 = math.rsqrt %142 : vector<96x1xf32>
    %144 = vector.broadcast %143 : vector<96x1xf32> to vector<96x32xf32>
    %145 = arith.mulf %140, %144 : vector<96x32xf32>
    %146 = vector.broadcast %20 : vector<1x32xf32> to vector<96x32xf32>
    %147 = arith.mulf %145, %146 : vector<96x32xf32>
    %148 = vector.broadcast %21 : vector<1x32xf32> to vector<96x32xf32>
    %149 = arith.addf %147, %148 : vector<96x32xf32>
    %c0_64 = arith.constant 0 : index
    %c0_65 = arith.constant 0 : index
    %c0_66 = arith.constant 0 : index
    %150 = vector.load %arg7[%c0_64, %c0_65, %c0_66] : memref<2x32x128xf32, #tpu.memory_space<vmem>>, vector<1x32x128xf32>
    %151 = vector.shape_cast %150 : vector<1x32x128xf32> to vector<32x128xf32>
    %cst_67 = arith.constant dense<0.000000e+00> : vector<96x128xf32>
    %152 = tpu.matmul %149, %151, %cst_67 {dimension_numbers = #tpu.dot_dimension_numbers<[1], [0], [0], [1], [0, 0, 1, 1], [], []>} : vector<96x32xf32>, vector<32x128xf32>, vector<96x128xf32> -> vector<96x128xf32>
    %153 = vector.broadcast %24 : vector<1x128xf32> to vector<96x128xf32>
    %154 = arith.addf %152, %153 : vector<96x128xf32>
    %cst_68 = arith.constant 5.000000e-01 : f32
    %155 = vector.broadcast %cst_68 : f32 to vector<96x128xf32>
    %156 = arith.mulf %155, %154 : vector<96x128xf32>
    %cst_69 = arith.constant 0.707106769 : f32
    %157 = vector.broadcast %cst_69 : f32 to vector<96x128xf32>
    %158 = arith.mulf %154, %157 : vector<96x128xf32>
    %159 = math.erf %158 : vector<96x128xf32>
    %cst_70 = arith.constant 1.000000e+00 : f32
    %160 = vector.broadcast %cst_70 : f32 to vector<96x128xf32>
    %161 = arith.addf %160, %159 : vector<96x128xf32>
    %162 = arith.mulf %156, %161 : vector<96x128xf32>
    %c0_71 = arith.constant 0 : index
    %c0_72 = arith.constant 0 : index
    %c0_73 = arith.constant 0 : index
    %163 = vector.load %arg8[%c0_71, %c0_72, %c0_73] : memref<2x128x32xf32, #tpu.memory_space<vmem>>, vector<1x128x32xf32>
    %164 = vector.shape_cast %163 : vector<1x128x32xf32> to vector<128x32xf32>
    %cst_74 = arith.constant dense<0.000000e+00> : vector<96x32xf32>
    %165 = tpu.matmul %162, %164, %cst_74 {dimension_numbers = #tpu.dot_dimension_numbers<[1], [0], [0], [1], [0, 0, 1, 1], [], []>} : vector<96x128xf32>, vector<128x32xf32>, vector<96x32xf32> -> vector<96x32xf32>
    %166 = arith.addf %127, %165 : vector<96x32xf32>
    %167 = vector.broadcast %25 : vector<1x32xf32> to vector<96x32xf32>
    %168 = arith.addf %166, %167 : vector<96x32xf32>
    %c4 = arith.constant 4 : index
    %c0_75 = arith.constant 0 : index
    %169 = vector.load %arg10[%c4, %c0_75] : memref<9x128xf32, #tpu.memory_space<vmem>>, vector<1x32xf32>
    %c4_76 = arith.constant 4 : index
    %c32_77 = arith.constant 32 : index
    %170 = vector.load %arg10[%c4_76, %c32_77] : memref<9x128xf32, #tpu.memory_space<vmem>>, vector<1x32xf32>
    %c4_78 = arith.constant 4 : index
    %c64_79 = arith.constant 64 : index
    %171 = vector.load %arg10[%c4_78, %c64_79] : memref<9x128xf32, #tpu.memory_space<vmem>>, vector<1x32xf32>
    %c4_80 = arith.constant 4 : index
    %c96_81 = arith.constant 96 : index
    %172 = vector.load %arg10[%c4_80, %c96_81] : memref<9x128xf32, #tpu.memory_space<vmem>>, vector<1x32xf32>
    %c5 = arith.constant 5 : index
    %c0_82 = arith.constant 0 : index
    %173 = vector.load %arg10[%c5, %c0_82] : memref<9x128xf32, #tpu.memory_space<vmem>>, vector<1x96xf32>
    %c5_83 = arith.constant 5 : index
    %c96_84 = arith.constant 96 : index
    %174 = vector.load %arg10[%c5_83, %c96_84] : memref<9x128xf32, #tpu.memory_space<vmem>>, vector<1x32xf32>
    %c6 = arith.constant 6 : index
    %c0_85 = arith.constant 0 : index
    %175 = vector.load %arg10[%c6, %c0_85] : memref<9x128xf32, #tpu.memory_space<vmem>>, vector<1x128xf32>
    %c7 = arith.constant 7 : index
    %c0_86 = arith.constant 0 : index
    %176 = vector.load %arg10[%c7, %c0_86] : memref<9x128xf32, #tpu.memory_space<vmem>>, vector<1x32xf32>
    %cst_87 = arith.constant dense<0.000000e+00> : vector<96xf32>
    %177 = vector.multi_reduction <add>, %168, %cst_87 [1] : vector<96x32xf32> to vector<96xf32>
    %178 = vector.shape_cast %177 : vector<96xf32> to vector<96x1xf32>
    %cst_88 = arith.constant 3.200000e+01 : f32
    %179 = vector.broadcast %cst_88 : f32 to vector<96x1xf32>
    %180 = arith.divf %178, %179 : vector<96x1xf32>
    %181 = vector.broadcast %180 : vector<96x1xf32> to vector<96x32xf32>
    %182 = arith.subf %168, %181 : vector<96x32xf32>
    %183 = arith.mulf %182, %182 : vector<96x32xf32>
    %cst_89 = arith.constant dense<0.000000e+00> : vector<96xf32>
    %184 = vector.multi_reduction <add>, %183, %cst_89 [1] : vector<96x32xf32> to vector<96xf32>
    %185 = vector.shape_cast %184 : vector<96xf32> to vector<96x1xf32>
    %cst_90 = arith.constant 3.200000e+01 : f32
    %186 = vector.broadcast %cst_90 : f32 to vector<96x1xf32>
    %187 = arith.divf %185, %186 : vector<96x1xf32>
    %188 = vector.broadcast %180 : vector<96x1xf32> to vector<96x32xf32>
    %189 = arith.subf %168, %188 : vector<96x32xf32>
    %cst_91 = arith.constant 9.99999997E-7 : f32
    %190 = vector.broadcast %cst_91 : f32 to vector<96x1xf32>
    %191 = arith.addf %187, %190 : vector<96x1xf32>
    %192 = math.rsqrt %191 : vector<96x1xf32>
    %193 = vector.broadcast %192 : vector<96x1xf32> to vector<96x32xf32>
    %194 = arith.mulf %189, %193 : vector<96x32xf32>
    %195 = vector.broadcast %169 : vector<1x32xf32> to vector<96x32xf32>
    %196 = arith.mulf %194, %195 : vector<96x32xf32>
    %197 = vector.broadcast %170 : vector<1x32xf32> to vector<96x32xf32>
    %198 = arith.addf %196, %197 : vector<96x32xf32>
    %c1_92 = arith.constant 1 : index
    %c0_93 = arith.constant 0 : index
    %c0_94 = arith.constant 0 : index
    %199 = vector.load %arg5[%c1_92, %c0_93, %c0_94] : memref<2x32x96xf32, #tpu.memory_space<vmem>>, vector<1x32x96xf32>
    %200 = vector.shape_cast %199 : vector<1x32x96xf32> to vector<32x96xf32>
    %cst_95 = arith.constant dense<0.000000e+00> : vector<96x96xf32>
    %201 = tpu.matmul %198, %200, %cst_95 {dimension_numbers = #tpu.dot_dimension_numbers<[1], [0], [0], [1], [0, 0, 1, 1], [], []>} : vector<96x32xf32>, vector<32x96xf32>, vector<96x96xf32> -> vector<96x96xf32>
    %202 = vector.broadcast %173 : vector<1x96xf32> to vector<96x96xf32>
    %203 = arith.addf %201, %202 : vector<96x96xf32>
    %204 = vector.extract_strided_slice %203 {offsets = [0, 0], sizes = [96, 8], strides = [1, 1]} : vector<96x96xf32> to vector<96x8xf32>
    %205 = vector.extract_strided_slice %203 {offsets = [0, 32], sizes = [96, 8], strides = [1, 1]} : vector<96x96xf32> to vector<96x8xf32>
    %206 = vector.extract_strided_slice %203 {offsets = [0, 64], sizes = [96, 8], strides = [1, 1]} : vector<96x96xf32> to vector<96x8xf32>
    %cst_96 = arith.constant 0.353553385 : f32
    %207 = vector.broadcast %cst_96 : f32 to vector<96x8xf32>
    %208 = arith.mulf %204, %207 : vector<96x8xf32>
    %cst_97 = arith.constant dense<0.000000e+00> : vector<96x96xf32>
    %209 = tpu.matmul %208, %205, %cst_97 {dimension_numbers = #tpu.dot_dimension_numbers<[1], [1], [0], [0], [0, 0, 1, 0], [], []>} : vector<96x8xf32>, vector<96x8xf32>, vector<96x96xf32> -> vector<96x96xf32>
    %210 = arith.addf %209, %17 : vector<96x96xf32>
    %cst_98 = arith.constant dense<0xFF800000> : vector<96xf32>
    %211 = vector.multi_reduction <maximumf>, %210, %cst_98 [1] : vector<96x96xf32> to vector<96xf32>
    %212 = vector.shape_cast %211 : vector<96xf32> to vector<96x1xf32>
    %213 = vector.broadcast %212 : vector<96x1xf32> to vector<96x96xf32>
    %214 = arith.subf %210, %213 : vector<96x96xf32>
    %215 = math.exp %214 : vector<96x96xf32>
    %cst_99 = arith.constant dense<0.000000e+00> : vector<96xf32>
    %216 = vector.multi_reduction <add>, %215, %cst_99 [1] : vector<96x96xf32> to vector<96xf32>
    %217 = vector.shape_cast %216 : vector<96xf32> to vector<96x1xf32>
    %218 = vector.broadcast %217 : vector<96x1xf32> to vector<96x96xf32>
    %219 = arith.divf %215, %218 : vector<96x96xf32>
    %cst_100 = arith.constant dense<0.000000e+00> : vector<96x8xf32>
    %220 = tpu.matmul %219, %206, %cst_100 {dimension_numbers = #tpu.dot_dimension_numbers<[1], [0], [0], [1], [0, 0, 1, 1], [], []>} : vector<96x96xf32>, vector<96x8xf32>, vector<96x8xf32> -> vector<96x8xf32>
    %221 = vector.extract_strided_slice %203 {offsets = [0, 8], sizes = [96, 8], strides = [1, 1]} : vector<96x96xf32> to vector<96x8xf32>
    %222 = vector.extract_strided_slice %203 {offsets = [0, 40], sizes = [96, 8], strides = [1, 1]} : vector<96x96xf32> to vector<96x8xf32>
    %223 = vector.extract_strided_slice %203 {offsets = [0, 72], sizes = [96, 8], strides = [1, 1]} : vector<96x96xf32> to vector<96x8xf32>
    %cst_101 = arith.constant 0.353553385 : f32
    %224 = vector.broadcast %cst_101 : f32 to vector<96x8xf32>
    %225 = arith.mulf %221, %224 : vector<96x8xf32>
    %cst_102 = arith.constant dense<0.000000e+00> : vector<96x96xf32>
    %226 = tpu.matmul %225, %222, %cst_102 {dimension_numbers = #tpu.dot_dimension_numbers<[1], [1], [0], [0], [0, 0, 1, 0], [], []>} : vector<96x8xf32>, vector<96x8xf32>, vector<96x96xf32> -> vector<96x96xf32>
    %227 = arith.addf %226, %17 : vector<96x96xf32>
    %cst_103 = arith.constant dense<0xFF800000> : vector<96xf32>
    %228 = vector.multi_reduction <maximumf>, %227, %cst_103 [1] : vector<96x96xf32> to vector<96xf32>
    %229 = vector.shape_cast %228 : vector<96xf32> to vector<96x1xf32>
    %230 = vector.broadcast %229 : vector<96x1xf32> to vector<96x96xf32>
    %231 = arith.subf %227, %230 : vector<96x96xf32>
    %232 = math.exp %231 : vector<96x96xf32>
    %cst_104 = arith.constant dense<0.000000e+00> : vector<96xf32>
    %233 = vector.multi_reduction <add>, %232, %cst_104 [1] : vector<96x96xf32> to vector<96xf32>
    %234 = vector.shape_cast %233 : vector<96xf32> to vector<96x1xf32>
    %235 = vector.broadcast %234 : vector<96x1xf32> to vector<96x96xf32>
    %236 = arith.divf %232, %235 : vector<96x96xf32>
    %cst_105 = arith.constant dense<0.000000e+00> : vector<96x8xf32>
    %237 = tpu.matmul %236, %223, %cst_105 {dimension_numbers = #tpu.dot_dimension_numbers<[1], [0], [0], [1], [0, 0, 1, 1], [], []>} : vector<96x96xf32>, vector<96x8xf32>, vector<96x8xf32> -> vector<96x8xf32>
    %238 = vector.extract_strided_slice %203 {offsets = [0, 16], sizes = [96, 8], strides = [1, 1]} : vector<96x96xf32> to vector<96x8xf32>
    %239 = vector.extract_strided_slice %203 {offsets = [0, 48], sizes = [96, 8], strides = [1, 1]} : vector<96x96xf32> to vector<96x8xf32>
    %240 = vector.extract_strided_slice %203 {offsets = [0, 80], sizes = [96, 8], strides = [1, 1]} : vector<96x96xf32> to vector<96x8xf32>
    %cst_106 = arith.constant 0.353553385 : f32
    %241 = vector.broadcast %cst_106 : f32 to vector<96x8xf32>
    %242 = arith.mulf %238, %241 : vector<96x8xf32>
    %cst_107 = arith.constant dense<0.000000e+00> : vector<96x96xf32>
    %243 = tpu.matmul %242, %239, %cst_107 {dimension_numbers = #tpu.dot_dimension_numbers<[1], [1], [0], [0], [0, 0, 1, 0], [], []>} : vector<96x8xf32>, vector<96x8xf32>, vector<96x96xf32> -> vector<96x96xf32>
    %244 = arith.addf %243, %17 : vector<96x96xf32>
    %cst_108 = arith.constant dense<0xFF800000> : vector<96xf32>
    %245 = vector.multi_reduction <maximumf>, %244, %cst_108 [1] : vector<96x96xf32> to vector<96xf32>
    %246 = vector.shape_cast %245 : vector<96xf32> to vector<96x1xf32>
    %247 = vector.broadcast %246 : vector<96x1xf32> to vector<96x96xf32>
    %248 = arith.subf %244, %247 : vector<96x96xf32>
    %249 = math.exp %248 : vector<96x96xf32>
    %cst_109 = arith.constant dense<0.000000e+00> : vector<96xf32>
    %250 = vector.multi_reduction <add>, %249, %cst_109 [1] : vector<96x96xf32> to vector<96xf32>
    %251 = vector.shape_cast %250 : vector<96xf32> to vector<96x1xf32>
    %252 = vector.broadcast %251 : vector<96x1xf32> to vector<96x96xf32>
    %253 = arith.divf %249, %252 : vector<96x96xf32>
    %cst_110 = arith.constant dense<0.000000e+00> : vector<96x8xf32>
    %254 = tpu.matmul %253, %240, %cst_110 {dimension_numbers = #tpu.dot_dimension_numbers<[1], [0], [0], [1], [0, 0, 1, 1], [], []>} : vector<96x96xf32>, vector<96x8xf32>, vector<96x8xf32> -> vector<96x8xf32>
    %255 = vector.extract_strided_slice %203 {offsets = [0, 24], sizes = [96, 8], strides = [1, 1]} : vector<96x96xf32> to vector<96x8xf32>
    %256 = vector.extract_strided_slice %203 {offsets = [0, 56], sizes = [96, 8], strides = [1, 1]} : vector<96x96xf32> to vector<96x8xf32>
    %257 = vector.extract_strided_slice %203 {offsets = [0, 88], sizes = [96, 8], strides = [1, 1]} : vector<96x96xf32> to vector<96x8xf32>
    %cst_111 = arith.constant 0.353553385 : f32
    %258 = vector.broadcast %cst_111 : f32 to vector<96x8xf32>
    %259 = arith.mulf %255, %258 : vector<96x8xf32>
    %cst_112 = arith.constant dense<0.000000e+00> : vector<96x96xf32>
    %260 = tpu.matmul %259, %256, %cst_112 {dimension_numbers = #tpu.dot_dimension_numbers<[1], [1], [0], [0], [0, 0, 1, 0], [], []>} : vector<96x8xf32>, vector<96x8xf32>, vector<96x96xf32> -> vector<96x96xf32>
    %261 = arith.addf %260, %17 : vector<96x96xf32>
    %cst_113 = arith.constant dense<0xFF800000> : vector<96xf32>
    %262 = vector.multi_reduction <maximumf>, %261, %cst_113 [1] : vector<96x96xf32> to vector<96xf32>
    %263 = vector.shape_cast %262 : vector<96xf32> to vector<96x1xf32>
    %264 = vector.broadcast %263 : vector<96x1xf32> to vector<96x96xf32>
    %265 = arith.subf %261, %264 : vector<96x96xf32>
    %266 = math.exp %265 : vector<96x96xf32>
    %cst_114 = arith.constant dense<0.000000e+00> : vector<96xf32>
    %267 = vector.multi_reduction <add>, %266, %cst_114 [1] : vector<96x96xf32> to vector<96xf32>
    %268 = vector.shape_cast %267 : vector<96xf32> to vector<96x1xf32>
    %269 = vector.broadcast %268 : vector<96x1xf32> to vector<96x96xf32>
    %270 = arith.divf %266, %269 : vector<96x96xf32>
    %cst_115 = arith.constant dense<0.000000e+00> : vector<96x8xf32>
    %271 = tpu.matmul %270, %257, %cst_115 {dimension_numbers = #tpu.dot_dimension_numbers<[1], [0], [0], [1], [0, 0, 1, 1], [], []>} : vector<96x96xf32>, vector<96x8xf32>, vector<96x8xf32> -> vector<96x8xf32>
    %272 = tpu.concatenate %220, %237, %254, %271 in 1 : vector<96x8xf32>, vector<96x8xf32>, vector<96x8xf32>, vector<96x8xf32> -> vector<96x32xf32>
    %c1_116 = arith.constant 1 : index
    %c0_117 = arith.constant 0 : index
    %c0_118 = arith.constant 0 : index
    %273 = vector.load %arg6[%c1_116, %c0_117, %c0_118] : memref<2x32x32xf32, #tpu.memory_space<vmem>>, vector<1x32x32xf32>
    %274 = vector.shape_cast %273 : vector<1x32x32xf32> to vector<32x32xf32>
    %cst_119 = arith.constant dense<0.000000e+00> : vector<96x32xf32>
    %275 = tpu.matmul %272, %274, %cst_119 {dimension_numbers = #tpu.dot_dimension_numbers<[1], [0], [0], [1], [0, 0, 1, 1], [], []>} : vector<96x32xf32>, vector<32x32xf32>, vector<96x32xf32> -> vector<96x32xf32>
    %276 = arith.addf %168, %275 : vector<96x32xf32>
    %277 = vector.broadcast %174 : vector<1x32xf32> to vector<96x32xf32>
    %278 = arith.addf %276, %277 : vector<96x32xf32>
    %cst_120 = arith.constant dense<0.000000e+00> : vector<96xf32>
    %279 = vector.multi_reduction <add>, %278, %cst_120 [1] : vector<96x32xf32> to vector<96xf32>
    %280 = vector.shape_cast %279 : vector<96xf32> to vector<96x1xf32>
    %cst_121 = arith.constant 3.200000e+01 : f32
    %281 = vector.broadcast %cst_121 : f32 to vector<96x1xf32>
    %282 = arith.divf %280, %281 : vector<96x1xf32>
    %283 = vector.broadcast %282 : vector<96x1xf32> to vector<96x32xf32>
    %284 = arith.subf %278, %283 : vector<96x32xf32>
    %285 = arith.mulf %284, %284 : vector<96x32xf32>
    %cst_122 = arith.constant dense<0.000000e+00> : vector<96xf32>
    %286 = vector.multi_reduction <add>, %285, %cst_122 [1] : vector<96x32xf32> to vector<96xf32>
    %287 = vector.shape_cast %286 : vector<96xf32> to vector<96x1xf32>
    %cst_123 = arith.constant 3.200000e+01 : f32
    %288 = vector.broadcast %cst_123 : f32 to vector<96x1xf32>
    %289 = arith.divf %287, %288 : vector<96x1xf32>
    %290 = vector.broadcast %282 : vector<96x1xf32> to vector<96x32xf32>
    %291 = arith.subf %278, %290 : vector<96x32xf32>
    %cst_124 = arith.constant 9.99999997E-7 : f32
    %292 = vector.broadcast %cst_124 : f32 to vector<96x1xf32>
    %293 = arith.addf %289, %292 : vector<96x1xf32>
    %294 = math.rsqrt %293 : vector<96x1xf32>
    %295 = vector.broadcast %294 : vector<96x1xf32> to vector<96x32xf32>
    %296 = arith.mulf %291, %295 : vector<96x32xf32>
    %297 = vector.broadcast %171 : vector<1x32xf32> to vector<96x32xf32>
    %298 = arith.mulf %296, %297 : vector<96x32xf32>
    %299 = vector.broadcast %172 : vector<1x32xf32> to vector<96x32xf32>
    %300 = arith.addf %298, %299 : vector<96x32xf32>
    %c1_125 = arith.constant 1 : index
    %c0_126 = arith.constant 0 : index
    %c0_127 = arith.constant 0 : index
    %301 = vector.load %arg7[%c1_125, %c0_126, %c0_127] : memref<2x32x128xf32, #tpu.memory_space<vmem>>, vector<1x32x128xf32>
    %302 = vector.shape_cast %301 : vector<1x32x128xf32> to vector<32x128xf32>
    %cst_128 = arith.constant dense<0.000000e+00> : vector<96x128xf32>
    %303 = tpu.matmul %300, %302, %cst_128 {dimension_numbers = #tpu.dot_dimension_numbers<[1], [0], [0], [1], [0, 0, 1, 1], [], []>} : vector<96x32xf32>, vector<32x128xf32>, vector<96x128xf32> -> vector<96x128xf32>
    %304 = vector.broadcast %175 : vector<1x128xf32> to vector<96x128xf32>
    %305 = arith.addf %303, %304 : vector<96x128xf32>
    %cst_129 = arith.constant 5.000000e-01 : f32
    %306 = vector.broadcast %cst_129 : f32 to vector<96x128xf32>
    %307 = arith.mulf %306, %305 : vector<96x128xf32>
    %cst_130 = arith.constant 0.707106769 : f32
    %308 = vector.broadcast %cst_130 : f32 to vector<96x128xf32>
    %309 = arith.mulf %305, %308 : vector<96x128xf32>
    %310 = math.erf %309 : vector<96x128xf32>
    %cst_131 = arith.constant 1.000000e+00 : f32
    %311 = vector.broadcast %cst_131 : f32 to vector<96x128xf32>
    %312 = arith.addf %311, %310 : vector<96x128xf32>
    %313 = arith.mulf %307, %312 : vector<96x128xf32>
    %c1_132 = arith.constant 1 : index
    %c0_133 = arith.constant 0 : index
    %c0_134 = arith.constant 0 : index
    %314 = vector.load %arg8[%c1_132, %c0_133, %c0_134] : memref<2x128x32xf32, #tpu.memory_space<vmem>>, vector<1x128x32xf32>
    %315 = vector.shape_cast %314 : vector<1x128x32xf32> to vector<128x32xf32>
    %cst_135 = arith.constant dense<0.000000e+00> : vector<96x32xf32>
    %316 = tpu.matmul %313, %315, %cst_135 {dimension_numbers = #tpu.dot_dimension_numbers<[1], [0], [0], [1], [0, 0, 1, 1], [], []>} : vector<96x128xf32>, vector<128x32xf32>, vector<96x32xf32> -> vector<96x32xf32>
    %317 = arith.addf %278, %316 : vector<96x32xf32>
    %318 = vector.broadcast %176 : vector<1x32xf32> to vector<96x32xf32>
    %319 = arith.addf %317, %318 : vector<96x32xf32>
    %c8 = arith.constant 8 : index
    %c0_136 = arith.constant 0 : index
    %320 = vector.load %arg10[%c8, %c0_136] : memref<9x128xf32, #tpu.memory_space<vmem>>, vector<1x32xf32>
    %c8_137 = arith.constant 8 : index
    %c32_138 = arith.constant 32 : index
    %321 = vector.load %arg10[%c8_137, %c32_138] : memref<9x128xf32, #tpu.memory_space<vmem>>, vector<1x32xf32>
    %c8_139 = arith.constant 8 : index
    %c64_140 = arith.constant 64 : index
    %322 = vector.load %arg10[%c8_139, %c64_140] : memref<9x128xf32, #tpu.memory_space<vmem>>, vector<1x8xf32>
    %cst_141 = arith.constant dense<0.000000e+00> : vector<96xf32>
    %323 = vector.multi_reduction <add>, %319, %cst_141 [1] : vector<96x32xf32> to vector<96xf32>
    %324 = vector.shape_cast %323 : vector<96xf32> to vector<96x1xf32>
    %cst_142 = arith.constant 3.200000e+01 : f32
    %325 = vector.broadcast %cst_142 : f32 to vector<96x1xf32>
    %326 = arith.divf %324, %325 : vector<96x1xf32>
    %327 = vector.broadcast %326 : vector<96x1xf32> to vector<96x32xf32>
    %328 = arith.subf %319, %327 : vector<96x32xf32>
    %329 = arith.mulf %328, %328 : vector<96x32xf32>
    %cst_143 = arith.constant dense<0.000000e+00> : vector<96xf32>
    %330 = vector.multi_reduction <add>, %329, %cst_143 [1] : vector<96x32xf32> to vector<96xf32>
    %331 = vector.shape_cast %330 : vector<96xf32> to vector<96x1xf32>
    %cst_144 = arith.constant 3.200000e+01 : f32
    %332 = vector.broadcast %cst_144 : f32 to vector<96x1xf32>
    %333 = arith.divf %331, %332 : vector<96x1xf32>
    %334 = vector.broadcast %326 : vector<96x1xf32> to vector<96x32xf32>
    %335 = arith.subf %319, %334 : vector<96x32xf32>
    %cst_145 = arith.constant 9.99999997E-7 : f32
    %336 = vector.broadcast %cst_145 : f32 to vector<96x1xf32>
    %337 = arith.addf %333, %336 : vector<96x1xf32>
    %338 = math.rsqrt %337 : vector<96x1xf32>
    %339 = vector.broadcast %338 : vector<96x1xf32> to vector<96x32xf32>
    %340 = arith.mulf %335, %339 : vector<96x32xf32>
    %341 = vector.broadcast %320 : vector<1x32xf32> to vector<96x32xf32>
    %342 = arith.mulf %340, %341 : vector<96x32xf32>
    %343 = vector.broadcast %321 : vector<1x32xf32> to vector<96x32xf32>
    %344 = arith.addf %342, %343 : vector<96x32xf32>
    %c0_146 = arith.constant 0 : index
    %c0_147 = arith.constant 0 : index
    %345 = vector.load %arg9[%c0_146, %c0_147] : memref<32x8xf32, #tpu.memory_space<vmem>>, vector<32x8xf32>
    %cst_148 = arith.constant dense<0.000000e+00> : vector<96x8xf32>
    %346 = tpu.matmul %344, %345, %cst_148 {dimension_numbers = #tpu.dot_dimension_numbers<[1], [0], [0], [1], [0, 0, 1, 1], [], []>} : vector<96x32xf32>, vector<32x8xf32>, vector<96x8xf32> -> vector<96x8xf32>
    %347 = vector.broadcast %322 : vector<1x8xf32> to vector<96x8xf32>
    %348 = arith.addf %346, %347 : vector<96x8xf32>
    %349 = vector.shape_cast %348 : vector<96x8xf32> to vector<4x24x8xf32>
    %c0_149 = arith.constant 0 : index
    %c0_150 = arith.constant 0 : index
    %c0_151 = arith.constant 0 : index
    %c0_152 = arith.constant 0 : index
    %350 = vector.load %arg11[%c0_149, %c0_150, %c0_151, %c0_152] : memref<1x4x24x8xf32, #tpu.memory_space<vmem>>, vector<1x4x24x8xf32>
    %351 = vector.shape_cast %350 : vector<1x4x24x8xf32> to vector<4x24x8xf32>
    %352 = vector.shape_cast %349 : vector<4x24x8xf32> to vector<1x4x24x8xf32>
    tpu.vector_store %arg11[%c0_149, %c0_150, %c0_151, %c0_152], %352 {strides = array<i32>} : memref<1x4x24x8xf32, #tpu.memory_space<vmem>>, vector<1x4x24x8xf32>,
    return
  }
  func.func @transform_0(%arg0: i32) -> (i32, i32, i32) {
    %c0_i32 = arith.constant 0 : i32
    %c0_i32_0 = arith.constant 0 : i32
    %c0_i32_1 = arith.constant 0 : i32
    return %arg0, %c0_i32, %c0_i32_0 : i32, i32, i32
  }
  func.func @transform_1(%arg0: i32) -> (i32, i32) {
    %c0_i32 = arith.constant 0 : i32
    %c0_i32_0 = arith.constant 0 : i32
    %c0_i32_1 = arith.constant 0 : i32
    return %c0_i32, %c0_i32_0 : i32, i32
  }
  func.func @transform_2(%arg0: i32) -> (i32, i32) {
    %c0_i32 = arith.constant 0 : i32
    %c0_i32_0 = arith.constant 0 : i32
    %c0_i32_1 = arith.constant 0 : i32
    return %c0_i32, %c0_i32_0 : i32, i32
  }
  func.func @transform_3(%arg0: i32) -> (i32, i32) {
    %c0_i32 = arith.constant 0 : i32
    %c0_i32_0 = arith.constant 0 : i32
    %c0_i32_1 = arith.constant 0 : i32
    return %c0_i32, %c0_i32_0 : i32, i32
  }
  func.func @transform_4(%arg0: i32) -> (i32, i32, i32) {
    %c0_i32 = arith.constant 0 : i32
    %c0_i32_0 = arith.constant 0 : i32
    %c0_i32_1 = arith.constant 0 : i32
    %c0_i32_2 = arith.constant 0 : i32
    return %c0_i32, %c0_i32_0, %c0_i32_1 : i32, i32, i32
  }
  func.func @transform_5(%arg0: i32) -> (i32, i32, i32) {
    %c0_i32 = arith.constant 0 : i32
    %c0_i32_0 = arith.constant 0 : i32
    %c0_i32_1 = arith.constant 0 : i32
    %c0_i32_2 = arith.constant 0 : i32
    return %c0_i32, %c0_i32_0, %c0_i32_1 : i32, i32, i32
  }
  func.func @transform_6(%arg0: i32) -> (i32, i32, i32) {
    %c0_i32 = arith.constant 0 : i32
    %c0_i32_0 = arith.constant 0 : i32
    %c0_i32_1 = arith.constant 0 : i32
    %c0_i32_2 = arith.constant 0 : i32
    return %c0_i32, %c0_i32_0, %c0_i32_1 : i32, i32, i32
  }
  func.func @transform_7(%arg0: i32) -> (i32, i32, i32) {
    %c0_i32 = arith.constant 0 : i32
    %c0_i32_0 = arith.constant 0 : i32
    %c0_i32_1 = arith.constant 0 : i32
    %c0_i32_2 = arith.constant 0 : i32
    return %c0_i32, %c0_i32_0, %c0_i32_1 : i32, i32, i32
  }
  func.func @transform_8(%arg0: i32) -> (i32, i32) {
    %c0_i32 = arith.constant 0 : i32
    %c0_i32_0 = arith.constant 0 : i32
    %c0_i32_1 = arith.constant 0 : i32
    return %c0_i32, %c0_i32_0 : i32, i32
  }
  func.func @transform_9(%arg0: i32) -> (i32, i32) {
    %c0_i32 = arith.constant 0 : i32
    %c0_i32_0 = arith.constant 0 : i32
    %c0_i32_1 = arith.constant 0 : i32
    return %c0_i32, %c0_i32_0 : i32, i32
  }
  func.func @transform_10(%arg0: i32) -> (i32, i32, i32, i32) {
    %c0_i32 = arith.constant 0 : i32
    %c0_i32_0 = arith.constant 0 : i32
    %c0_i32_1 = arith.constant 0 : i32
    %c0_i32_2 = arith.constant 0 : i32
    return %arg0, %c0_i32, %c0_i32_0, %c0_i32_1 : i32, i32, i32, i32
  }
}

</mosaic_0001>

<llo_original>
// kernel: spectrogram_vit_forward.1
$region0: #{spectrogram_vit_forward.1}
  #allocation0 [shape = 'u32[]', space=smem, size = 0x4, offset = 0x4, fixed_abs, tag = 'smem constant byte address 0x4 - core index']
  #allocation1 [shape = 'u32[144,128]{1,0:T(1,128)}', space=vmem, size = 0x12000, scoped, tag = 'internal scratch']
  #allocation2 [shape = 'f32[4,24,32]{2,1,0:T(8,128)}', space=vmem, size = 0xc000, scoped, tag = 'scratch operand']
  %s0 = inlined_call_operand.vmem [shape: f32[8,16,192], index: 0, kind: input, shape index: {}]
  %s1 = inlined_call_operand.vmem [shape: f32[96,96], index: 1, kind: input, shape index: {}]
  %s2 = inlined_call_operand.vmem [shape: f32[192,32], index: 2, kind: input, shape index: {}]
  %s3 = inlined_call_operand.vmem [shape: f32[24,32], index: 3, kind: input, shape index: {}]
  %s4 = inlined_call_operand.vmem [shape: f32[2,32,96], index: 4, kind: input, shape index: {}]
  %s5 = inlined_call_operand.vmem [shape: f32[2,32,32], index: 5, kind: input, shape index: {}]
  %s6 = inlined_call_operand.vmem [shape: f32[2,32,128], index: 6, kind: input, shape index: {}]
  %s7 = inlined_call_operand.vmem [shape: f32[2,128,32], index: 7, kind: input, shape index: {}]
  %s8 = inlined_call_operand.vmem [shape: f32[32,8], index: 8, kind: input, shape index: {}]
  %s9 = inlined_call_operand.vmem [shape: f32[9,128], index: 9, kind: input, shape index: {}]
  %s10 = inlined_call_operand.vmem [shape: f32[2,4,24,8], index: 10, kind: output, shape index: {}]
  %s11 = sld [smem:[#allocation0]]
  $region73: #{spectrogram_vit_forward.1} parent=0
    _
  %s13 = ssub.s32 1, %s11
  %s14 = scalar_select 0, %s13, %s11
  loop: start=0, step=1, limit=4
  $region2: #{spectrogram_vit_forward.1} parent=0 // loop_pre_header
    _
  $region3: #{spectrogram_vit_forward.1} parent=0 // loop_header
    %s16 = sphi 0, %s20
    %p17 = scmp.ge.s32.totalorder %s16, 4
    %s26 = sphi 0, %s28
    %s29 = sphi 0, %s26
    %s30 = sphi 0, %s29
    %s46 = sphi 0, %s30
    %s50 = sphi 0, %s50
    %s52 = sphi 0, %s50
    %s53 = sphi 0, %s52
    %s67 = sphi 0, %s53
    %s71 = sphi 0, %s71
    %s73 = sphi 0, %s71
    %s74 = sphi 0, %s73
    %s88 = sphi 0, %s74
    %s92 = sphi 0, %s92
    %s94 = sphi 0, %s92
    %s95 = sphi 0, %s94
    %s109 = sphi 0, %s95
    %s113 = sphi 0, %s113
    %s115 = sphi 0, %s113
    %s116 = sphi 0, %s115
    %s130 = sphi 0, %s116
    %s134 = sphi 0, %s134
    %s136 = sphi 0, %s134
    %s137 = sphi 0, %s136
    %s151 = sphi 0, %s137
    %s155 = sphi 0, %s155
    %s157 = sphi 0, %s155
    %s158 = sphi 0, %s157
    %s172 = sphi 0, %s158
    %s176 = sphi 0, %s176
    %s178 = sphi 0, %s176
    %s179 = sphi 0, %s178
    %s193 = sphi 0, %s179
    %s197 = sphi 0, %s197
    %s199 = sphi 0, %s197
    %s200 = sphi 0, %s199
    %s214 = sphi 0, %s200
    %s218 = sphi 0, %s218
    %s220 = sphi 0, %s218
    %s221 = sphi 0, %s220
    %s235 = sphi 0, %s221
    %s241 = sphi 0, %s243
    %s244 = sphi 0, %s241
    %s245 = sphi 0, %s244
    %s261 = sphi 0, %s245
  $region4: #{spectrogram_vit_forward.1} parent=0 // loop_header_branch
    %19 = sbr.rel (%p17) target = $region8
  $region5: #{spectrogram_vit_forward.1} parent=0 // loop_body
    %s21 = ssub.s32 %s16, 1
    %s22 = ssub.s32 %s16, 2
    %s23 = sadd.s32 %s16, 1
    %s24 = ssub.s32 %s16, %s23
    %p25 = scmp.eq.s32.totalorder %s24, 0
    %s27 = sadd.s32 %s26, 1
    %s28 = scalar_select %p25, %s26, %s27
    %p31 = pneg %p25
    %p32 = scmp.eq.s32.totalorder %s16, 1
    %p33 = por %p31, %p32
    %p34 = scmp.ne.s32.totalorder %s26, %s29
    %p35 = scmp.eq.s32.totalorder %s16, 0
    %p36 = por %p34, %p35
    %p37 = scmp.ne.s32.totalorder %s26, %s29
    %p38 = scmp.eq.s32.totalorder %s21, 1
    %p39 = por %p37, %p38
    %p40 = scmp.ne.s32.totalorder %s29, %s30
    %p41 = scmp.eq.s32.totalorder %s21, 0
    %p42 = por %p40, %p41
    %p43 = scmp.ne.s32.totalorder %s29, %s30
    %p44 = scmp.eq.s32.totalorder %s22, 1
    %p45 = por %p43, %p44
    %p47 = scmp.ne.s32.totalorder %s30, %s46
    %p48 = scmp.eq.s32.totalorder %s22, 0
    %p49 = por %p47, %p48
    %s51 = sadd.s32 %s50, 1
    %p54 = scmp.eq.s32.totalorder %s16, 1
    %p55 = scmp.ne.s32.totalorder %s50, %s52
    %p56 = scmp.eq.s32.totalorder %s16, 0
    %p57 = por %p55, %p56
    %p58 = scmp.ne.s32.totalorder %s50, %s52
    %p59 = scmp.eq.s32.totalorder %s21, 1
    %p60 = por %p58, %p59
    %p61 = scmp.ne.s32.totalorder %s52, %s53
    %p62 = scmp.eq.s32.totalorder %s21, 0
    %p63 = por %p61, %p62
    %p64 = scmp.ne.s32.totalorder %s52, %s53
    %p65 = scmp.eq.s32.totalorder %s22, 1
    %p66 = por %p64, %p65
    %p68 = scmp.ne.s32.totalorder %s53, %s67
    %p69 = scmp.eq.s32.totalorder %s22, 0
    %p70 = por %p68, %p69
    %s72 = sadd.s32 %s71, 1
    %p75 = scmp.eq.s32.totalorder %s16, 1
    %p76 = scmp.ne.s32.totalorder %s71, %s73
    %p77 = scmp.eq.s32.totalorder %s16, 0
    %p78 = por %p76, %p77
    %p79 = scmp.ne.s32.totalorder %s71, %s73
    %p80 = scmp.eq.s32.totalorder %s21, 1
    %p81 = por %p79, %p80
    %p82 = scmp.ne.s32.totalorder %s73, %s74
    %p83 = scmp.eq.s32.totalorder %s21, 0
    %p84 = por %p82, %p83
    %p85 = scmp.ne.s32.totalorder %s73, %s74
    %p86 = scmp.eq.s32.totalorder %s22, 1
    %p87 = por %p85, %p86
    %p89 = scmp.ne.s32.totalorder %s74, %s88
    %p90 = scmp.eq.s32.totalorder %s22, 0
    %p91 = por %p89, %p90
    %s93 = sadd.s32 %s92, 1
    %p96 = scmp.eq.s32.totalorder %s16, 1
    %p97 = scmp.ne.s32.totalorder %s92, %s94
    %p98 = scmp.eq.s32.totalorder %s16, 0
    %p99 = por %p97, %p98
    %p100 = scmp.ne.s32.totalorder %s92, %s94
    %p101 = scmp.eq.s32.totalorder %s21, 1
    %p102 = por %p100, %p101
    %p103 = scmp.ne.s32.totalorder %s94, %s95
    %p104 = scmp.eq.s32.totalorder %s21, 0
    %p105 = por %p103, %p104
    %p106 = scmp.ne.s32.totalorder %s94, %s95
    %p107 = scmp.eq.s32.totalorder %s22, 1
    %p108 = por %p106, %p107
    %p110 = scmp.ne.s32.totalorder %s95, %s109
    %p111 = scmp.eq.s32.totalorder %s22, 0
    %p112 = por %p110, %p111
    %s114 = sadd.s32 %s113, 1
    %p117 = scmp.eq.s32.totalorder %s16, 1
    %p118 = scmp.ne.s32.totalorder %s113, %s115
    %p119 = scmp.eq.s32.totalorder %s16, 0
    %p120 = por %p118, %p119
    %p121 = scmp.ne.s32.totalorder %s113, %s115
    %p122 = scmp.eq.s32.totalorder %s21, 1
    %p123 = por %p121, %p122
    %p124 = scmp.ne.s32.totalorder %s115, %s116
    %p125 = scmp.eq.s32.totalorder %s21, 0
    %p126 = por %p124, %p125
    %p127 = scmp.ne.s32.totalorder %s115, %s116
    %p128 = scmp.eq.s32.totalorder %s22, 1
    %p129 = por %p127, %p128
    %p131 = scmp.ne.s32.totalorder %s116, %s130
    %p132 = scmp.eq.s32.totalorder %s22, 0
    %p133 = por %p131, %p132
    %s135 = sadd.s32 %s134, 1
    %p138 = scmp.eq.s32.totalorder %s16, 1
    %p139 = scmp.ne.s32.totalorder %s134, %s136
    %p140 = scmp.eq.s32.totalorder %s16, 0
    %p141 = por %p139, %p140
    %p142 = scmp.ne.s32.totalorder %s134, %s136
    %p143 = scmp.eq.s32.totalorder %s21, 1
    %p144 = por %p142, %p143
    %p145 = scmp.ne.s32.totalorder %s136, %s137
    %p146 = scmp.eq.s32.totalorder %s21, 0
    %p147 = por %p145, %p146
    %p148 = scmp.ne.s32.totalorder %s136, %s137
    %p149 = scmp.eq.s32.totalorder %s22, 1
    %p150 = por %p148, %p149
    %p152 = scmp.ne.s32.totalorder %s137, %s151
    %p153 = scmp.eq.s32.totalorder %s22, 0
    %p154 = por %p152, %p153
    %s156 = sadd.s32 %s155, 1
    %p159 = scmp.eq.s32.totalorder %s16, 1
    %p160 = scmp.ne.s32.totalorder %s155, %s157
    %p161 = scmp.eq.s32.totalorder %s16, 0
    %p162 = por %p160, %p161
    %p163 = scmp.ne.s32.totalorder %s155, %s157
    %p164 = scmp.eq.s32.totalorder %s21, 1
    %p165 = por %p163, %p164
    %p166 = scmp.ne.s32.totalorder %s157, %s158
    %p167 = scmp.eq.s32.totalorder %s21, 0
    %p168 = por %p166, %p167
    %p169 = scmp.ne.s32.totalorder %s157, %s158
    %p170 = scmp.eq.s32.totalorder %s22, 1
    %p171 = por %p169, %p170
    %p173 = scmp.ne.s32.totalorder %s158, %s172
    %p174 = scmp.eq.s32.totalorder %s22, 0
    %p175 = por %p173, %p174
    %s177 = sadd.s32 %s176, 1
    %p180 = scmp.eq.s32.totalorder %s16, 1
    %p181 = scmp.ne.s32.totalorder %s176, %s178
    %p182 = scmp.eq.s32.totalorder %s16, 0
    %p183 = por %p181, %p182
    %p184 = scmp.ne.s32.totalorder %s176, %s178
    %p185 = scmp.eq.s32.totalorder %s21, 1
    %p186 = por %p184, %p185
    %p187 = scmp.ne.s32.totalorder %s178, %s179
    %p188 = scmp.eq.s32.totalorder %s21, 0
    %p189 = por %p187, %p188
    %p190 = scmp.ne.s32.totalorder %s178, %s179
    %p191 = scmp.eq.s32.totalorder %s22, 1
    %p192 = por %p190, %p191
    %p194 = scmp.ne.s32.totalorder %s179, %s193
    %p195 = scmp.eq.s32.totalorder %s22, 0
    %p196 = por %p194, %p195
    %s198 = sadd.s32 %s197, 1
    %p201 = scmp.eq.s32.totalorder %s16, 1
    %p202 = scmp.ne.s32.totalorder %s197, %s199
    %p203 = scmp.eq.s32.totalorder %s16, 0
    %p204 = por %p202, %p203
    %p205 = scmp.ne.s32.totalorder %s197, %s199
    %p206 = scmp.eq.s32.totalorder %s21, 1
    %p207 = por %p205, %p206
    %p208 = scmp.ne.s32.totalorder %s199, %s200
    %p209 = scmp.eq.s32.totalorder %s21, 0
    %p210 = por %p208, %p209
    %p211 = scmp.ne.s32.totalorder %s199, %s200
    %p212 = scmp.eq.s32.totalorder %s22, 1
    %p213 = por %p211, %p212
    %p215 = scmp.ne.s32.totalorder %s200, %s214
    %p216 = scmp.eq.s32.totalorder %s22, 0
    %p217 = por %p215, %p216
    %s219 = sadd.s32 %s218, 1
    %p222 = scmp.eq.s32.totalorder %s16, 1
    %p223 = scmp.ne.s32.totalorder %s218, %s220
    %p224 = scmp.eq.s32.totalorder %s16, 0
    %p225 = por %p223, %p224
    %p226 = scmp.ne.s32.totalorder %s218, %s220
    %p227 = scmp.eq.s32.totalorder %s21, 1
    %p228 = por %p226, %p227
    %p229 = scmp.ne.s32.totalorder %s220, %s221
    %p230 = scmp.eq.s32.totalorder %s21, 0
    %p231 = por %p229, %p230
    %p232 = scmp.ne.s32.totalorder %s220, %s221
    %p233 = scmp.eq.s32.totalorder %s22, 1
    %p234 = por %p232, %p233
    %p236 = scmp.ne.s32.totalorder %s221, %s235
    %p237 = scmp.eq.s32.totalorder %s22, 0
    %p238 = por %p236, %p237
    %s239 = ssub.s32 %s16, %s23
    %p240 = scmp.eq.s32.totalorder %s239, 0
    %s242 = sadd.s32 %s241, 1
    %s243 = scalar_select %p240, %s241, %s242
    %p246 = pneg %p240
    %p247 = scmp.eq.s32.totalorder %s16, 1
    %p248 = por %p246, %p247
    %p249 = scmp.ne.s32.totalorder %s241, %s244
    %p250 = scmp.eq.s32.totalorder %s16, 0
    %p251 = por %p249, %p250
    %p252 = scmp.ne.s32.totalorder %s241, %s244
    %p253 = scmp.eq.s32.totalorder %s21, 1
    %p254 = por %p252, %p253
    %p255 = scmp.ne.s32.totalorder %s244, %s245
    %p256 = scmp.eq.s32.totalorder %s21, 0
    %p257 = por %p255, %p256
    %p258 = scmp.ne.s32.totalorder %s244, %s245
    %p259 = scmp.eq.s32.totalorder %s22, 1
    %p260 = por %p258, %p259
    %p262 = scmp.ne.s32.totalorder %s245, %s261
    %p263 = scmp.eq.s32.totalorder %s22, 0
    %p264 = por %p262, %p263
    %p265 = scmp.le.s32.totalorder 1, %s16
    %p266 = scmp.lt.s32.totalorder %s16, 3
    %p267 = pnand %p265, %p266
    %p268 = pneg %p267
    // Predicated region
    $region9: #{spectrogram_vit_forward.1} parent=5 // pred_check
      _
    $region10: #{spectrogram_vit_forward.1} parent=5 // pred_check_branch
      %270 = sbr.rel (%p267) target = $region12
    $region11: #{spectrogram_vit_forward.1} parent=5 // pred_region
      %s271 = ssub.s32 %s16, 1
      // Predicated region
      $region13: #{spectrogram_vit_forward.1} parent=11 // pred_check
        %p272 = pneg %p63
      $region14: #{spectrogram_vit_forward.1} parent=11 // pred_check_branch
        %274 = sbr.rel (%p272) target = $region16
      $region15: #{spectrogram_vit_forward.1} parent=11 // pred_region
        _
      $region16: #{spectrogram_vit_forward.1} parent=11 // pred_fallthru
        _
      // Predicated region
      $region17: #{spectrogram_vit_forward.1} parent=11 // pred_check
        %p275 = pneg %p84
      $region18: #{spectrogram_vit_forward.1} parent=11 // pred_check_branch
        %277 = sbr.rel (%p275) target = $region20
      $region19: #{spectrogram_vit_forward.1} parent=11 // pred_region
        _
      $region20: #{spectrogram_vit_forward.1} parent=11 // pred_fallthru
        _
      // Predicated region
      $region21: #{spectrogram_vit_forward.1} parent=11 // pred_check
        %p278 = pneg %p105
      $region22: #{spectrogram_vit_forward.1} parent=11 // pred_check_branch
        %280 = sbr.rel (%p278) target = $region24
      $region23: #{spectrogram_vit_forward.1} parent=11 // pred_region
        _
      $region24: #{spectrogram_vit_forward.1} parent=11 // pred_fallthru
        _
      // Predicated region
      $region25: #{spectrogram_vit_forward.1} parent=11 // pred_check
        %p281 = pneg %p126
      $region26: #{spectrogram_vit_forward.1} parent=11 // pred_check_branch
        %283 = sbr.rel (%p281) target = $region28
      $region27: #{spectrogram_vit_forward.1} parent=11 // pred_region
        _
      $region28: #{spectrogram_vit_forward.1} parent=11 // pred_fallthru
        _
      // Predicated region
      $region29: #{spectrogram_vit_forward.1} parent=11 // pred_check
        %p284 = pneg %p147
      $region30: #{spectrogram_vit_forward.1} parent=11 // pred_check_branch
        %286 = sbr.rel (%p284) target = $region32
      $region31: #{spectrogram_vit_forward.1} parent=11 // pred_region
        _
      $region32: #{spectrogram_vit_forward.1} parent=11 // pred_fallthru
        _
      // Predicated region
      $region33: #{spectrogram_vit_forward.1} parent=11 // pred_check
        %p287 = pneg %p168
      $region34: #{spectrogram_vit_forward.1} parent=11 // pred_check_branch
        %289 = sbr.rel (%p287) target = $region36
      $region35: #{spectrogram_vit_forward.1} parent=11 // pred_region
        _
      $region36: #{spectrogram_vit_forward.1} parent=11 // pred_fallthru
        _
      // Predicated region
      $region37: #{spectrogram_vit_forward.1} parent=11 // pred_check
        %p290 = pneg %p189
      $region38: #{spectrogram_vit_forward.1} parent=11 // pred_check_branch
        %292 = sbr.rel (%p290) target = $region40
      $region39: #{spectrogram_vit_forward.1} parent=11 // pred_region
        _
      $region40: #{spectrogram_vit_forward.1} parent=11 // pred_fallthru
        _
      // Predicated region
      $region41: #{spectrogram_vit_forward.1} parent=11 // pred_check
        %p293 = pneg %p210
      $region42: #{spectrogram_vit_forward.1} parent=11 // pred_check_branch
        %295 = sbr.rel (%p293) target = $region44
      $region43: #{spectrogram_vit_forward.1} parent=11 // pred_region
        _
      $region44: #{spectrogram_vit_forward.1} parent=11 // pred_fallthru
        _
      // Predicated region
      $region45: #{spectrogram_vit_forward.1} parent=11 // pred_check
        %p296 = pneg %p231
      $region46: #{spectrogram_vit_forward.1} parent=11 // pred_check_branch
        %298 = sbr.rel (%p296) target = $region48
      $region47: #{spectrogram_vit_forward.1} parent=11 // pred_region
        _
      $region48: #{spectrogram_vit_forward.1} parent=11 // pred_fallthru
        _
    $region12: #{spectrogram_vit_forward.1} parent=5 // pred_fallthru
      _
    %p299 = scmp.lt.s32.totalorder %s16, 2
    // Predicated region
    $region49: #{spectrogram_vit_forward.1} parent=5 // pred_check
      %p300 = pneg %p299
    $region50: #{spectrogram_vit_forward.1} parent=5 // pred_check_branch
      %302 = sbr.rel (%p300) target = $region52
    $region51: #{spectrogram_vit_forward.1} parent=5 // pred_region
      // Predicated region
      $region53: #{spectrogram_vit_forward.1} parent=51 // pred_check
        %p303 = pneg %p36
      $region54: #{spectrogram_vit_forward.1} parent=51 // pred_check_branch
        %305 = sbr.rel (%p303) target = $region56
      $region55: #{spectrogram_vit_forward.1} parent=51 // pred_region
        %s306 = smul.u32 4, %s16
        %p307 = scmp.lt.s32.totalorder %s306, 7
        %s308 = scalar_select %p307, %s306, 7
        %s309 = smul.addr %s308, 4
        %s310 = smul.addr %s309, 8
        %s311 = scalar_lea.vmem %s0, %s310
        %s312 = smul.u32 4, %s16
      $region56: #{spectrogram_vit_forward.1} parent=51 // pred_fallthru
        _
    $region52: #{spectrogram_vit_forward.1} parent=5 // pred_fallthru
      _
    %p313 = scmp.le.s32.totalorder 1, %s16
    %p314 = scmp.lt.s32.totalorder %s16, 3
    %p315 = pnand %p313, %p314
    %p316 = pneg %p315
    // Predicated region
    $region57: #{spectrogram_vit_forward.1} parent=5 // pred_check
      _
    $region58: #{spectrogram_vit_forward.1} parent=5 // pred_check_branch
      %318 = sbr.rel (%p315) target = $region60
    $region59: #{spectrogram_vit_forward.1} parent=5 // pred_region
      %s319 = ssub.s32 %s16, 1
      %s320 = smul.u32 4, %s21
      %p321 = scmp.lt.s32.totalorder %s320, 7
      %s322 = scalar_select %p321, %s320, 7
      %s323 = smul.addr %s322, 4
      %s324 = smul.addr %s323, 8
      %s325 = scalar_lea.vmem %s0, %s324
      %p326 = pneg %p42
      %p327 = pneg %p39
      %p328 = pneg %p63
      %p329 = pneg %p60
      %p330 = pneg %p84
      %p331 = pneg %p81
      %p332 = pneg %p105
      %p333 = pneg %p102
      %p334 = pneg %p126
      %p335 = pneg %p123
      %p336 = pneg %p147
      %p337 = pneg %p144
      %p338 = pneg %p168
      %p339 = pneg %p165
      %p340 = pneg %p189
      %p341 = pneg %p186
      %p342 = pneg %p210
      %p343 = pneg %p207
      %p344 = pneg %p231
      %p345 = pneg %p228
      %p346 = pneg %p257
      %p347 = pneg %p254
      %p348 = scmp.lt.s32.totalorder %s21, 1
      %s349 = scalar_select %p348, %s21, 1
      %s350 = smul.addr %s349, 12
      %s351 = smul.addr %s350, 8
      %s352 = scalar_lea.vmem %s10, %s351
      %s353 = smul.u32 4, %s21
      %p354 = scmp.lt.s32.totalorder %s353, 7
      %s355 = scalar_select %p354, %s353, 7
      %s356 = smul.addr %s355, 4
      %s357 = smul.addr %s356, 8
      %s358 = scalar_lea.vmem %s0, %s357
      %s359 = smul.u32 4, %s21
      %p360 = scmp.lt.s32.totalorder %s21, 1
      %s361 = scalar_select %p360, %s21, 1
      %s362 = smul.addr %s361, 12
      %s363 = smul.addr %s362, 8
      %s364 = scalar_lea.vmem %s10, %s363
      %v365 = vld [vmem:[%s358] sm:$0xff]
      %v366 = vld [vmem:[%s358 + $0x8] sm:$0xff]
      %v367 = vld [vmem:[%s358 + $0x10] sm:$0xff]
      %v368 = vld [vmem:[%s358 + $0x18] sm:$0xff]
      %v369 = vld [vmem:[%s358 + $0x20] sm:$0xff]
      %v370 = vld [vmem:[%s358 + $0x28] sm:$0xff]
      %v371 = vld [vmem:[%s358 + $0x30] sm:$0xff]
      %v372 = vld [vmem:[%s358 + $0x38] sm:$0xff]
      %v373 = vld [vmem:[%s358 + $0x40] sm:$0xff]
      %v374 = vld [vmem:[%s358 + $0x48] sm:$0xff]
      %v375 = vld [vmem:[%s358 + $0x50] sm:$0xff]
      %v376 = vld [vmem:[%s358 + $0x58] sm:$0xff]
      %v377 = vld [vmem:[%s358 + $0x60] sm:$0xff]
      %v378 = vld [vmem:[%s358 + $0x68] sm:$0xff]
      %v379 = vld [vmem:[%s358 + $0x70] sm:$0xff]
      %v380 = vld [vmem:[%s358 + $0x78] sm:$0xff]
      %v381 = vld [vmem:[%s2] sm:$0xff]
      %v382 = vld [vmem:[%s2 + $0x8] sm:$0xff]
      %v383 = vld [vmem:[%s2 + $0x10] sm:$0xff]
      %v384 = vld [vmem:[%s2 + $0x18] sm:$0xff]
      %v385 = vld [vmem:[%s2 + $0x20] sm:$0xff]
      %v386 = vld [vmem:[%s2 + $0x28] sm:$0xff]
      %v387 = vld [vmem:[%s2 + $0x30] sm:$0xff]
      %v388 = vld [vmem:[%s2 + $0x38] sm:$0xff]
      %v389 = vld [vmem:[%s2 + $0x40] sm:$0xff]
      %v390 = vld [vmem:[%s2 + $0x48] sm:$0xff]
      %v391 = vld [vmem:[%s2 + $0x50] sm:$0xff]
      %v392 = vld [vmem:[%s2 + $0x58] sm:$0xff]
      %v393 = vld [vmem:[%s2 + $0x60] sm:$0xff]
      %v394 = vld [vmem:[%s2 + $0x68] sm:$0xff]
      %v395 = vld [vmem:[%s2 + $0x70] sm:$0xff]
      %v396 = vld [vmem:[%s2 + $0x78] sm:$0xff]
      %v397 = vld [vmem:[%s2 + $0x80] sm:$0xff]
      %v398 = vld [vmem:[%s2 + $0x88] sm:$0xff]
      %v399 = vld [vmem:[%s2 + $0x90] sm:$0xff]
      %v400 = vld [vmem:[%s2 + $0x98] sm:$0xff]
      %v401 = vld [vmem:[%s2 + $0xa0] sm:$0xff]
      %v402 = vld [vmem:[%s2 + $0xa8] sm:$0xff]
      %v403 = vld [vmem:[%s2 + $0xb0] sm:$0xff]
      %v404 = vld [vmem:[%s2 + $0xb8] sm:$0xff]
      %vm405 = vcmask 523264
      %v407 = vsel %vm405, %v366, 0
      %v410 = vsel %vm405, %v368, 0
      %v413 = vsel %vm405, %v370, 0
      %v416 = vsel %vm405, %v372, 0
      %v419 = vsel %vm405, %v374, 0
      %v422 = vsel %vm405, %v376, 0
      %v425 = vsel %vm405, %v378, 0
      %v428 = vsel %vm405, %v380, 0
      %430 = vmatprep.subr.mxu0 0.0
      %431 = vmatpush1.msra.mxu0 %v396
      %432 = vmatprep.subr.mxu0 0.0
      %433 = vmatpush1.msra.mxu0 %v395
      %434 = vmatprep.subr.mxu0 0.0
      %435 = vmatpush1.msra.mxu0 %v394
      %436 = vmatprep.subr.mxu0 0.0
      %437 = vmatpush1.msra.mxu0 %v393
      %438 = vmatprep.subr.mxu0 0.0
      %439 = vmatpush1.msra.mxu0 %v392
      %440 = vmatprep.subr.mxu0 0.0
      %441 = vmatpush1.msra.mxu0 %v391
      %442 = vmatprep.subr.mxu0 0.0
      %443 = vmatpush1.msra.mxu0 %v390
      %444 = vmatprep.subr.mxu0 0.0
      %445 = vmatpush1.msra.mxu0 %v389
      %446 = vmatprep.subr.mxu0 0.0
      %447 = vmatpush1.msra.mxu0 %v388
      %448 = vmatprep.subr.mxu0 0.0
      %449 = vmatpush1.msra.mxu0 %v387
      %450 = vmatprep.subr.mxu0 0.0
      %451 = vmatpush1.msra.mxu0 %v386
      %452 = vmatprep.subr.mxu0 0.0
      %453 = vmatpush1.msra.mxu0 %v385
      %454 = vmatprep.subr.mxu0 0.0
      %455 = vmatpush1.msra.mxu0 %v384
      %456 = vmatprep.subr.mxu0 0.0
      %457 = vmatpush1.msra.mxu0 %v383
      %458 = vmatprep.subr.mxu0 0.0
      %459 = vmatpush1.msra.mxu0 %v382
      %460 = vmatprep.subr.mxu0 0.0
      %461 = vmatpush1.msra.mxu0 %v381
      %462 = vmatprep.subr.mxu0 0.0
      %463 = vmatpush2.msra.mxu0 0.0
      %464 = vmatprep.subr.mxu0 0.0
      %465 = vmatpush2.msra.mxu0 0.0
      %466 = vmatprep.subr.mxu0 0.0
      %467 = vmatpush2.msra.mxu0 0.0
      %468 = vmatprep.subr.mxu0 0.0
      %469 = vmatpush2.msra.mxu0 0.0
      %470 = vmatprep.subr.mxu0 0.0
      %471 = vmatpush2.msra.mxu0 0.0
      %472 = vmatprep.subr.mxu0 0.0
      %473 = vmatpush2.msra.mxu0 0.0
      %474 = vmatprep.subr.mxu0 0.0
      %475 = vmatpush2.msra.mxu0 0.0
      %476 = vmatprep.subr.mxu0 0.0
      %477 = vmatpush2.msra.mxu0 0.0
      %478 = vmatprep.subr.mxu0 0.0
      %479 = vmatpush2.msra.mxu0 %v404
      %480 = vmatprep.subr.mxu0 0.0
      %481 = vmatpush2.msra.mxu0 %v403
      %482 = vmatprep.subr.mxu0 0.0
      %483 = vmatpush2.msra.mxu0 %v402
      %484 = vmatprep.subr.mxu0 0.0
      %485 = vmatpush2.msra.mxu0 %v401
      %486 = vmatprep.subr.mxu0 0.0
      %487 = vmatpush2.msra.mxu0 %v400
      %488 = vmatprep.subr.mxu0 0.0
      %489 = vmatpush2.msra.mxu0 %v399
      %490 = vmatprep.subr.mxu0 0.0
      %491 = vmatpush2.msra.mxu0 %v398
      %492 = vmatprep.subr.mxu0 0.0
      %493 = vmatpush2.msra.mxu0 %v397
      %494 = vmatprep.mubr.f32.mxu0 %v407
      %495 = vmatmul.mubr.f32.gmra.mxu0 %v365
      %v496 = vpop.f32.mrf.mxu0
      %v497 = vadd.f32 0.0, %v496
      %v498 = vpop.f32.mrf.mxu0
      %499 = vmatprep.mubr.f32.mxu0 %v410
      %500 = vmatmul.mubr.f32.gmra.mxu0 %v367
      %v501 = vpop.f32.mrf.mxu0
      %v502 = vadd.f32 0.0, %v501
      %v503 = vpop.f32.mrf.mxu0
      %504 = vmatprep.mubr.f32.mxu0 %v413
      %505 = vmatmul.mubr.f32.gmra.mxu0 %v369
      %v506 = vpop.f32.mrf.mxu0
      %v507 = vadd.f32 0.0, %v506
      %v508 = vpop.f32.mrf.mxu0
      %509 = vmatprep.mubr.f32.mxu0 %v416
      %510 = vmatmul.mubr.f32.gmra.mxu0 %v371
      %v511 = vpop.f32.mrf.mxu0
      %v512 = vadd.f32 0.0, %v511
      %v513 = vpop.f32.mrf.mxu0
      %514 = vmatprep.mubr.f32.mxu0 %v419
      %515 = vmatmul.mubr.f32.gmra.mxu0 %v373
      %v516 = vpop.f32.mrf.mxu0
      %v517 = vadd.f32 0.0, %v516
      %v518 = vpop.f32.mrf.mxu0
      %519 = vmatprep.mubr.f32.mxu0 %v422
      %520 = vmatmul.mubr.f32.gmra.mxu0 %v375
      %v521 = vpop.f32.mrf.mxu0
      %v522 = vadd.f32 0.0, %v521
      %v523 = vpop.f32.mrf.mxu0
      %524 = vmatprep.mubr.f32.mxu0 %v425
      %525 = vmatmul.mubr.f32.gmra.mxu0 %v377
      %v526 = vpop.f32.mrf.mxu0
      %v527 = vadd.f32 0.0, %v526
      %v528 = vpop.f32.mrf.mxu0
      %529 = vmatprep.mubr.f32.mxu0 %v428
      %530 = vmatmul.mubr.f32.gmra.mxu0 %v379
      %v531 = vpop.f32.mrf.mxu0
      %v532 = vadd.f32 0.0, %v531
      %v533 = vpop.f32.mrf.mxu0
      %534 = vdwg.mxu0
      %v535 = vld [vmem:[%s3] sm:$0xff]
      %v536 = vld [vmem:[%s3 + $0x8] sm:$0xff]
      %v537 = vld [vmem:[%s3 + $0x10] sm:$0xff]
      %v538 = vadd.f32 %v497, %v535
      %v539 = vadd.f32 %v502, %v536
      %v540 = vadd.f32 %v507, %v535
      %v541 = vadd.f32 %v512, %v536
      %v542 = vadd.f32 %v517, %v535
      %v543 = vadd.f32 %v522, %v536
      %v544 = vadd.f32 %v527, %v535
      %v545 = vadd.f32 %v532, %v536
      %vm546 = vcmask 261120
      %547 = vst.msk [vmem:[#allocation2] sm:$0xff] %vm546, %v538
      %548 = vst.msk [vmem:[#allocation2 + $0x8] sm:$0xff] %vm546, %v539
      %549 = vst.msk [vmem:[#allocation2 + $0x18] sm:$0xff] %vm546, %v540
      %550 = vst.msk [vmem:[#allocation2 + $0x20] sm:$0xff] %vm546, %v541
      %551 = vst.msk [vmem:[#allocation2 + $0x30] sm:$0xff] %vm546, %v542
      %552 = vst.msk [vmem:[#allocation2 + $0x38] sm:$0xff] %vm546, %v543
      %553 = vst.msk [vmem:[#allocation2 + $0x48] sm:$0xff] %vm546, %v544
      %554 = vst.msk [vmem:[#allocation2 + $0x50] sm:$0xff] %vm546, %v545
      %555 = vst.msk [vmem:[#allocation2 + $0x10] sm:$0xff] %vm546, %v537
      %556 = vst.msk [vmem:[#allocation2 + $0x28] sm:$0xff] %vm546, %v537
      %557 = vst.msk [vmem:[#allocation2 + $0x40] sm:$0xff] %vm546, %v537
      %558 = vst.msk [vmem:[#allocation2 + $0x58] sm:$0xff] %vm546, %v537
      %v559 = vld [vmem:[#allocation2] sm:$0xff]
      %v560 = vld [vmem:[#allocation2 + $0x8] sm:$0xff]
      %v561 = vld [vmem:[#allocation2 + $0x10] sm:$0xff]
      %v562 = vld [vmem:[#allocation2 + $0x18] sm:$0xff]
      %v563 = vld [vmem:[#allocation2 + $0x20] sm:$0xff]
      %v564 = vld [vmem:[#allocation2 + $0x28] sm:$0xff]
      %v565 = vld [vmem:[#allocation2 + $0x30] sm:$0xff]
      %v566 = vld [vmem:[#allocation2 + $0x38] sm:$0xff]
      %v567 = vld [vmem:[#allocation2 + $0x40] sm:$0xff]
      %v568 = vld [vmem:[#allocation2 + $0x48] sm:$0xff]
      %v569 = vld [vmem:[#allocation2 + $0x50] sm:$0xff]
      %v570 = vld [vmem:[#allocation2 + $0x58] sm:$0xff]
      %v571 = vld [vmem:[%s1] sm:$0xff]
      %v572 = vld [vmem:[%s1 + $0x8] sm:$0xff]
      %v573 = vld [vmem:[%s1 + $0x10] sm:$0xff]
      %v574 = vld [vmem:[%s1 + $0x18] sm:$0xff]
      %v575 = vld [vmem:[%s1 + $0x20] sm:$0xff]
      %v576 = vld [vmem:[%s1 + $0x28] sm:$0xff]
      %v577 = vld [vmem:[%s1 + $0x30] sm:$0xff]
      %v578 = vld [vmem:[%s1 + $0x38] sm:$0xff]
      %v579 = vld [vmem:[%s1 + $0x40] sm:$0xff]
      %v580 = vld [vmem:[%s1 + $0x48] sm:$0xff]
      %v581 = vld [vmem:[%s1 + $0x50] sm:$0xff]
      %v582 = vld [vmem:[%s1 + $0x58] sm:$0xff]
      %v583 = vld [vmem:[%s9] sm:$0x1]
      %v584 = vld [vmem:[%s9 + $0x1] sm:$0x1]
      %v585 = vld [vmem:[%s9 + $0x2] sm:$0x1]
      %v586 = vld [vmem:[%s9 + $0x3] sm:$0x1]
      %v587 = vsel %vm546, %v559, 0.0
      %588 = vadd.xlane.f32.xlu0 %v587
      %v589 = vpop.xlane.xlu0 %588
      %v590 = vsel %vm546, %v560, 0.0
      %591 = vadd.xlane.f32.xlu0 %v590
      %v592 = vpop.xlane.xlu0 %591
      %v593 = vsel %vm546, %v561, 0.0
      %594 = vadd.xlane.f32.xlu0 %v593
      %v595 = vpop.xlane.xlu0 %594
      %v596 = vsel %vm546, %v562, 0.0
      %597 = vadd.xlane.f32.xlu0 %v596
      %v598 = vpop.xlane.xlu0 %597
      %v599 = vsel %vm546, %v563, 0.0
      %600 = vadd.xlane.f32.xlu0 %v599
      %v601 = vpop.xlane.xlu0 %600
      %v602 = vsel %vm546, %v564, 0.0
      %603 = vadd.xlane.f32.xlu0 %v602
      %v604 = vpop.xlane.xlu0 %603
      %v605 = vsel %vm546, %v565, 0.0
      %606 = vadd.xlane.f32.xlu0 %v605
      %v607 = vpop.xlane.xlu0 %606
      %v608 = vsel %vm546, %v566, 0.0
      %609 = vadd.xlane.f32.xlu0 %v608
      %v610 = vpop.xlane.xlu0 %609
      %v611 = vsel %vm546, %v567, 0.0
      %612 = vadd.xlane.f32.xlu0 %v611
      %v613 = vpop.xlane.xlu0 %612
      %v614 = vsel %vm546, %v568, 0.0
      %615 = vadd.xlane.f32.xlu0 %v614
      %v616 = vpop.xlane.xlu0 %615
      %v617 = vsel %vm546, %v569, 0.0
      %618 = vadd.xlane.f32.xlu0 %v617
      %v619 = vpop.xlane.xlu0 %618
      %v620 = vsel %vm546, %v570, 0.0
      %621 = vadd.xlane.f32.xlu0 %v620
      %v622 = vpop.xlane.xlu0 %621
      %v623 = vrcp.pop 32.0
      %v624 = vmul.f32 %v589, %v623
      %v625 = vmul.f32 %v592, %v623
      %v626 = vmul.f32 %v595, %v623
      %v627 = vmul.f32 %v598, %v623
      %v628 = vmul.f32 %v601, %v623
      %v629 = vmul.f32 %v604, %v623
      %v630 = vmul.f32 %v607, %v623
      %v631 = vmul.f32 %v610, %v623
      %v632 = vmul.f32 %v613, %v623
      %v633 = vmul.f32 %v616, %v623
      %v634 = vmul.f32 %v619, %v623
      %v635 = vmul.f32 %v622, %v623
      %v636 = vsub.f32 %v559, %v624
      %v637 = vsub.f32 %v560, %v625
      %v638 = vsub.f32 %v561, %v626
      %v639 = vsub.f32 %v562, %v627
      %v640 = vsub.f32 %v563, %v628
      %v641 = vsub.f32 %v564, %v629
      %v642 = vsub.f32 %v565, %v630
      %v643 = vsub.f32 %v566, %v631
      %v644 = vsub.f32 %v567, %v632
      %v645 = vsub.f32 %v568, %v633
      %v646 = vsub.f32 %v569, %v634
      %v647 = vsub.f32 %v570, %v635
      %v648 = vmul.f32 %v636, %v636
      %v649 = vmul.f32 %v637, %v637
      %v650 = vmul.f32 %v638, %v638
      %v651 = vmul.f32 %v639, %v639
      %v652 = vmul.f32 %v640, %v640
      %v653 = vmul.f32 %v641, %v641
      %v654 = vmul.f32 %v642, %v642
      %v655 = vmul.f32 %v643, %v643
      %v656 = vmul.f32 %v644, %v644
      %v657 = vmul.f32 %v645, %v645
      %v658 = vmul.f32 %v646, %v646
      %v659 = vmul.f32 %v647, %v647
      %v660 = vsel %vm546, %v648, 0.0
      %661 = vadd.xlane.f32.xlu0 %v660
      %v662 = vpop.xlane.xlu0 %661
      %v663 = vsel %vm546, %v649, 0.0
      %664 = vadd.xlane.f32.xlu0 %v663
      %v665 = vpop.xlane.xlu0 %664
      %v666 = vsel %vm546, %v650, 0.0
      %667 = vadd.xlane.f32.xlu0 %v666
      %v668 = vpop.xlane.xlu0 %667
      %v669 = vsel %vm546, %v651, 0.0
      %670 = vadd.xlane.f32.xlu0 %v669
      %v671 = vpop.xlane.xlu0 %670
      %v672 = vsel %vm546, %v652, 0.0
      %673 = vadd.xlane.f32.xlu0 %v672
      %v674 = vpop.xlane.xlu0 %673
      %v675 = vsel %vm546, %v653, 0.0
      %676 = vadd.xlane.f32.xlu0 %v675
      %v677 = vpop.xlane.xlu0 %676
      %v678 = vsel %vm546, %v654, 0.0
      %679 = vadd.xlane.f32.xlu0 %v678
      %v680 = vpop.xlane.xlu0 %679
      %v681 = vsel %vm546, %v655, 0.0
      %682 = vadd.xlane.f32.xlu0 %v681
      %v683 = vpop.xlane.xlu0 %682
      %v684 = vsel %vm546, %v656, 0.0
      %685 = vadd.xlane.f32.xlu0 %v684
      %v686 = vpop.xlane.xlu0 %685
      %v687 = vsel %vm546, %v657, 0.0
      %688 = vadd.xlane.f32.xlu0 %v687
      %v689 = vpop.xlane.xlu0 %688
      %v690 = vsel %vm546, %v658, 0.0
      %691 = vadd.xlane.f32.xlu0 %v690
      %v692 = vpop.xlane.xlu0 %691
      %v693 = vsel %vm546, %v659, 0.0
      %694 = vadd.xlane.f32.xlu0 %v693
      %v695 = vpop.xlane.xlu0 %694
      %v696 = vmul.f32 %v662, %v623
      %v697 = vmul.f32 %v665, %v623
      %v698 = vmul.f32 %v668, %v623
      %v699 = vmul.f32 %v671, %v623
      %v700 = vmul.f32 %v674, %v623
      %v701 = vmul.f32 %v677, %v623
      %v702 = vmul.f32 %v680, %v623
      %v703 = vmul.f32 %v683, %v623
      %v704 = vmul.f32 %v686, %v623
      %v705 = vmul.f32 %v689, %v623
      %v706 = vmul.f32 %v692, %v623
      %v707 = vmul.f32 %v695, %v623
      %v708 = vadd.f32 %v696, 1e-06
      %v709 = vadd.f32 %v697, 1e-06
      %v710 = vadd.f32 %v698, 1e-06
      %v711 = vadd.f32 %v699, 1e-06
      %v712 = vadd.f32 %v700, 1e-06
      %v713 = vadd.f32 %v701, 1e-06
      %v714 = vadd.f32 %v702, 1e-06
      %v715 = vadd.f32 %v703, 1e-06
      %v716 = vadd.f32 %v704, 1e-06
      %v717 = vadd.f32 %v705, 1e-06
      %v718 = vadd.f32 %v706, 1e-06
      %v719 = vadd.f32 %v707, 1e-06
      %v720 = vrsqrt.pop %v708
      %v721 = vrsqrt.pop %v709
      %v722 = vrsqrt.pop %v710
      %v723 = vrsqrt.pop %v711
      %v724 = vrsqrt.pop %v712
      %v725 = vrsqrt.pop %v713
      %v726 = vrsqrt.pop %v714
      %v727 = vrsqrt.pop %v715
      %v728 = vrsqrt.pop %v716
      %v729 = vrsqrt.pop %v717
      %v730 = vrsqrt.pop %v718
      %v731 = vrsqrt.pop %v719
      %v732 = vmul.f32 %v636, %v720
      %v733 = vmul.f32 %v637, %v721
      %v734 = vmul.f32 %v638, %v722
      %v735 = vmul.f32 %v639, %v723
      %v736 = vmul.f32 %v640, %v724
      %v737 = vmul.f32 %v641, %v725
      %v738 = vmul.f32 %v642, %v726
      %v739 = vmul.f32 %v643, %v727
      %v740 = vmul.f32 %v644, %v728
      %v741 = vmul.f32 %v645, %v729
      %v742 = vmul.f32 %v646, %v730
      %v743 = vmul.f32 %v647, %v731
      %v744 = vlaneseq
      %v745 = vshrl.u32 %v744, 7
      %v746 = vsub.s32 0, %v745
      %v747 = vrot.slane %v583, %v746
      %v748 = vmul.f32 %v732, %v747
      %v749 = vmul.f32 %v733, %v747
      %v750 = vmul.f32 %v734, %v747
      %v751 = vmul.f32 %v735, %v747
      %v752 = vmul.f32 %v736, %v747
      %v753 = vmul.f32 %v737, %v747
      %v754 = vmul.f32 %v738, %v747
      %v755 = vmul.f32 %v739, %v747
      %v756 = vmul.f32 %v740, %v747
      %v757 = vmul.f32 %v741, %v747
      %v758 = vmul.f32 %v742, %v747
      %v759 = vmul.f32 %v743, %v747
      %761 = vrot.lane.b32.xlu0 %v747, 96
      %v762 = vpop.permute.xlu0 %761
      %v764 = vadd.f32 %v748, %v762
      %v765 = vadd.f32 %v749, %v762
      %v766 = vadd.f32 %v750, %v762
      %v767 = vadd.f32 %v751, %v762
      %v768 = vadd.f32 %v752, %v762
      %v769 = vadd.f32 %v753, %v762
      %v770 = vadd.f32 %v754, %v762
      %v771 = vadd.f32 %v755, %v762
      %v772 = vadd.f32 %v756, %v762
      %v773 = vadd.f32 %v757, %v762
      %v774 = vadd.f32 %v758, %v762
      %v775 = vadd.f32 %v759, %v762
      %v776 = vld [vmem:[%s4] sm:$0xff]
      %v777 = vld [vmem:[%s4 + $0x8] sm:$0xff]
      %v778 = vld [vmem:[%s4 + $0x10] sm:$0xff]
      %v779 = vld [vmem:[%s4 + $0x18] sm:$0xff]
      %v780 = vlaneseq
      %v781 = vshrl.u32 %v780, 7
      %v782 = vsub.s32 0, %v781
      %v783 = vrot.slane %v584, %v782
      %v785 = vsel %vm546, %v764, 0
      %v788 = vsel %vm546, %v765, 0
      %v791 = vsel %vm546, %v766, 0
      %v794 = vsel %vm546, %v767, 0
      %v797 = vsel %vm546, %v768, 0
      %v800 = vsel %vm546, %v769, 0
      %v803 = vsel %vm546, %v770, 0
      %v806 = vsel %vm546, %v771, 0
      %v809 = vsel %vm546, %v772, 0
      %v812 = vsel %vm546, %v773, 0
      %v815 = vsel %vm546, %v774, 0
      %v818 = vsel %vm546, %v775, 0
      %820 = vmatprep.subr.mxu0 0.0
      %821 = vmatpush1.msra.mxu0 0.0
      %822 = vmatprep.subr.mxu0 0.0
      %823 = vmatpush1.msra.mxu0 0.0
      %824 = vmatprep.subr.mxu0 0.0
      %825 = vmatpush1.msra.mxu0 0.0
      %826 = vmatprep.subr.mxu0 0.0
      %827 = vmatpush1.msra.mxu0 0.0
      %828 = vmatprep.subr.mxu0 0.0
      %829 = vmatpush1.msra.mxu0 0.0
      %830 = vmatprep.subr.mxu0 0.0
      %831 = vmatpush1.msra.mxu0 0.0
      %832 = vmatprep.subr.mxu0 0.0
      %833 = vmatpush1.msra.mxu0 0.0
      %834 = vmatprep.subr.mxu0 0.0
      %835 = vmatpush1.msra.mxu0 0.0
      %836 = vmatprep.subr.mxu0 0.0
      %837 = vmatpush1.msra.mxu0 0.0
      %838 = vmatprep.subr.mxu0 0.0
      %839 = vmatpush1.msra.mxu0 0.0
      %840 = vmatprep.subr.mxu0 0.0
      %841 = vmatpush1.msra.mxu0 0.0
      %842 = vmatprep.subr.mxu0 0.0
      %843 = vmatpush1.msra.mxu0 0.0
      %844 = vmatprep.subr.mxu0 0.0
      %845 = vmatpush1.msra.mxu0 %v779
      %846 = vmatprep.subr.mxu0 0.0
      %847 = vmatpush1.msra.mxu0 %v778
      %848 = vmatprep.subr.mxu0 0.0
      %849 = vmatpush1.msra.mxu0 %v777
      %850 = vmatprep.subr.mxu0 0.0
      %851 = vmatpush1.msra.mxu0 %v776
      %852 = vmatprep.subr.mxu0 0.0
      %853 = vmatpush2.msra.mxu0 0.0
      %854 = vmatprep.subr.mxu0 0.0
      %855 = vmatpush2.msra.mxu0 0.0
      %856 = vmatprep.subr.mxu0 0.0
      %857 = vmatpush2.msra.mxu0 0.0
      %858 = vmatprep.subr.mxu0 0.0
      %859 = vmatpush2.msra.mxu0 0.0
      %860 = vmatprep.subr.mxu0 0.0
      %861 = vmatpush2.msra.mxu0 0.0
      %862 = vmatprep.subr.mxu0 0.0
      %863 = vmatpush2.msra.mxu0 0.0
      %864 = vmatprep.subr.mxu0 0.0
      %865 = vmatpush2.msra.mxu0 0.0
      %866 = vmatprep.subr.mxu0 0.0
      %867 = vmatpush2.msra.mxu0 0.0
      %868 = vmatprep.subr.mxu0 0.0
      %869 = vmatpush2.msra.mxu0 0.0
      %870 = vmatprep.subr.mxu0 0.0
      %871 = vmatpush2.msra.mxu0 0.0
      %872 = vmatprep.subr.mxu0 0.0
      %873 = vmatpush2.msra.mxu0 0.0
      %874 = vmatprep.subr.mxu0 0.0
      %875 = vmatpush2.msra.mxu0 0.0
      %876 = vmatprep.subr.mxu0 0.0
      %877 = vmatpush2.msra.mxu0 0.0
      %878 = vmatprep.subr.mxu0 0.0
      %879 = vmatpush2.msra.mxu0 0.0
      %880 = vmatprep.subr.mxu0 0.0
      %881 = vmatpush2.msra.mxu0 0.0
      %882 = vmatprep.subr.mxu0 0.0
      %883 = vmatpush2.msra.mxu0 0.0
      %884 = vmatprep.mubr.f32.mxu0 0.0
      %885 = vmatmul.mubr.f32.gmra.mxu0 %v785
      %v886 = vpop.f32.mrf.mxu0
      %v887 = vadd.f32 %v783, %v886
      %v888 = vpop.f32.mrf.mxu0
      %889 = vmatprep.mubr.f32.mxu0 0.0
      %890 = vmatmul.mubr.f32.gmra.mxu0 %v788
      %v891 = vpop.f32.mrf.mxu0
      %v892 = vadd.f32 %v783, %v891
      %v893 = vpop.f32.mrf.mxu0
      %894 = vmatprep.mubr.f32.mxu0 0.0
      %895 = vmatmul.mubr.f32.gmra.mxu0 %v791
      %v896 = vpop.f32.mrf.mxu0
      %v897 = vadd.f32 %v783, %v896
      %v898 = vpop.f32.mrf.mxu0
      %899 = vmatprep.mubr.f32.mxu0 0.0
      %900 = vmatmul.mubr.f32.gmra.mxu0 %v794
      %v901 = vpop.f32.mrf.mxu0
      %v902 = vadd.f32 %v783, %v901
      %v903 = vpop.f32.mrf.mxu0
      %904 = vmatprep.mubr.f32.mxu0 0.0
      %905 = vmatmul.mubr.f32.gmra.mxu0 %v797
      %v906 = vpop.f32.mrf.mxu0
      %v907 = vadd.f32 %v783, %v906
      %v908 = vpop.f32.mrf.mxu0
      %909 = vmatprep.mubr.f32.mxu0 0.0
      %910 = vmatmul.mubr.f32.gmra.mxu0 %v800
      %v911 = vpop.f32.mrf.mxu0
      %v912 = vadd.f32 %v783, %v911
      %v913 = vpop.f32.mrf.mxu0
      %914 = vmatprep.mubr.f32.mxu0 0.0
      %915 = vmatmul.mubr.f32.gmra.mxu0 %v803
      %v916 = vpop.f32.mrf.mxu0
      %v917 = vadd.f32 %v783, %v916
      %v918 = vpop.f32.mrf.mxu0
      %919 = vmatprep.mubr.f32.mxu0 0.0
      %920 = vmatmul.mubr.f32.gmra.mxu0 %v806
      %v921 = vpop.f32.mrf.mxu0
      %v922 = vadd.f32 %v783, %v921
      %v923 = vpop.f32.mrf.mxu0
      %924 = vmatprep.mubr.f32.mxu0 0.0
      %925 = vmatmul.mubr.f32.gmra.mxu0 %v809
      %v926 = vpop.f32.mrf.mxu0
      %v927 = vadd.f32 %v783, %v926
      %v928 = vpop.f32.mrf.mxu0
      %929 = vmatprep.mubr.f32.mxu0 0.0
      %930 = vmatmul.mubr.f32.gmra.mxu0 %v812
      %v931 = vpop.f32.mrf.mxu0
      %v932 = vadd.f32 %v783, %v931
      %v933 = vpop.f32.mrf.mxu0
      %934 = vmatprep.mubr.f32.mxu0 0.0
      %935 = vmatmul.mubr.f32.gmra.mxu0 %v815
      %v936 = vpop.f32.mrf.mxu0
      %v937 = vadd.f32 %v783, %v936
      %v938 = vpop.f32.mrf.mxu0
      %939 = vmatprep.mubr.f32.mxu0 0.0
      %940 = vmatmul.mubr.f32.gmra.mxu0 %v818
      %v941 = vpop.f32.mrf.mxu0
      %v942 = vadd.f32 %v783, %v941
      %v943 = vpop.f32.mrf.mxu0
      %944 = vdwg.mxu0
      %v945 = vmul.f32 %v887, 0.35355338
      %v946 = vmul.f32 %v892, 0.35355338
      %v947 = vmul.f32 %v897, 0.35355338
      %v948 = vmul.f32 %v902, 0.35355338
      %v949 = vmul.f32 %v907, 0.35355338
      %v950 = vmul.f32 %v912, 0.35355338
      %v951 = vmul.f32 %v917, 0.35355338
      %v952 = vmul.f32 %v922, 0.35355338
      %v953 = vmul.f32 %v927, 0.35355338
      %v954 = vmul.f32 %v932, 0.35355338
      %v955 = vmul.f32 %v937, 0.35355338
      %v956 = vmul.f32 %v942, 0.35355338
      %969 = vrot.lane.b32.xlu0 %v887, 96
      %v970 = vpop.permute.xlu0 %969
      %971 = vrot.lane.b32.xlu0 %v892, 96
      %v972 = vpop.permute.xlu0 %971
      %973 = vrot.lane.b32.xlu0 %v897, 96
      %v974 = vpop.permute.xlu0 %973
      %975 = vrot.lane.b32.xlu0 %v902, 96
      %v976 = vpop.permute.xlu0 %975
      %977 = vrot.lane.b32.xlu0 %v907, 96
      %v978 = vpop.permute.xlu0 %977
      %979 = vrot.lane.b32.xlu0 %v912, 96
      %v980 = vpop.permute.xlu0 %979
      %981 = vrot.lane.b32.xlu0 %v917, 96
      %v982 = vpop.permute.xlu0 %981
      %983 = vrot.lane.b32.xlu0 %v922, 96
      %v984 = vpop.permute.xlu0 %983
      %985 = vrot.lane.b32.xlu0 %v927, 96
      %v986 = vpop.permute.xlu0 %985
      %987 = vrot.lane.b32.xlu0 %v932, 96
      %v988 = vpop.permute.xlu0 %987
      %989 = vrot.lane.b32.xlu0 %v937, 96
      %v990 = vpop.permute.xlu0 %989
      %991 = vrot.lane.b32.xlu0 %v942, 96
      %v992 = vpop.permute.xlu0 %991
      %vm993 = vcmask 64512
      %v995 = vsel %vm993, %v945, 0
      %v998 = vsel %vm993, %v946, 0
      %v1001 = vsel %vm993, %v947, 0
      %v1004 = vsel %vm993, %v948, 0
      %v1007 = vsel %vm993, %v949, 0
      %v1010 = vsel %vm993, %v950, 0
      %v1013 = vsel %vm993, %v951, 0
      %v1016 = vsel %vm993, %v952, 0
      %v1019 = vsel %vm993, %v953, 0
      %v1022 = vsel %vm993, %v954, 0
      %v1025 = vsel %vm993, %v955, 0
      %v1028 = vsel %vm993, %v956, 0
      %v1030 = vsel %vm993, %v970, 0
      %v1032 = vsel %vm993, %v972, 0
      %v1034 = vsel %vm993, %v974, 0
      %v1036 = vsel %vm993, %v976, 0
      %v1038 = vsel %vm993, %v978, 0
      %v1040 = vsel %vm993, %v980, 0
      %v1042 = vsel %vm993, %v982, 0
      %v1044 = vsel %vm993, %v984, 0
      %v1046 = vsel %vm993, %v986, 0
      %v1048 = vsel %vm993, %v988, 0
      %v1050 = vsel %vm993, %v990, 0
      %v1052 = vsel %vm993, %v992, 0
      %1054 = vmatprep.subr.mxu0 0.0
      %1055 = vmatpush1.xpose.msra.mxu0 0.0
      %1056 = vmatprep.subr.mxu0 0.0
      %1057 = vmatpush1.xpose.msra.mxu0 0.0
      %1058 = vmatprep.subr.mxu0 0.0
      %1059 = vmatpush1.xpose.msra.mxu0 0.0
      %1060 = vmatprep.subr.mxu0 0.0
      %1061 = vmatpush1.xpose.msra.mxu0 0.0
      %1062 = vmatprep.subr.mxu0 0.0
      %1063 = vmatpush1.xpose.msra.mxu0 %v1052
      %1064 = vmatprep.subr.mxu0 0.0
      %1065 = vmatpush1.xpose.msra.mxu0 %v1050
      %1066 = vmatprep.subr.mxu0 0.0
      %1067 = vmatpush1.xpose.msra.mxu0 %v1048
      %1068 = vmatprep.subr.mxu0 0.0
      %1069 = vmatpush1.xpose.msra.mxu0 %v1046
      %1070 = vmatprep.subr.mxu0 0.0
      %1071 = vmatpush1.xpose.msra.mxu0 %v1044
      %1072 = vmatprep.subr.mxu0 0.0
      %1073 = vmatpush1.xpose.msra.mxu0 %v1042
      %1074 = vmatprep.subr.mxu0 0.0
      %1075 = vmatpush1.xpose.msra.mxu0 %v1040
      %1076 = vmatprep.subr.mxu0 0.0
      %1077 = vmatpush1.xpose.msra.mxu0 %v1038
      %1078 = vmatprep.subr.mxu0 0.0
      %1079 = vmatpush1.xpose.msra.mxu0 %v1036
      %1080 = vmatprep.subr.mxu0 0.0
      %1081 = vmatpush1.xpose.msra.mxu0 %v1034
      %1082 = vmatprep.subr.mxu0 0.0
      %1083 = vmatpush1.xpose.msra.mxu0 %v1032
      %1084 = vmatprep.subr.mxu0 0.0
      %1085 = vmatpush1.xpose.msra.mxu0 %v1030
      %1086 = vmatprep.subr.mxu0 0.0
      %1087 = vmatpush2.xpose.msra.mxu0 0.0
      %1088 = vmatprep.subr.mxu0 0.0
      %1089 = vmatpush2.xpose.msra.mxu0 0.0
      %1090 = vmatprep.subr.mxu0 0.0
      %1091 = vmatpush2.xpose.msra.mxu0 0.0
      %1092 = vmatprep.subr.mxu0 0.0
      %1093 = vmatpush2.xpose.msra.mxu0 0.0
      %1094 = vmatprep.subr.mxu0 0.0
      %1095 = vmatpush2.xpose.msra.mxu0 0.0
      %1096 = vmatprep.subr.mxu0 0.0
      %1097 = vmatpush2.xpose.msra.mxu0 0.0
      %1098 = vmatprep.subr.mxu0 0.0
      %1099 = vmatpush2.xpose.msra.mxu0 0.0
      %1100 = vmatprep.subr.mxu0 0.0
      %1101 = vmatpush2.xpose.msra.mxu0 0.0
      %1102 = vmatprep.subr.mxu0 0.0
      %1103 = vmatpush2.xpose.msra.mxu0 0.0
      %1104 = vmatprep.subr.mxu0 0.0
      %1105 = vmatpush2.xpose.msra.mxu0 0.0
      %1106 = vmatprep.subr.mxu0 0.0
      %1107 = vmatpush2.xpose.msra.mxu0 0.0
      %1108 = vmatprep.subr.mxu0 0.0
      %1109 = vmatpush2.xpose.msra.mxu0 0.0
      %1110 = vmatprep.subr.mxu0 0.0
      %1111 = vmatpush2.xpose.msra.mxu0 0.0
      %1112 = vmatprep.subr.mxu0 0.0
      %1113 = vmatpush2.xpose.msra.mxu0 0.0
      %1114 = vmatprep.subr.mxu0 0.0
      %1115 = vmatpush2.xpose.msra.mxu0 0.0
      %1116 = vmatprep.subr.mxu0 0.0
      %1117 = vmatpush2.xpose.msra.mxu0 0.0
      %1118 = vmatprep.mubr.f32.mxu0 0.0
      %1119 = vmatmul.mubr.f32.gmra.mxu0 %v995
      %v1120 = vpop.f32.mrf.mxu0
      %v1121 = vadd.f32 %v571, %v1120
      %v1122 = vpop.f32.mrf.mxu0
      %1123 = vmatprep.mubr.f32.mxu0 0.0
      %1124 = vmatmul.mubr.f32.gmra.mxu0 %v998
      %v1125 = vpop.f32.mrf.mxu0
      %v1126 = vadd.f32 %v572, %v1125
      %v1127 = vpop.f32.mrf.mxu0
      %1128 = vmatprep.mubr.f32.mxu0 0.0
      %1129 = vmatmul.mubr.f32.gmra.mxu0 %v1001
      %v1130 = vpop.f32.mrf.mxu0
      %v1131 = vadd.f32 %v573, %v1130
      %v1132 = vpop.f32.mrf.mxu0
      %1133 = vmatprep.mubr.f32.mxu0 0.0
      %1134 = vmatmul.mubr.f32.gmra.mxu0 %v1004
      %v1135 = vpop.f32.mrf.mxu0
      %v1136 = vadd.f32 %v574, %v1135
      %v1137 = vpop.f32.mrf.mxu0
      %1138 = vmatprep.mubr.f32.mxu0 0.0
      %1139 = vmatmul.mubr.f32.gmra.mxu0 %v1007
      %v1140 = vpop.f32.mrf.mxu0
      %v1141 = vadd.f32 %v575, %v1140
      %v1142 = vpop.f32.mrf.mxu0
      %1143 = vmatprep.mubr.f32.mxu0 0.0
      %1144 = vmatmul.mubr.f32.gmra.mxu0 %v1010
      %v1145 = vpop.f32.mrf.mxu0
      %v1146 = vadd.f32 %v576, %v1145
      %v1147 = vpop.f32.mrf.mxu0
      %1148 = vmatprep.mubr.f32.mxu0 0.0
      %1149 = vmatmul.mubr.f32.gmra.mxu0 %v1013
      %v1150 = vpop.f32.mrf.mxu0
      %v1151 = vadd.f32 %v577, %v1150
      %v1152 = vpop.f32.mrf.mxu0
      %1153 = vmatprep.mubr.f32.mxu0 0.0
      %1154 = vmatmul.mubr.f32.gmra.mxu0 %v1016
      %v1155 = vpop.f32.mrf.mxu0
      %v1156 = vadd.f32 %v578, %v1155
      %v1157 = vpop.f32.mrf.mxu0
      %1158 = vmatprep.mubr.f32.mxu0 0.0
      %1159 = vmatmul.mubr.f32.gmra.mxu0 %v1019
      %v1160 = vpop.f32.mrf.mxu0
      %v1161 = vadd.f32 %v579, %v1160
      %v1162 = vpop.f32.mrf.mxu0
      %1163 = vmatprep.mubr.f32.mxu0 0.0
      %1164 = vmatmul.mubr.f32.gmra.mxu0 %v1022
      %v1165 = vpop.f32.mrf.mxu0
      %v1166 = vadd.f32 %v580, %v1165
      %v1167 = vpop.f32.mrf.mxu0
      %1168 = vmatprep.mubr.f32.mxu0 0.0
      %1169 = vmatmul.mubr.f32.gmra.mxu0 %v1025
      %v1170 = vpop.f32.mrf.mxu0
      %v1171 = vadd.f32 %v581, %v1170
      %v1172 = vpop.f32.mrf.mxu0
      %1173 = vmatprep.mubr.f32.mxu0 0.0
      %1174 = vmatmul.mubr.f32.gmra.mxu0 %v1028
      %v1175 = vpop.f32.mrf.mxu0
      %v1176 = vadd.f32 %v582, %v1175
      %v1177 = vpop.f32.mrf.mxu0
      %1178 = vdwg.mxu0
      %vm1179 = vcmask 785408
      %v1180 = vsel %vm1179, %v1121, -inf
      %1181 = vmax.xlane.f32.xlu0 %v1180
      %v1182 = vpop.xlane.xlu0 %1181
      %v1183 = vsel %vm1179, %v1126, -inf
      %1184 = vmax.xlane.f32.xlu0 %v1183
      %v1185 = vpop.xlane.xlu0 %1184
      %v1186 = vsel %vm1179, %v1131, -inf
      %1187 = vmax.xlane.f32.xlu0 %v1186
      %v1188 = vpop.xlane.xlu0 %1187
      %v1189 = vsel %vm1179, %v1136, -inf
      %1190 = vmax.xlane.f32.xlu0 %v1189
      %v1191 = vpop.xlane.xlu0 %1190
      %v1192 = vsel %vm1179, %v1141, -inf
      %1193 = vmax.xlane.f32.xlu0 %v1192
      %v1194 = vpop.xlane.xlu0 %1193
      %v1195 = vsel %vm1179, %v1146, -inf
      %1196 = vmax.xlane.f32.xlu0 %v1195
      %v1197 = vpop.xlane.xlu0 %1196
      %v1198 = vsel %vm1179, %v1151, -inf
      %1199 = vmax.xlane.f32.xlu0 %v1198
      %v1200 = vpop.xlane.xlu0 %1199
      %v1201 = vsel %vm1179, %v1156, -inf
      %1202 = vmax.xlane.f32.xlu0 %v1201
      %v1203 = vpop.xlane.xlu0 %1202
      %v1204 = vsel %vm1179, %v1161, -inf
      %1205 = vmax.xlane.f32.xlu0 %v1204
      %v1206 = vpop.xlane.xlu0 %1205
      %v1207 = vsel %vm1179, %v1166, -inf
      %1208 = vmax.xlane.f32.xlu0 %v1207
      %v1209 = vpop.xlane.xlu0 %1208
      %v1210 = vsel %vm1179, %v1171, -inf
      %1211 = vmax.xlane.f32.xlu0 %v1210
      %v1212 = vpop.xlane.xlu0 %1211
      %v1213 = vsel %vm1179, %v1176, -inf
      %1214 = vmax.xlane.f32.xlu0 %v1213
      %v1215 = vpop.xlane.xlu0 %1214
      %v1216 = vsub.f32 %v1121, %v1182
      %v1217 = vsub.f32 %v1126, %v1185
      %v1218 = vsub.f32 %v1131, %v1188
      %v1219 = vsub.f32 %v1136, %v1191
      %v1220 = vsub.f32 %v1141, %v1194
      %v1221 = vsub.f32 %v1146, %v1197
      %v1222 = vsub.f32 %v1151, %v1200
      %v1223 = vsub.f32 %v1156, %v1203
      %v1224 = vsub.f32 %v1161, %v1206
      %v1225 = vsub.f32 %v1166, %v1209
      %v1226 = vsub.f32 %v1171, %v1212
      %v1227 = vsub.f32 %v1176, %v1215
      %v1228 = vmul.f32 %v1216, 1.442695
      %v1229 = vpow.pop %v1228
      %v1230 = vmul.f32 %v1217, 1.442695
      %v1231 = vpow.pop %v1230
      %v1232 = vmul.f32 %v1218, 1.442695
      %v1233 = vpow.pop %v1232
      %v1234 = vmul.f32 %v1219, 1.442695
      %v1235 = vpow.pop %v1234
      %v1236 = vmul.f32 %v1220, 1.442695
      %v1237 = vpow.pop %v1236
      %v1238 = vmul.f32 %v1221, 1.442695
      %v1239 = vpow.pop %v1238
      %v1240 = vmul.f32 %v1222, 1.442695
      %v1241 = vpow.pop %v1240
      %v1242 = vmul.f32 %v1223, 1.442695
      %v1243 = vpow.pop %v1242
      %v1244 = vmul.f32 %v1224, 1.442695
      %v1245 = vpow.pop %v1244
      %v1246 = vmul.f32 %v1225, 1.442695
      %v1247 = vpow.pop %v1246
      %v1248 = vmul.f32 %v1226, 1.442695
      %v1249 = vpow.pop %v1248
      %v1250 = vmul.f32 %v1227, 1.442695
      %v1251 = vpow.pop %v1250
      %v1252 = vsel %vm1179, %v1229, 0.0
      %1253 = vadd.xlane.f32.xlu0 %v1252
      %v1254 = vpop.xlane.xlu0 %1253
      %v1255 = vsel %vm1179, %v1231, 0.0
      %1256 = vadd.xlane.f32.xlu0 %v1255
      %v1257 = vpop.xlane.xlu0 %1256
      %v1258 = vsel %vm1179, %v1233, 0.0
      %1259 = vadd.xlane.f32.xlu0 %v1258
      %v1260 = vpop.xlane.xlu0 %1259
      %v1261 = vsel %vm1179, %v1235, 0.0
      %1262 = vadd.xlane.f32.xlu0 %v1261
      %v1263 = vpop.xlane.xlu0 %1262
      %v1264 = vsel %vm1179, %v1237, 0.0
      %1265 = vadd.xlane.f32.xlu0 %v1264
      %v1266 = vpop.xlane.xlu0 %1265
      %v1267 = vsel %vm1179, %v1239, 0.0
      %1268 = vadd.xlane.f32.xlu0 %v1267
      %v1269 = vpop.xlane.xlu0 %1268
      %v1270 = vsel %vm1179, %v1241, 0.0
      %1271 = vadd.xlane.f32.xlu0 %v1270
      %v1272 = vpop.xlane.xlu0 %1271
      %v1273 = vsel %vm1179, %v1243, 0.0
      %1274 = vadd.xlane.f32.xlu0 %v1273
      %v1275 = vpop.xlane.xlu0 %1274
      %v1276 = vsel %vm1179, %v1245, 0.0
      %1277 = vadd.xlane.f32.xlu0 %v1276
      %v1278 = vpop.xlane.xlu0 %1277
      %v1279 = vsel %vm1179, %v1247, 0.0
      %1280 = vadd.xlane.f32.xlu0 %v1279
      %v1281 = vpop.xlane.xlu0 %1280
      %v1282 = vsel %vm1179, %v1249, 0.0
      %1283 = vadd.xlane.f32.xlu0 %v1282
      %v1284 = vpop.xlane.xlu0 %1283
      %v1285 = vsel %vm1179, %v1251, 0.0
      %1286 = vadd.xlane.f32.xlu0 %v1285
      %v1287 = vpop.xlane.xlu0 %1286
      %v1288 = vrcp.pop %v1254
      %v1289 = vmul.f32 %v1229, %v1288
      %v1290 = vrcp.pop %v1257
      %v1291 = vmul.f32 %v1231, %v1290
      %v1292 = vrcp.pop %v1260
      %v1293 = vmul.f32 %v1233, %v1292
      %v1294 = vrcp.pop %v1263
      %v1295 = vmul.f32 %v1235, %v1294
      %v1296 = vrcp.pop %v1266
      %v1297 = vmul.f32 %v1237, %v1296
      %v1298 = vrcp.pop %v1269
      %v1299 = vmul.f32 %v1239, %v1298
      %v1300 = vrcp.pop %v1272
      %v1301 = vmul.f32 %v1241, %v1300
      %v1302 = vrcp.pop %v1275
      %v1303 = vmul.f32 %v1243, %v1302
      %v1304 = vrcp.pop %v1278
      %v1305 = vmul.f32 %v1245, %v1304
      %v1306 = vrcp.pop %v1281
      %v1307 = vmul.f32 %v1247, %v1306
      %v1308 = vrcp.pop %v1284
      %v1309 = vmul.f32 %v1249, %v1308
      %v1310 = vrcp.pop %v1287
      %v1311 = vmul.f32 %v1251, %v1310
      %1312 = vrot.lane.b32.xlu0 %v887, 64
      %v1313 = vpop.permute.xlu0 %1312
      %1314 = vrot.lane.b32.xlu0 %v892, 64
      %v1315 = vpop.permute.xlu0 %1314
      %1316 = vrot.lane.b32.xlu0 %v897, 64
      %v1317 = vpop.permute.xlu0 %1316
      %1318 = vrot.lane.b32.xlu0 %v902, 64
      %v1319 = vpop.permute.xlu0 %1318
      %1320 = vrot.lane.b32.xlu0 %v907, 64
      %v1321 = vpop.permute.xlu0 %1320
      %1322 = vrot.lane.b32.xlu0 %v912, 64
      %v1323 = vpop.permute.xlu0 %1322
      %1324 = vrot.lane.b32.xlu0 %v917, 64
      %v1325 = vpop.permute.xlu0 %1324
      %1326 = vrot.lane.b32.xlu0 %v922, 64
      %v1327 = vpop.permute.xlu0 %1326
      %1328 = vrot.lane.b32.xlu0 %v927, 64
      %v1329 = vpop.permute.xlu0 %1328
      %1330 = vrot.lane.b32.xlu0 %v932, 64
      %v1331 = vpop.permute.xlu0 %1330
      %1332 = vrot.lane.b32.xlu0 %v937, 64
      %v1333 = vpop.permute.xlu0 %1332
      %1334 = vrot.lane.b32.xlu0 %v942, 64
      %v1335 = vpop.permute.xlu0 %1334
      %v1349 = vsel %vm1179, %v1289, 0
      %v1352 = vsel %vm1179, %v1291, 0
      %v1355 = vsel %vm1179, %v1293, 0
      %v1358 = vsel %vm1179, %v1295, 0
      %v1361 = vsel %vm1179, %v1297, 0
      %v1364 = vsel %vm1179, %v1299, 0
      %v1367 = vsel %vm1179, %v1301, 0
      %v1370 = vsel %vm1179, %v1303, 0
      %v1373 = vsel %vm1179, %v1305, 0
      %v1376 = vsel %vm1179, %v1307, 0
      %v1379 = vsel %vm1179, %v1309, 0
      %v1382 = vsel %vm1179, %v1311, 0
      %1384 = vmatprep.subr.mxu0 0.0
      %1385 = vmatpush1.msra.mxu0 0.0
      %1386 = vmatprep.subr.mxu0 0.0
      %1387 = vmatpush1.msra.mxu0 0.0
      %1388 = vmatprep.subr.mxu0 0.0
      %1389 = vmatpush1.msra.mxu0 0.0
      %1390 = vmatprep.subr.mxu0 0.0
      %1391 = vmatpush1.msra.mxu0 0.0
      %1392 = vmatprep.subr.mxu0 0.0
      %1393 = vmatpush1.msra.mxu0 %v1335
      %1394 = vmatprep.subr.mxu0 0.0
      %1395 = vmatpush1.msra.mxu0 %v1333
      %1396 = vmatprep.subr.mxu0 0.0
      %1397 = vmatpush1.msra.mxu0 %v1331
      %1398 = vmatprep.subr.mxu0 0.0
      %1399 = vmatpush1.msra.mxu0 %v1329
      %1400 = vmatprep.subr.mxu0 0.0
      %1401 = vmatpush1.msra.mxu0 %v1327
      %1402 = vmatprep.subr.mxu0 0.0
      %1403 = vmatpush1.msra.mxu0 %v1325
      %1404 = vmatprep.subr.mxu0 0.0
      %1405 = vmatpush1.msra.mxu0 %v1323
      %1406 = vmatprep.subr.mxu0 0.0
      %1407 = vmatpush1.msra.mxu0 %v1321
      %1408 = vmatprep.subr.mxu0 0.0
      %1409 = vmatpush1.msra.mxu0 %v1319
      %1410 = vmatprep.subr.mxu0 0.0
      %1411 = vmatpush1.msra.mxu0 %v1317
      %1412 = vmatprep.subr.mxu0 0.0
      %1413 = vmatpush1.msra.mxu0 %v1315
      %1414 = vmatprep.subr.mxu0 0.0
      %1415 = vmatpush1.msra.mxu0 %v1313
      %1416 = vmatprep.subr.mxu0 0.0
      %1417 = vmatpush2.msra.mxu0 0.0
      %1418 = vmatprep.subr.mxu0 0.0
      %1419 = vmatpush2.msra.mxu0 0.0
      %1420 = vmatprep.subr.mxu0 0.0
      %1421 = vmatpush2.msra.mxu0 0.0
      %1422 = vmatprep.subr.mxu0 0.0
      %1423 = vmatpush2.msra.mxu0 0.0
      %1424 = vmatprep.subr.mxu0 0.0
      %1425 = vmatpush2.msra.mxu0 0.0
      %1426 = vmatprep.subr.mxu0 0.0
      %1427 = vmatpush2.msra.mxu0 0.0
      %1428 = vmatprep.subr.mxu0 0.0
      %1429 = vmatpush2.msra.mxu0 0.0
      %1430 = vmatprep.subr.mxu0 0.0
      %1431 = vmatpush2.msra.mxu0 0.0
      %1432 = vmatprep.subr.mxu0 0.0
      %1433 = vmatpush2.msra.mxu0 0.0
      %1434 = vmatprep.subr.mxu0 0.0
      %1435 = vmatpush2.msra.mxu0 0.0
      %1436 = vmatprep.subr.mxu0 0.0
      %1437 = vmatpush2.msra.mxu0 0.0
      %1438 = vmatprep.subr.mxu0 0.0
      %1439 = vmatpush2.msra.mxu0 0.0
      %1440 = vmatprep.subr.mxu0 0.0
      %1441 = vmatpush2.msra.mxu0 0.0
      %1442 = vmatprep.subr.mxu0 0.0
      %1443 = vmatpush2.msra.mxu0 0.0
      %1444 = vmatprep.subr.mxu0 0.0
      %1445 = vmatpush2.msra.mxu0 0.0
      %1446 = vmatprep.subr.mxu0 0.0
      %1447 = vmatpush2.msra.mxu0 0.0
      %1448 = vmatprep.mubr.f32.mxu0 0.0
      %1449 = vmatmul.mubr.f32.gmra.mxu0 %v1349
      %v1450 = vpop.f32.mrf.mxu0
      %v1451 = vadd.f32 0.0, %v1450
      %v1452 = vpop.f32.mrf.mxu0
      %1453 = vmatprep.mubr.f32.mxu0 0.0
      %1454 = vmatmul.mubr.f32.gmra.mxu0 %v1352
      %v1455 = vpop.f32.mrf.mxu0
      %v1456 = vadd.f32 0.0, %v1455
      %v1457 = vpop.f32.mrf.mxu0
      %1458 = vmatprep.mubr.f32.mxu0 0.0
      %1459 = vmatmul.mubr.f32.gmra.mxu0 %v1355
      %v1460 = vpop.f32.mrf.mxu0
      %v1461 = vadd.f32 0.0, %v1460
      %v1462 = vpop.f32.mrf.mxu0
      %1463 = vmatprep.mubr.f32.mxu0 0.0
      %1464 = vmatmul.mubr.f32.gmra.mxu0 %v1358
      %v1465 = vpop.f32.mrf.mxu0
      %v1466 = vadd.f32 0.0, %v1465
      %v1467 = vpop.f32.mrf.mxu0
      %1468 = vmatprep.mubr.f32.mxu0 0.0
      %1469 = vmatmul.mubr.f32.gmra.mxu0 %v1361
      %v1470 = vpop.f32.mrf.mxu0
      %v1471 = vadd.f32 0.0, %v1470
      %v1472 = vpop.f32.mrf.mxu0
      %1473 = vmatprep.mubr.f32.mxu0 0.0
      %1474 = vmatmul.mubr.f32.gmra.mxu0 %v1364
      %v1475 = vpop.f32.mrf.mxu0
      %v1476 = vadd.f32 0.0, %v1475
      %v1477 = vpop.f32.mrf.mxu0
      %1478 = vmatprep.mubr.f32.mxu0 0.0
      %1479 = vmatmul.mubr.f32.gmra.mxu0 %v1367
      %v1480 = vpop.f32.mrf.mxu0
      %v1481 = vadd.f32 0.0, %v1480
      %v1482 = vpop.f32.mrf.mxu0
      %1483 = vmatprep.mubr.f32.mxu0 0.0
      %1484 = vmatmul.mubr.f32.gmra.mxu0 %v1370
      %v1485 = vpop.f32.mrf.mxu0
      %v1486 = vadd.f32 0.0, %v1485
      %v1487 = vpop.f32.mrf.mxu0
      %1488 = vmatprep.mubr.f32.mxu0 0.0
      %1489 = vmatmul.mubr.f32.gmra.mxu0 %v1373
      %v1490 = vpop.f32.mrf.mxu0
      %v1491 = vadd.f32 0.0, %v1490
      %v1492 = vpop.f32.mrf.mxu0
      %1493 = vmatprep.mubr.f32.mxu0 0.0
      %1494 = vmatmul.mubr.f32.gmra.mxu0 %v1376
      %v1495 = vpop.f32.mrf.mxu0
      %v1496 = vadd.f32 0.0, %v1495
      %v1497 = vpop.f32.mrf.mxu0
      %1498 = vmatprep.mubr.f32.mxu0 0.0
      %1499 = vmatmul.mubr.f32.gmra.mxu0 %v1379
      %v1500 = vpop.f32.mrf.mxu0
      %v1501 = vadd.f32 0.0, %v1500
      %v1502 = vpop.f32.mrf.mxu0
      %1503 = vmatprep.mubr.f32.mxu0 0.0
      %1504 = vmatmul.mubr.f32.gmra.mxu0 %v1382
      %v1505 = vpop.f32.mrf.mxu0
      %v1506 = vadd.f32 0.0, %v1505
      %v1507 = vpop.f32.mrf.mxu0
      %1508 = vdwg.mxu0
      %1509 = vrot.lane.b32.xlu0 %v945, 120
      %v1510 = vpop.permute.xlu0 %1509
      %1511 = vrot.lane.b32.xlu0 %v946, 120
      %v1512 = vpop.permute.xlu0 %1511
      %1513 = vrot.lane.b32.xlu0 %v947, 120
      %v1514 = vpop.permute.xlu0 %1513
      %1515 = vrot.lane.b32.xlu0 %v948, 120
      %v1516 = vpop.permute.xlu0 %1515
      %1517 = vrot.lane.b32.xlu0 %v949, 120
      %v1518 = vpop.permute.xlu0 %1517
      %1519 = vrot.lane.b32.xlu0 %v950, 120
      %v1520 = vpop.permute.xlu0 %1519
      %1521 = vrot.lane.b32.xlu0 %v951, 120
      %v1522 = vpop.permute.xlu0 %1521
      %1523 = vrot.lane.b32.xlu0 %v952, 120
      %v1524 = vpop.permute.xlu0 %1523
      %1525 = vrot.lane.b32.xlu0 %v953, 120
      %v1526 = vpop.permute.xlu0 %1525
      %1527 = vrot.lane.b32.xlu0 %v954, 120
      %v1528 = vpop.permute.xlu0 %1527
      %1529 = vrot.lane.b32.xlu0 %v955, 120
      %v1530 = vpop.permute.xlu0 %1529
      %1531 = vrot.lane.b32.xlu0 %v956, 120
      %v1532 = vpop.permute.xlu0 %1531
      %1533 = vrot.lane.b32.xlu0 %v887, 88
      %v1534 = vpop.permute.xlu0 %1533
      %1535 = vrot.lane.b32.xlu0 %v892, 88
      %v1536 = vpop.permute.xlu0 %1535
      %1537 = vrot.lane.b32.xlu0 %v897, 88
      %v1538 = vpop.permute.xlu0 %1537
      %1539 = vrot.lane.b32.xlu0 %v902, 88
      %v1540 = vpop.permute.xlu0 %1539
      %1541 = vrot.lane.b32.xlu0 %v907, 88
      %v1542 = vpop.permute.xlu0 %1541
      %1543 = vrot.lane.b32.xlu0 %v912, 88
      %v1544 = vpop.permute.xlu0 %1543
      %1545 = vrot.lane.b32.xlu0 %v917, 88
      %v1546 = vpop.permute.xlu0 %1545
      %1547 = vrot.lane.b32.xlu0 %v922, 88
      %v1548 = vpop.permute.xlu0 %1547
      %1549 = vrot.lane.b32.xlu0 %v927, 88
      %v1550 = vpop.permute.xlu0 %1549
      %1551 = vrot.lane.b32.xlu0 %v932, 88
      %v1552 = vpop.permute.xlu0 %1551
      %1553 = vrot.lane.b32.xlu0 %v937, 88
      %v1554 = vpop.permute.xlu0 %1553
      %1555 = vrot.lane.b32.xlu0 %v942, 88
      %v1556 = vpop.permute.xlu0 %1555
      %v1557 = vsel %vm993, %v1510, 0
      %v1559 = vsel %vm993, %v1512, 0
      %v1561 = vsel %vm993, %v1514, 0
      %v1563 = vsel %vm993, %v1516, 0
      %v1565 = vsel %vm993, %v1518, 0
      %v1567 = vsel %vm993, %v1520, 0
      %v1569 = vsel %vm993, %v1522, 0
      %v1571 = vsel %vm993, %v1524, 0
      %v1573 = vsel %vm993, %v1526, 0
      %v1575 = vsel %vm993, %v1528, 0
      %v1577 = vsel %vm993, %v1530, 0
      %v1579 = vsel %vm993, %v1532, 0
      %v1581 = vsel %vm993, %v1534, 0
      %v1583 = vsel %vm993, %v1536, 0
      %v1585 = vsel %vm993, %v1538, 0
      %v1587 = vsel %vm993, %v1540, 0
      %v1589 = vsel %vm993, %v1542, 0
      %v1591 = vsel %vm993, %v1544, 0
      %v1593 = vsel %vm993, %v1546, 0
      %v1595 = vsel %vm993, %v1548, 0
      %v1597 = vsel %vm993, %v1550, 0
      %v1599 = vsel %vm993, %v1552, 0
      %v1601 = vsel %vm993, %v1554, 0
      %v1603 = vsel %vm993, %v1556, 0
      %1605 = vmatprep.subr.mxu0 0.0
      %1606 = vmatpush1.xpose.msra.mxu0 0.0
      %1607 = vmatprep.subr.mxu0 0.0
      %1608 = vmatpush1.xpose.msra.mxu0 0.0
      %1609 = vmatprep.subr.mxu0 0.0
      %1610 = vmatpush1.xpose.msra.mxu0 0.0
      %1611 = vmatprep.subr.mxu0 0.0
      %1612 = vmatpush1.xpose.msra.mxu0 0.0
      %1613 = vmatprep.subr.mxu0 0.0
      %1614 = vmatpush1.xpose.msra.mxu0 %v1603
      %1615 = vmatprep.subr.mxu0 0.0
      %1616 = vmatpush1.xpose.msra.mxu0 %v1601
      %1617 = vmatprep.subr.mxu0 0.0
      %1618 = vmatpush1.xpose.msra.mxu0 %v1599
      %1619 = vmatprep.subr.mxu0 0.0
      %1620 = vmatpush1.xpose.msra.mxu0 %v1597
      %1621 = vmatprep.subr.mxu0 0.0
      %1622 = vmatpush1.xpose.msra.mxu0 %v1595
      %1623 = vmatprep.subr.mxu0 0.0
      %1624 = vmatpush1.xpose.msra.mxu0 %v1593
      %1625 = vmatprep.subr.mxu0 0.0
      %1626 = vmatpush1.xpose.msra.mxu0 %v1591
      %1627 = vmatprep.subr.mxu0 0.0
      %1628 = vmatpush1.xpose.msra.mxu0 %v1589
      %1629 = vmatprep.subr.mxu0 0.0
      %1630 = vmatpush1.xpose.msra.mxu0 %v1587
      %1631 = vmatprep.subr.mxu0 0.0
      %1632 = vmatpush1.xpose.msra.mxu0 %v1585
      %1633 = vmatprep.subr.mxu0 0.0
      %1634 = vmatpush1.xpose.msra.mxu0 %v1583
      %1635 = vmatprep.subr.mxu0 0.0
      %1636 = vmatpush1.xpose.msra.mxu0 %v1581
      %1637 = vmatprep.subr.mxu0 0.0
      %1638 = vmatpush2.xpose.msra.mxu0 0.0
      %1639 = vmatprep.subr.mxu0 0.0
      %1640 = vmatpush2.xpose.msra.mxu0 0.0
      %1641 = vmatprep.subr.mxu0 0.0
      %1642 = vmatpush2.xpose.msra.mxu0 0.0
      %1643 = vmatprep.subr.mxu0 0.0
      %1644 = vmatpush2.xpose.msra.mxu0 0.0
      %1645 = vmatprep.subr.mxu0 0.0
      %1646 = vmatpush2.xpose.msra.mxu0 0.0
      %1647 = vmatprep.subr.mxu0 0.0
      %1648 = vmatpush2.xpose.msra.mxu0 0.0
      %1649 = vmatprep.subr.mxu0 0.0
      %1650 = vmatpush2.xpose.msra.mxu0 0.0
      %1651 = vmatprep.subr.mxu0 0.0
      %1652 = vmatpush2.xpose.msra.mxu0 0.0
      %1653 = vmatprep.subr.mxu0 0.0
      %1654 = vmatpush2.xpose.msra.mxu0 0.0
      %1655 = vmatprep.subr.mxu0 0.0
      %1656 = vmatpush2.xpose.msra.mxu0 0.0
      %1657 = vmatprep.subr.mxu0 0.0
      %1658 = vmatpush2.xpose.msra.mxu0 0.0
      %1659 = vmatprep.subr.mxu0 0.0
      %1660 = vmatpush2.xpose.msra.mxu0 0.0
      %1661 = vmatprep.subr.mxu0 0.0
      %1662 = vmatpush2.xpose.msra.mxu0 0.0
      %1663 = vmatprep.subr.mxu0 0.0
      %1664 = vmatpush2.xpose.msra.mxu0 0.0
      %1665 = vmatprep.subr.mxu0 0.0
      %1666 = vmatpush2.xpose.msra.mxu0 0.0
      %1667 = vmatprep.subr.mxu0 0.0
      %1668 = vmatpush2.xpose.msra.mxu0 0.0
      %1669 = vmatprep.mubr.f32.mxu0 0.0
      %1670 = vmatmul.mubr.f32.gmra.mxu0 %v1557
      %v1671 = vpop.f32.mrf.mxu0
      %v1672 = vadd.f32 %v571, %v1671
      %v1673 = vpop.f32.mrf.mxu0
      %1674 = vmatprep.mubr.f32.mxu0 0.0
      %1675 = vmatmul.mubr.f32.gmra.mxu0 %v1559
      %v1676 = vpop.f32.mrf.mxu0
      %v1677 = vadd.f32 %v572, %v1676
      %v1678 = vpop.f32.mrf.mxu0
      %1679 = vmatprep.mubr.f32.mxu0 0.0
      %1680 = vmatmul.mubr.f32.gmra.mxu0 %v1561
      %v1681 = vpop.f32.mrf.mxu0
      %v1682 = vadd.f32 %v573, %v1681
      %v1683 = vpop.f32.mrf.mxu0
      %1684 = vmatprep.mubr.f32.mxu0 0.0
      %1685 = vmatmul.mubr.f32.gmra.mxu0 %v1563
      %v1686 = vpop.f32.mrf.mxu0
      %v1687 = vadd.f32 %v574, %v1686
      %v1688 = vpop.f32.mrf.mxu0
      %1689 = vmatprep.mubr.f32.mxu0 0.0
      %1690 = vmatmul.mubr.f32.gmra.mxu0 %v1565
      %v1691 = vpop.f32.mrf.mxu0
      %v1692 = vadd.f32 %v575, %v1691
      %v1693 = vpop.f32.mrf.mxu0
      %1694 = vmatprep.mubr.f32.mxu0 0.0
      %1695 = vmatmul.mubr.f32.gmra.mxu0 %v1567
      %v1696 = vpop.f32.mrf.mxu0
      %v1697 = vadd.f32 %v576, %v1696
      %v1698 = vpop.f32.mrf.mxu0
      %1699 = vmatprep.mubr.f32.mxu0 0.0
      %1700 = vmatmul.mubr.f32.gmra.mxu0 %v1569
      %v1701 = vpop.f32.mrf.mxu0
      %v1702 = vadd.f32 %v577, %v1701
      %v1703 = vpop.f32.mrf.mxu0
      %1704 = vmatprep.mubr.f32.mxu0 0.0
      %1705 = vmatmul.mubr.f32.gmra.mxu0 %v1571
      %v1706 = vpop.f32.mrf.mxu0
      %v1707 = vadd.f32 %v578, %v1706
      %v1708 = vpop.f32.mrf.mxu0
      %1709 = vmatprep.mubr.f32.mxu0 0.0
      %1710 = vmatmul.mubr.f32.gmra.mxu0 %v1573
      %v1711 = vpop.f32.mrf.mxu0
      %v1712 = vadd.f32 %v579, %v1711
      %v1713 = vpop.f32.mrf.mxu0
      %1714 = vmatprep.mubr.f32.mxu0 0.0
      %1715 = vmatmul.mubr.f32.gmra.mxu0 %v1575
      %v1716 = vpop.f32.mrf.mxu0
      %v1717 = vadd.f32 %v580, %v1716
      %v1718 = vpop.f32.mrf.mxu0
      %1719 = vmatprep.mubr.f32.mxu0 0.0
      %1720 = vmatmul.mubr.f32.gmra.mxu0 %v1577
      %v1721 = vpop.f32.mrf.mxu0
      %v1722 = vadd.f32 %v581, %v1721
      %v1723 = vpop.f32.mrf.mxu0
      %1724 = vmatprep.mubr.f32.mxu0 0.0
      %1725 = vmatmul.mubr.f32.gmra.mxu0 %v1579
      %v1726 = vpop.f32.mrf.mxu0
      %v1727 = vadd.f32 %v582, %v1726
      %v1728 = vpop.f32.mrf.mxu0
      %1729 = vdwg.mxu0
      %v1730 = vsel %vm1179, %v1672, -inf
      %1731 = vmax.xlane.f32.xlu0 %v1730
      %v1732 = vpop.xlane.xlu0 %1731
      %v1733 = vsel %vm1179, %v1677, -inf
      %1734 = vmax.xlane.f32.xlu0 %v1733
      %v1735 = vpop.xlane.xlu0 %1734
      %v1736 = vsel %vm1179, %v1682, -inf
      %1737 = vmax.xlane.f32.xlu0 %v1736
      %v1738 = vpop.xlane.xlu0 %1737
      %v1739 = vsel %vm1179, %v1687, -inf
      %1740 = vmax.xlane.f32.xlu0 %v1739
      %v1741 = vpop.xlane.xlu0 %1740
      %v1742 = vsel %vm1179, %v1692, -inf
      %1743 = vmax.xlane.f32.xlu0 %v1742
      %v1744 = vpop.xlane.xlu0 %1743
      %v1745 = vsel %vm1179, %v1697, -inf
      %1746 = vmax.xlane.f32.xlu0 %v1745
      %v1747 = vpop.xlane.xlu0 %1746
      %v1748 = vsel %vm1179, %v1702, -inf
      %1749 = vmax.xlane.f32.xlu0 %v1748
      %v1750 = vpop.xlane.xlu0 %1749
      %v1751 = vsel %vm1179, %v1707, -inf
      %1752 = vmax.xlane.f32.xlu0 %v1751
      %v1753 = vpop.xlane.xlu0 %1752
      %v1754 = vsel %vm1179, %v1712, -inf
      %1755 = vmax.xlane.f32.xlu0 %v1754
      %v1756 = vpop.xlane.xlu0 %1755
      %v1757 = vsel %vm1179, %v1717, -inf
      %1758 = vmax.xlane.f32.xlu0 %v1757
      %v1759 = vpop.xlane.xlu0 %1758
      %v1760 = vsel %vm1179, %v1722, -inf
      %1761 = vmax.xlane.f32.xlu0 %v1760
      %v1762 = vpop.xlane.xlu0 %1761
      %v1763 = vsel %vm1179, %v1727, -inf
      %1764 = vmax.xlane.f32.xlu0 %v1763
      %v1765 = vpop.xlane.xlu0 %1764
      %v1766 = vsub.f32 %v1672, %v1732
      %v1767 = vsub.f32 %v1677, %v1735
      %v1768 = vsub.f32 %v1682, %v1738
      %v1769 = vsub.f32 %v1687, %v1741
      %v1770 = vsub.f32 %v1692, %v1744
      %v1771 = vsub.f32 %v1697, %v1747
      %v1772 = vsub.f32 %v1702, %v1750
      %v1773 = vsub.f32 %v1707, %v1753
      %v1774 = vsub.f32 %v1712, %v1756
      %v1775 = vsub.f32 %v1717, %v1759
      %v1776 = vsub.f32 %v1722, %v1762
      %v1777 = vsub.f32 %v1727, %v1765
      %v1778 = vmul.f32 %v1766, 1.442695
      %v1779 = vpow.pop %v1778
      %v1780 = vmul.f32 %v1767, 1.442695
      %v1781 = vpow.pop %v1780
      %v1782 = vmul.f32 %v1768, 1.442695
      %v1783 = vpow.pop %v1782
      %v1784 = vmul.f32 %v1769, 1.442695
      %v1785 = vpow.pop %v1784
      %v1786 = vmul.f32 %v1770, 1.442695
      %v1787 = vpow.pop %v1786
      %v1788 = vmul.f32 %v1771, 1.442695
      %v1789 = vpow.pop %v1788
      %v1790 = vmul.f32 %v1772, 1.442695
      %v1791 = vpow.pop %v1790
      %v1792 = vmul.f32 %v1773, 1.442695
      %v1793 = vpow.pop %v1792
      %v1794 = vmul.f32 %v1774, 1.442695
      %v1795 = vpow.pop %v1794
      %v1796 = vmul.f32 %v1775, 1.442695
      %v1797 = vpow.pop %v1796
      %v1798 = vmul.f32 %v1776, 1.442695
      %v1799 = vpow.pop %v1798
      %v1800 = vmul.f32 %v1777, 1.442695
      %v1801 = vpow.pop %v1800
      %v1802 = vsel %vm1179, %v1779, 0.0
      %1803 = vadd.xlane.f32.xlu0 %v1802
      %v1804 = vpop.xlane.xlu0 %1803
      %v1805 = vsel %vm1179, %v1781, 0.0
      %1806 = vadd.xlane.f32.xlu0 %v1805
      %v1807 = vpop.xlane.xlu0 %1806
      %v1808 = vsel %vm1179, %v1783, 0.0
      %1809 = vadd.xlane.f32.xlu0 %v1808
      %v1810 = vpop.xlane.xlu0 %1809
      %v1811 = vsel %vm1179, %v1785, 0.0
      %1812 = vadd.xlane.f32.xlu0 %v1811
      %v1813 = vpop.xlane.xlu0 %1812
      %v1814 = vsel %vm1179, %v1787, 0.0
      %1815 = vadd.xlane.f32.xlu0 %v1814
      %v1816 = vpop.xlane.xlu0 %1815
      %v1817 = vsel %vm1179, %v1789, 0.0
      %1818 = vadd.xlane.f32.xlu0 %v1817
      %v1819 = vpop.xlane.xlu0 %1818
      %v1820 = vsel %vm1179, %v1791, 0.0
      %1821 = vadd.xlane.f32.xlu0 %v1820
      %v1822 = vpop.xlane.xlu0 %1821
      %v1823 = vsel %vm1179, %v1793, 0.0
      %1824 = vadd.xlane.f32.xlu0 %v1823
      %v1825 = vpop.xlane.xlu0 %1824
      %v1826 = vsel %vm1179, %v1795, 0.0
      %1827 = vadd.xlane.f32.xlu0 %v1826
      %v1828 = vpop.xlane.xlu0 %1827
      %v1829 = vsel %vm1179, %v1797, 0.0
      %1830 = vadd.xlane.f32.xlu0 %v1829
      %v1831 = vpop.xlane.xlu0 %1830
      %v1832 = vsel %vm1179, %v1799, 0.0
      %1833 = vadd.xlane.f32.xlu0 %v1832
      %v1834 = vpop.xlane.xlu0 %1833
      %v1835 = vsel %vm1179, %v1801, 0.0
      %1836 = vadd.xlane.f32.xlu0 %v1835
      %v1837 = vpop.xlane.xlu0 %1836
      %v1838 = vrcp.pop %v1804
      %v1839 = vmul.f32 %v1779, %v1838
      %v1840 = vrcp.pop %v1807
      %v1841 = vmul.f32 %v1781, %v1840
      %v1842 = vrcp.pop %v1810
      %v1843 = vmul.f32 %v1783, %v1842
      %v1844 = vrcp.pop %v1813
      %v1845 = vmul.f32 %v1785, %v1844
      %v1846 = vrcp.pop %v1816
      %v1847 = vmul.f32 %v1787, %v1846
      %v1848 = vrcp.pop %v1819
      %v1849 = vmul.f32 %v1789, %v1848
      %v1850 = vrcp.pop %v1822
      %v1851 = vmul.f32 %v1791, %v1850
      %v1852 = vrcp.pop %v1825
      %v1853 = vmul.f32 %v1793, %v1852
      %v1854 = vrcp.pop %v1828
      %v1855 = vmul.f32 %v1795, %v1854
      %v1856 = vrcp.pop %v1831
      %v1857 = vmul.f32 %v1797, %v1856
      %v1858 = vrcp.pop %v1834
      %v1859 = vmul.f32 %v1799, %v1858
      %v1860 = vrcp.pop %v1837
      %v1861 = vmul.f32 %v1801, %v1860
      %1862 = vrot.lane.b32.xlu0 %v887, 56
      %v1863 = vpop.permute.xlu0 %1862
      %1864 = vrot.lane.b32.xlu0 %v892, 56
      %v1865 = vpop.permute.xlu0 %1864
      %1866 = vrot.lane.b32.xlu0 %v897, 56
      %v1867 = vpop.permute.xlu0 %1866
      %1868 = vrot.lane.b32.xlu0 %v902, 56
      %v1869 = vpop.permute.xlu0 %1868
      %1870 = vrot.lane.b32.xlu0 %v907, 56
      %v1871 = vpop.permute.xlu0 %1870
      %1872 = vrot.lane.b32.xlu0 %v912, 56
      %v1873 = vpop.permute.xlu0 %1872
      %1874 = vrot.lane.b32.xlu0 %v917, 56
      %v1875 = vpop.permute.xlu0 %1874
      %1876 = vrot.lane.b32.xlu0 %v922, 56
      %v1877 = vpop.permute.xlu0 %1876
      %1878 = vrot.lane.b32.xlu0 %v927, 56
      %v1879 = vpop.permute.xlu0 %1878
      %1880 = vrot.lane.b32.xlu0 %v932, 56
      %v1881 = vpop.permute.xlu0 %1880
      %1882 = vrot.lane.b32.xlu0 %v937, 56
      %v1883 = vpop.permute.xlu0 %1882
      %1884 = vrot.lane.b32.xlu0 %v942, 56
      %v1885 = vpop.permute.xlu0 %1884
      %v1899 = vsel %vm1179, %v1839, 0
      %v1902 = vsel %vm1179, %v1841, 0
      %v1905 = vsel %vm1179, %v1843, 0
      %v1908 = vsel %vm1179, %v1845, 0
      %v1911 = vsel %vm1179, %v1847, 0
      %v1914 = vsel %vm1179, %v1849, 0
      %v1917 = vsel %vm1179, %v1851, 0
      %v1920 = vsel %vm1179, %v1853, 0
      %v1923 = vsel %vm1179, %v1855, 0
      %v1926 = vsel %vm1179, %v1857, 0
      %v1929 = vsel %vm1179, %v1859, 0
      %v1932 = vsel %vm1179, %v1861, 0
      %1934 = vmatprep.subr.mxu0 0.0
      %1935 = vmatpush1.msra.mxu0 0.0
      %1936 = vmatprep.subr.mxu0 0.0
      %1937 = vmatpush1.msra.mxu0 0.0
      %1938 = vmatprep.subr.mxu0 0.0
      %1939 = vmatpush1.msra.mxu0 0.0
      %1940 = vmatprep.subr.mxu0 0.0
      %1941 = vmatpush1.msra.mxu0 0.0
      %1942 = vmatprep.subr.mxu0 0.0
      %1943 = vmatpush1.msra.mxu0 %v1885
      %1944 = vmatprep.subr.mxu0 0.0
      %1945 = vmatpush1.msra.mxu0 %v1883
      %1946 = vmatprep.subr.mxu0 0.0
      %1947 = vmatpush1.msra.mxu0 %v1881
      %1948 = vmatprep.subr.mxu0 0.0
      %1949 = vmatpush1.msra.mxu0 %v1879
      %1950 = vmatprep.subr.mxu0 0.0
      %1951 = vmatpush1.msra.mxu0 %v1877
      %1952 = vmatprep.subr.mxu0 0.0
      %1953 = vmatpush1.msra.mxu0 %v1875
      %1954 = vmatprep.subr.mxu0 0.0
      %1955 = vmatpush1.msra.mxu0 %v1873
      %1956 = vmatprep.subr.mxu0 0.0
      %1957 = vmatpush1.msra.mxu0 %v1871
      %1958 = vmatprep.subr.mxu0 0.0
      %1959 = vmatpush1.msra.mxu0 %v1869
      %1960 = vmatprep.subr.mxu0 0.0
      %1961 = vmatpush1.msra.mxu0 %v1867
      %1962 = vmatprep.subr.mxu0 0.0
      %1963 = vmatpush1.msra.mxu0 %v1865
      %1964 = vmatprep.subr.mxu0 0.0
      %1965 = vmatpush1.msra.mxu0 %v1863
      %1966 = vmatprep.subr.mxu0 0.0
      %1967 = vmatpush2.msra.mxu0 0.0
      %1968 = vmatprep.subr.mxu0 0.0
      %1969 = vmatpush2.msra.mxu0 0.0
      %1970 = vmatprep.subr.mxu0 0.0
      %1971 = vmatpush2.msra.mxu0 0.0
      %1972 = vmatprep.subr.mxu0 0.0
      %1973 = vmatpush2.msra.mxu0 0.0
      %1974 = vmatprep.subr.mxu0 0.0
      %1975 = vmatpush2.msra.mxu0 0.0
      %1976 = vmatprep.subr.mxu0 0.0
      %1977 = vmatpush2.msra.mxu0 0.0
      %1978 = vmatprep.subr.mxu0 0.0
      %1979 = vmatpush2.msra.mxu0 0.0
      %1980 = vmatprep.subr.mxu0 0.0
      %1981 = vmatpush2.msra.mxu0 0.0
      %1982 = vmatprep.subr.mxu0 0.0
      %1983 = vmatpush2.msra.mxu0 0.0
      %1984 = vmatprep.subr.mxu0 0.0
      %1985 = vmatpush2.msra.mxu0 0.0
      %1986 = vmatprep.subr.mxu0 0.0
      %1987 = vmatpush2.msra.mxu0 0.0
      %1988 = vmatprep.subr.mxu0 0.0
      %1989 = vmatpush2.msra.mxu0 0.0
      %1990 = vmatprep.subr.mxu0 0.0
      %1991 = vmatpush2.msra.mxu0 0.0
      %1992 = vmatprep.subr.mxu0 0.0
      %1993 = vmatpush2.msra.mxu0 0.0
      %1994 = vmatprep.subr.mxu0 0.0
      %1995 = vmatpush2.msra.mxu0 0.0
      %1996 = vmatprep.subr.mxu0 0.0
      %1997 = vmatpush2.msra.mxu0 0.0
      %1998 = vmatprep.mubr.f32.mxu0 0.0
      %1999 = vmatmul.mubr.f32.gmra.mxu0 %v1899
      %v2000 = vpop.f32.mrf.mxu0
      %v2001 = vadd.f32 0.0, %v2000
      %v2002 = vpop.f32.mrf.mxu0
      %2003 = vmatprep.mubr.f32.mxu0 0.0
      %2004 = vmatmul.mubr.f32.gmra.mxu0 %v1902
      %v2005 = vpop.f32.mrf.mxu0
      %v2006 = vadd.f32 0.0, %v2005
      %v2007 = vpop.f32.mrf.mxu0
      %2008 = vmatprep.mubr.f32.mxu0 0.0
      %2009 = vmatmul.mubr.f32.gmra.mxu0 %v1905
      %v2010 = vpop.f32.mrf.mxu0
      %v2011 = vadd.f32 0.0, %v2010
      %v2012 = vpop.f32.mrf.mxu0
      %2013 = vmatprep.mubr.f32.mxu0 0.0
      %2014 = vmatmul.mubr.f32.gmra.mxu0 %v1908
      %v2015 = vpop.f32.mrf.mxu0
      %v2016 = vadd.f32 0.0, %v2015
      %v2017 = vpop.f32.mrf.mxu0
      %2018 = vmatprep.mubr.f32.mxu0 0.0
      %2019 = vmatmul.mubr.f32.gmra.mxu0 %v1911
      %v2020 = vpop.f32.mrf.mxu0
      %v2021 = vadd.f32 0.0, %v2020
      %v2022 = vpop.f32.mrf.mxu0
      %2023 = vmatprep.mubr.f32.mxu0 0.0
      %2024 = vmatmul.mubr.f32.gmra.mxu0 %v1914
      %v2025 = vpop.f32.mrf.mxu0
      %v2026 = vadd.f32 0.0, %v2025
      %v2027 = vpop.f32.mrf.mxu0
      %2028 = vmatprep.mubr.f32.mxu0 0.0
      %2029 = vmatmul.mubr.f32.gmra.mxu0 %v1917
      %v2030 = vpop.f32.mrf.mxu0
      %v2031 = vadd.f32 0.0, %v2030
      %v2032 = vpop.f32.mrf.mxu0
      %2033 = vmatprep.mubr.f32.mxu0 0.0
      %2034 = vmatmul.mubr.f32.gmra.mxu0 %v1920
      %v2035 = vpop.f32.mrf.mxu0
      %v2036 = vadd.f32 0.0, %v2035
      %v2037 = vpop.f32.mrf.mxu0
      %2038 = vmatprep.mubr.f32.mxu0 0.0
      %2039 = vmatmul.mubr.f32.gmra.mxu0 %v1923
      %v2040 = vpop.f32.mrf.mxu0
      %v2041 = vadd.f32 0.0, %v2040
      %v2042 = vpop.f32.mrf.mxu0
      %2043 = vmatprep.mubr.f32.mxu0 0.0
      %2044 = vmatmul.mubr.f32.gmra.mxu0 %v1926
      %v2045 = vpop.f32.mrf.mxu0
      %v2046 = vadd.f32 0.0, %v2045
      %v2047 = vpop.f32.mrf.mxu0
      %2048 = vmatprep.mubr.f32.mxu0 0.0
      %2049 = vmatmul.mubr.f32.gmra.mxu0 %v1929
      %v2050 = vpop.f32.mrf.mxu0
      %v2051 = vadd.f32 0.0, %v2050
      %v2052 = vpop.f32.mrf.mxu0
      %2053 = vmatprep.mubr.f32.mxu0 0.0
      %2054 = vmatmul.mubr.f32.gmra.mxu0 %v1932
      %v2055 = vpop.f32.mrf.mxu0
      %v2056 = vadd.f32 0.0, %v2055
      %v2057 = vpop.f32.mrf.mxu0
      %2058 = vdwg.mxu0
      %2059 = vrot.lane.b32.xlu0 %v945, 112
      %v2060 = vpop.permute.xlu0 %2059
      %2061 = vrot.lane.b32.xlu0 %v946, 112
      %v2062 = vpop.permute.xlu0 %2061
      %2063 = vrot.lane.b32.xlu0 %v947, 112
      %v2064 = vpop.permute.xlu0 %2063
      %2065 = vrot.lane.b32.xlu0 %v948, 112
      %v2066 = vpop.permute.xlu0 %2065
      %2067 = vrot.lane.b32.xlu0 %v949, 112
      %v2068 = vpop.permute.xlu0 %2067
      %2069 = vrot.lane.b32.xlu0 %v950, 112
      %v2070 = vpop.permute.xlu0 %2069
      %2071 = vrot.lane.b32.xlu0 %v951, 112
      %v2072 = vpop.permute.xlu0 %2071
      %2073 = vrot.lane.b32.xlu0 %v952, 112
      %v2074 = vpop.permute.xlu0 %2073
      %2075 = vrot.lane.b32.xlu0 %v953, 112
      %v2076 = vpop.permute.xlu0 %2075
      %2077 = vrot.lane.b32.xlu0 %v954, 112
      %v2078 = vpop.permute.xlu0 %2077
      %2079 = vrot.lane.b32.xlu0 %v955, 112
      %v2080 = vpop.permute.xlu0 %2079
      %2081 = vrot.lane.b32.xlu0 %v956, 112
      %v2082 = vpop.permute.xlu0 %2081
      %2083 = vrot.lane.b32.xlu0 %v887, 80
      %v2084 = vpop.permute.xlu0 %2083
      %2085 = vrot.lane.b32.xlu0 %v892, 80
      %v2086 = vpop.permute.xlu0 %2085
      %2087 = vrot.lane.b32.xlu0 %v897, 80
      %v2088 = vpop.permute.xlu0 %2087
      %2089 = vrot.lane.b32.xlu0 %v902, 80
      %v2090 = vpop.permute.xlu0 %2089
      %2091 = vrot.lane.b32.xlu0 %v907, 80
      %v2092 = vpop.permute.xlu0 %2091
      %2093 = vrot.lane.b32.xlu0 %v912, 80
      %v2094 = vpop.permute.xlu0 %2093
      %2095 = vrot.lane.b32.xlu0 %v917, 80
      %v2096 = vpop.permute.xlu0 %2095
      %2097 = vrot.lane.b32.xlu0 %v922, 80
      %v2098 = vpop.permute.xlu0 %2097
      %2099 = vrot.lane.b32.xlu0 %v927, 80
      %v2100 = vpop.permute.xlu0 %2099
      %2101 = vrot.lane.b32.xlu0 %v932, 80
      %v2102 = vpop.permute.xlu0 %2101
      %2103 = vrot.lane.b32.xlu0 %v937, 80
      %v2104 = vpop.permute.xlu0 %2103
      %2105 = vrot.lane.b32.xlu0 %v942, 80
      %v2106 = vpop.permute.xlu0 %2105
      %v2107 = vsel %vm993, %v2060, 0
      %v2109 = vsel %vm993, %v2062, 0
      %v2111 = vsel %vm993, %v2064, 0
      %v2113 = vsel %vm993, %v2066, 0
      %v2115 = vsel %vm993, %v2068, 0
      %v2117 = vsel %vm993, %v2070, 0
      %v2119 = vsel %vm993, %v2072, 0
      %v2121 = vsel %vm993, %v2074, 0
      %v2123 = vsel %vm993, %v2076, 0
      %v2125 = vsel %vm993, %v2078, 0
      %v2127 = vsel %vm993, %v2080, 0
      %v2129 = vsel %vm993, %v2082, 0
      %v2131 = vsel %vm993, %v2084, 0
      %v2133 = vsel %vm993, %v2086, 0
      %v2135 = vsel %vm993, %v2088, 0
      %v2137 = vsel %vm993, %v2090, 0
      %v2139 = vsel %vm993, %v2092, 0
      %v2141 = vsel %vm993, %v2094, 0
      %v2143 = vsel %vm993, %v2096, 0
      %v2145 = vsel %vm993, %v2098, 0
      %v2147 = vsel %vm993, %v2100, 0
      %v2149 = vsel %vm993, %v2102, 0
      %v2151 = vsel %vm993, %v2104, 0
      %v2153 = vsel %vm993, %v2106, 0
      %2155 = vmatprep.subr.mxu0 0.0
      %2156 = vmatpush1.xpose.msra.mxu0 0.0
      %2157 = vmatprep.subr.mxu0 0.0
      %2158 = vmatpush1.xpose.msra.mxu0 0.0
      %2159 = vmatprep.subr.mxu0 0.0
      %2160 = vmatpush1.xpose.msra.mxu0 0.0
      %2161 = vmatprep.subr.mxu0 0.0
      %2162 = vmatpush1.xpose.msra.mxu0 0.0
      %2163 = vmatprep.subr.mxu0 0.0
      %2164 = vmatpush1.xpose.msra.mxu0 %v2153
      %2165 = vmatprep.subr.mxu0 0.0
      %2166 = vmatpush1.xpose.msra.mxu0 %v2151
      %2167 = vmatprep.subr.mxu0 0.0
      %2168 = vmatpush1.xpose.msra.mxu0 %v2149
      %2169 = vmatprep.subr.mxu0 0.0
      %2170 = vmatpush1.xpose.msra.mxu0 %v2147
      %2171 = vmatprep.subr.mxu0 0.0
      %2172 = vmatpush1.xpose.msra.mxu0 %v2145
      %2173 = vmatprep.subr.mxu0 0.0
      %2174 = vmatpush1.xpose.msra.mxu0 %v2143
      %2175 = vmatprep.subr.mxu0 0.0
      %2176 = vmatpush1.xpose.msra.mxu0 %v2141
      %2177 = vmatprep.subr.mxu0 0.0
      %2178 = vmatpush1.xpose.msra.mxu0 %v2139
      %2179 = vmatprep.subr.mxu0 0.0
      %2180 = vmatpush1.xpose.msra.mxu0 %v2137
      %2181 = vmatprep.subr.mxu0 0.0
      %2182 = vmatpush1.xpose.msra.mxu0 %v2135
      %2183 = vmatprep.subr.mxu0 0.0
      %2184 = vmatpush1.xpose.msra.mxu0 %v2133
      %2185 = vmatprep.subr.mxu0 0.0
      %2186 = vmatpush1.xpose.msra.mxu0 %v2131
      %2187 = vmatprep.subr.mxu0 0.0
      %2188 = vmatpush2.xpose.msra.mxu0 0.0
      %2189 = vmatprep.subr.mxu0 0.0
      %2190 = vmatpush2.xpose.msra.mxu0 0.0
      %2191 = vmatprep.subr.mxu0 0.0
      %2192 = vmatpush2.xpose.msra.mxu0 0.0
      %2193 = vmatprep.subr.mxu0 0.0
      %2194 = vmatpush2.xpose.msra.mxu0 0.0
      %2195 = vmatprep.subr.mxu0 0.0
      %2196 = vmatpush2.xpose.msra.mxu0 0.0
      %2197 = vmatprep.subr.mxu0 0.0
      %2198 = vmatpush2.xpose.msra.mxu0 0.0
      %2199 = vmatprep.subr.mxu0 0.0
      %2200 = vmatpush2.xpose.msra.mxu0 0.0
      %2201 = vmatprep.subr.mxu0 0.0
      %2202 = vmatpush2.xpose.msra.mxu0 0.0
      %2203 = vmatprep.subr.mxu0 0.0
      %2204 = vmatpush2.xpose.msra.mxu0 0.0
      %2205 = vmatprep.subr.mxu0 0.0
      %2206 = vmatpush2.xpose.msra.mxu0 0.0
      %2207 = vmatprep.subr.mxu0 0.0
      %2208 = vmatpush2.xpose.msra.mxu0 0.0
      %2209 = vmatprep.subr.mxu0 0.0
      %2210 = vmatpush2.xpose.msra.mxu0 0.0
      %2211 = vmatprep.subr.mxu0 0.0
      %2212 = vmatpush2.xpose.msra.mxu0 0.0
      %2213 = vmatprep.subr.mxu0 0.0
      %2214 = vmatpush2.xpose.msra.mxu0 0.0
      %2215 = vmatprep.subr.mxu0 0.0
      %2216 = vmatpush2.xpose.msra.mxu0 0.0
      %2217 = vmatprep.subr.mxu0 0.0
      %2218 = vmatpush2.xpose.msra.mxu0 0.0
      %2219 = vmatprep.mubr.f32.mxu0 0.0
      %2220 = vmatmul.mubr.f32.gmra.mxu0 %v2107
      %v2221 = vpop.f32.mrf.mxu0
      %v2222 = vadd.f32 %v571, %v2221
      %v2223 = vpop.f32.mrf.mxu0
      %2224 = vmatprep.mubr.f32.mxu0 0.0
      %2225 = vmatmul.mubr.f32.gmra.mxu0 %v2109
      %v2226 = vpop.f32.mrf.mxu0
      %v2227 = vadd.f32 %v572, %v2226
      %v2228 = vpop.f32.mrf.mxu0
      %2229 = vmatprep.mubr.f32.mxu0 0.0
      %2230 = vmatmul.mubr.f32.gmra.mxu0 %v2111
      %v2231 = vpop.f32.mrf.mxu0
      %v2232 = vadd.f32 %v573, %v2231
      %v2233 = vpop.f32.mrf.mxu0
      %2234 = vmatprep.mubr.f32.mxu0 0.0
      %2235 = vmatmul.mubr.f32.gmra.mxu0 %v2113
      %v2236 = vpop.f32.mrf.mxu0
      %v2237 = vadd.f32 %v574, %v2236
      %v2238 = vpop.f32.mrf.mxu0
      %2239 = vmatprep.mubr.f32.mxu0 0.0
      %2240 = vmatmul.mubr.f32.gmra.mxu0 %v2115
      %v2241 = vpop.f32.mrf.mxu0
      %v2242 = vadd.f32 %v575, %v2241
      %v2243 = vpop.f32.mrf.mxu0
      %2244 = vmatprep.mubr.f32.mxu0 0.0
      %2245 = vmatmul.mubr.f32.gmra.mxu0 %v2117
      %v2246 = vpop.f32.mrf.mxu0
      %v2247 = vadd.f32 %v576, %v2246
      %v2248 = vpop.f32.mrf.mxu0
      %2249 = vmatprep.mubr.f32.mxu0 0.0
      %2250 = vmatmul.mubr.f32.gmra.mxu0 %v2119
      %v2251 = vpop.f32.mrf.mxu0
      %v2252 = vadd.f32 %v577, %v2251
      %v2253 = vpop.f32.mrf.mxu0
      %2254 = vmatprep.mubr.f32.mxu0 0.0
      %2255 = vmatmul.mubr.f32.gmra.mxu0 %v2121
      %v2256 = vpop.f32.mrf.mxu0
      %v2257 = vadd.f32 %v578, %v2256
      %v2258 = vpop.f32.mrf.mxu0
      %2259 = vmatprep.mubr.f32.mxu0 0.0
      %2260 = vmatmul.mubr.f32.gmra.mxu0 %v2123
      %v2261 = vpop.f32.mrf.mxu0
      %v2262 = vadd.f32 %v579, %v2261
      %v2263 = vpop.f32.mrf.mxu0
      %2264 = vmatprep.mubr.f32.mxu0 0.0
      %2265 = vmatmul.mubr.f32.gmra.mxu0 %v2125
      %v2266 = vpop.f32.mrf.mxu0
      %v2267 = vadd.f32 %v580, %v2266
      %v2268 = vpop.f32.mrf.mxu0
      %2269 = vmatprep.mubr.f32.mxu0 0.0
      %2270 = vmatmul.mubr.f32.gmra.mxu0 %v2127
      %v2271 = vpop.f32.mrf.mxu0
      %v2272 = vadd.f32 %v581, %v2271
      %v2273 = vpop.f32.mrf.mxu0
      %2274 = vmatprep.mubr.f32.mxu0 0.0
      %2275 = vmatmul.mubr.f32.gmra.mxu0 %v2129
      %v2276 = vpop.f32.mrf.mxu0
      %v2277 = vadd.f32 %v582, %v2276
      %v2278 = vpop.f32.mrf.mxu0
      %2279 = vdwg.mxu0
      %v2280 = vsel %vm1179, %v2222, -inf
      %2281 = vmax.xlane.f32.xlu0 %v2280
      %v2282 = vpop.xlane.xlu0 %2281
      %v2283 = vsel %vm1179, %v2227, -inf
      %2284 = vmax.xlane.f32.xlu0 %v2283
      %v2285 = vpop.xlane.xlu0 %2284
      %v2286 = vsel %vm1179, %v2232, -inf
      %2287 = vmax.xlane.f32.xlu0 %v2286
      %v2288 = vpop.xlane.xlu0 %2287
      %v2289 = vsel %vm1179, %v2237, -inf
      %2290 = vmax.xlane.f32.xlu0 %v2289
      %v2291 = vpop.xlane.xlu0 %2290
      %v2292 = vsel %vm1179, %v2242, -inf
      %2293 = vmax.xlane.f32.xlu0 %v2292
      %v2294 = vpop.xlane.xlu0 %2293
      %v2295 = vsel %vm1179, %v2247, -inf
      %2296 = vmax.xlane.f32.xlu0 %v2295
      %v2297 = vpop.xlane.xlu0 %2296
      %v2298 = vsel %vm1179, %v2252, -inf
      %2299 = vmax.xlane.f32.xlu0 %v2298
      %v2300 = vpop.xlane.xlu0 %2299
      %v2301 = vsel %vm1179, %v2257, -inf
      %2302 = vmax.xlane.f32.xlu0 %v2301
      %v2303 = vpop.xlane.xlu0 %2302
      %v2304 = vsel %vm1179, %v2262, -inf
      %2305 = vmax.xlane.f32.xlu0 %v2304
      %v2306 = vpop.xlane.xlu0 %2305
      %v2307 = vsel %vm1179, %v2267, -inf
      %2308 = vmax.xlane.f32.xlu0 %v2307
      %v2309 = vpop.xlane.xlu0 %2308
      %v2310 = vsel %vm1179, %v2272, -inf
      %2311 = vmax.xlane.f32.xlu0 %v2310
      %v2312 = vpop.xlane.xlu0 %2311
      %v2313 = vsel %vm1179, %v2277, -inf
      %2314 = vmax.xlane.f32.xlu0 %v2313
      %v2315 = vpop.xlane.xlu0 %2314
      %v2316 = vsub.f32 %v2222, %v2282
      %v2317 = vsub.f32 %v2227, %v2285
      %v2318 = vsub.f32 %v2232, %v2288
      %v2319 = vsub.f32 %v2237, %v2291
      %v2320 = vsub.f32 %v2242, %v2294
      %v2321 = vsub.f32 %v2247, %v2297
      %v2322 = vsub.f32 %v2252, %v2300
      %v2323 = vsub.f32 %v2257, %v2303
      %v2324 = vsub.f32 %v2262, %v2306
      %v2325 = vsub.f32 %v2267, %v2309
      %v2326 = vsub.f32 %v2272, %v2312
      %v2327 = vsub.f32 %v2277, %v2315
      %v2328 = vmul.f32 %v2316, 1.442695
      %v2329 = vpow.pop %v2328
      %v2330 = vmul.f32 %v2317, 1.442695
      %v2331 = vpow.pop %v2330
      %v2332 = vmul.f32 %v2318, 1.442695
      %v2333 = vpow.pop %v2332
      %v2334 = vmul.f32 %v2319, 1.442695
      %v2335 = vpow.pop %v2334
      %v2336 = vmul.f32 %v2320, 1.442695
      %v2337 = vpow.pop %v2336
      %v2338 = vmul.f32 %v2321, 1.442695
      %v2339 = vpow.pop %v2338
      %v2340 = vmul.f32 %v2322, 1.442695
      %v2341 = vpow.pop %v2340
      %v2342 = vmul.f32 %v2323, 1.442695
      %v2343 = vpow.pop %v2342
      %v2344 = vmul.f32 %v2324, 1.442695
      %v2345 = vpow.pop %v2344
      %v2346 = vmul.f32 %v2325, 1.442695
      %v2347 = vpow.pop %v2346
      %v2348 = vmul.f32 %v2326, 1.442695
      %v2349 = vpow.pop %v2348
      %v2350 = vmul.f32 %v2327, 1.442695
      %v2351 = vpow.pop %v2350
      %v2352 = vsel %vm1179, %v2329, 0.0
      %2353 = vadd.xlane.f32.xlu0 %v2352
      %v2354 = vpop.xlane.xlu0 %2353
      %v2355 = vsel %vm1179, %v2331, 0.0
      %2356 = vadd.xlane.f32.xlu0 %v2355
      %v2357 = vpop.xlane.xlu0 %2356
      %v2358 = vsel %vm1179, %v2333, 0.0
      %2359 = vadd.xlane.f32.xlu0 %v2358
      %v2360 = vpop.xlane.xlu0 %2359
      %v2361 = vsel %vm1179, %v2335, 0.0
      %2362 = vadd.xlane.f32.xlu0 %v2361
      %v2363 = vpop.xlane.xlu0 %2362
      %v2364 = vsel %vm1179, %v2337, 0.0
      %2365 = vadd.xlane.f32.xlu0 %v2364
      %v2366 = vpop.xlane.xlu0 %2365
      %v2367 = vsel %vm1179, %v2339, 0.0
      %2368 = vadd.xlane.f32.xlu0 %v2367
      %v2369 = vpop.xlane.xlu0 %2368
      %v2370 = vsel %vm1179, %v2341, 0.0
      %2371 = vadd.xlane.f32.xlu0 %v2370
      %v2372 = vpop.xlane.xlu0 %2371
      %v2373 = vsel %vm1179, %v2343, 0.0
      %2374 = vadd.xlane.f32.xlu0 %v2373
      %v2375 = vpop.xlane.xlu0 %2374
      %v2376 = vsel %vm1179, %v2345, 0.0
      %2377 = vadd.xlane.f32.xlu0 %v2376
      %v2378 = vpop.xlane.xlu0 %2377
      %v2379 = vsel %vm1179, %v2347, 0.0
      %2380 = vadd.xlane.f32.xlu0 %v2379
      %v2381 = vpop.xlane.xlu0 %2380
      %v2382 = vsel %vm1179, %v2349, 0.0
      %2383 = vadd.xlane.f32.xlu0 %v2382
      %v2384 = vpop.xlane.xlu0 %2383
      %v2385 = vsel %vm1179, %v2351, 0.0
      %2386 = vadd.xlane.f32.xlu0 %v2385
      %v2387 = vpop.xlane.xlu0 %2386
      %v2388 = vrcp.pop %v2354
      %v2389 = vmul.f32 %v2329, %v2388
      %v2390 = vrcp.pop %v2357
      %v2391 = vmul.f32 %v2331, %v2390
      %v2392 = vrcp.pop %v2360
      %v2393 = vmul.f32 %v2333, %v2392
      %v2394 = vrcp.pop %v2363
      %v2395 = vmul.f32 %v2335, %v2394
      %v2396 = vrcp.pop %v2366
      %v2397 = vmul.f32 %v2337, %v2396
      %v2398 = vrcp.pop %v2369
      %v2399 = vmul.f32 %v2339, %v2398
      %v2400 = vrcp.pop %v2372
      %v2401 = vmul.f32 %v2341, %v2400
      %v2402 = vrcp.pop %v2375
      %v2403 = vmul.f32 %v2343, %v2402
      %v2404 = vrcp.pop %v2378
      %v2405 = vmul.f32 %v2345, %v2404
      %v2406 = vrcp.pop %v2381
      %v2407 = vmul.f32 %v2347, %v2406
      %v2408 = vrcp.pop %v2384
      %v2409 = vmul.f32 %v2349, %v2408
      %v2410 = vrcp.pop %v2387
      %v2411 = vmul.f32 %v2351, %v2410
      %2412 = vrot.lane.b32.xlu0 %v887, 48
      %v2413 = vpop.permute.xlu0 %2412
      %2414 = vrot.lane.b32.xlu0 %v892, 48
      %v2415 = vpop.permute.xlu0 %2414
      %2416 = vrot.lane.b32.xlu0 %v897, 48
      %v2417 = vpop.permute.xlu0 %2416
      %2418 = vrot.lane.b32.xlu0 %v902, 48
      %v2419 = vpop.permute.xlu0 %2418
      %2420 = vrot.lane.b32.xlu0 %v907, 48
      %v2421 = vpop.permute.xlu0 %2420
      %2422 = vrot.lane.b32.xlu0 %v912, 48
      %v2423 = vpop.permute.xlu0 %2422
      %2424 = vrot.lane.b32.xlu0 %v917, 48
      %v2425 = vpop.permute.xlu0 %2424
      %2426 = vrot.lane.b32.xlu0 %v922, 48
      %v2427 = vpop.permute.xlu0 %2426
      %2428 = vrot.lane.b32.xlu0 %v927, 48
      %v2429 = vpop.permute.xlu0 %2428
      %2430 = vrot.lane.b32.xlu0 %v932, 48
      %v2431 = vpop.permute.xlu0 %2430
      %2432 = vrot.lane.b32.xlu0 %v937, 48
      %v2433 = vpop.permute.xlu0 %2432
      %2434 = vrot.lane.b32.xlu0 %v942, 48
      %v2435 = vpop.permute.xlu0 %2434
      %v2449 = vsel %vm1179, %v2389, 0
      %v2452 = vsel %vm1179, %v2391, 0
      %v2455 = vsel %vm1179, %v2393, 0
      %v2458 = vsel %vm1179, %v2395, 0
      %v2461 = vsel %vm1179, %v2397, 0
      %v2464 = vsel %vm1179, %v2399, 0
      %v2467 = vsel %vm1179, %v2401, 0
      %v2470 = vsel %vm1179, %v2403, 0
      %v2473 = vsel %vm1179, %v2405, 0
      %v2476 = vsel %vm1179, %v2407, 0
      %v2479 = vsel %vm1179, %v2409, 0
      %v2482 = vsel %vm1179, %v2411, 0
      %2484 = vmatprep.subr.mxu0 0.0
      %2485 = vmatpush1.msra.mxu0 0.0
      %2486 = vmatprep.subr.mxu0 0.0
      %2487 = vmatpush1.msra.mxu0 0.0
      %2488 = vmatprep.subr.mxu0 0.0
      %2489 = vmatpush1.msra.mxu0 0.0
      %2490 = vmatprep.subr.mxu0 0.0
      %2491 = vmatpush1.msra.mxu0 0.0
      %2492 = vmatprep.subr.mxu0 0.0
      %2493 = vmatpush1.msra.mxu0 %v2435
      %2494 = vmatprep.subr.mxu0 0.0
      %2495 = vmatpush1.msra.mxu0 %v2433
      %2496 = vmatprep.subr.mxu0 0.0
      %2497 = vmatpush1.msra.mxu0 %v2431
      %2498 = vmatprep.subr.mxu0 0.0
      %2499 = vmatpush1.msra.mxu0 %v2429
      %2500 = vmatprep.subr.mxu0 0.0
      %2501 = vmatpush1.msra.mxu0 %v2427
      %2502 = vmatprep.subr.mxu0 0.0
      %2503 = vmatpush1.msra.mxu0 %v2425
      %2504 = vmatprep.subr.mxu0 0.0
      %2505 = vmatpush1.msra.mxu0 %v2423
      %2506 = vmatprep.subr.mxu0 0.0
      %2507 = vmatpush1.msra.mxu0 %v2421
      %2508 = vmatprep.subr.mxu0 0.0
      %2509 = vmatpush1.msra.mxu0 %v2419
      %2510 = vmatprep.subr.mxu0 0.0
      %2511 = vmatpush1.msra.mxu0 %v2417
      %2512 = vmatprep.subr.mxu0 0.0
      %2513 = vmatpush1.msra.mxu0 %v2415
      %2514 = vmatprep.subr.mxu0 0.0
      %2515 = vmatpush1.msra.mxu0 %v2413
      %2516 = vmatprep.subr.mxu0 0.0
      %2517 = vmatpush2.msra.mxu0 0.0
      %2518 = vmatprep.subr.mxu0 0.0
      %2519 = vmatpush2.msra.mxu0 0.0
      %2520 = vmatprep.subr.mxu0 0.0
      %2521 = vmatpush2.msra.mxu0 0.0
      %2522 = vmatprep.subr.mxu0 0.0
      %2523 = vmatpush2.msra.mxu0 0.0
      %2524 = vmatprep.subr.mxu0 0.0
      %2525 = vmatpush2.msra.mxu0 0.0
      %2526 = vmatprep.subr.mxu0 0.0
      %2527 = vmatpush2.msra.mxu0 0.0
      %2528 = vmatprep.subr.mxu0 0.0
      %2529 = vmatpush2.msra.mxu0 0.0
      %2530 = vmatprep.subr.mxu0 0.0
      %2531 = vmatpush2.msra.mxu0 0.0
      %2532 = vmatprep.subr.mxu0 0.0
      %2533 = vmatpush2.msra.mxu0 0.0
      %2534 = vmatprep.subr.mxu0 0.0
      %2535 = vmatpush2.msra.mxu0 0.0
      %2536 = vmatprep.subr.mxu0 0.0
      %2537 = vmatpush2.msra.mxu0 0.0
      %2538 = vmatprep.subr.mxu0 0.0
      %2539 = vmatpush2.msra.mxu0 0.0
      %2540 = vmatprep.subr.mxu0 0.0
      %2541 = vmatpush2.msra.mxu0 0.0
      %2542 = vmatprep.subr.mxu0 0.0
      %2543 = vmatpush2.msra.mxu0 0.0
      %2544 = vmatprep.subr.mxu0 0.0
      %2545 = vmatpush2.msra.mxu0 0.0
      %2546 = vmatprep.subr.mxu0 0.0
      %2547 = vmatpush2.msra.mxu0 0.0
      %2548 = vmatprep.mubr.f32.mxu0 0.0
      %2549 = vmatmul.mubr.f32.gmra.mxu0 %v2449
      %v2550 = vpop.f32.mrf.mxu0
      %v2551 = vadd.f32 0.0, %v2550
      %v2552 = vpop.f32.mrf.mxu0
      %2553 = vmatprep.mubr.f32.mxu0 0.0
      %2554 = vmatmul.mubr.f32.gmra.mxu0 %v2452
      %v2555 = vpop.f32.mrf.mxu0
      %v2556 = vadd.f32 0.0, %v2555
      %v2557 = vpop.f32.mrf.mxu0
      %2558 = vmatprep.mubr.f32.mxu0 0.0
      %2559 = vmatmul.mubr.f32.gmra.mxu0 %v2455
      %v2560 = vpop.f32.mrf.mxu0
      %v2561 = vadd.f32 0.0, %v2560
      %v2562 = vpop.f32.mrf.mxu0
      %2563 = vmatprep.mubr.f32.mxu0 0.0
      %2564 = vmatmul.mubr.f32.gmra.mxu0 %v2458
      %v2565 = vpop.f32.mrf.mxu0
      %v2566 = vadd.f32 0.0, %v2565
      %v2567 = vpop.f32.mrf.mxu0
      %2568 = vmatprep.mubr.f32.mxu0 0.0
      %2569 = vmatmul.mubr.f32.gmra.mxu0 %v2461
      %v2570 = vpop.f32.mrf.mxu0
      %v2571 = vadd.f32 0.0, %v2570
      %v2572 = vpop.f32.mrf.mxu0
      %2573 = vmatprep.mubr.f32.mxu0 0.0
      %2574 = vmatmul.mubr.f32.gmra.mxu0 %v2464
      %v2575 = vpop.f32.mrf.mxu0
      %v2576 = vadd.f32 0.0, %v2575
      %v2577 = vpop.f32.mrf.mxu0
      %2578 = vmatprep.mubr.f32.mxu0 0.0
      %2579 = vmatmul.mubr.f32.gmra.mxu0 %v2467
      %v2580 = vpop.f32.mrf.mxu0
      %v2581 = vadd.f32 0.0, %v2580
      %v2582 = vpop.f32.mrf.mxu0
      %2583 = vmatprep.mubr.f32.mxu0 0.0
      %2584 = vmatmul.mubr.f32.gmra.mxu0 %v2470
      %v2585 = vpop.f32.mrf.mxu0
      %v2586 = vadd.f32 0.0, %v2585
      %v2587 = vpop.f32.mrf.mxu0
      %2588 = vmatprep.mubr.f32.mxu0 0.0
      %2589 = vmatmul.mubr.f32.gmra.mxu0 %v2473
      %v2590 = vpop.f32.mrf.mxu0
      %v2591 = vadd.f32 0.0, %v2590
      %v2592 = vpop.f32.mrf.mxu0
      %2593 = vmatprep.mubr.f32.mxu0 0.0
      %2594 = vmatmul.mubr.f32.gmra.mxu0 %v2476
      %v2595 = vpop.f32.mrf.mxu0
      %v2596 = vadd.f32 0.0, %v2595
      %v2597 = vpop.f32.mrf.mxu0
      %2598 = vmatprep.mubr.f32.mxu0 0.0
      %2599 = vmatmul.mubr.f32.gmra.mxu0 %v2479
      %v2600 = vpop.f32.mrf.mxu0
      %v2601 = vadd.f32 0.0, %v2600
      %v2602 = vpop.f32.mrf.mxu0
      %2603 = vmatprep.mubr.f32.mxu0 0.0
      %2604 = vmatmul.mubr.f32.gmra.mxu0 %v2482
      %v2605 = vpop.f32.mrf.mxu0
      %v2606 = vadd.f32 0.0, %v2605
      %v2607 = vpop.f32.mrf.mxu0
      %2608 = vdwg.mxu0
      %2609 = vrot.lane.b32.xlu0 %v945, 104
      %v2610 = vpop.permute.xlu0 %2609
      %2611 = vrot.lane.b32.xlu0 %v946, 104
      %v2612 = vpop.permute.xlu0 %2611
      %2613 = vrot.lane.b32.xlu0 %v947, 104
      %v2614 = vpop.permute.xlu0 %2613
      %2615 = vrot.lane.b32.xlu0 %v948, 104
      %v2616 = vpop.permute.xlu0 %2615
      %2617 = vrot.lane.b32.xlu0 %v949, 104
      %v2618 = vpop.permute.xlu0 %2617
      %2619 = vrot.lane.b32.xlu0 %v950, 104
      %v2620 = vpop.permute.xlu0 %2619
      %2621 = vrot.lane.b32.xlu0 %v951, 104
      %v2622 = vpop.permute.xlu0 %2621
      %2623 = vrot.lane.b32.xlu0 %v952, 104
      %v2624 = vpop.permute.xlu0 %2623
      %2625 = vrot.lane.b32.xlu0 %v953, 104
      %v2626 = vpop.permute.xlu0 %2625
      %2627 = vrot.lane.b32.xlu0 %v954, 104
      %v2628 = vpop.permute.xlu0 %2627
      %2629 = vrot.lane.b32.xlu0 %v955, 104
      %v2630 = vpop.permute.xlu0 %2629
      %2631 = vrot.lane.b32.xlu0 %v956, 104
      %v2632 = vpop.permute.xlu0 %2631
      %2633 = vrot.lane.b32.xlu0 %v887, 72
      %v2634 = vpop.permute.xlu0 %2633
      %2635 = vrot.lane.b32.xlu0 %v892, 72
      %v2636 = vpop.permute.xlu0 %2635
      %2637 = vrot.lane.b32.xlu0 %v897, 72
      %v2638 = vpop.permute.xlu0 %2637
      %2639 = vrot.lane.b32.xlu0 %v902, 72
      %v2640 = vpop.permute.xlu0 %2639
      %2641 = vrot.lane.b32.xlu0 %v907, 72
      %v2642 = vpop.permute.xlu0 %2641
      %2643 = vrot.lane.b32.xlu0 %v912, 72
      %v2644 = vpop.permute.xlu0 %2643
      %2645 = vrot.lane.b32.xlu0 %v917, 72
      %v2646 = vpop.permute.xlu0 %2645
      %2647 = vrot.lane.b32.xlu0 %v922, 72
      %v2648 = vpop.permute.xlu0 %2647
      %2649 = vrot.lane.b32.xlu0 %v927, 72
      %v2650 = vpop.permute.xlu0 %2649
      %2651 = vrot.lane.b32.xlu0 %v932, 72
      %v2652 = vpop.permute.xlu0 %2651
      %2653 = vrot.lane.b32.xlu0 %v937, 72
      %v2654 = vpop.permute.xlu0 %2653
      %2655 = vrot.lane.b32.xlu0 %v942, 72
      %v2656 = vpop.permute.xlu0 %2655
      %v2657 = vsel %vm993, %v2610, 0
      %v2659 = vsel %vm993, %v2612, 0
      %v2661 = vsel %vm993, %v2614, 0
      %v2663 = vsel %vm993, %v2616, 0
      %v2665 = vsel %vm993, %v2618, 0
      %v2667 = vsel %vm993, %v2620, 0
      %v2669 = vsel %vm993, %v2622, 0
      %v2671 = vsel %vm993, %v2624, 0
      %v2673 = vsel %vm993, %v2626, 0
      %v2675 = vsel %vm993, %v2628, 0
      %v2677 = vsel %vm993, %v2630, 0
      %v2679 = vsel %vm993, %v2632, 0
      %v2681 = vsel %vm993, %v2634, 0
      %v2683 = vsel %vm993, %v2636, 0
      %v2685 = vsel %vm993, %v2638, 0
      %v2687 = vsel %vm993, %v2640, 0
      %v2689 = vsel %vm993, %v2642, 0
      %v2691 = vsel %vm993, %v2644, 0
      %v2693 = vsel %vm993, %v2646, 0
      %v2695 = vsel %vm993, %v2648, 0
      %v2697 = vsel %vm993, %v2650, 0
      %v2699 = vsel %vm993, %v2652, 0
      %v2701 = vsel %vm993, %v2654, 0
      %v2703 = vsel %vm993, %v2656, 0
      %2705 = vmatprep.subr.mxu0 0.0
      %2706 = vmatpush1.xpose.msra.mxu0 0.0
      %2707 = vmatprep.subr.mxu0 0.0
      %2708 = vmatpush1.xpose.msra.mxu0 0.0
      %2709 = vmatprep.subr.mxu0 0.0
      %2710 = vmatpush1.xpose.msra.mxu0 0.0
      %2711 = vmatprep.subr.mxu0 0.0
      %2712 = vmatpush1.xpose.msra.mxu0 0.0
      %2713 = vmatprep.subr.mxu0 0.0
      %2714 = vmatpush1.xpose.msra.mxu0 %v2703
      %2715 = vmatprep.subr.mxu0 0.0
      %2716 = vmatpush1.xpose.msra.mxu0 %v2701
      %2717 = vmatprep.subr.mxu0 0.0
      %2718 = vmatpush1.xpose.msra.mxu0 %v2699
      %2719 = vmatprep.subr.mxu0 0.0
      %2720 = vmatpush1.xpose.msra.mxu0 %v2697
      %2721 = vmatprep.subr.mxu0 0.0
      %2722 = vmatpush1.xpose.msra.mxu0 %v2695
      %2723 = vmatprep.subr.mxu0 0.0
      %2724 = vmatpush1.xpose.msra.mxu0 %v2693
      %2725 = vmatprep.subr.mxu0 0.0
      %2726 = vmatpush1.xpose.msra.mxu0 %v2691
      %2727 = vmatprep.subr.mxu0 0.0
      %2728 = vmatpush1.xpose.msra.mxu0 %v2689
      %2729 = vmatprep.subr.mxu0 0.0
      %2730 = vmatpush1.xpose.msra.mxu0 %v2687
      %2731 = vmatprep.subr.mxu0 0.0
      %2732 = vmatpush1.xpose.msra.mxu0 %v2685
      %2733 = vmatprep.subr.mxu0 0.0
      %2734 = vmatpush1.xpose.msra.mxu0 %v2683
      %2735 = vmatprep.subr.mxu0 0.0
      %2736 = vmatpush1.xpose.msra.mxu0 %v2681
      %2737 = vmatprep.subr.mxu0 0.0
      %2738 = vmatpush2.xpose.msra.mxu0 0.0
      %2739 = vmatprep.subr.mxu0 0.0
      %2740 = vmatpush2.xpose.msra.mxu0 0.0
      %2741 = vmatprep.subr.mxu0 0.0
      %2742 = vmatpush2.xpose.msra.mxu0 0.0
      %2743 = vmatprep.subr.mxu0 0.0
      %2744 = vmatpush2.xpose.msra.mxu0 0.0
      %2745 = vmatprep.subr.mxu0 0.0
      %2746 = vmatpush2.xpose.msra.mxu0 0.0
      %2747 = vmatprep.subr.mxu0 0.0
      %2748 = vmatpush2.xpose.msra.mxu0 0.0
      %2749 = vmatprep.subr.mxu0 0.0
      %2750 = vmatpush2.xpose.msra.mxu0 0.0
      %2751 = vmatprep.subr.mxu0 0.0
      %2752 = vmatpush2.xpose.msra.mxu0 0.0
      %2753 = vmatprep.subr.mxu0 0.0
      %2754 = vmatpush2.xpose.msra.mxu0 0.0
      %2755 = vmatprep.subr.mxu0 0.0
      %2756 = vmatpush2.xpose.msra.mxu0 0.0
      %2757 = vmatprep.subr.mxu0 0.0
      %2758 = vmatpush2.xpose.msra.mxu0 0.0
      %2759 = vmatprep.subr.mxu0 0.0
      %2760 = vmatpush2.xpose.msra.mxu0 0.0
      %2761 = vmatprep.subr.mxu0 0.0
      %2762 = vmatpush2.xpose.msra.mxu0 0.0
      %2763 = vmatprep.subr.mxu0 0.0
      %2764 = vmatpush2.xpose.msra.mxu0 0.0
      %2765 = vmatprep.subr.mxu0 0.0
      %2766 = vmatpush2.xpose.msra.mxu0 0.0
      %2767 = vmatprep.subr.mxu0 0.0
      %2768 = vmatpush2.xpose.msra.mxu0 0.0
      %2769 = vmatprep.mubr.f32.mxu0 0.0
      %2770 = vmatmul.mubr.f32.gmra.mxu0 %v2657
      %v2771 = vpop.f32.mrf.mxu0
      %v2772 = vadd.f32 %v571, %v2771
      %v2773 = vpop.f32.mrf.mxu0
      %2774 = vmatprep.mubr.f32.mxu0 0.0
      %2775 = vmatmul.mubr.f32.gmra.mxu0 %v2659
      %v2776 = vpop.f32.mrf.mxu0
      %v2777 = vadd.f32 %v572, %v2776
      %v2778 = vpop.f32.mrf.mxu0
      %2779 = vmatprep.mubr.f32.mxu0 0.0
      %2780 = vmatmul.mubr.f32.gmra.mxu0 %v2661
      %v2781 = vpop.f32.mrf.mxu0
      %v2782 = vadd.f32 %v573, %v2781
      %v2783 = vpop.f32.mrf.mxu0
      %2784 = vmatprep.mubr.f32.mxu0 0.0
      %2785 = vmatmul.mubr.f32.gmra.mxu0 %v2663
      %v2786 = vpop.f32.mrf.mxu0
      %v2787 = vadd.f32 %v574, %v2786
      %v2788 = vpop.f32.mrf.mxu0
      %2789 = vmatprep.mubr.f32.mxu0 0.0
      %2790 = vmatmul.mubr.f32.gmra.mxu0 %v2665
      %v2791 = vpop.f32.mrf.mxu0
      %v2792 = vadd.f32 %v575, %v2791
      %v2793 = vpop.f32.mrf.mxu0
      %2794 = vmatprep.mubr.f32.mxu0 0.0
      %2795 = vmatmul.mubr.f32.gmra.mxu0 %v2667
      %v2796 = vpop.f32.mrf.mxu0
      %v2797 = vadd.f32 %v576, %v2796
      %v2798 = vpop.f32.mrf.mxu0
      %2799 = vmatprep.mubr.f32.mxu0 0.0
      %2800 = vmatmul.mubr.f32.gmra.mxu0 %v2669
      %v2801 = vpop.f32.mrf.mxu0
      %v2802 = vadd.f32 %v577, %v2801
      %v2803 = vpop.f32.mrf.mxu0
      %2804 = vmatprep.mubr.f32.mxu0 0.0
      %2805 = vmatmul.mubr.f32.gmra.mxu0 %v2671
      %v2806 = vpop.f32.mrf.mxu0
      %v2807 = vadd.f32 %v578, %v2806
      %v2808 = vpop.f32.mrf.mxu0
      %2809 = vmatprep.mubr.f32.mxu0 0.0
      %2810 = vmatmul.mubr.f32.gmra.mxu0 %v2673
      %v2811 = vpop.f32.mrf.mxu0
      %v2812 = vadd.f32 %v579, %v2811
      %v2813 = vpop.f32.mrf.mxu0
      %2814 = vmatprep.mubr.f32.mxu0 0.0
      %2815 = vmatmul.mubr.f32.gmra.mxu0 %v2675
      %v2816 = vpop.f32.mrf.mxu0
      %v2817 = vadd.f32 %v580, %v2816
      %v2818 = vpop.f32.mrf.mxu0
      %2819 = vmatprep.mubr.f32.mxu0 0.0
      %2820 = vmatmul.mubr.f32.gmra.mxu0 %v2677
      %v2821 = vpop.f32.mrf.mxu0
      %v2822 = vadd.f32 %v581, %v2821
      %v2823 = vpop.f32.mrf.mxu0
      %2824 = vmatprep.mubr.f32.mxu0 0.0
      %2825 = vmatmul.mubr.f32.gmra.mxu0 %v2679
      %v2826 = vpop.f32.mrf.mxu0
      %v2827 = vadd.f32 %v582, %v2826
      %v2828 = vpop.f32.mrf.mxu0
      %2829 = vdwg.mxu0
      %v2830 = vsel %vm1179, %v2772, -inf
      %2831 = vmax.xlane.f32.xlu0 %v2830
      %v2832 = vpop.xlane.xlu0 %2831
      %v2833 = vsel %vm1179, %v2777, -inf
      %2834 = vmax.xlane.f32.xlu0 %v2833
      %v2835 = vpop.xlane.xlu0 %2834
      %v2836 = vsel %vm1179, %v2782, -inf
      %2837 = vmax.xlane.f32.xlu0 %v2836
      %v2838 = vpop.xlane.xlu0 %2837
      %v2839 = vsel %vm1179, %v2787, -inf
      %2840 = vmax.xlane.f32.xlu0 %v2839
      %v2841 = vpop.xlane.xlu0 %2840
      %v2842 = vsel %vm1179, %v2792, -inf
      %2843 = vmax.xlane.f32.xlu0 %v2842
      %v2844 = vpop.xlane.xlu0 %2843
      %v2845 = vsel %vm1179, %v2797, -inf
      %2846 = vmax.xlane.f32.xlu0 %v2845
      %v2847 = vpop.xlane.xlu0 %2846
      %v2848 = vsel %vm1179, %v2802, -inf
      %2849 = vmax.xlane.f32.xlu0 %v2848
      %v2850 = vpop.xlane.xlu0 %2849
      %v2851 = vsel %vm1179, %v2807, -inf
      %2852 = vmax.xlane.f32.xlu0 %v2851
      %v2853 = vpop.xlane.xlu0 %2852
      %v2854 = vsel %vm1179, %v2812, -inf
      %2855 = vmax.xlane.f32.xlu0 %v2854
      %v2856 = vpop.xlane.xlu0 %2855
      %v2857 = vsel %vm1179, %v2817, -inf
      %2858 = vmax.xlane.f32.xlu0 %v2857
      %v2859 = vpop.xlane.xlu0 %2858
      %v2860 = vsel %vm1179, %v2822, -inf
      %2861 = vmax.xlane.f32.xlu0 %v2860
      %v2862 = vpop.xlane.xlu0 %2861
      %v2863 = vsel %vm1179, %v2827, -inf
      %2864 = vmax.xlane.f32.xlu0 %v2863
      %v2865 = vpop.xlane.xlu0 %2864
      %v2866 = vsub.f32 %v2772, %v2832
      %v2867 = vsub.f32 %v2777, %v2835
      %v2868 = vsub.f32 %v2782, %v2838
      %v2869 = vsub.f32 %v2787, %v2841
      %v2870 = vsub.f32 %v2792, %v2844
      %v2871 = vsub.f32 %v2797, %v2847
      %v2872 = vsub.f32 %v2802, %v2850
      %v2873 = vsub.f32 %v2807, %v2853
      %v2874 = vsub.f32 %v2812, %v2856
      %v2875 = vsub.f32 %v2817, %v2859
      %v2876 = vsub.f32 %v2822, %v2862
      %v2877 = vsub.f32 %v2827, %v2865
      %v2878 = vmul.f32 %v2866, 1.442695
      %v2879 = vpow.pop %v2878
      %v2880 = vmul.f32 %v2867, 1.442695
      %v2881 = vpow.pop %v2880
      %v2882 = vmul.f32 %v2868, 1.442695
      %v2883 = vpow.pop %v2882
      %v2884 = vmul.f32 %v2869, 1.442695
      %v2885 = vpow.pop %v2884
      %v2886 = vmul.f32 %v2870, 1.442695
      %v2887 = vpow.pop %v2886
      %v2888 = vmul.f32 %v2871, 1.442695
      %v2889 = vpow.pop %v2888
      %v2890 = vmul.f32 %v2872, 1.442695
      %v2891 = vpow.pop %v2890
      %v2892 = vmul.f32 %v2873, 1.442695
      %v2893 = vpow.pop %v2892
      %v2894 = vmul.f32 %v2874, 1.442695
      %v2895 = vpow.pop %v2894
      %v2896 = vmul.f32 %v2875, 1.442695
      %v2897 = vpow.pop %v2896
      %v2898 = vmul.f32 %v2876, 1.442695
      %v2899 = vpow.pop %v2898
      %v2900 = vmul.f32 %v2877, 1.442695
      %v2901 = vpow.pop %v2900
      %v2902 = vsel %vm1179, %v2879, 0.0
      %2903 = vadd.xlane.f32.xlu0 %v2902
      %v2904 = vpop.xlane.xlu0 %2903
      %v2905 = vsel %vm1179, %v2881, 0.0
      %2906 = vadd.xlane.f32.xlu0 %v2905
      %v2907 = vpop.xlane.xlu0 %2906
      %v2908 = vsel %vm1179, %v2883, 0.0
      %2909 = vadd.xlane.f32.xlu0 %v2908
      %v2910 = vpop.xlane.xlu0 %2909
      %v2911 = vsel %vm1179, %v2885, 0.0
      %2912 = vadd.xlane.f32.xlu0 %v2911
      %v2913 = vpop.xlane.xlu0 %2912
      %v2914 = vsel %vm1179, %v2887, 0.0
      %2915 = vadd.xlane.f32.xlu0 %v2914
      %v2916 = vpop.xlane.xlu0 %2915
      %v2917 = vsel %vm1179, %v2889, 0.0
      %2918 = vadd.xlane.f32.xlu0 %v2917
      %v2919 = vpop.xlane.xlu0 %2918
      %v2920 = vsel %vm1179, %v2891, 0.0
      %2921 = vadd.xlane.f32.xlu0 %v2920
      %v2922 = vpop.xlane.xlu0 %2921
      %v2923 = vsel %vm1179, %v2893, 0.0
      %2924 = vadd.xlane.f32.xlu0 %v2923
      %v2925 = vpop.xlane.xlu0 %2924
      %v2926 = vsel %vm1179, %v2895, 0.0
      %2927 = vadd.xlane.f32.xlu0 %v2926
      %v2928 = vpop.xlane.xlu0 %2927
      %v2929 = vsel %vm1179, %v2897, 0.0
      %2930 = vadd.xlane.f32.xlu0 %v2929
      %v2931 = vpop.xlane.xlu0 %2930
      %v2932 = vsel %vm1179, %v2899, 0.0
      %2933 = vadd.xlane.f32.xlu0 %v2932
      %v2934 = vpop.xlane.xlu0 %2933
      %v2935 = vsel %vm1179, %v2901, 0.0
      %2936 = vadd.xlane.f32.xlu0 %v2935
      %v2937 = vpop.xlane.xlu0 %2936
      %v2938 = vrcp.pop %v2904
      %v2939 = vmul.f32 %v2879, %v2938
      %v2940 = vrcp.pop %v2907
      %v2941 = vmul.f32 %v2881, %v2940
      %v2942 = vrcp.pop %v2910
      %v2943 = vmul.f32 %v2883, %v2942
      %v2944 = vrcp.pop %v2913
      %v2945 = vmul.f32 %v2885, %v2944
      %v2946 = vrcp.pop %v2916
      %v2947 = vmul.f32 %v2887, %v2946
      %v2948 = vrcp.pop %v2919
      %v2949 = vmul.f32 %v2889, %v2948
      %v2950 = vrcp.pop %v2922
      %v2951 = vmul.f32 %v2891, %v2950
      %v2952 = vrcp.pop %v2925
      %v2953 = vmul.f32 %v2893, %v2952
      %v2954 = vrcp.pop %v2928
      %v2955 = vmul.f32 %v2895, %v2954
      %v2956 = vrcp.pop %v2931
      %v2957 = vmul.f32 %v2897, %v2956
      %v2958 = vrcp.pop %v2934
      %v2959 = vmul.f32 %v2899, %v2958
      %v2960 = vrcp.pop %v2937
      %v2961 = vmul.f32 %v2901, %v2960
      %2962 = vrot.lane.b32.xlu0 %v887, 40
      %v2963 = vpop.permute.xlu0 %2962
      %2964 = vrot.lane.b32.xlu0 %v892, 40
      %v2965 = vpop.permute.xlu0 %2964
      %2966 = vrot.lane.b32.xlu0 %v897, 40
      %v2967 = vpop.permute.xlu0 %2966
      %2968 = vrot.lane.b32.xlu0 %v902, 40
      %v2969 = vpop.permute.xlu0 %2968
      %2970 = vrot.lane.b32.xlu0 %v907, 40
      %v2971 = vpop.permute.xlu0 %2970
      %2972 = vrot.lane.b32.xlu0 %v912, 40
      %v2973 = vpop.permute.xlu0 %2972
      %2974 = vrot.lane.b32.xlu0 %v917, 40
      %v2975 = vpop.permute.xlu0 %2974
      %2976 = vrot.lane.b32.xlu0 %v922, 40
      %v2977 = vpop.permute.xlu0 %2976
      %2978 = vrot.lane.b32.xlu0 %v927, 40
      %v2979 = vpop.permute.xlu0 %2978
      %2980 = vrot.lane.b32.xlu0 %v932, 40
      %v2981 = vpop.permute.xlu0 %2980
      %2982 = vrot.lane.b32.xlu0 %v937, 40
      %v2983 = vpop.permute.xlu0 %2982
      %2984 = vrot.lane.b32.xlu0 %v942, 40
      %v2985 = vpop.permute.xlu0 %2984
      %v2999 = vsel %vm1179, %v2939, 0
      %v3002 = vsel %vm1179, %v2941, 0
      %v3005 = vsel %vm1179, %v2943, 0
      %v3008 = vsel %vm1179, %v2945, 0
      %v3011 = vsel %vm1179, %v2947, 0
      %v3014 = vsel %vm1179, %v2949, 0
      %v3017 = vsel %vm1179, %v2951, 0
      %v3020 = vsel %vm1179, %v2953, 0
      %v3023 = vsel %vm1179, %v2955, 0
      %v3026 = vsel %vm1179, %v2957, 0
      %v3029 = vsel %vm1179, %v2959, 0
      %v3032 = vsel %vm1179, %v2961, 0
      %3034 = vmatprep.subr.mxu0 0.0
      %3035 = vmatpush1.msra.mxu0 0.0
      %3036 = vmatprep.subr.mxu0 0.0
      %3037 = vmatpush1.msra.mxu0 0.0
      %3038 = vmatprep.subr.mxu0 0.0
      %3039 = vmatpush1.msra.mxu0 0.0
      %3040 = vmatprep.subr.mxu0 0.0
      %3041 = vmatpush1.msra.mxu0 0.0
      %3042 = vmatprep.subr.mxu0 0.0
      %3043 = vmatpush1.msra.mxu0 %v2985
      %3044 = vmatprep.subr.mxu0 0.0
      %3045 = vmatpush1.msra.mxu0 %v2983
      %3046 = vmatprep.subr.mxu0 0.0
      %3047 = vmatpush1.msra.mxu0 %v2981
      %3048 = vmatprep.subr.mxu0 0.0
      %3049 = vmatpush1.msra.mxu0 %v2979
      %3050 = vmatprep.subr.mxu0 0.0
      %3051 = vmatpush1.msra.mxu0 %v2977
      %3052 = vmatprep.subr.mxu0 0.0
      %3053 = vmatpush1.msra.mxu0 %v2975
      %3054 = vmatprep.subr.mxu0 0.0
      %3055 = vmatpush1.msra.mxu0 %v2973
      %3056 = vmatprep.subr.mxu0 0.0
      %3057 = vmatpush1.msra.mxu0 %v2971
      %3058 = vmatprep.subr.mxu0 0.0
      %3059 = vmatpush1.msra.mxu0 %v2969
      %3060 = vmatprep.subr.mxu0 0.0
      %3061 = vmatpush1.msra.mxu0 %v2967
      %3062 = vmatprep.subr.mxu0 0.0
      %3063 = vmatpush1.msra.mxu0 %v2965
      %3064 = vmatprep.subr.mxu0 0.0
      %3065 = vmatpush1.msra.mxu0 %v2963
      %3066 = vmatprep.subr.mxu0 0.0
      %3067 = vmatpush2.msra.mxu0 0.0
      %3068 = vmatprep.subr.mxu0 0.0
      %3069 = vmatpush2.msra.mxu0 0.0
      %3070 = vmatprep.subr.mxu0 0.0
      %3071 = vmatpush2.msra.mxu0 0.0
      %3072 = vmatprep.subr.mxu0 0.0
      %3073 = vmatpush2.msra.mxu0 0.0
      %3074 = vmatprep.subr.mxu0 0.0
      %3075 = vmatpush2.msra.mxu0 0.0
      %3076 = vmatprep.subr.mxu0 0.0
      %3077 = vmatpush2.msra.mxu0 0.0
      %3078 = vmatprep.subr.mxu0 0.0
      %3079 = vmatpush2.msra.mxu0 0.0
      %3080 = vmatprep.subr.mxu0 0.0
      %3081 = vmatpush2.msra.mxu0 0.0
      %3082 = vmatprep.subr.mxu0 0.0
      %3083 = vmatpush2.msra.mxu0 0.0
      %3084 = vmatprep.subr.mxu0 0.0
      %3085 = vmatpush2.msra.mxu0 0.0
      %3086 = vmatprep.subr.mxu0 0.0
      %3087 = vmatpush2.msra.mxu0 0.0
      %3088 = vmatprep.subr.mxu0 0.0
      %3089 = vmatpush2.msra.mxu0 0.0
      %3090 = vmatprep.subr.mxu0 0.0
      %3091 = vmatpush2.msra.mxu0 0.0
      %3092 = vmatprep.subr.mxu0 0.0
      %3093 = vmatpush2.msra.mxu0 0.0
      %3094 = vmatprep.subr.mxu0 0.0
      %3095 = vmatpush2.msra.mxu0 0.0
      %3096 = vmatprep.subr.mxu0 0.0
      %3097 = vmatpush2.msra.mxu0 0.0
      %3098 = vmatprep.mubr.f32.mxu0 0.0
      %3099 = vmatmul.mubr.f32.gmra.mxu0 %v2999
      %v3100 = vpop.f32.mrf.mxu0
      %v3101 = vadd.f32 0.0, %v3100
      %v3102 = vpop.f32.mrf.mxu0
      %3103 = vmatprep.mubr.f32.mxu0 0.0
      %3104 = vmatmul.mubr.f32.gmra.mxu0 %v3002
      %v3105 = vpop.f32.mrf.mxu0
      %v3106 = vadd.f32 0.0, %v3105
      %v3107 = vpop.f32.mrf.mxu0
      %3108 = vmatprep.mubr.f32.mxu0 0.0
      %3109 = vmatmul.mubr.f32.gmra.mxu0 %v3005
      %v3110 = vpop.f32.mrf.mxu0
      %v3111 = vadd.f32 0.0, %v3110
      %v3112 = vpop.f32.mrf.mxu0
      %3113 = vmatprep.mubr.f32.mxu0 0.0
      %3114 = vmatmul.mubr.f32.gmra.mxu0 %v3008
      %v3115 = vpop.f32.mrf.mxu0
      %v3116 = vadd.f32 0.0, %v3115
      %v3117 = vpop.f32.mrf.mxu0
      %3118 = vmatprep.mubr.f32.mxu0 0.0
      %3119 = vmatmul.mubr.f32.gmra.mxu0 %v3011
      %v3120 = vpop.f32.mrf.mxu0
      %v3121 = vadd.f32 0.0, %v3120
      %v3122 = vpop.f32.mrf.mxu0
      %3123 = vmatprep.mubr.f32.mxu0 0.0
      %3124 = vmatmul.mubr.f32.gmra.mxu0 %v3014
      %v3125 = vpop.f32.mrf.mxu0
      %v3126 = vadd.f32 0.0, %v3125
      %v3127 = vpop.f32.mrf.mxu0
      %3128 = vmatprep.mubr.f32.mxu0 0.0
      %3129 = vmatmul.mubr.f32.gmra.mxu0 %v3017
      %v3130 = vpop.f32.mrf.mxu0
      %v3131 = vadd.f32 0.0, %v3130
      %v3132 = vpop.f32.mrf.mxu0
      %3133 = vmatprep.mubr.f32.mxu0 0.0
      %3134 = vmatmul.mubr.f32.gmra.mxu0 %v3020
      %v3135 = vpop.f32.mrf.mxu0
      %v3136 = vadd.f32 0.0, %v3135
      %v3137 = vpop.f32.mrf.mxu0
      %3138 = vmatprep.mubr.f32.mxu0 0.0
      %3139 = vmatmul.mubr.f32.gmra.mxu0 %v3023
      %v3140 = vpop.f32.mrf.mxu0
      %v3141 = vadd.f32 0.0, %v3140
      %v3142 = vpop.f32.mrf.mxu0
      %3143 = vmatprep.mubr.f32.mxu0 0.0
      %3144 = vmatmul.mubr.f32.gmra.mxu0 %v3026
      %v3145 = vpop.f32.mrf.mxu0
      %v3146 = vadd.f32 0.0, %v3145
      %v3147 = vpop.f32.mrf.mxu0
      %3148 = vmatprep.mubr.f32.mxu0 0.0
      %3149 = vmatmul.mubr.f32.gmra.mxu0 %v3029
      %v3150 = vpop.f32.mrf.mxu0
      %v3151 = vadd.f32 0.0, %v3150
      %v3152 = vpop.f32.mrf.mxu0
      %3153 = vmatprep.mubr.f32.mxu0 0.0
      %3154 = vmatmul.mubr.f32.gmra.mxu0 %v3032
      %v3155 = vpop.f32.mrf.mxu0
      %v3156 = vadd.f32 0.0, %v3155
      %v3157 = vpop.f32.mrf.mxu0
      %3158 = vdwg.mxu0
      %3171 = vrot.lane.b32.xlu0 %v2001, 8
      %v3172 = vpop.permute.xlu0 %3171
      %3173 = vrot.lane.b32.xlu0 %v2006, 8
      %v3174 = vpop.permute.xlu0 %3173
      %3175 = vrot.lane.b32.xlu0 %v2011, 8
      %v3176 = vpop.permute.xlu0 %3175
      %3177 = vrot.lane.b32.xlu0 %v2016, 8
      %v3178 = vpop.permute.xlu0 %3177
      %3179 = vrot.lane.b32.xlu0 %v2021, 8
      %v3180 = vpop.permute.xlu0 %3179
      %3181 = vrot.lane.b32.xlu0 %v2026, 8
      %v3182 = vpop.permute.xlu0 %3181
      %3183 = vrot.lane.b32.xlu0 %v2031, 8
      %v3184 = vpop.permute.xlu0 %3183
      %3185 = vrot.lane.b32.xlu0 %v2036, 8
      %v3186 = vpop.permute.xlu0 %3185
      %3187 = vrot.lane.b32.xlu0 %v2041, 8
      %v3188 = vpop.permute.xlu0 %3187
      %3189 = vrot.lane.b32.xlu0 %v2046, 8
      %v3190 = vpop.permute.xlu0 %3189
      %3191 = vrot.lane.b32.xlu0 %v2051, 8
      %v3192 = vpop.permute.xlu0 %3191
      %3193 = vrot.lane.b32.xlu0 %v2056, 8
      %v3194 = vpop.permute.xlu0 %3193
      %3219 = vrot.lane.b32.xlu0 %v2551, 16
      %v3220 = vpop.permute.xlu0 %3219
      %3221 = vrot.lane.b32.xlu0 %v2556, 16
      %v3222 = vpop.permute.xlu0 %3221
      %3223 = vrot.lane.b32.xlu0 %v2561, 16
      %v3224 = vpop.permute.xlu0 %3223
      %3225 = vrot.lane.b32.xlu0 %v2566, 16
      %v3226 = vpop.permute.xlu0 %3225
      %3227 = vrot.lane.b32.xlu0 %v2571, 16
      %v3228 = vpop.permute.xlu0 %3227
      %3229 = vrot.lane.b32.xlu0 %v2576, 16
      %v3230 = vpop.permute.xlu0 %3229
      %3231 = vrot.lane.b32.xlu0 %v2581, 16
      %v3232 = vpop.permute.xlu0 %3231
      %3233 = vrot.lane.b32.xlu0 %v2586, 16
      %v3234 = vpop.permute.xlu0 %3233
      %3235 = vrot.lane.b32.xlu0 %v2591, 16
      %v3236 = vpop.permute.xlu0 %3235
      %3237 = vrot.lane.b32.xlu0 %v2596, 16
      %v3238 = vpop.permute.xlu0 %3237
      %3239 = vrot.lane.b32.xlu0 %v2601, 16
      %v3240 = vpop.permute.xlu0 %3239
      %3241 = vrot.lane.b32.xlu0 %v2606, 16
      %v3242 = vpop.permute.xlu0 %3241
      %3267 = vrot.lane.b32.xlu0 %v3101, 24
      %v3268 = vpop.permute.xlu0 %3267
      %3269 = vrot.lane.b32.xlu0 %v3106, 24
      %v3270 = vpop.permute.xlu0 %3269
      %3271 = vrot.lane.b32.xlu0 %v3111, 24
      %v3272 = vpop.permute.xlu0 %3271
      %3273 = vrot.lane.b32.xlu0 %v3116, 24
      %v3274 = vpop.permute.xlu0 %3273
      %3275 = vrot.lane.b32.xlu0 %v3121, 24
      %v3276 = vpop.permute.xlu0 %3275
      %3277 = vrot.lane.b32.xlu0 %v3126, 24
      %v3278 = vpop.permute.xlu0 %3277
      %3279 = vrot.lane.b32.xlu0 %v3131, 24
      %v3280 = vpop.permute.xlu0 %3279
      %3281 = vrot.lane.b32.xlu0 %v3136, 24
      %v3282 = vpop.permute.xlu0 %3281
      %3283 = vrot.lane.b32.xlu0 %v3141, 24
      %v3284 = vpop.permute.xlu0 %3283
      %3285 = vrot.lane.b32.xlu0 %v3146, 24
      %v3286 = vpop.permute.xlu0 %3285
      %3287 = vrot.lane.b32.xlu0 %v3151, 24
      %v3288 = vpop.permute.xlu0 %3287
      %3289 = vrot.lane.b32.xlu0 %v3156, 24
      %v3290 = vpop.permute.xlu0 %3289
      %v3303 = vsel %vm993, %v1451, %v3172
      %v3304 = vsel %vm993, %v1456, %v3174
      %v3305 = vsel %vm993, %v1461, %v3176
      %v3306 = vsel %vm993, %v1466, %v3178
      %v3307 = vsel %vm993, %v1471, %v3180
      %v3308 = vsel %vm993, %v1476, %v3182
      %v3309 = vsel %vm993, %v1481, %v3184
      %v3310 = vsel %vm993, %v1486, %v3186
      %v3311 = vsel %vm993, %v1491, %v3188
      %v3312 = vsel %vm993, %v1496, %v3190
      %v3313 = vsel %vm993, %v1501, %v3192
      %v3314 = vsel %vm993, %v1506, %v3194
      %vm3315 = vcmask 130048
      %v3316 = vsel %vm3315, %v3303, %v3220
      %v3317 = vsel %vm3315, %v3304, %v3222
      %v3318 = vsel %vm3315, %v3305, %v3224
      %v3319 = vsel %vm3315, %v3306, %v3226
      %v3320 = vsel %vm3315, %v3307, %v3228
      %v3321 = vsel %vm3315, %v3308, %v3230
      %v3322 = vsel %vm3315, %v3309, %v3232
      %v3323 = vsel %vm3315, %v3310, %v3234
      %v3324 = vsel %vm3315, %v3311, %v3236
      %v3325 = vsel %vm3315, %v3312, %v3238
      %v3326 = vsel %vm3315, %v3313, %v3240
      %v3327 = vsel %vm3315, %v3314, %v3242
      %vm3328 = vcmask 195584
      %v3329 = vsel %vm3328, %v3316, %v3268
      %v3330 = vsel %vm3328, %v3317, %v3270
      %v3331 = vsel %vm3328, %v3318, %v3272
      %v3332 = vsel %vm3328, %v3319, %v3274
      %v3333 = vsel %vm3328, %v3320, %v3276
      %v3334 = vsel %vm3328, %v3321, %v3278
      %v3335 = vsel %vm3328, %v3322, %v3280
      %v3336 = vsel %vm3328, %v3323, %v3282
      %v3337 = vsel %vm3328, %v3324, %v3284
      %v3338 = vsel %vm3328, %v3325, %v3286
      %v3339 = vsel %vm3328, %v3326, %v3288
      %v3340 = vsel %vm3328, %v3327, %v3290
      %v3341 = vld [vmem:[%s5] sm:$0xff]
      %v3342 = vld [vmem:[%s5 + $0x8] sm:$0xff]
      %v3343 = vld [vmem:[%s5 + $0x10] sm:$0xff]
      %v3344 = vld [vmem:[%s5 + $0x18] sm:$0xff]
      %v3346 = vsel %vm546, %v3329, 0
      %v3349 = vsel %vm546, %v3330, 0
      %v3352 = vsel %vm546, %v3331, 0
      %v3355 = vsel %vm546, %v3332, 0
      %v3358 = vsel %vm546, %v3333, 0
      %v3361 = vsel %vm546, %v3334, 0
      %v3364 = vsel %vm546, %v3335, 0
      %v3367 = vsel %vm546, %v3336, 0
      %v3370 = vsel %vm546, %v3337, 0
      %v3373 = vsel %vm546, %v3338, 0
      %v3376 = vsel %vm546, %v3339, 0
      %v3379 = vsel %vm546, %v3340, 0
      %3381 = vmatprep.subr.mxu0 0.0
      %3382 = vmatpush1.msra.mxu0 0.0
      %3383 = vmatprep.subr.mxu0 0.0
      %3384 = vmatpush1.msra.mxu0 0.0
      %3385 = vmatprep.subr.mxu0 0.0
      %3386 = vmatpush1.msra.mxu0 0.0
      %3387 = vmatprep.subr.mxu0 0.0
      %3388 = vmatpush1.msra.mxu0 0.0
      %3389 = vmatprep.subr.mxu0 0.0
      %3390 = vmatpush1.msra.mxu0 0.0
      %3391 = vmatprep.subr.mxu0 0.0
      %3392 = vmatpush1.msra.mxu0 0.0
      %3393 = vmatprep.subr.mxu0 0.0
      %3394 = vmatpush1.msra.mxu0 0.0
      %3395 = vmatprep.subr.mxu0 0.0
      %3396 = vmatpush1.msra.mxu0 0.0
      %3397 = vmatprep.subr.mxu0 0.0
      %3398 = vmatpush1.msra.mxu0 0.0
      %3399 = vmatprep.subr.mxu0 0.0
      %3400 = vmatpush1.msra.mxu0 0.0
      %3401 = vmatprep.subr.mxu0 0.0
      %3402 = vmatpush1.msra.mxu0 0.0
      %3403 = vmatprep.subr.mxu0 0.0
      %3404 = vmatpush1.msra.mxu0 0.0
      %3405 = vmatprep.subr.mxu0 0.0
      %3406 = vmatpush1.msra.mxu0 %v3344
      %3407 = vmatprep.subr.mxu0 0.0
      %3408 = vmatpush1.msra.mxu0 %v3343
      %3409 = vmatprep.subr.mxu0 0.0
      %3410 = vmatpush1.msra.mxu0 %v3342
      %3411 = vmatprep.subr.mxu0 0.0
      %3412 = vmatpush1.msra.mxu0 %v3341
      %3413 = vmatprep.subr.mxu0 0.0
      %3414 = vmatpush2.msra.mxu0 0.0
      %3415 = vmatprep.subr.mxu0 0.0
      %3416 = vmatpush2.msra.mxu0 0.0
      %3417 = vmatprep.subr.mxu0 0.0
      %3418 = vmatpush2.msra.mxu0 0.0
      %3419 = vmatprep.subr.mxu0 0.0
      %3420 = vmatpush2.msra.mxu0 0.0
      %3421 = vmatprep.subr.mxu0 0.0
      %3422 = vmatpush2.msra.mxu0 0.0
      %3423 = vmatprep.subr.mxu0 0.0
      %3424 = vmatpush2.msra.mxu0 0.0
      %3425 = vmatprep.subr.mxu0 0.0
      %3426 = vmatpush2.msra.mxu0 0.0
      %3427 = vmatprep.subr.mxu0 0.0
      %3428 = vmatpush2.msra.mxu0 0.0
      %3429 = vmatprep.subr.mxu0 0.0
      %3430 = vmatpush2.msra.mxu0 0.0
      %3431 = vmatprep.subr.mxu0 0.0
      %3432 = vmatpush2.msra.mxu0 0.0
      %3433 = vmatprep.subr.mxu0 0.0
      %3434 = vmatpush2.msra.mxu0 0.0
      %3435 = vmatprep.subr.mxu0 0.0
      %3436 = vmatpush2.msra.mxu0 0.0
      %3437 = vmatprep.subr.mxu0 0.0
      %3438 = vmatpush2.msra.mxu0 0.0
      %3439 = vmatprep.subr.mxu0 0.0
      %3440 = vmatpush2.msra.mxu0 0.0
      %3441 = vmatprep.subr.mxu0 0.0
      %3442 = vmatpush2.msra.mxu0 0.0
      %3443 = vmatprep.subr.mxu0 0.0
      %3444 = vmatpush2.msra.mxu0 0.0
      %3445 = vmatprep.mubr.f32.mxu0 0.0
      %3446 = vmatmul.mubr.f32.gmra.mxu0 %v3346
      %v3447 = vpop.f32.mrf.mxu0
      %v3448 = vadd.f32 0.0, %v3447
      %v3449 = vpop.f32.mrf.mxu0
      %3450 = vmatprep.mubr.f32.mxu0 0.0
      %3451 = vmatmul.mubr.f32.gmra.mxu0 %v3349
      %v3452 = vpop.f32.mrf.mxu0
      %v3453 = vadd.f32 0.0, %v3452
      %v3454 = vpop.f32.mrf.mxu0
      %3455 = vmatprep.mubr.f32.mxu0 0.0
      %3456 = vmatmul.mubr.f32.gmra.mxu0 %v3352
      %v3457 = vpop.f32.mrf.mxu0
      %v3458 = vadd.f32 0.0, %v3457
      %v3459 = vpop.f32.mrf.mxu0
      %3460 = vmatprep.mubr.f32.mxu0 0.0
      %3461 = vmatmul.mubr.f32.gmra.mxu0 %v3355
      %v3462 = vpop.f32.mrf.mxu0
      %v3463 = vadd.f32 0.0, %v3462
      %v3464 = vpop.f32.mrf.mxu0
      %3465 = vmatprep.mubr.f32.mxu0 0.0
      %3466 = vmatmul.mubr.f32.gmra.mxu0 %v3358
      %v3467 = vpop.f32.mrf.mxu0
      %v3468 = vadd.f32 0.0, %v3467
      %v3469 = vpop.f32.mrf.mxu0
      %3470 = vmatprep.mubr.f32.mxu0 0.0
      %3471 = vmatmul.mubr.f32.gmra.mxu0 %v3361
      %v3472 = vpop.f32.mrf.mxu0
      %v3473 = vadd.f32 0.0, %v3472
      %v3474 = vpop.f32.mrf.mxu0
      %3475 = vmatprep.mubr.f32.mxu0 0.0
      %3476 = vmatmul.mubr.f32.gmra.mxu0 %v3364
      %v3477 = vpop.f32.mrf.mxu0
      %v3478 = vadd.f32 0.0, %v3477
      %v3479 = vpop.f32.mrf.mxu0
      %3480 = vmatprep.mubr.f32.mxu0 0.0
      %3481 = vmatmul.mubr.f32.gmra.mxu0 %v3367
      %v3482 = vpop.f32.mrf.mxu0
      %v3483 = vadd.f32 0.0, %v3482
      %v3484 = vpop.f32.mrf.mxu0
      %3485 = vmatprep.mubr.f32.mxu0 0.0
      %3486 = vmatmul.mubr.f32.gmra.mxu0 %v3370
      %v3487 = vpop.f32.mrf.mxu0
      %v3488 = vadd.f32 0.0, %v3487
      %v3489 = vpop.f32.mrf.mxu0
      %3490 = vmatprep.mubr.f32.mxu0 0.0
      %3491 = vmatmul.mubr.f32.gmra.mxu0 %v3373
      %v3492 = vpop.f32.mrf.mxu0
      %v3493 = vadd.f32 0.0, %v3492
      %v3494 = vpop.f32.mrf.mxu0
      %3495 = vmatprep.mubr.f32.mxu0 0.0
      %3496 = vmatmul.mubr.f32.gmra.mxu0 %v3376
      %v3497 = vpop.f32.mrf.mxu0
      %v3498 = vadd.f32 0.0, %v3497
      %v3499 = vpop.f32.mrf.mxu0
      %3500 = vmatprep.mubr.f32.mxu0 0.0
      %3501 = vmatmul.mubr.f32.gmra.mxu0 %v3379
      %v3502 = vpop.f32.mrf.mxu0
      %v3503 = vadd.f32 0.0, %v3502
      %v3504 = vpop.f32.mrf.mxu0
      %3505 = vdwg.mxu0
      %v3506 = vadd.f32 %v559, %v3448
      %v3507 = vadd.f32 %v560, %v3453
      %v3508 = vadd.f32 %v561, %v3458
      %v3509 = vadd.f32 %v562, %v3463
      %v3510 = vadd.f32 %v563, %v3468
      %v3511 = vadd.f32 %v564, %v3473
      %v3512 = vadd.f32 %v565, %v3478
      %v3513 = vadd.f32 %v566, %v3483
      %v3514 = vadd.f32 %v567, %v3488
      %v3515 = vadd.f32 %v568, %v3493
      %v3516 = vadd.f32 %v569, %v3498
      %v3517 = vadd.f32 %v570, %v3503
      %3519 = vrot.lane.b32.xlu0 %v783, 32
      %v3520 = vpop.permute.xlu0 %3519
      %v3522 = vadd.f32 %v3506, %v3520
      %v3523 = vadd.f32 %v3507, %v3520
      %v3524 = vadd.f32 %v3508, %v3520
      %v3525 = vadd.f32 %v3509, %v3520
      %v3526 = vadd.f32 %v3510, %v3520
      %v3527 = vadd.f32 %v3511, %v3520
      %v3528 = vadd.f32 %v3512, %v3520
      %v3529 = vadd.f32 %v3513, %v3520
      %v3530 = vadd.f32 %v3514, %v3520
      %v3531 = vadd.f32 %v3515, %v3520
      %v3532 = vadd.f32 %v3516, %v3520
      %v3533 = vadd.f32 %v3517, %v3520
      %v3534 = vsel %vm546, %v3522, 0.0
      %3535 = vadd.xlane.f32.xlu0 %v3534
      %v3536 = vpop.xlane.xlu0 %3535
      %v3537 = vsel %vm546, %v3523, 0.0
      %3538 = vadd.xlane.f32.xlu0 %v3537
      %v3539 = vpop.xlane.xlu0 %3538
      %v3540 = vsel %vm546, %v3524, 0.0
      %3541 = vadd.xlane.f32.xlu0 %v3540
      %v3542 = vpop.xlane.xlu0 %3541
      %v3543 = vsel %vm546, %v3525, 0.0
      %3544 = vadd.xlane.f32.xlu0 %v3543
      %v3545 = vpop.xlane.xlu0 %3544
      %v3546 = vsel %vm546, %v3526, 0.0
      %3547 = vadd.xlane.f32.xlu0 %v3546
      %v3548 = vpop.xlane.xlu0 %3547
      %v3549 = vsel %vm546, %v3527, 0.0
      %3550 = vadd.xlane.f32.xlu0 %v3549
      %v3551 = vpop.xlane.xlu0 %3550
      %v3552 = vsel %vm546, %v3528, 0.0
      %3553 = vadd.xlane.f32.xlu0 %v3552
      %v3554 = vpop.xlane.xlu0 %3553
      %v3555 = vsel %vm546, %v3529, 0.0
      %3556 = vadd.xlane.f32.xlu0 %v3555
      %v3557 = vpop.xlane.xlu0 %3556
      %v3558 = vsel %vm546, %v3530, 0.0
      %3559 = vadd.xlane.f32.xlu0 %v3558
      %v3560 = vpop.xlane.xlu0 %3559
      %v3561 = vsel %vm546, %v3531, 0.0
      %3562 = vadd.xlane.f32.xlu0 %v3561
      %v3563 = vpop.xlane.xlu0 %3562
      %v3564 = vsel %vm546, %v3532, 0.0
      %3565 = vadd.xlane.f32.xlu0 %v3564
      %v3566 = vpop.xlane.xlu0 %3565
      %v3567 = vsel %vm546, %v3533, 0.0
      %3568 = vadd.xlane.f32.xlu0 %v3567
      %v3569 = vpop.xlane.xlu0 %3568
      %v3570 = vmul.f32 %v3536, %v623
      %v3571 = vmul.f32 %v3539, %v623
      %v3572 = vmul.f32 %v3542, %v623
      %v3573 = vmul.f32 %v3545, %v623
      %v3574 = vmul.f32 %v3548, %v623
      %v3575 = vmul.f32 %v3551, %v623
      %v3576 = vmul.f32 %v3554, %v623
      %v3577 = vmul.f32 %v3557, %v623
      %v3578 = vmul.f32 %v3560, %v623
      %v3579 = vmul.f32 %v3563, %v623
      %v3580 = vmul.f32 %v3566, %v623
      %v3581 = vmul.f32 %v3569, %v623
      %v3582 = vsub.f32 %v3522, %v3570
      %v3583 = vsub.f32 %v3523, %v3571
      %v3584 = vsub.f32 %v3524, %v3572
      %v3585 = vsub.f32 %v3525, %v3573
      %v3586 = vsub.f32 %v3526, %v3574
      %v3587 = vsub.f32 %v3527, %v3575
      %v3588 = vsub.f32 %v3528, %v3576
      %v3589 = vsub.f32 %v3529, %v3577
      %v3590 = vsub.f32 %v3530, %v3578
      %v3591 = vsub.f32 %v3531, %v3579
      %v3592 = vsub.f32 %v3532, %v3580
      %v3593 = vsub.f32 %v3533, %v3581
      %v3594 = vmul.f32 %v3582, %v3582
      %v3595 = vmul.f32 %v3583, %v3583
      %v3596 = vmul.f32 %v3584, %v3584
      %v3597 = vmul.f32 %v3585, %v3585
      %v3598 = vmul.f32 %v3586, %v3586
      %v3599 = vmul.f32 %v3587, %v3587
      %v3600 = vmul.f32 %v3588, %v3588
      %v3601 = vmul.f32 %v3589, %v3589
      %v3602 = vmul.f32 %v3590, %v3590
      %v3603 = vmul.f32 %v3591, %v3591
      %v3604 = vmul.f32 %v3592, %v3592
      %v3605 = vmul.f32 %v3593, %v3593
      %v3606 = vsel %vm546, %v3594, 0.0
      %3607 = vadd.xlane.f32.xlu0 %v3606
      %v3608 = vpop.xlane.xlu0 %3607
      %v3609 = vsel %vm546, %v3595, 0.0
      %3610 = vadd.xlane.f32.xlu0 %v3609
      %v3611 = vpop.xlane.xlu0 %3610
      %v3612 = vsel %vm546, %v3596, 0.0
      %3613 = vadd.xlane.f32.xlu0 %v3612
      %v3614 = vpop.xlane.xlu0 %3613
      %v3615 = vsel %vm546, %v3597, 0.0
      %3616 = vadd.xlane.f32.xlu0 %v3615
      %v3617 = vpop.xlane.xlu0 %3616
      %v3618 = vsel %vm546, %v3598, 0.0
      %3619 = vadd.xlane.f32.xlu0 %v3618
      %v3620 = vpop.xlane.xlu0 %3619
      %v3621 = vsel %vm546, %v3599, 0.0
      %3622 = vadd.xlane.f32.xlu0 %v3621
      %v3623 = vpop.xlane.xlu0 %3622
      %v3624 = vsel %vm546, %v3600, 0.0
      %3625 = vadd.xlane.f32.xlu0 %v3624
      %v3626 = vpop.xlane.xlu0 %3625
      %v3627 = vsel %vm546, %v3601, 0.0
      %3628 = vadd.xlane.f32.xlu0 %v3627
      %v3629 = vpop.xlane.xlu0 %3628
      %v3630 = vsel %vm546, %v3602, 0.0
      %3631 = vadd.xlane.f32.xlu0 %v3630
      %v3632 = vpop.xlane.xlu0 %3631
      %v3633 = vsel %vm546, %v3603, 0.0
      %3634 = vadd.xlane.f32.xlu0 %v3633
      %v3635 = vpop.xlane.xlu0 %3634
      %v3636 = vsel %vm546, %v3604, 0.0
      %3637 = vadd.xlane.f32.xlu0 %v3636
      %v3638 = vpop.xlane.xlu0 %3637
      %v3639 = vsel %vm546, %v3605, 0.0
      %3640 = vadd.xlane.f32.xlu0 %v3639
      %v3641 = vpop.xlane.xlu0 %3640
      %v3642 = vmul.f32 %v3608, %v623
      %v3643 = vmul.f32 %v3611, %v623
      %v3644 = vmul.f32 %v3614, %v623
      %v3645 = vmul.f32 %v3617, %v623
      %v3646 = vmul.f32 %v3620, %v623
      %v3647 = vmul.f32 %v3623, %v623
      %v3648 = vmul.f32 %v3626, %v623
      %v3649 = vmul.f32 %v3629, %v623
      %v3650 = vmul.f32 %v3632, %v623
      %v3651 = vmul.f32 %v3635, %v623
      %v3652 = vmul.f32 %v3638, %v623
      %v3653 = vmul.f32 %v3641, %v623
      %v3654 = vadd.f32 %v3642, 1e-06
      %v3655 = vadd.f32 %v3643, 1e-06
      %v3656 = vadd.f32 %v3644, 1e-06
      %v3657 = vadd.f32 %v3645, 1e-06
      %v3658 = vadd.f32 %v3646, 1e-06
      %v3659 = vadd.f32 %v3647, 1e-06
      %v3660 = vadd.f32 %v3648, 1e-06
      %v3661 = vadd.f32 %v3649, 1e-06
      %v3662 = vadd.f32 %v3650, 1e-06
      %v3663 = vadd.f32 %v3651, 1e-06
      %v3664 = vadd.f32 %v3652, 1e-06
      %v3665 = vadd.f32 %v3653, 1e-06
      %v3666 = vrsqrt.pop %v3654
      %v3667 = vrsqrt.pop %v3655
      %v3668 = vrsqrt.pop %v3656
      %v3669 = vrsqrt.pop %v3657
      %v3670 = vrsqrt.pop %v3658
      %v3671 = vrsqrt.pop %v3659
      %v3672 = vrsqrt.pop %v3660
      %v3673 = vrsqrt.pop %v3661
      %v3674 = vrsqrt.pop %v3662
      %v3675 = vrsqrt.pop %v3663
      %v3676 = vrsqrt.pop %v3664
      %v3677 = vrsqrt.pop %v3665
      %v3678 = vmul.f32 %v3582, %v3666
      %v3679 = vmul.f32 %v3583, %v3667
      %v3680 = vmul.f32 %v3584, %v3668
      %v3681 = vmul.f32 %v3585, %v3669
      %v3682 = vmul.f32 %v3586, %v3670
      %v3683 = vmul.f32 %v3587, %v3671
      %v3684 = vmul.f32 %v3588, %v3672
      %v3685 = vmul.f32 %v3589, %v3673
      %v3686 = vmul.f32 %v3590, %v3674
      %v3687 = vmul.f32 %v3591, %v3675
      %v3688 = vmul.f32 %v3592, %v3676
      %v3689 = vmul.f32 %v3593, %v3677
      %3690 = vrot.lane.b32.xlu0 %v747, 64
      %v3691 = vpop.permute.xlu0 %3690
      %v3693 = vmul.f32 %v3678, %v3691
      %v3694 = vmul.f32 %v3679, %v3691
      %v3695 = vmul.f32 %v3680, %v3691
      %v3696 = vmul.f32 %v3681, %v3691
      %v3697 = vmul.f32 %v3682, %v3691
      %v3698 = vmul.f32 %v3683, %v3691
      %v3699 = vmul.f32 %v3684, %v3691
      %v3700 = vmul.f32 %v3685, %v3691
      %v3701 = vmul.f32 %v3686, %v3691
      %v3702 = vmul.f32 %v3687, %v3691
      %v3703 = vmul.f32 %v3688, %v3691
      %v3704 = vmul.f32 %v3689, %v3691
      %3705 = vrot.lane.b32.xlu0 %v747, 32
      %v3706 = vpop.permute.xlu0 %3705
      %v3708 = vadd.f32 %v3693, %v3706
      %v3709 = vadd.f32 %v3694, %v3706
      %v3710 = vadd.f32 %v3695, %v3706
      %v3711 = vadd.f32 %v3696, %v3706
      %v3712 = vadd.f32 %v3697, %v3706
      %v3713 = vadd.f32 %v3698, %v3706
      %v3714 = vadd.f32 %v3699, %v3706
      %v3715 = vadd.f32 %v3700, %v3706
      %v3716 = vadd.f32 %v3701, %v3706
      %v3717 = vadd.f32 %v3702, %v3706
      %v3718 = vadd.f32 %v3703, %v3706
      %v3719 = vadd.f32 %v3704, %v3706
      %v3720 = vld [vmem:[%s6] sm:$0xff]
      %v3721 = vld [vmem:[%s6 + $0x8] sm:$0xff]
      %v3722 = vld [vmem:[%s6 + $0x10] sm:$0xff]
      %v3723 = vld [vmem:[%s6 + $0x18] sm:$0xff]
      %v3724 = vlaneseq
      %v3725 = vshrl.u32 %v3724, 7
      %v3726 = vsub.s32 0, %v3725
      %v3727 = vrot.slane %v585, %v3726
      %v3729 = vsel %vm546, %v3708, 0
      %v3732 = vsel %vm546, %v3709, 0
      %v3735 = vsel %vm546, %v3710, 0
      %v3738 = vsel %vm546, %v3711, 0
      %v3741 = vsel %vm546, %v3712, 0
      %v3744 = vsel %vm546, %v3713, 0
      %v3747 = vsel %vm546, %v3714, 0
      %v3750 = vsel %vm546, %v3715, 0
      %v3753 = vsel %vm546, %v3716, 0
      %v3756 = vsel %vm546, %v3717, 0
      %v3759 = vsel %vm546, %v3718, 0
      %v3762 = vsel %vm546, %v3719, 0
      %3764 = vmatprep.subr.mxu0 0.0
      %3765 = vmatpush1.msra.mxu0 0.0
      %3766 = vmatprep.subr.mxu0 0.0
      %3767 = vmatpush1.msra.mxu0 0.0
      %3768 = vmatprep.subr.mxu0 0.0
      %3769 = vmatpush1.msra.mxu0 0.0
      %3770 = vmatprep.subr.mxu0 0.0
      %3771 = vmatpush1.msra.mxu0 0.0
      %3772 = vmatprep.subr.mxu0 0.0
      %3773 = vmatpush1.msra.mxu0 0.0
      %3774 = vmatprep.subr.mxu0 0.0
      %3775 = vmatpush1.msra.mxu0 0.0
      %3776 = vmatprep.subr.mxu0 0.0
      %3777 = vmatpush1.msra.mxu0 0.0
      %3778 = vmatprep.subr.mxu0 0.0
      %3779 = vmatpush1.msra.mxu0 0.0
      %3780 = vmatprep.subr.mxu0 0.0
      %3781 = vmatpush1.msra.mxu0 0.0
      %3782 = vmatprep.subr.mxu0 0.0
      %3783 = vmatpush1.msra.mxu0 0.0
      %3784 = vmatprep.subr.mxu0 0.0
      %3785 = vmatpush1.msra.mxu0 0.0
      %3786 = vmatprep.subr.mxu0 0.0
      %3787 = vmatpush1.msra.mxu0 0.0
      %3788 = vmatprep.subr.mxu0 0.0
      %3789 = vmatpush1.msra.mxu0 %v3723
      %3790 = vmatprep.subr.mxu0 0.0
      %3791 = vmatpush1.msra.mxu0 %v3722
      %3792 = vmatprep.subr.mxu0 0.0
      %3793 = vmatpush1.msra.mxu0 %v3721
      %3794 = vmatprep.subr.mxu0 0.0
      %3795 = vmatpush1.msra.mxu0 %v3720
      %3796 = vmatprep.subr.mxu0 0.0
      %3797 = vmatpush2.msra.mxu0 0.0
      %3798 = vmatprep.subr.mxu0 0.0
      %3799 = vmatpush2.msra.mxu0 0.0
      %3800 = vmatprep.subr.mxu0 0.0
      %3801 = vmatpush2.msra.mxu0 0.0
      %3802 = vmatprep.subr.mxu0 0.0
      %3803 = vmatpush2.msra.mxu0 0.0
      %3804 = vmatprep.subr.mxu0 0.0
      %3805 = vmatpush2.msra.mxu0 0.0
      %3806 = vmatprep.subr.mxu0 0.0
      %3807 = vmatpush2.msra.mxu0 0.0
      %3808 = vmatprep.subr.mxu0 0.0
      %3809 = vmatpush2.msra.mxu0 0.0
      %3810 = vmatprep.subr.mxu0 0.0
      %3811 = vmatpush2.msra.mxu0 0.0
      %3812 = vmatprep.subr.mxu0 0.0
      %3813 = vmatpush2.msra.mxu0 0.0
      %3814 = vmatprep.subr.mxu0 0.0
      %3815 = vmatpush2.msra.mxu0 0.0
      %3816 = vmatprep.subr.mxu0 0.0
      %3817 = vmatpush2.msra.mxu0 0.0
      %3818 = vmatprep.subr.mxu0 0.0
      %3819 = vmatpush2.msra.mxu0 0.0
      %3820 = vmatprep.subr.mxu0 0.0
      %3821 = vmatpush2.msra.mxu0 0.0
      %3822 = vmatprep.subr.mxu0 0.0
      %3823 = vmatpush2.msra.mxu0 0.0
      %3824 = vmatprep.subr.mxu0 0.0
      %3825 = vmatpush2.msra.mxu0 0.0
      %3826 = vmatprep.subr.mxu0 0.0
      %3827 = vmatpush2.msra.mxu0 0.0
      %3828 = vmatprep.mubr.f32.mxu0 0.0
      %3829 = vmatmul.mubr.f32.gmra.mxu0 %v3729
      %v3830 = vpop.f32.mrf.mxu0
      %v3831 = vadd.f32 %v3727, %v3830
      %v3832 = vpop.f32.mrf.mxu0
      %3833 = vmatprep.mubr.f32.mxu0 0.0
      %3834 = vmatmul.mubr.f32.gmra.mxu0 %v3732
      %v3835 = vpop.f32.mrf.mxu0
      %v3836 = vadd.f32 %v3727, %v3835
      %v3837 = vpop.f32.mrf.mxu0
      %3838 = vmatprep.mubr.f32.mxu0 0.0
      %3839 = vmatmul.mubr.f32.gmra.mxu0 %v3735
      %v3840 = vpop.f32.mrf.mxu0
      %v3841 = vadd.f32 %v3727, %v3840
      %v3842 = vpop.f32.mrf.mxu0
      %3843 = vmatprep.mubr.f32.mxu0 0.0
      %3844 = vmatmul.mubr.f32.gmra.mxu0 %v3738
      %v3845 = vpop.f32.mrf.mxu0
      %v3846 = vadd.f32 %v3727, %v3845
      %v3847 = vpop.f32.mrf.mxu0
      %3848 = vmatprep.mubr.f32.mxu0 0.0
      %3849 = vmatmul.mubr.f32.gmra.mxu0 %v3741
      %v3850 = vpop.f32.mrf.mxu0
      %v3851 = vadd.f32 %v3727, %v3850
      %v3852 = vpop.f32.mrf.mxu0
      %3853 = vmatprep.mubr.f32.mxu0 0.0
      %3854 = vmatmul.mubr.f32.gmra.mxu0 %v3744
      %v3855 = vpop.f32.mrf.mxu0
      %v3856 = vadd.f32 %v3727, %v3855
      %v3857 = vpop.f32.mrf.mxu0
      %3858 = vmatprep.mubr.f32.mxu0 0.0
      %3859 = vmatmul.mubr.f32.gmra.mxu0 %v3747
      %v3860 = vpop.f32.mrf.mxu0
      %v3861 = vadd.f32 %v3727, %v3860
      %v3862 = vpop.f32.mrf.mxu0
      %3863 = vmatprep.mubr.f32.mxu0 0.0
      %3864 = vmatmul.mubr.f32.gmra.mxu0 %v3750
      %v3865 = vpop.f32.mrf.mxu0
      %v3866 = vadd.f32 %v3727, %v3865
      %v3867 = vpop.f32.mrf.mxu0
      %3868 = vmatprep.mubr.f32.mxu0 0.0
      %3869 = vmatmul.mubr.f32.gmra.mxu0 %v3753
      %v3870 = vpop.f32.mrf.mxu0
      %v3871 = vadd.f32 %v3727, %v3870
      %v3872 = vpop.f32.mrf.mxu0
      %3873 = vmatprep.mubr.f32.mxu0 0.0
      %3874 = vmatmul.mubr.f32.gmra.mxu0 %v3756
      %v3875 = vpop.f32.mrf.mxu0
      %v3876 = vadd.f32 %v3727, %v3875
      %v3877 = vpop.f32.mrf.mxu0
      %3878 = vmatprep.mubr.f32.mxu0 0.0
      %3879 = vmatmul.mubr.f32.gmra.mxu0 %v3759
      %v3880 = vpop.f32.mrf.mxu0
      %v3881 = vadd.f32 %v3727, %v3880
      %v3882 = vpop.f32.mrf.mxu0
      %3883 = vmatprep.mubr.f32.mxu0 0.0
      %3884 = vmatmul.mubr.f32.gmra.mxu0 %v3762
      %v3885 = vpop.f32.mrf.mxu0
      %v3886 = vadd.f32 %v3727, %v3885
      %v3887 = vpop.f32.mrf.mxu0
      %3888 = vdwg.mxu0
      %v3889 = vmul.f32 %v3831, 0.5
      %v3890 = vmul.f32 %v3836, 0.5
      %v3891 = vmul.f32 %v3841, 0.5
      %v3892 = vmul.f32 %v3846, 0.5
      %v3893 = vmul.f32 %v3851, 0.5
      %v3894 = vmul.f32 %v3856, 0.5
      %v3895 = vmul.f32 %v3861, 0.5
      %v3896 = vmul.f32 %v3866, 0.5
      %v3897 = vmul.f32 %v3871, 0.5
      %v3898 = vmul.f32 %v3876, 0.5
      %v3899 = vmul.f32 %v3881, 0.5
      %v3900 = vmul.f32 %v3886, 0.5
      %v3901 = vmul.f32 %v3831, 0.70710677
      %v3902 = vmul.f32 %v3836, 0.70710677
      %v3903 = vmul.f32 %v3841, 0.70710677
      %v3904 = vmul.f32 %v3846, 0.70710677
      %v3905 = vmul.f32 %v3851, 0.70710677
      %v3906 = vmul.f32 %v3856, 0.70710677
      %v3907 = vmul.f32 %v3861, 0.70710677
      %v3908 = vmul.f32 %v3866, 0.70710677
      %v3909 = vmul.f32 %v3871, 0.70710677
      %v3910 = vmul.f32 %v3876, 0.70710677
      %v3911 = vmul.f32 %v3881, 0.70710677
      %v3912 = vmul.f32 %v3886, 0.70710677
      %v3913 = verf.f32.pop %v3901
      %v3914 = verf.f32.pop %v3902
      %v3915 = verf.f32.pop %v3903
      %v3916 = verf.f32.pop %v3904
      %v3917 = verf.f32.pop %v3905
      %v3918 = verf.f32.pop %v3906
      %v3919 = verf.f32.pop %v3907
      %v3920 = verf.f32.pop %v3908
      %v3921 = verf.f32.pop %v3909
      %v3922 = verf.f32.pop %v3910
      %v3923 = verf.f32.pop %v3911
      %v3924 = verf.f32.pop %v3912
      %v3925 = vadd.f32 %v3913, 1.0
      %v3926 = vadd.f32 %v3914, 1.0
      %v3927 = vadd.f32 %v3915, 1.0
      %v3928 = vadd.f32 %v3916, 1.0
      %v3929 = vadd.f32 %v3917, 1.0
      %v3930 = vadd.f32 %v3918, 1.0
      %v3931 = vadd.f32 %v3919, 1.0
      %v3932 = vadd.f32 %v3920, 1.0
      %v3933 = vadd.f32 %v3921, 1.0
      %v3934 = vadd.f32 %v3922, 1.0
      %v3935 = vadd.f32 %v3923, 1.0
      %v3936 = vadd.f32 %v3924, 1.0
      %v3937 = vmul.f32 %v3889, %v3925
      %v3938 = vmul.f32 %v3890, %v3926
      %v3939 = vmul.f32 %v3891, %v3927
      %v3940 = vmul.f32 %v3892, %v3928
      %v3941 = vmul.f32 %v3893, %v3929
      %v3942 = vmul.f32 %v3894, %v3930
      %v3943 = vmul.f32 %v3895, %v3931
      %v3944 = vmul.f32 %v3896, %v3932
      %v3945 = vmul.f32 %v3897, %v3933
      %v3946 = vmul.f32 %v3898, %v3934
      %v3947 = vmul.f32 %v3899, %v3935
      %v3948 = vmul.f32 %v3900, %v3936
      %v3949 = vld [vmem:[%s7] sm:$0xff]
      %v3950 = vld [vmem:[%s7 + $0x8] sm:$0xff]
      %v3951 = vld [vmem:[%s7 + $0x10] sm:$0xff]
      %v3952 = vld [vmem:[%s7 + $0x18] sm:$0xff]
      %v3953 = vld [vmem:[%s7 + $0x20] sm:$0xff]
      %v3954 = vld [vmem:[%s7 + $0x28] sm:$0xff]
      %v3955 = vld [vmem:[%s7 + $0x30] sm:$0xff]
      %v3956 = vld [vmem:[%s7 + $0x38] sm:$0xff]
      %v3957 = vld [vmem:[%s7 + $0x40] sm:$0xff]
      %v3958 = vld [vmem:[%s7 + $0x48] sm:$0xff]
      %v3959 = vld [vmem:[%s7 + $0x50] sm:$0xff]
      %v3960 = vld [vmem:[%s7 + $0x58] sm:$0xff]
      %v3961 = vld [vmem:[%s7 + $0x60] sm:$0xff]
      %v3962 = vld [vmem:[%s7 + $0x68] sm:$0xff]
      %v3963 = vld [vmem:[%s7 + $0x70] sm:$0xff]
      %v3964 = vld [vmem:[%s7 + $0x78] sm:$0xff]
      %3965 = vmatprep.subr.mxu0 0.0
      %3966 = vmatpush1.msra.mxu0 %v3964
      %3967 = vmatprep.subr.mxu0 0.0
      %3968 = vmatpush1.msra.mxu0 %v3963
      %3969 = vmatprep.subr.mxu0 0.0
      %3970 = vmatpush1.msra.mxu0 %v3962
      %3971 = vmatprep.subr.mxu0 0.0
      %3972 = vmatpush1.msra.mxu0 %v3961
      %3973 = vmatprep.subr.mxu0 0.0
      %3974 = vmatpush1.msra.mxu0 %v3960
      %3975 = vmatprep.subr.mxu0 0.0
      %3976 = vmatpush1.msra.mxu0 %v3959
      %3977 = vmatprep.subr.mxu0 0.0
      %3978 = vmatpush1.msra.mxu0 %v3958
      %3979 = vmatprep.subr.mxu0 0.0
      %3980 = vmatpush1.msra.mxu0 %v3957
      %3981 = vmatprep.subr.mxu0 0.0
      %3982 = vmatpush1.msra.mxu0 %v3956
      %3983 = vmatprep.subr.mxu0 0.0
      %3984 = vmatpush1.msra.mxu0 %v3955
      %3985 = vmatprep.subr.mxu0 0.0
      %3986 = vmatpush1.msra.mxu0 %v3954
      %3987 = vmatprep.subr.mxu0 0.0
      %3988 = vmatpush1.msra.mxu0 %v3953
      %3989 = vmatprep.subr.mxu0 0.0
      %3990 = vmatpush1.msra.mxu0 %v3952
      %3991 = vmatprep.subr.mxu0 0.0
      %3992 = vmatpush1.msra.mxu0 %v3951
      %3993 = vmatprep.subr.mxu0 0.0
      %3994 = vmatpush1.msra.mxu0 %v3950
      %3995 = vmatprep.subr.mxu0 0.0
      %3996 = vmatpush1.msra.mxu0 %v3949
      %3997 = vmatprep.subr.mxu0 0.0
      %3998 = vmatpush2.msra.mxu0 0.0
      %3999 = vmatprep.subr.mxu0 0.0
      %4000 = vmatpush2.msra.mxu0 0.0
      %4001 = vmatprep.subr.mxu0 0.0
      %4002 = vmatpush2.msra.mxu0 0.0
      %4003 = vmatprep.subr.mxu0 0.0
      %4004 = vmatpush2.msra.mxu0 0.0
      %4005 = vmatprep.subr.mxu0 0.0
      %4006 = vmatpush2.msra.mxu0 0.0
      %4007 = vmatprep.subr.mxu0 0.0
      %4008 = vmatpush2.msra.mxu0 0.0
      %4009 = vmatprep.subr.mxu0 0.0
      %4010 = vmatpush2.msra.mxu0 0.0
      %4011 = vmatprep.subr.mxu0 0.0
      %4012 = vmatpush2.msra.mxu0 0.0
      %4013 = vmatprep.subr.mxu0 0.0
      %4014 = vmatpush2.msra.mxu0 0.0
      %4015 = vmatprep.subr.mxu0 0.0
      %4016 = vmatpush2.msra.mxu0 0.0
      %4017 = vmatprep.subr.mxu0 0.0
      %4018 = vmatpush2.msra.mxu0 0.0
      %4019 = vmatprep.subr.mxu0 0.0
      %4020 = vmatpush2.msra.mxu0 0.0
      %4021 = vmatprep.subr.mxu0 0.0
      %4022 = vmatpush2.msra.mxu0 0.0
      %4023 = vmatprep.subr.mxu0 0.0
      %4024 = vmatpush2.msra.mxu0 0.0
      %4025 = vmatprep.subr.mxu0 0.0
      %4026 = vmatpush2.msra.mxu0 0.0
      %4027 = vmatprep.subr.mxu0 0.0
      %4028 = vmatpush2.msra.mxu0 0.0
      %4029 = vmatprep.mubr.f32.mxu0 0.0
      %4030 = vmatmul.mubr.f32.gmra.mxu0 %v3937
      %v4031 = vpop.f32.mrf.mxu0
      %v4032 = vadd.f32 0.0, %v4031
      %v4033 = vpop.f32.mrf.mxu0
      %4034 = vmatprep.mubr.f32.mxu0 0.0
      %4035 = vmatmul.mubr.f32.gmra.mxu0 %v3938
      %v4036 = vpop.f32.mrf.mxu0
      %v4037 = vadd.f32 0.0, %v4036
      %v4038 = vpop.f32.mrf.mxu0
      %4039 = vmatprep.mubr.f32.mxu0 0.0
      %4040 = vmatmul.mubr.f32.gmra.mxu0 %v3939
      %v4041 = vpop.f32.mrf.mxu0
      %v4042 = vadd.f32 0.0, %v4041
      %v4043 = vpop.f32.mrf.mxu0
      %4044 = vmatprep.mubr.f32.mxu0 0.0
      %4045 = vmatmul.mubr.f32.gmra.mxu0 %v3940
      %v4046 = vpop.f32.mrf.mxu0
      %v4047 = vadd.f32 0.0, %v4046
      %v4048 = vpop.f32.mrf.mxu0
      %4049 = vmatprep.mubr.f32.mxu0 0.0
      %4050 = vmatmul.mubr.f32.gmra.mxu0 %v3941
      %v4051 = vpop.f32.mrf.mxu0
      %v4052 = vadd.f32 0.0, %v4051
      %v4053 = vpop.f32.mrf.mxu0
      %4054 = vmatprep.mubr.f32.mxu0 0.0
      %4055 = vmatmul.mubr.f32.gmra.mxu0 %v3942
      %v4056 = vpop.f32.mrf.mxu0
      %v4057 = vadd.f32 0.0, %v4056
      %v4058 = vpop.f32.mrf.mxu0
      %4059 = vmatprep.mubr.f32.mxu0 0.0
      %4060 = vmatmul.mubr.f32.gmra.mxu0 %v3943
      %v4061 = vpop.f32.mrf.mxu0
      %v4062 = vadd.f32 0.0, %v4061
      %v4063 = vpop.f32.mrf.mxu0
      %4064 = vmatprep.mubr.f32.mxu0 0.0
      %4065 = vmatmul.mubr.f32.gmra.mxu0 %v3944
      %v4066 = vpop.f32.mrf.mxu0
      %v4067 = vadd.f32 0.0, %v4066
      %v4068 = vpop.f32.mrf.mxu0
      %4069 = vmatprep.mubr.f32.mxu0 0.0
      %4070 = vmatmul.mubr.f32.gmra.mxu0 %v3945
      %v4071 = vpop.f32.mrf.mxu0
      %v4072 = vadd.f32 0.0, %v4071
      %v4073 = vpop.f32.mrf.mxu0
      %4074 = vmatprep.mubr.f32.mxu0 0.0
      %4075 = vmatmul.mubr.f32.gmra.mxu0 %v3946
      %v4076 = vpop.f32.mrf.mxu0
      %v4077 = vadd.f32 0.0, %v4076
      %v4078 = vpop.f32.mrf.mxu0
      %4079 = vmatprep.mubr.f32.mxu0 0.0
      %4080 = vmatmul.mubr.f32.gmra.mxu0 %v3947
      %v4081 = vpop.f32.mrf.mxu0
      %v4082 = vadd.f32 0.0, %v4081
      %v4083 = vpop.f32.mrf.mxu0
      %4084 = vmatprep.mubr.f32.mxu0 0.0
      %4085 = vmatmul.mubr.f32.gmra.mxu0 %v3948
      %v4086 = vpop.f32.mrf.mxu0
      %v4087 = vadd.f32 0.0, %v4086
      %v4088 = vpop.f32.mrf.mxu0
      %4089 = vdwg.mxu0
      %v4090 = vadd.f32 %v3522, %v4032
      %v4091 = vadd.f32 %v3523, %v4037
      %v4092 = vadd.f32 %v3524, %v4042
      %v4093 = vadd.f32 %v3525, %v4047
      %v4094 = vadd.f32 %v3526, %v4052
      %v4095 = vadd.f32 %v3527, %v4057
      %v4096 = vadd.f32 %v3528, %v4062
      %v4097 = vadd.f32 %v3529, %v4067
      %v4098 = vadd.f32 %v3530, %v4072
      %v4099 = vadd.f32 %v3531, %v4077
      %v4100 = vadd.f32 %v3532, %v4082
      %v4101 = vadd.f32 %v3533, %v4087
      %v4102 = vlaneseq
      %v4103 = vshrl.u32 %v4102, 7
      %v4104 = vsub.s32 0, %v4103
      %v4105 = vrot.slane %v586, %v4104
      %v4106 = vadd.f32 %v4090, %v4105
      %v4107 = vadd.f32 %v4091, %v4105
      %v4108 = vadd.f32 %v4092, %v4105
      %v4109 = vadd.f32 %v4093, %v4105
      %v4110 = vadd.f32 %v4094, %v4105
      %v4111 = vadd.f32 %v4095, %v4105
      %v4112 = vadd.f32 %v4096, %v4105
      %v4113 = vadd.f32 %v4097, %v4105
      %v4114 = vadd.f32 %v4098, %v4105
      %v4115 = vadd.f32 %v4099, %v4105
      %v4116 = vadd.f32 %v4100, %v4105
      %v4117 = vadd.f32 %v4101, %v4105
      %v4118 = vld [vmem:[%s9 + $0x4] sm:$0x1]
      %v4119 = vld [vmem:[%s9 + $0x5] sm:$0x1]
      %v4120 = vld [vmem:[%s9 + $0x6] sm:$0x1]
      %v4121 = vld [vmem:[%s9 + $0x7] sm:$0x1]
      %v4122 = vsel %vm546, %v4106, 0.0
      %4123 = vadd.xlane.f32.xlu0 %v4122
      %v4124 = vpop.xlane.xlu0 %4123
      %v4125 = vsel %vm546, %v4107, 0.0
      %4126 = vadd.xlane.f32.xlu0 %v4125
      %v4127 = vpop.xlane.xlu0 %4126
      %v4128 = vsel %vm546, %v4108, 0.0
      %4129 = vadd.xlane.f32.xlu0 %v4128
      %v4130 = vpop.xlane.xlu0 %4129
      %v4131 = vsel %vm546, %v4109, 0.0
      %4132 = vadd.xlane.f32.xlu0 %v4131
      %v4133 = vpop.xlane.xlu0 %4132
      %v4134 = vsel %vm546, %v4110, 0.0
      %4135 = vadd.xlane.f32.xlu0 %v4134
      %v4136 = vpop.xlane.xlu0 %4135
      %v4137 = vsel %vm546, %v4111, 0.0
      %4138 = vadd.xlane.f32.xlu0 %v4137
      %v4139 = vpop.xlane.xlu0 %4138
      %v4140 = vsel %vm546, %v4112, 0.0
      %4141 = vadd.xlane.f32.xlu0 %v4140
      %v4142 = vpop.xlane.xlu0 %4141
      %v4143 = vsel %vm546, %v4113, 0.0
      %4144 = vadd.xlane.f32.xlu0 %v4143
      %v4145 = vpop.xlane.xlu0 %4144
      %v4146 = vsel %vm546, %v4114, 0.0
      %4147 = vadd.xlane.f32.xlu0 %v4146
      %v4148 = vpop.xlane.xlu0 %4147
      %v4149 = vsel %vm546, %v4115, 0.0
      %4150 = vadd.xlane.f32.xlu0 %v4149
      %v4151 = vpop.xlane.xlu0 %4150
      %v4152 = vsel %vm546, %v4116, 0.0
      %4153 = vadd.xlane.f32.xlu0 %v4152
      %v4154 = vpop.xlane.xlu0 %4153
      %v4155 = vsel %vm546, %v4117, 0.0
      %4156 = vadd.xlane.f32.xlu0 %v4155
      %v4157 = vpop.xlane.xlu0 %4156
      %v4158 = vmul.f32 %v4124, %v623
      %v4159 = vmul.f32 %v4127, %v623
      %v4160 = vmul.f32 %v4130, %v623
      %v4161 = vmul.f32 %v4133, %v623
      %v4162 = vmul.f32 %v4136, %v623
      %v4163 = vmul.f32 %v4139, %v623
      %v4164 = vmul.f32 %v4142, %v623
      %v4165 = vmul.f32 %v4145, %v623
      %v4166 = vmul.f32 %v4148, %v623
      %v4167 = vmul.f32 %v4151, %v623
      %v4168 = vmul.f32 %v4154, %v623
      %v4169 = vmul.f32 %v4157, %v623
      %v4170 = vsub.f32 %v4106, %v4158
      %v4171 = vsub.f32 %v4107, %v4159
      %v4172 = vsub.f32 %v4108, %v4160
      %v4173 = vsub.f32 %v4109, %v4161
      %v4174 = vsub.f32 %v4110, %v4162
      %v4175 = vsub.f32 %v4111, %v4163
      %v4176 = vsub.f32 %v4112, %v4164
      %v4177 = vsub.f32 %v4113, %v4165
      %v4178 = vsub.f32 %v4114, %v4166
      %v4179 = vsub.f32 %v4115, %v4167
      %v4180 = vsub.f32 %v4116, %v4168
      %v4181 = vsub.f32 %v4117, %v4169
      %v4182 = vmul.f32 %v4170, %v4170
      %v4183 = vmul.f32 %v4171, %v4171
      %v4184 = vmul.f32 %v4172, %v4172
      %v4185 = vmul.f32 %v4173, %v4173
      %v4186 = vmul.f32 %v4174, %v4174
      %v4187 = vmul.f32 %v4175, %v4175
      %v4188 = vmul.f32 %v4176, %v4176
      %v4189 = vmul.f32 %v4177, %v4177
      %v4190 = vmul.f32 %v4178, %v4178
      %v4191 = vmul.f32 %v4179, %v4179
      %v4192 = vmul.f32 %v4180, %v4180
      %v4193 = vmul.f32 %v4181, %v4181
      %v4194 = vsel %vm546, %v4182, 0.0
      %4195 = vadd.xlane.f32.xlu0 %v4194
      %v4196 = vpop.xlane.xlu0 %4195
      %v4197 = vsel %vm546, %v4183, 0.0
      %4198 = vadd.xlane.f32.xlu0 %v4197
      %v4199 = vpop.xlane.xlu0 %4198
      %v4200 = vsel %vm546, %v4184, 0.0
      %4201 = vadd.xlane.f32.xlu0 %v4200
      %v4202 = vpop.xlane.xlu0 %4201
      %v4203 = vsel %vm546, %v4185, 0.0
      %4204 = vadd.xlane.f32.xlu0 %v4203
      %v4205 = vpop.xlane.xlu0 %4204
      %v4206 = vsel %vm546, %v4186, 0.0
      %4207 = vadd.xlane.f32.xlu0 %v4206
      %v4208 = vpop.xlane.xlu0 %4207
      %v4209 = vsel %vm546, %v4187, 0.0
      %4210 = vadd.xlane.f32.xlu0 %v4209
      %v4211 = vpop.xlane.xlu0 %4210
      %v4212 = vsel %vm546, %v4188, 0.0
      %4213 = vadd.xlane.f32.xlu0 %v4212
      %v4214 = vpop.xlane.xlu0 %4213
      %v4215 = vsel %vm546, %v4189, 0.0
      %4216 = vadd.xlane.f32.xlu0 %v4215
      %v4217 = vpop.xlane.xlu0 %4216
      %v4218 = vsel %vm546, %v4190, 0.0
      %4219 = vadd.xlane.f32.xlu0 %v4218
      %v4220 = vpop.xlane.xlu0 %4219
      %v4221 = vsel %vm546, %v4191, 0.0
      %4222 = vadd.xlane.f32.xlu0 %v4221
      %v4223 = vpop.xlane.xlu0 %4222
      %v4224 = vsel %vm546, %v4192, 0.0
      %4225 = vadd.xlane.f32.xlu0 %v4224
      %v4226 = vpop.xlane.xlu0 %4225
      %v4227 = vsel %vm546, %v4193, 0.0
      %4228 = vadd.xlane.f32.xlu0 %v4227
      %v4229 = vpop.xlane.xlu0 %4228
      %v4230 = vmul.f32 %v4196, %v623
      %v4231 = vmul.f32 %v4199, %v623
      %v4232 = vmul.f32 %v4202, %v623
      %v4233 = vmul.f32 %v4205, %v623
      %v4234 = vmul.f32 %v4208, %v623
      %v4235 = vmul.f32 %v4211, %v623
      %v4236 = vmul.f32 %v4214, %v623
      %v4237 = vmul.f32 %v4217, %v623
      %v4238 = vmul.f32 %v4220, %v623
      %v4239 = vmul.f32 %v4223, %v623
      %v4240 = vmul.f32 %v4226, %v623
      %v4241 = vmul.f32 %v4229, %v623
      %v4242 = vadd.f32 %v4230, 1e-06
      %v4243 = vadd.f32 %v4231, 1e-06
      %v4244 = vadd.f32 %v4232, 1e-06
      %v4245 = vadd.f32 %v4233, 1e-06
      %v4246 = vadd.f32 %v4234, 1e-06
      %v4247 = vadd.f32 %v4235, 1e-06
      %v4248 = vadd.f32 %v4236, 1e-06
      %v4249 = vadd.f32 %v4237, 1e-06
      %v4250 = vadd.f32 %v4238, 1e-06
      %v4251 = vadd.f32 %v4239, 1e-06
      %v4252 = vadd.f32 %v4240, 1e-06
      %v4253 = vadd.f32 %v4241, 1e-06
      %v4254 = vrsqrt.pop %v4242
      %v4255 = vrsqrt.pop %v4243
      %v4256 = vrsqrt.pop %v4244
      %v4257 = vrsqrt.pop %v4245
      %v4258 = vrsqrt.pop %v4246
      %v4259 = vrsqrt.pop %v4247
      %v4260 = vrsqrt.pop %v4248
      %v4261 = vrsqrt.pop %v4249
      %v4262 = vrsqrt.pop %v4250
      %v4263 = vrsqrt.pop %v4251
      %v4264 = vrsqrt.pop %v4252
      %v4265 = vrsqrt.pop %v4253
      %v4266 = vmul.f32 %v4170, %v4254
      %v4267 = vmul.f32 %v4171, %v4255
      %v4268 = vmul.f32 %v4172, %v4256
      %v4269 = vmul.f32 %v4173, %v4257
      %v4270 = vmul.f32 %v4174, %v4258
      %v4271 = vmul.f32 %v4175, %v4259
      %v4272 = vmul.f32 %v4176, %v4260
      %v4273 = vmul.f32 %v4177, %v4261
      %v4274 = vmul.f32 %v4178, %v4262
      %v4275 = vmul.f32 %v4179, %v4263
      %v4276 = vmul.f32 %v4180, %v4264
      %v4277 = vmul.f32 %v4181, %v4265
      %v4278 = vlaneseq
      %v4279 = vshrl.u32 %v4278, 7
      %v4280 = vsub.s32 0, %v4279
      %v4281 = vrot.slane %v4118, %v4280
      %v4282 = vmul.f32 %v4266, %v4281
      %v4283 = vmul.f32 %v4267, %v4281
      %v4284 = vmul.f32 %v4268, %v4281
      %v4285 = vmul.f32 %v4269, %v4281
      %v4286 = vmul.f32 %v4270, %v4281
      %v4287 = vmul.f32 %v4271, %v4281
      %v4288 = vmul.f32 %v4272, %v4281
      %v4289 = vmul.f32 %v4273, %v4281
      %v4290 = vmul.f32 %v4274, %v4281
      %v4291 = vmul.f32 %v4275, %v4281
      %v4292 = vmul.f32 %v4276, %v4281
      %v4293 = vmul.f32 %v4277, %v4281
      %4295 = vrot.lane.b32.xlu0 %v4281, 96
      %v4296 = vpop.permute.xlu0 %4295
      %v4298 = vadd.f32 %v4282, %v4296
      %v4299 = vadd.f32 %v4283, %v4296
      %v4300 = vadd.f32 %v4284, %v4296
      %v4301 = vadd.f32 %v4285, %v4296
      %v4302 = vadd.f32 %v4286, %v4296
      %v4303 = vadd.f32 %v4287, %v4296
      %v4304 = vadd.f32 %v4288, %v4296
      %v4305 = vadd.f32 %v4289, %v4296
      %v4306 = vadd.f32 %v4290, %v4296
      %v4307 = vadd.f32 %v4291, %v4296
      %v4308 = vadd.f32 %v4292, %v4296
      %v4309 = vadd.f32 %v4293, %v4296
      %s4310 = scalar_lea.vmem %s4, 32
      %v4311 = vld [vmem:[%s4310] sm:$0xff]
      %v4312 = vld [vmem:[%s4310 + $0x8] sm:$0xff]
      %v4313 = vld [vmem:[%s4310 + $0x10] sm:$0xff]
      %v4314 = vld [vmem:[%s4310 + $0x18] sm:$0xff]
      %v4315 = vlaneseq
      %v4316 = vshrl.u32 %v4315, 7
      %v4317 = vsub.s32 0, %v4316
      %v4318 = vrot.slane %v4119, %v4317
      %v4320 = vsel %vm546, %v4298, 0
      %v4323 = vsel %vm546, %v4299, 0
      %v4326 = vsel %vm546, %v4300, 0
      %v4329 = vsel %vm546, %v4301, 0
      %v4332 = vsel %vm546, %v4302, 0
      %v4335 = vsel %vm546, %v4303, 0
      %v4338 = vsel %vm546, %v4304, 0
      %v4341 = vsel %vm546, %v4305, 0
      %v4344 = vsel %vm546, %v4306, 0
      %v4347 = vsel %vm546, %v4307, 0
      %v4350 = vsel %vm546, %v4308, 0
      %v4353 = vsel %vm546, %v4309, 0
      %4355 = vmatprep.subr.mxu0 0.0
      %4356 = vmatpush1.msra.mxu0 0.0
      %4357 = vmatprep.subr.mxu0 0.0
      %4358 = vmatpush1.msra.mxu0 0.0
      %4359 = vmatprep.subr.mxu0 0.0
      %4360 = vmatpush1.msra.mxu0 0.0
      %4361 = vmatprep.subr.mxu0 0.0
      %4362 = vmatpush1.msra.mxu0 0.0
      %4363 = vmatprep.subr.mxu0 0.0
      %4364 = vmatpush1.msra.mxu0 0.0
      %4365 = vmatprep.subr.mxu0 0.0
      %4366 = vmatpush1.msra.mxu0 0.0
      %4367 = vmatprep.subr.mxu0 0.0
      %4368 = vmatpush1.msra.mxu0 0.0
      %4369 = vmatprep.subr.mxu0 0.0
      %4370 = vmatpush1.msra.mxu0 0.0
      %4371 = vmatprep.subr.mxu0 0.0
      %4372 = vmatpush1.msra.mxu0 0.0
      %4373 = vmatprep.subr.mxu0 0.0
      %4374 = vmatpush1.msra.mxu0 0.0
      %4375 = vmatprep.subr.mxu0 0.0
      %4376 = vmatpush1.msra.mxu0 0.0
      %4377 = vmatprep.subr.mxu0 0.0
      %4378 = vmatpush1.msra.mxu0 0.0
      %4379 = vmatprep.subr.mxu0 0.0
      %4380 = vmatpush1.msra.mxu0 %v4314
      %4381 = vmatprep.subr.mxu0 0.0
      %4382 = vmatpush1.msra.mxu0 %v4313
      %4383 = vmatprep.subr.mxu0 0.0
      %4384 = vmatpush1.msra.mxu0 %v4312
      %4385 = vmatprep.subr.mxu0 0.0
      %4386 = vmatpush1.msra.mxu0 %v4311
      %4387 = vmatprep.subr.mxu0 0.0
      %4388 = vmatpush2.msra.mxu0 0.0
      %4389 = vmatprep.subr.mxu0 0.0
      %4390 = vmatpush2.msra.mxu0 0.0
      %4391 = vmatprep.subr.mxu0 0.0
      %4392 = vmatpush2.msra.mxu0 0.0
      %4393 = vmatprep.subr.mxu0 0.0
      %4394 = vmatpush2.msra.mxu0 0.0
      %4395 = vmatprep.subr.mxu0 0.0
      %4396 = vmatpush2.msra.mxu0 0.0
      %4397 = vmatprep.subr.mxu0 0.0
      %4398 = vmatpush2.msra.mxu0 0.0
      %4399 = vmatprep.subr.mxu0 0.0
      %4400 = vmatpush2.msra.mxu0 0.0
      %4401 = vmatprep.subr.mxu0 0.0
      %4402 = vmatpush2.msra.mxu0 0.0
      %4403 = vmatprep.subr.mxu0 0.0
      %4404 = vmatpush2.msra.mxu0 0.0
      %4405 = vmatprep.subr.mxu0 0.0
      %4406 = vmatpush2.msra.mxu0 0.0
      %4407 = vmatprep.subr.mxu0 0.0
      %4408 = vmatpush2.msra.mxu0 0.0
      %4409 = vmatprep.subr.mxu0 0.0
      %4410 = vmatpush2.msra.mxu0 0.0
      %4411 = vmatprep.subr.mxu0 0.0
      %4412 = vmatpush2.msra.mxu0 0.0
      %4413 = vmatprep.subr.mxu0 0.0
      %4414 = vmatpush2.msra.mxu0 0.0
      %4415 = vmatprep.subr.mxu0 0.0
      %4416 = vmatpush2.msra.mxu0 0.0
      %4417 = vmatprep.subr.mxu0 0.0
      %4418 = vmatpush2.msra.mxu0 0.0
      %4419 = vmatprep.mubr.f32.mxu0 0.0
      %4420 = vmatmul.mubr.f32.gmra.mxu0 %v4320
      %v4421 = vpop.f32.mrf.mxu0
      %v4422 = vadd.f32 %v4318, %v4421
      %v4423 = vpop.f32.mrf.mxu0
      %4424 = vmatprep.mubr.f32.mxu0 0.0
      %4425 = vmatmul.mubr.f32.gmra.mxu0 %v4323
      %v4426 = vpop.f32.mrf.mxu0
      %v4427 = vadd.f32 %v4318, %v4426
      %v4428 = vpop.f32.mrf.mxu0
      %4429 = vmatprep.mubr.f32.mxu0 0.0
      %4430 = vmatmul.mubr.f32.gmra.mxu0 %v4326
      %v4431 = vpop.f32.mrf.mxu0
      %v4432 = vadd.f32 %v4318, %v4431
      %v4433 = vpop.f32.mrf.mxu0
      %4434 = vmatprep.mubr.f32.mxu0 0.0
      %4435 = vmatmul.mubr.f32.gmra.mxu0 %v4329
      %v4436 = vpop.f32.mrf.mxu0
      %v4437 = vadd.f32 %v4318, %v4436
      %v4438 = vpop.f32.mrf.mxu0
      %4439 = vmatprep.mubr.f32.mxu0 0.0
      %4440 = vmatmul.mubr.f32.gmra.mxu0 %v4332
      %v4441 = vpop.f32.mrf.mxu0
      %v4442 = vadd.f32 %v4318, %v4441
      %v4443 = vpop.f32.mrf.mxu0
      %4444 = vmatprep.mubr.f32.mxu0 0.0
      %4445 = vmatmul.mubr.f32.gmra.mxu0 %v4335
      %v4446 = vpop.f32.mrf.mxu0
      %v4447 = vadd.f32 %v4318, %v4446
      %v4448 = vpop.f32.mrf.mxu0
      %4449 = vmatprep.mubr.f32.mxu0 0.0
      %4450 = vmatmul.mubr.f32.gmra.mxu0 %v4338
      %v4451 = vpop.f32.mrf.mxu0
      %v4452 = vadd.f32 %v4318, %v4451
      %v4453 = vpop.f32.mrf.mxu0
      %4454 = vmatprep.mubr.f32.mxu0 0.0
      %4455 = vmatmul.mubr.f32.gmra.mxu0 %v4341
      %v4456 = vpop.f32.mrf.mxu0
      %v4457 = vadd.f32 %v4318, %v4456
      %v4458 = vpop.f32.mrf.mxu0
      %4459 = vmatprep.mubr.f32.mxu0 0.0
      %4460 = vmatmul.mubr.f32.gmra.mxu0 %v4344
      %v4461 = vpop.f32.mrf.mxu0
      %v4462 = vadd.f32 %v4318, %v4461
      %v4463 = vpop.f32.mrf.mxu0
      %4464 = vmatprep.mubr.f32.mxu0 0.0
      %4465 = vmatmul.mubr.f32.gmra.mxu0 %v4347
      %v4466 = vpop.f32.mrf.mxu0
      %v4467 = vadd.f32 %v4318, %v4466
      %v4468 = vpop.f32.mrf.mxu0
      %4469 = vmatprep.mubr.f32.mxu0 0.0
      %4470 = vmatmul.mubr.f32.gmra.mxu0 %v4350
      %v4471 = vpop.f32.mrf.mxu0
      %v4472 = vadd.f32 %v4318, %v4471
      %v4473 = vpop.f32.mrf.mxu0
      %4474 = vmatprep.mubr.f32.mxu0 0.0
      %4475 = vmatmul.mubr.f32.gmra.mxu0 %v4353
      %v4476 = vpop.f32.mrf.mxu0
      %v4477 = vadd.f32 %v4318, %v4476
      %v4478 = vpop.f32.mrf.mxu0
      %4479 = vdwg.mxu0
      %v4480 = vmul.f32 %v4422, 0.35355338
      %v4481 = vmul.f32 %v4427, 0.35355338
      %v4482 = vmul.f32 %v4432, 0.35355338
      %v4483 = vmul.f32 %v4437, 0.35355338
      %v4484 = vmul.f32 %v4442, 0.35355338
      %v4485 = vmul.f32 %v4447, 0.35355338
      %v4486 = vmul.f32 %v4452, 0.35355338
      %v4487 = vmul.f32 %v4457, 0.35355338
      %v4488 = vmul.f32 %v4462, 0.35355338
      %v4489 = vmul.f32 %v4467, 0.35355338
      %v4490 = vmul.f32 %v4472, 0.35355338
      %v4491 = vmul.f32 %v4477, 0.35355338
      %4504 = vrot.lane.b32.xlu0 %v4422, 96
      %v4505 = vpop.permute.xlu0 %4504
      %4506 = vrot.lane.b32.xlu0 %v4427, 96
      %v4507 = vpop.permute.xlu0 %4506
      %4508 = vrot.lane.b32.xlu0 %v4432, 96
      %v4509 = vpop.permute.xlu0 %4508
      %4510 = vrot.lane.b32.xlu0 %v4437, 96
      %v4511 = vpop.permute.xlu0 %4510
      %4512 = vrot.lane.b32.xlu0 %v4442, 96
      %v4513 = vpop.permute.xlu0 %4512
      %4514 = vrot.lane.b32.xlu0 %v4447, 96
      %v4515 = vpop.permute.xlu0 %4514
      %4516 = vrot.lane.b32.xlu0 %v4452, 96
      %v4517 = vpop.permute.xlu0 %4516
      %4518 = vrot.lane.b32.xlu0 %v4457, 96
      %v4519 = vpop.permute.xlu0 %4518
      %4520 = vrot.lane.b32.xlu0 %v4462, 96
      %v4521 = vpop.permute.xlu0 %4520
      %4522 = vrot.lane.b32.xlu0 %v4467, 96
      %v4523 = vpop.permute.xlu0 %4522
      %4524 = vrot.lane.b32.xlu0 %v4472, 96
      %v4525 = vpop.permute.xlu0 %4524
      %4526 = vrot.lane.b32.xlu0 %v4477, 96
      %v4527 = vpop.permute.xlu0 %4526
      %v4529 = vsel %vm993, %v4480, 0
      %v4532 = vsel %vm993, %v4481, 0
      %v4535 = vsel %vm993, %v4482, 0
      %v4538 = vsel %vm993, %v4483, 0
      %v4541 = vsel %vm993, %v4484, 0
      %v4544 = vsel %vm993, %v4485, 0
      %v4547 = vsel %vm993, %v4486, 0
      %v4550 = vsel %vm993, %v4487, 0
      %v4553 = vsel %vm993, %v4488, 0
      %v4556 = vsel %vm993, %v4489, 0
      %v4559 = vsel %vm993, %v4490, 0
      %v4562 = vsel %vm993, %v4491, 0
      %v4564 = vsel %vm993, %v4505, 0
      %v4566 = vsel %vm993, %v4507, 0
      %v4568 = vsel %vm993, %v4509, 0
      %v4570 = vsel %vm993, %v4511, 0
      %v4572 = vsel %vm993, %v4513, 0
      %v4574 = vsel %vm993, %v4515, 0
      %v4576 = vsel %vm993, %v4517, 0
      %v4578 = vsel %vm993, %v4519, 0
      %v4580 = vsel %vm993, %v4521, 0
      %v4582 = vsel %vm993, %v4523, 0
      %v4584 = vsel %vm993, %v4525, 0
      %v4586 = vsel %vm993, %v4527, 0
      %4588 = vmatprep.subr.mxu0 0.0
      %4589 = vmatpush1.xpose.msra.mxu0 0.0
      %4590 = vmatprep.subr.mxu0 0.0
      %4591 = vmatpush1.xpose.msra.mxu0 0.0
      %4592 = vmatprep.subr.mxu0 0.0
      %4593 = vmatpush1.xpose.msra.mxu0 0.0
      %4594 = vmatprep.subr.mxu0 0.0
      %4595 = vmatpush1.xpose.msra.mxu0 0.0
      %4596 = vmatprep.subr.mxu0 0.0
      %4597 = vmatpush1.xpose.msra.mxu0 %v4586
      %4598 = vmatprep.subr.mxu0 0.0
      %4599 = vmatpush1.xpose.msra.mxu0 %v4584
      %4600 = vmatprep.subr.mxu0 0.0
      %4601 = vmatpush1.xpose.msra.mxu0 %v4582
      %4602 = vmatprep.subr.mxu0 0.0
      %4603 = vmatpush1.xpose.msra.mxu0 %v4580
      %4604 = vmatprep.subr.mxu0 0.0
      %4605 = vmatpush1.xpose.msra.mxu0 %v4578
      %4606 = vmatprep.subr.mxu0 0.0
      %4607 = vmatpush1.xpose.msra.mxu0 %v4576
      %4608 = vmatprep.subr.mxu0 0.0
      %4609 = vmatpush1.xpose.msra.mxu0 %v4574
      %4610 = vmatprep.subr.mxu0 0.0
      %4611 = vmatpush1.xpose.msra.mxu0 %v4572
      %4612 = vmatprep.subr.mxu0 0.0
      %4613 = vmatpush1.xpose.msra.mxu0 %v4570
      %4614 = vmatprep.subr.mxu0 0.0
      %4615 = vmatpush1.xpose.msra.mxu0 %v4568
      %4616 = vmatprep.subr.mxu0 0.0
      %4617 = vmatpush1.xpose.msra.mxu0 %v4566
      %4618 = vmatprep.subr.mxu0 0.0
      %4619 = vmatpush1.xpose.msra.mxu0 %v4564
      %4620 = vmatprep.subr.mxu0 0.0
      %4621 = vmatpush2.xpose.msra.mxu0 0.0
      %4622 = vmatprep.subr.mxu0 0.0
      %4623 = vmatpush2.xpose.msra.mxu0 0.0
      %4624 = vmatprep.subr.mxu0 0.0
      %4625 = vmatpush2.xpose.msra.mxu0 0.0
      %4626 = vmatprep.subr.mxu0 0.0
      %4627 = vmatpush2.xpose.msra.mxu0 0.0
      %4628 = vmatprep.subr.mxu0 0.0
      %4629 = vmatpush2.xpose.msra.mxu0 0.0
      %4630 = vmatprep.subr.mxu0 0.0
      %4631 = vmatpush2.xpose.msra.mxu0 0.0
      %4632 = vmatprep.subr.mxu0 0.0
      %4633 = vmatpush2.xpose.msra.mxu0 0.0
      %4634 = vmatprep.subr.mxu0 0.0
      %4635 = vmatpush2.xpose.msra.mxu0 0.0
      %4636 = vmatprep.subr.mxu0 0.0
      %4637 = vmatpush2.xpose.msra.mxu0 0.0
      %4638 = vmatprep.subr.mxu0 0.0
      %4639 = vmatpush2.xpose.msra.mxu0 0.0
      %4640 = vmatprep.subr.mxu0 0.0
      %4641 = vmatpush2.xpose.msra.mxu0 0.0
      %4642 = vmatprep.subr.mxu0 0.0
      %4643 = vmatpush2.xpose.msra.mxu0 0.0
      %4644 = vmatprep.subr.mxu0 0.0
      %4645 = vmatpush2.xpose.msra.mxu0 0.0
      %4646 = vmatprep.subr.mxu0 0.0
      %4647 = vmatpush2.xpose.msra.mxu0 0.0
      %4648 = vmatprep.subr.mxu0 0.0
      %4649 = vmatpush2.xpose.msra.mxu0 0.0
      %4650 = vmatprep.subr.mxu0 0.0
      %4651 = vmatpush2.xpose.msra.mxu0 0.0
      %4652 = vmatprep.mubr.f32.mxu0 0.0
      %4653 = vmatmul.mubr.f32.gmra.mxu0 %v4529
      %v4654 = vpop.f32.mrf.mxu0
      %v4655 = vadd.f32 %v571, %v4654
      %v4656 = vpop.f32.mrf.mxu0
      %4657 = vmatprep.mubr.f32.mxu0 0.0
      %4658 = vmatmul.mubr.f32.gmra.mxu0 %v4532
      %v4659 = vpop.f32.mrf.mxu0
      %v4660 = vadd.f32 %v572, %v4659
      %v4661 = vpop.f32.mrf.mxu0
      %4662 = vmatprep.mubr.f32.mxu0 0.0
      %4663 = vmatmul.mubr.f32.gmra.mxu0 %v4535
      %v4664 = vpop.f32.mrf.mxu0
      %v4665 = vadd.f32 %v573, %v4664
      %v4666 = vpop.f32.mrf.mxu0
      %4667 = vmatprep.mubr.f32.mxu0 0.0
      %4668 = vmatmul.mubr.f32.gmra.mxu0 %v4538
      %v4669 = vpop.f32.mrf.mxu0
      %v4670 = vadd.f32 %v574, %v4669
      %v4671 = vpop.f32.mrf.mxu0
      %4672 = vmatprep.mubr.f32.mxu0 0.0
      %4673 = vmatmul.mubr.f32.gmra.mxu0 %v4541
      %v4674 = vpop.f32.mrf.mxu0
      %v4675 = vadd.f32 %v575, %v4674
      %v4676 = vpop.f32.mrf.mxu0
      %4677 = vmatprep.mubr.f32.mxu0 0.0
      %4678 = vmatmul.mubr.f32.gmra.mxu0 %v4544
      %v4679 = vpop.f32.mrf.mxu0
      %v4680 = vadd.f32 %v576, %v4679
      %v4681 = vpop.f32.mrf.mxu0
      %4682 = vmatprep.mubr.f32.mxu0 0.0
      %4683 = vmatmul.mubr.f32.gmra.mxu0 %v4547
      %v4684 = vpop.f32.mrf.mxu0
      %v4685 = vadd.f32 %v577, %v4684
      %v4686 = vpop.f32.mrf.mxu0
      %4687 = vmatprep.mubr.f32.mxu0 0.0
      %4688 = vmatmul.mubr.f32.gmra.mxu0 %v4550
      %v4689 = vpop.f32.mrf.mxu0
      %v4690 = vadd.f32 %v578, %v4689
      %v4691 = vpop.f32.mrf.mxu0
      %4692 = vmatprep.mubr.f32.mxu0 0.0
      %4693 = vmatmul.mubr.f32.gmra.mxu0 %v4553
      %v4694 = vpop.f32.mrf.mxu0
      %v4695 = vadd.f32 %v579, %v4694
      %v4696 = vpop.f32.mrf.mxu0
      %4697 = vmatprep.mubr.f32.mxu0 0.0
      %4698 = vmatmul.mubr.f32.gmra.mxu0 %v4556
      %v4699 = vpop.f32.mrf.mxu0
      %v4700 = vadd.f32 %v580, %v4699
      %v4701 = vpop.f32.mrf.mxu0
      %4702 = vmatprep.mubr.f32.mxu0 0.0
      %4703 = vmatmul.mubr.f32.gmra.mxu0 %v4559
      %v4704 = vpop.f32.mrf.mxu0
      %v4705 = vadd.f32 %v581, %v4704
      %v4706 = vpop.f32.mrf.mxu0
      %4707 = vmatprep.mubr.f32.mxu0 0.0
      %4708 = vmatmul.mubr.f32.gmra.mxu0 %v4562
      %v4709 = vpop.f32.mrf.mxu0
      %v4710 = vadd.f32 %v582, %v4709
      %v4711 = vpop.f32.mrf.mxu0
      %4712 = vdwg.mxu0
      %v4713 = vsel %vm1179, %v4655, -inf
      %4714 = vmax.xlane.f32.xlu0 %v4713
      %v4715 = vpop.xlane.xlu0 %4714
      %v4716 = vsel %vm1179, %v4660, -inf
      %4717 = vmax.xlane.f32.xlu0 %v4716
      %v4718 = vpop.xlane.xlu0 %4717
      %v4719 = vsel %vm1179, %v4665, -inf
      %4720 = vmax.xlane.f32.xlu0 %v4719
      %v4721 = vpop.xlane.xlu0 %4720
      %v4722 = vsel %vm1179, %v4670, -inf
      %4723 = vmax.xlane.f32.xlu0 %v4722
      %v4724 = vpop.xlane.xlu0 %4723
      %v4725 = vsel %vm1179, %v4675, -inf
      %4726 = vmax.xlane.f32.xlu0 %v4725
      %v4727 = vpop.xlane.xlu0 %4726
      %v4728 = vsel %vm1179, %v4680, -inf
      %4729 = vmax.xlane.f32.xlu0 %v4728
      %v4730 = vpop.xlane.xlu0 %4729
      %v4731 = vsel %vm1179, %v4685, -inf
      %4732 = vmax.xlane.f32.xlu0 %v4731
      %v4733 = vpop.xlane.xlu0 %4732
      %v4734 = vsel %vm1179, %v4690, -inf
      %4735 = vmax.xlane.f32.xlu0 %v4734
      %v4736 = vpop.xlane.xlu0 %4735
      %v4737 = vsel %vm1179, %v4695, -inf
      %4738 = vmax.xlane.f32.xlu0 %v4737
      %v4739 = vpop.xlane.xlu0 %4738
      %v4740 = vsel %vm1179, %v4700, -inf
      %4741 = vmax.xlane.f32.xlu0 %v4740
      %v4742 = vpop.xlane.xlu0 %4741
      %v4743 = vsel %vm1179, %v4705, -inf
      %4744 = vmax.xlane.f32.xlu0 %v4743
      %v4745 = vpop.xlane.xlu0 %4744
      %v4746 = vsel %vm1179, %v4710, -inf
      %4747 = vmax.xlane.f32.xlu0 %v4746
      %v4748 = vpop.xlane.xlu0 %4747
      %v4749 = vsub.f32 %v4655, %v4715
      %v4750 = vsub.f32 %v4660, %v4718
      %v4751 = vsub.f32 %v4665, %v4721
      %v4752 = vsub.f32 %v4670, %v4724
      %v4753 = vsub.f32 %v4675, %v4727
      %v4754 = vsub.f32 %v4680, %v4730
      %v4755 = vsub.f32 %v4685, %v4733
      %v4756 = vsub.f32 %v4690, %v4736
      %v4757 = vsub.f32 %v4695, %v4739
      %v4758 = vsub.f32 %v4700, %v4742
      %v4759 = vsub.f32 %v4705, %v4745
      %v4760 = vsub.f32 %v4710, %v4748
      %v4761 = vmul.f32 %v4749, 1.442695
      %v4762 = vpow.pop %v4761
      %v4763 = vmul.f32 %v4750, 1.442695
      %v4764 = vpow.pop %v4763
      %v4765 = vmul.f32 %v4751, 1.442695
      %v4766 = vpow.pop %v4765
      %v4767 = vmul.f32 %v4752, 1.442695
      %v4768 = vpow.pop %v4767
      %v4769 = vmul.f32 %v4753, 1.442695
      %v4770 = vpow.pop %v4769
      %v4771 = vmul.f32 %v4754, 1.442695
      %v4772 = vpow.pop %v4771
      %v4773 = vmul.f32 %v4755, 1.442695
      %v4774 = vpow.pop %v4773
      %v4775 = vmul.f32 %v4756, 1.442695
      %v4776 = vpow.pop %v4775
      %v4777 = vmul.f32 %v4757, 1.442695
      %v4778 = vpow.pop %v4777
      %v4779 = vmul.f32 %v4758, 1.442695
      %v4780 = vpow.pop %v4779
      %v4781 = vmul.f32 %v4759, 1.442695
      %v4782 = vpow.pop %v4781
      %v4783 = vmul.f32 %v4760, 1.442695
      %v4784 = vpow.pop %v4783
      %v4785 = vsel %vm1179, %v4762, 0.0
      %4786 = vadd.xlane.f32.xlu0 %v4785
      %v4787 = vpop.xlane.xlu0 %4786
      %v4788 = vsel %vm1179, %v4764, 0.0
      %4789 = vadd.xlane.f32.xlu0 %v4788
      %v4790 = vpop.xlane.xlu0 %4789
      %v4791 = vsel %vm1179, %v4766, 0.0
      %4792 = vadd.xlane.f32.xlu0 %v4791
      %v4793 = vpop.xlane.xlu0 %4792
      %v4794 = vsel %vm1179, %v4768, 0.0
      %4795 = vadd.xlane.f32.xlu0 %v4794
      %v4796 = vpop.xlane.xlu0 %4795
      %v4797 = vsel %vm1179, %v4770, 0.0
      %4798 = vadd.xlane.f32.xlu0 %v4797
      %v4799 = vpop.xlane.xlu0 %4798
      %v4800 = vsel %vm1179, %v4772, 0.0
      %4801 = vadd.xlane.f32.xlu0 %v4800
      %v4802 = vpop.xlane.xlu0 %4801
      %v4803 = vsel %vm1179, %v4774, 0.0
      %4804 = vadd.xlane.f32.xlu0 %v4803
      %v4805 = vpop.xlane.xlu0 %4804
      %v4806 = vsel %vm1179, %v4776, 0.0
      %4807 = vadd.xlane.f32.xlu0 %v4806
      %v4808 = vpop.xlane.xlu0 %4807
      %v4809 = vsel %vm1179, %v4778, 0.0
      %4810 = vadd.xlane.f32.xlu0 %v4809
      %v4811 = vpop.xlane.xlu0 %4810
      %v4812 = vsel %vm1179, %v4780, 0.0
      %4813 = vadd.xlane.f32.xlu0 %v4812
      %v4814 = vpop.xlane.xlu0 %4813
      %v4815 = vsel %vm1179, %v4782, 0.0
      %4816 = vadd.xlane.f32.xlu0 %v4815
      %v4817 = vpop.xlane.xlu0 %4816
      %v4818 = vsel %vm1179, %v4784, 0.0
      %4819 = vadd.xlane.f32.xlu0 %v4818
      %v4820 = vpop.xlane.xlu0 %4819
      %v4821 = vrcp.pop %v4787
      %v4822 = vmul.f32 %v4762, %v4821
      %v4823 = vrcp.pop %v4790
      %v4824 = vmul.f32 %v4764, %v4823
      %v4825 = vrcp.pop %v4793
      %v4826 = vmul.f32 %v4766, %v4825
      %v4827 = vrcp.pop %v4796
      %v4828 = vmul.f32 %v4768, %v4827
      %v4829 = vrcp.pop %v4799
      %v4830 = vmul.f32 %v4770, %v4829
      %v4831 = vrcp.pop %v4802
      %v4832 = vmul.f32 %v4772, %v4831
      %v4833 = vrcp.pop %v4805
      %v4834 = vmul.f32 %v4774, %v4833
      %v4835 = vrcp.pop %v4808
      %v4836 = vmul.f32 %v4776, %v4835
      %v4837 = vrcp.pop %v4811
      %v4838 = vmul.f32 %v4778, %v4837
      %v4839 = vrcp.pop %v4814
      %v4840 = vmul.f32 %v4780, %v4839
      %v4841 = vrcp.pop %v4817
      %v4842 = vmul.f32 %v4782, %v4841
      %v4843 = vrcp.pop %v4820
      %v4844 = vmul.f32 %v4784, %v4843
      %4845 = vrot.lane.b32.xlu0 %v4422, 64
      %v4846 = vpop.permute.xlu0 %4845
      %4847 = vrot.lane.b32.xlu0 %v4427, 64
      %v4848 = vpop.permute.xlu0 %4847
      %4849 = vrot.lane.b32.xlu0 %v4432, 64
      %v4850 = vpop.permute.xlu0 %4849
      %4851 = vrot.lane.b32.xlu0 %v4437, 64
      %v4852 = vpop.permute.xlu0 %4851
      %4853 = vrot.lane.b32.xlu0 %v4442, 64
      %v4854 = vpop.permute.xlu0 %4853
      %4855 = vrot.lane.b32.xlu0 %v4447, 64
      %v4856 = vpop.permute.xlu0 %4855
      %4857 = vrot.lane.b32.xlu0 %v4452, 64
      %v4858 = vpop.permute.xlu0 %4857
      %4859 = vrot.lane.b32.xlu0 %v4457, 64
      %v4860 = vpop.permute.xlu0 %4859
      %4861 = vrot.lane.b32.xlu0 %v4462, 64
      %v4862 = vpop.permute.xlu0 %4861
      %4863 = vrot.lane.b32.xlu0 %v4467, 64
      %v4864 = vpop.permute.xlu0 %4863
      %4865 = vrot.lane.b32.xlu0 %v4472, 64
      %v4866 = vpop.permute.xlu0 %4865
      %4867 = vrot.lane.b32.xlu0 %v4477, 64
      %v4868 = vpop.permute.xlu0 %4867
      %v4882 = vsel %vm1179, %v4822, 0
      %v4885 = vsel %vm1179, %v4824, 0
      %v4888 = vsel %vm1179, %v4826, 0
      %v4891 = vsel %vm1179, %v4828, 0
      %v4894 = vsel %vm1179, %v4830, 0
      %v4897 = vsel %vm1179, %v4832, 0
      %v4900 = vsel %vm1179, %v4834, 0
      %v4903 = vsel %vm1179, %v4836, 0
      %v4906 = vsel %vm1179, %v4838, 0
      %v4909 = vsel %vm1179, %v4840, 0
      %v4912 = vsel %vm1179, %v4842, 0
      %v4915 = vsel %vm1179, %v4844, 0
      %4917 = vmatprep.subr.mxu0 0.0
      %4918 = vmatpush1.msra.mxu0 0.0
      %4919 = vmatprep.subr.mxu0 0.0
      %4920 = vmatpush1.msra.mxu0 0.0
      %4921 = vmatprep.subr.mxu0 0.0
      %4922 = vmatpush1.msra.mxu0 0.0
      %4923 = vmatprep.subr.mxu0 0.0
      %4924 = vmatpush1.msra.mxu0 0.0
      %4925 = vmatprep.subr.mxu0 0.0
      %4926 = vmatpush1.msra.mxu0 %v4868
      %4927 = vmatprep.subr.mxu0 0.0
      %4928 = vmatpush1.msra.mxu0 %v4866
      %4929 = vmatprep.subr.mxu0 0.0
      %4930 = vmatpush1.msra.mxu0 %v4864
      %4931 = vmatprep.subr.mxu0 0.0
      %4932 = vmatpush1.msra.mxu0 %v4862
      %4933 = vmatprep.subr.mxu0 0.0
      %4934 = vmatpush1.msra.mxu0 %v4860
      %4935 = vmatprep.subr.mxu0 0.0
      %4936 = vmatpush1.msra.mxu0 %v4858
      %4937 = vmatprep.subr.mxu0 0.0
      %4938 = vmatpush1.msra.mxu0 %v4856
      %4939 = vmatprep.subr.mxu0 0.0
      %4940 = vmatpush1.msra.mxu0 %v4854
      %4941 = vmatprep.subr.mxu0 0.0
      %4942 = vmatpush1.msra.mxu0 %v4852
      %4943 = vmatprep.subr.mxu0 0.0
      %4944 = vmatpush1.msra.mxu0 %v4850
      %4945 = vmatprep.subr.mxu0 0.0
      %4946 = vmatpush1.msra.mxu0 %v4848
      %4947 = vmatprep.subr.mxu0 0.0
      %4948 = vmatpush1.msra.mxu0 %v4846
      %4949 = vmatprep.subr.mxu0 0.0
      %4950 = vmatpush2.msra.mxu0 0.0
      %4951 = vmatprep.subr.mxu0 0.0
      %4952 = vmatpush2.msra.mxu0 0.0
      %4953 = vmatprep.subr.mxu0 0.0
      %4954 = vmatpush2.msra.mxu0 0.0
      %4955 = vmatprep.subr.mxu0 0.0
      %4956 = vmatpush2.msra.mxu0 0.0
      %4957 = vmatprep.subr.mxu0 0.0
      %4958 = vmatpush2.msra.mxu0 0.0
      %4959 = vmatprep.subr.mxu0 0.0
      %4960 = vmatpush2.msra.mxu0 0.0
      %4961 = vmatprep.subr.mxu0 0.0
      %4962 = vmatpush2.msra.mxu0 0.0
      %4963 = vmatprep.subr.mxu0 0.0
      %4964 = vmatpush2.msra.mxu0 0.0
      %4965 = vmatprep.subr.mxu0 0.0
      %4966 = vmatpush2.msra.mxu0 0.0
      %4967 = vmatprep.subr.mxu0 0.0
      %4968 = vmatpush2.msra.mxu0 0.0
      %4969 = vmatprep.subr.mxu0 0.0
      %4970 = vmatpush2.msra.mxu0 0.0
      %4971 = vmatprep.subr.mxu0 0.0
      %4972 = vmatpush2.msra.mxu0 0.0
      %4973 = vmatprep.subr.mxu0 0.0
      %4974 = vmatpush2.msra.mxu0 0.0
      %4975 = vmatprep.subr.mxu0 0.0
      %4976 = vmatpush2.msra.mxu0 0.0
      %4977 = vmatprep.subr.mxu0 0.0
      %4978 = vmatpush2.msra.mxu0 0.0
      %4979 = vmatprep.subr.mxu0 0.0
      %4980 = vmatpush2.msra.mxu0 0.0
      %4981 = vmatprep.mubr.f32.mxu0 0.0
      %4982 = vmatmul.mubr.f32.gmra.mxu0 %v4882
      %v4983 = vpop.f32.mrf.mxu0
      %v4984 = vadd.f32 0.0, %v4983
      %v4985 = vpop.f32.mrf.mxu0
      %4986 = vmatprep.mubr.f32.mxu0 0.0
      %4987 = vmatmul.mubr.f32.gmra.mxu0 %v4885
      %v4988 = vpop.f32.mrf.mxu0
      %v4989 = vadd.f32 0.0, %v4988
      %v4990 = vpop.f32.mrf.mxu0
      %4991 = vmatprep.mubr.f32.mxu0 0.0
      %4992 = vmatmul.mubr.f32.gmra.mxu0 %v4888
      %v4993 = vpop.f32.mrf.mxu0
      %v4994 = vadd.f32 0.0, %v4993
      %v4995 = vpop.f32.mrf.mxu0
      %4996 = vmatprep.mubr.f32.mxu0 0.0
      %4997 = vmatmul.mubr.f32.gmra.mxu0 %v4891
      %v4998 = vpop.f32.mrf.mxu0
      %v4999 = vadd.f32 0.0, %v4998
      %v5000 = vpop.f32.mrf.mxu0
      %5001 = vmatprep.mubr.f32.mxu0 0.0
      %5002 = vmatmul.mubr.f32.gmra.mxu0 %v4894
      %v5003 = vpop.f32.mrf.mxu0
      %v5004 = vadd.f32 0.0, %v5003
      %v5005 = vpop.f32.mrf.mxu0
      %5006 = vmatprep.mubr.f32.mxu0 0.0
      %5007 = vmatmul.mubr.f32.gmra.mxu0 %v4897
      %v5008 = vpop.f32.mrf.mxu0
      %v5009 = vadd.f32 0.0, %v5008
      %v5010 = vpop.f32.mrf.mxu0
      %5011 = vmatprep.mubr.f32.mxu0 0.0
      %5012 = vmatmul.mubr.f32.gmra.mxu0 %v4900
      %v5013 = vpop.f32.mrf.mxu0
      %v5014 = vadd.f32 0.0, %v5013
      %v5015 = vpop.f32.mrf.mxu0
      %5016 = vmatprep.mubr.f32.mxu0 0.0
      %5017 = vmatmul.mubr.f32.gmra.mxu0 %v4903
      %v5018 = vpop.f32.mrf.mxu0
      %v5019 = vadd.f32 0.0, %v5018
      %v5020 = vpop.f32.mrf.mxu0
      %5021 = vmatprep.mubr.f32.mxu0 0.0
      %5022 = vmatmul.mubr.f32.gmra.mxu0 %v4906
      %v5023 = vpop.f32.mrf.mxu0
      %v5024 = vadd.f32 0.0, %v5023
      %v5025 = vpop.f32.mrf.mxu0
      %5026 = vmatprep.mubr.f32.mxu0 0.0
      %5027 = vmatmul.mubr.f32.gmra.mxu0 %v4909
      %v5028 = vpop.f32.mrf.mxu0
      %v5029 = vadd.f32 0.0, %v5028
      %v5030 = vpop.f32.mrf.mxu0
      %5031 = vmatprep.mubr.f32.mxu0 0.0
      %5032 = vmatmul.mubr.f32.gmra.mxu0 %v4912
      %v5033 = vpop.f32.mrf.mxu0
      %v5034 = vadd.f32 0.0, %v5033
      %v5035 = vpop.f32.mrf.mxu0
      %5036 = vmatprep.mubr.f32.mxu0 0.0
      %5037 = vmatmul.mubr.f32.gmra.mxu0 %v4915
      %v5038 = vpop.f32.mrf.mxu0
      %v5039 = vadd.f32 0.0, %v5038
      %v5040 = vpop.f32.mrf.mxu0
      %5041 = vdwg.mxu0
      %5042 = vrot.lane.b32.xlu0 %v4480, 120
      %v5043 = vpop.permute.xlu0 %5042
      %5044 = vrot.lane.b32.xlu0 %v4481, 120
      %v5045 = vpop.permute.xlu0 %5044
      %5046 = vrot.lane.b32.xlu0 %v4482, 120
      %v5047 = vpop.permute.xlu0 %5046
      %5048 = vrot.lane.b32.xlu0 %v4483, 120
      %v5049 = vpop.permute.xlu0 %5048
      %5050 = vrot.lane.b32.xlu0 %v4484, 120
      %v5051 = vpop.permute.xlu0 %5050
      %5052 = vrot.lane.b32.xlu0 %v4485, 120
      %v5053 = vpop.permute.xlu0 %5052
      %5054 = vrot.lane.b32.xlu0 %v4486, 120
      %v5055 = vpop.permute.xlu0 %5054
      %5056 = vrot.lane.b32.xlu0 %v4487, 120
      %v5057 = vpop.permute.xlu0 %5056
      %5058 = vrot.lane.b32.xlu0 %v4488, 120
      %v5059 = vpop.permute.xlu0 %5058
      %5060 = vrot.lane.b32.xlu0 %v4489, 120
      %v5061 = vpop.permute.xlu0 %5060
      %5062 = vrot.lane.b32.xlu0 %v4490, 120
      %v5063 = vpop.permute.xlu0 %5062
      %5064 = vrot.lane.b32.xlu0 %v4491, 120
      %v5065 = vpop.permute.xlu0 %5064
      %5066 = vrot.lane.b32.xlu0 %v4422, 88
      %v5067 = vpop.permute.xlu0 %5066
      %5068 = vrot.lane.b32.xlu0 %v4427, 88
      %v5069 = vpop.permute.xlu0 %5068
      %5070 = vrot.lane.b32.xlu0 %v4432, 88
      %v5071 = vpop.permute.xlu0 %5070
      %5072 = vrot.lane.b32.xlu0 %v4437, 88
      %v5073 = vpop.permute.xlu0 %5072
      %5074 = vrot.lane.b32.xlu0 %v4442, 88
      %v5075 = vpop.permute.xlu0 %5074
      %5076 = vrot.lane.b32.xlu0 %v4447, 88
      %v5077 = vpop.permute.xlu0 %5076
      %5078 = vrot.lane.b32.xlu0 %v4452, 88
      %v5079 = vpop.permute.xlu0 %5078
      %5080 = vrot.lane.b32.xlu0 %v4457, 88
      %v5081 = vpop.permute.xlu0 %5080
      %5082 = vrot.lane.b32.xlu0 %v4462, 88
      %v5083 = vpop.permute.xlu0 %5082
      %5084 = vrot.lane.b32.xlu0 %v4467, 88
      %v5085 = vpop.permute.xlu0 %5084
      %5086 = vrot.lane.b32.xlu0 %v4472, 88
      %v5087 = vpop.permute.xlu0 %5086
      %5088 = vrot.lane.b32.xlu0 %v4477, 88
      %v5089 = vpop.permute.xlu0 %5088
      %v5090 = vsel %vm993, %v5043, 0
      %v5092 = vsel %vm993, %v5045, 0
      %v5094 = vsel %vm993, %v5047, 0
      %v5096 = vsel %vm993, %v5049, 0
      %v5098 = vsel %vm993, %v5051, 0
      %v5100 = vsel %vm993, %v5053, 0
      %v5102 = vsel %vm993, %v5055, 0
      %v5104 = vsel %vm993, %v5057, 0
      %v5106 = vsel %vm993, %v5059, 0
      %v5108 = vsel %vm993, %v5061, 0
      %v5110 = vsel %vm993, %v5063, 0
      %v5112 = vsel %vm993, %v5065, 0
      %v5114 = vsel %vm993, %v5067, 0
      %v5116 = vsel %vm993, %v5069, 0
      %v5118 = vsel %vm993, %v5071, 0
      %v5120 = vsel %vm993, %v5073, 0
      %v5122 = vsel %vm993, %v5075, 0
      %v5124 = vsel %vm993, %v5077, 0
      %v5126 = vsel %vm993, %v5079, 0
      %v5128 = vsel %vm993, %v5081, 0
      %v5130 = vsel %vm993, %v5083, 0
      %v5132 = vsel %vm993, %v5085, 0
      %v5134 = vsel %vm993, %v5087, 0
      %v5136 = vsel %vm993, %v5089, 0
      %5138 = vmatprep.subr.mxu0 0.0
      %5139 = vmatpush1.xpose.msra.mxu0 0.0
      %5140 = vmatprep.subr.mxu0 0.0
      %5141 = vmatpush1.xpose.msra.mxu0 0.0
      %5142 = vmatprep.subr.mxu0 0.0
      %5143 = vmatpush1.xpose.msra.mxu0 0.0
      %5144 = vmatprep.subr.mxu0 0.0
      %5145 = vmatpush1.xpose.msra.mxu0 0.0
      %5146 = vmatprep.subr.mxu0 0.0
      %5147 = vmatpush1.xpose.msra.mxu0 %v5136
      %5148 = vmatprep.subr.mxu0 0.0
      %5149 = vmatpush1.xpose.msra.mxu0 %v5134
      %5150 = vmatprep.subr.mxu0 0.0
      %5151 = vmatpush1.xpose.msra.mxu0 %v5132
      %5152 = vmatprep.subr.mxu0 0.0
      %5153 = vmatpush1.xpose.msra.mxu0 %v5130
      %5154 = vmatprep.subr.mxu0 0.0
      %5155 = vmatpush1.xpose.msra.mxu0 %v5128
      %5156 = vmatprep.subr.mxu0 0.0
      %5157 = vmatpush1.xpose.msra.mxu0 %v5126
      %5158 = vmatprep.subr.mxu0 0.0
      %5159 = vmatpush1.xpose.msra.mxu0 %v5124
      %5160 = vmatprep.subr.mxu0 0.0
      %5161 = vmatpush1.xpose.msra.mxu0 %v5122
      %5162 = vmatprep.subr.mxu0 0.0
      %5163 = vmatpush1.xpose.msra.mxu0 %v5120
      %5164 = vmatprep.subr.mxu0 0.0
      %5165 = vmatpush1.xpose.msra.mxu0 %v5118
      %5166 = vmatprep.subr.mxu0 0.0
      %5167 = vmatpush1.xpose.msra.mxu0 %v5116
      %5168 = vmatprep.subr.mxu0 0.0
      %5169 = vmatpush1.xpose.msra.mxu0 %v5114
      %5170 = vmatprep.subr.mxu0 0.0
      %5171 = vmatpush2.xpose.msra.mxu0 0.0
      %5172 = vmatprep.subr.mxu0 0.0
      %5173 = vmatpush2.xpose.msra.mxu0 0.0
      %5174 = vmatprep.subr.mxu0 0.0
      %5175 = vmatpush2.xpose.msra.mxu0 0.0
      %5176 = vmatprep.subr.mxu0 0.0
      %5177 = vmatpush2.xpose.msra.mxu0 0.0
      %5178 = vmatprep.subr.mxu0 0.0
      %5179 = vmatpush2.xpose.msra.mxu0 0.0
      %5180 = vmatprep.subr.mxu0 0.0
      %5181 = vmatpush2.xpose.msra.mxu0 0.0
      %5182 = vmatprep.subr.mxu0 0.0
      %5183 = vmatpush2.xpose.msra.mxu0 0.0
      %5184 = vmatprep.subr.mxu0 0.0
      %5185 = vmatpush2.xpose.msra.mxu0 0.0
      %5186 = vmatprep.subr.mxu0 0.0
      %5187 = vmatpush2.xpose.msra.mxu0 0.0
      %5188 = vmatprep.subr.mxu0 0.0
      %5189 = vmatpush2.xpose.msra.mxu0 0.0
      %5190 = vmatprep.subr.mxu0 0.0
      %5191 = vmatpush2.xpose.msra.mxu0 0.0
      %5192 = vmatprep.subr.mxu0 0.0
      %5193 = vmatpush2.xpose.msra.mxu0 0.0
      %5194 = vmatprep.subr.mxu0 0.0
      %5195 = vmatpush2.xpose.msra.mxu0 0.0
      %5196 = vmatprep.subr.mxu0 0.0
      %5197 = vmatpush2.xpose.msra.mxu0 0.0
      %5198 = vmatprep.subr.mxu0 0.0
      %5199 = vmatpush2.xpose.msra.mxu0 0.0
      %5200 = vmatprep.subr.mxu0 0.0
      %5201 = vmatpush2.xpose.msra.mxu0 0.0
      %5202 = vmatprep.mubr.f32.mxu0 0.0
      %5203 = vmatmul.mubr.f32.gmra.mxu0 %v5090
      %v5204 = vpop.f32.mrf.mxu0
      %v5205 = vadd.f32 %v571, %v5204
      %v5206 = vpop.f32.mrf.mxu0
      %5207 = vmatprep.mubr.f32.mxu0 0.0
      %5208 = vmatmul.mubr.f32.gmra.mxu0 %v5092
      %v5209 = vpop.f32.mrf.mxu0
      %v5210 = vadd.f32 %v572, %v5209
      %v5211 = vpop.f32.mrf.mxu0
      %5212 = vmatprep.mubr.f32.mxu0 0.0
      %5213 = vmatmul.mubr.f32.gmra.mxu0 %v5094
      %v5214 = vpop.f32.mrf.mxu0
      %v5215 = vadd.f32 %v573, %v5214
      %v5216 = vpop.f32.mrf.mxu0
      %5217 = vmatprep.mubr.f32.mxu0 0.0
      %5218 = vmatmul.mubr.f32.gmra.mxu0 %v5096
      %v5219 = vpop.f32.mrf.mxu0
      %v5220 = vadd.f32 %v574, %v5219
      %v5221 = vpop.f32.mrf.mxu0
      %5222 = vmatprep.mubr.f32.mxu0 0.0
      %5223 = vmatmul.mubr.f32.gmra.mxu0 %v5098
      %v5224 = vpop.f32.mrf.mxu0
      %v5225 = vadd.f32 %v575, %v5224
      %v5226 = vpop.f32.mrf.mxu0
      %5227 = vmatprep.mubr.f32.mxu0 0.0
      %5228 = vmatmul.mubr.f32.gmra.mxu0 %v5100
      %v5229 = vpop.f32.mrf.mxu0
      %v5230 = vadd.f32 %v576, %v5229
      %v5231 = vpop.f32.mrf.mxu0
      %5232 = vmatprep.mubr.f32.mxu0 0.0
      %5233 = vmatmul.mubr.f32.gmra.mxu0 %v5102
      %v5234 = vpop.f32.mrf.mxu0
      %v5235 = vadd.f32 %v577, %v5234
      %v5236 = vpop.f32.mrf.mxu0
      %5237 = vmatprep.mubr.f32.mxu0 0.0
      %5238 = vmatmul.mubr.f32.gmra.mxu0 %v5104
      %v5239 = vpop.f32.mrf.mxu0
      %v5240 = vadd.f32 %v578, %v5239
      %v5241 = vpop.f32.mrf.mxu0
      %5242 = vmatprep.mubr.f32.mxu0 0.0
      %5243 = vmatmul.mubr.f32.gmra.mxu0 %v5106
      %v5244 = vpop.f32.mrf.mxu0
      %v5245 = vadd.f32 %v579, %v5244
      %v5246 = vpop.f32.mrf.mxu0
      %5247 = vmatprep.mubr.f32.mxu0 0.0
      %5248 = vmatmul.mubr.f32.gmra.mxu0 %v5108
      %v5249 = vpop.f32.mrf.mxu0
      %v5250 = vadd.f32 %v580, %v5249
      %v5251 = vpop.f32.mrf.mxu0
      %5252 = vmatprep.mubr.f32.mxu0 0.0
      %5253 = vmatmul.mubr.f32.gmra.mxu0 %v5110
      %v5254 = vpop.f32.mrf.mxu0
      %v5255 = vadd.f32 %v581, %v5254
      %v5256 = vpop.f32.mrf.mxu0
      %5257 = vmatprep.mubr.f32.mxu0 0.0
      %5258 = vmatmul.mubr.f32.gmra.mxu0 %v5112
      %v5259 = vpop.f32.mrf.mxu0
      %v5260 = vadd.f32 %v582, %v5259
      %v5261 = vpop.f32.mrf.mxu0
      %5262 = vdwg.mxu0
      %v5263 = vsel %vm1179, %v5205, -inf
      %5264 = vmax.xlane.f32.xlu0 %v5263
      %v5265 = vpop.xlane.xlu0 %5264
      %v5266 = vsel %vm1179, %v5210, -inf
      %5267 = vmax.xlane.f32.xlu0 %v5266
      %v5268 = vpop.xlane.xlu0 %5267
      %v5269 = vsel %vm1179, %v5215, -inf
      %5270 = vmax.xlane.f32.xlu0 %v5269
      %v5271 = vpop.xlane.xlu0 %5270
      %v5272 = vsel %vm1179, %v5220, -inf
      %5273 = vmax.xlane.f32.xlu0 %v5272
      %v5274 = vpop.xlane.xlu0 %5273
      %v5275 = vsel %vm1179, %v5225, -inf
      %5276 = vmax.xlane.f32.xlu0 %v5275
      %v5277 = vpop.xlane.xlu0 %5276
      %v5278 = vsel %vm1179, %v5230, -inf
      %5279 = vmax.xlane.f32.xlu0 %v5278
      %v5280 = vpop.xlane.xlu0 %5279
      %v5281 = vsel %vm1179, %v5235, -inf
      %5282 = vmax.xlane.f32.xlu0 %v5281
      %v5283 = vpop.xlane.xlu0 %5282
      %v5284 = vsel %vm1179, %v5240, -inf
      %5285 = vmax.xlane.f32.xlu0 %v5284
      %v5286 = vpop.xlane.xlu0 %5285
      %v5287 = vsel %vm1179, %v5245, -inf
      %5288 = vmax.xlane.f32.xlu0 %v5287
      %v5289 = vpop.xlane.xlu0 %5288
      %v5290 = vsel %vm1179, %v5250, -inf
      %5291 = vmax.xlane.f32.xlu0 %v5290
      %v5292 = vpop.xlane.xlu0 %5291
      %v5293 = vsel %vm1179, %v5255, -inf
      %5294 = vmax.xlane.f32.xlu0 %v5293
      %v5295 = vpop.xlane.xlu0 %5294
      %v5296 = vsel %vm1179, %v5260, -inf
      %5297 = vmax.xlane.f32.xlu0 %v5296
      %v5298 = vpop.xlane.xlu0 %5297
      %v5299 = vsub.f32 %v5205, %v5265
      %v5300 = vsub.f32 %v5210, %v5268
      %v5301 = vsub.f32 %v5215, %v5271
      %v5302 = vsub.f32 %v5220, %v5274
      %v5303 = vsub.f32 %v5225, %v5277
      %v5304 = vsub.f32 %v5230, %v5280
      %v5305 = vsub.f32 %v5235, %v5283
      %v5306 = vsub.f32 %v5240, %v5286
      %v5307 = vsub.f32 %v5245, %v5289
      %v5308 = vsub.f32 %v5250, %v5292
      %v5309 = vsub.f32 %v5255, %v5295
      %v5310 = vsub.f32 %v5260, %v5298
      %v5311 = vmul.f32 %v5299, 1.442695
      %v5312 = vpow.pop %v5311
      %v5313 = vmul.f32 %v5300, 1.442695
      %v5314 = vpow.pop %v5313
      %v5315 = vmul.f32 %v5301, 1.442695
      %v5316 = vpow.pop %v5315
      %v5317 = vmul.f32 %v5302, 1.442695
      %v5318 = vpow.pop %v5317
      %v5319 = vmul.f32 %v5303, 1.442695
      %v5320 = vpow.pop %v5319
      %v5321 = vmul.f32 %v5304, 1.442695
      %v5322 = vpow.pop %v5321
      %v5323 = vmul.f32 %v5305, 1.442695
      %v5324 = vpow.pop %v5323
      %v5325 = vmul.f32 %v5306, 1.442695
      %v5326 = vpow.pop %v5325
      %v5327 = vmul.f32 %v5307, 1.442695
      %v5328 = vpow.pop %v5327
      %v5329 = vmul.f32 %v5308, 1.442695
      %v5330 = vpow.pop %v5329
      %v5331 = vmul.f32 %v5309, 1.442695
      %v5332 = vpow.pop %v5331
      %v5333 = vmul.f32 %v5310, 1.442695
      %v5334 = vpow.pop %v5333
      %v5335 = vsel %vm1179, %v5312, 0.0
      %5336 = vadd.xlane.f32.xlu0 %v5335
      %v5337 = vpop.xlane.xlu0 %5336
      %v5338 = vsel %vm1179, %v5314, 0.0
      %5339 = vadd.xlane.f32.xlu0 %v5338
      %v5340 = vpop.xlane.xlu0 %5339
      %v5341 = vsel %vm1179, %v5316, 0.0
      %5342 = vadd.xlane.f32.xlu0 %v5341
      %v5343 = vpop.xlane.xlu0 %5342
      %v5344 = vsel %vm1179, %v5318, 0.0
      %5345 = vadd.xlane.f32.xlu0 %v5344
      %v5346 = vpop.xlane.xlu0 %5345
      %v5347 = vsel %vm1179, %v5320, 0.0
      %5348 = vadd.xlane.f32.xlu0 %v5347
      %v5349 = vpop.xlane.xlu0 %5348
      %v5350 = vsel %vm1179, %v5322, 0.0
      %5351 = vadd.xlane.f32.xlu0 %v5350
      %v5352 = vpop.xlane.xlu0 %5351
      %v5353 = vsel %vm1179, %v5324, 0.0
      %5354 = vadd.xlane.f32.xlu0 %v5353
      %v5355 = vpop.xlane.xlu0 %5354
      %v5356 = vsel %vm1179, %v5326, 0.0
      %5357 = vadd.xlane.f32.xlu0 %v5356
      %v5358 = vpop.xlane.xlu0 %5357
      %v5359 = vsel %vm1179, %v5328, 0.0
      %5360 = vadd.xlane.f32.xlu0 %v5359
      %v5361 = vpop.xlane.xlu0 %5360
      %v5362 = vsel %vm1179, %v5330, 0.0
      %5363 = vadd.xlane.f32.xlu0 %v5362
      %v5364 = vpop.xlane.xlu0 %5363
      %v5365 = vsel %vm1179, %v5332, 0.0
      %5366 = vadd.xlane.f32.xlu0 %v5365
      %v5367 = vpop.xlane.xlu0 %5366
      %v5368 = vsel %vm1179, %v5334, 0.0
      %5369 = vadd.xlane.f32.xlu0 %v5368
      %v5370 = vpop.xlane.xlu0 %5369
      %v5371 = vrcp.pop %v5337
      %v5372 = vmul.f32 %v5312, %v5371
      %v5373 = vrcp.pop %v5340
      %v5374 = vmul.f32 %v5314, %v5373
      %v5375 = vrcp.pop %v5343
      %v5376 = vmul.f32 %v5316, %v5375
      %v5377 = vrcp.pop %v5346
      %v5378 = vmul.f32 %v5318, %v5377
      %v5379 = vrcp.pop %v5349
      %v5380 = vmul.f32 %v5320, %v5379
      %v5381 = vrcp.pop %v5352
      %v5382 = vmul.f32 %v5322, %v5381
      %v5383 = vrcp.pop %v5355
      %v5384 = vmul.f32 %v5324, %v5383
      %v5385 = vrcp.pop %v5358
      %v5386 = vmul.f32 %v5326, %v5385
      %v5387 = vrcp.pop %v5361
      %v5388 = vmul.f32 %v5328, %v5387
      %v5389 = vrcp.pop %v5364
      %v5390 = vmul.f32 %v5330, %v5389
      %v5391 = vrcp.pop %v5367
      %v5392 = vmul.f32 %v5332, %v5391
      %v5393 = vrcp.pop %v5370
      %v5394 = vmul.f32 %v5334, %v5393
      %5395 = vrot.lane.b32.xlu0 %v4422, 56
      %v5396 = vpop.permute.xlu0 %5395
      %5397 = vrot.lane.b32.xlu0 %v4427, 56
      %v5398 = vpop.permute.xlu0 %5397
      %5399 = vrot.lane.b32.xlu0 %v4432, 56
      %v5400 = vpop.permute.xlu0 %5399
      %5401 = vrot.lane.b32.xlu0 %v4437, 56
      %v5402 = vpop.permute.xlu0 %5401
      %5403 = vrot.lane.b32.xlu0 %v4442, 56
      %v5404 = vpop.permute.xlu0 %5403
      %5405 = vrot.lane.b32.xlu0 %v4447, 56
      %v5406 = vpop.permute.xlu0 %5405
      %5407 = vrot.lane.b32.xlu0 %v4452, 56
      %v5408 = vpop.permute.xlu0 %5407
      %5409 = vrot.lane.b32.xlu0 %v4457, 56
      %v5410 = vpop.permute.xlu0 %5409
      %5411 = vrot.lane.b32.xlu0 %v4462, 56
      %v5412 = vpop.permute.xlu0 %5411
      %5413 = vrot.lane.b32.xlu0 %v4467, 56
      %v5414 = vpop.permute.xlu0 %5413
      %5415 = vrot.lane.b32.xlu0 %v4472, 56
      %v5416 = vpop.permute.xlu0 %5415
      %5417 = vrot.lane.b32.xlu0 %v4477, 56
      %v5418 = vpop.permute.xlu0 %5417
      %v5432 = vsel %vm1179, %v5372, 0
      %v5435 = vsel %vm1179, %v5374, 0
      %v5438 = vsel %vm1179, %v5376, 0
      %v5441 = vsel %vm1179, %v5378, 0
      %v5444 = vsel %vm1179, %v5380, 0
      %v5447 = vsel %vm1179, %v5382, 0
      %v5450 = vsel %vm1179, %v5384, 0
      %v5453 = vsel %vm1179, %v5386, 0
      %v5456 = vsel %vm1179, %v5388, 0
      %v5459 = vsel %vm1179, %v5390, 0
      %v5462 = vsel %vm1179, %v5392, 0
      %v5465 = vsel %vm1179, %v5394, 0
      %5467 = vmatprep.subr.mxu0 0.0
      %5468 = vmatpush1.msra.mxu0 0.0
      %5469 = vmatprep.subr.mxu0 0.0
      %5470 = vmatpush1.msra.mxu0 0.0
      %5471 = vmatprep.subr.mxu0 0.0
      %5472 = vmatpush1.msra.mxu0 0.0
      %5473 = vmatprep.subr.mxu0 0.0
      %5474 = vmatpush1.msra.mxu0 0.0
      %5475 = vmatprep.subr.mxu0 0.0
      %5476 = vmatpush1.msra.mxu0 %v5418
      %5477 = vmatprep.subr.mxu0 0.0
      %5478 = vmatpush1.msra.mxu0 %v5416
      %5479 = vmatprep.subr.mxu0 0.0
      %5480 = vmatpush1.msra.mxu0 %v5414
      %5481 = vmatprep.subr.mxu0 0.0
      %5482 = vmatpush1.msra.mxu0 %v5412
      %5483 = vmatprep.subr.mxu0 0.0
      %5484 = vmatpush1.msra.mxu0 %v5410
      %5485 = vmatprep.subr.mxu0 0.0
      %5486 = vmatpush1.msra.mxu0 %v5408
      %5487 = vmatprep.subr.mxu0 0.0
      %5488 = vmatpush1.msra.mxu0 %v5406
      %5489 = vmatprep.subr.mxu0 0.0
      %5490 = vmatpush1.msra.mxu0 %v5404
      %5491 = vmatprep.subr.mxu0 0.0
      %5492 = vmatpush1.msra.mxu0 %v5402
      %5493 = vmatprep.subr.mxu0 0.0
      %5494 = vmatpush1.msra.mxu0 %v5400
      %5495 = vmatprep.subr.mxu0 0.0
      %5496 = vmatpush1.msra.mxu0 %v5398
      %5497 = vmatprep.subr.mxu0 0.0
      %5498 = vmatpush1.msra.mxu0 %v5396
      %5499 = vmatprep.subr.mxu0 0.0
      %5500 = vmatpush2.msra.mxu0 0.0
      %5501 = vmatprep.subr.mxu0 0.0
      %5502 = vmatpush2.msra.mxu0 0.0
      %5503 = vmatprep.subr.mxu0 0.0
      %5504 = vmatpush2.msra.mxu0 0.0
      %5505 = vmatprep.subr.mxu0 0.0
      %5506 = vmatpush2.msra.mxu0 0.0
      %5507 = vmatprep.subr.mxu0 0.0
      %5508 = vmatpush2.msra.mxu0 0.0
      %5509 = vmatprep.subr.mxu0 0.0
      %5510 = vmatpush2.msra.mxu0 0.0
      %5511 = vmatprep.subr.mxu0 0.0
      %5512 = vmatpush2.msra.mxu0 0.0
      %5513 = vmatprep.subr.mxu0 0.0
      %5514 = vmatpush2.msra.mxu0 0.0
      %5515 = vmatprep.subr.mxu0 0.0
      %5516 = vmatpush2.msra.mxu0 0.0
      %5517 = vmatprep.subr.mxu0 0.0
      %5518 = vmatpush2.msra.mxu0 0.0
      %5519 = vmatprep.subr.mxu0 0.0
      %5520 = vmatpush2.msra.mxu0 0.0
      %5521 = vmatprep.subr.mxu0 0.0
      %5522 = vmatpush2.msra.mxu0 0.0
      %5523 = vmatprep.subr.mxu0 0.0
      %5524 = vmatpush2.msra.mxu0 0.0
      %5525 = vmatprep.subr.mxu0 0.0
      %5526 = vmatpush2.msra.mxu0 0.0
      %5527 = vmatprep.subr.mxu0 0.0
      %5528 = vmatpush2.msra.mxu0 0.0
      %5529 = vmatprep.subr.mxu0 0.0
      %5530 = vmatpush2.msra.mxu0 0.0
      %5531 = vmatprep.mubr.f32.mxu0 0.0
      %5532 = vmatmul.mubr.f32.gmra.mxu0 %v5432
      %v5533 = vpop.f32.mrf.mxu0
      %v5534 = vadd.f32 0.0, %v5533
      %v5535 = vpop.f32.mrf.mxu0
      %5536 = vmatprep.mubr.f32.mxu0 0.0
      %5537 = vmatmul.mubr.f32.gmra.mxu0 %v5435
      %v5538 = vpop.f32.mrf.mxu0
      %v5539 = vadd.f32 0.0, %v5538
      %v5540 = vpop.f32.mrf.mxu0
      %5541 = vmatprep.mubr.f32.mxu0 0.0
      %5542 = vmatmul.mubr.f32.gmra.mxu0 %v5438
      %v5543 = vpop.f32.mrf.mxu0
      %v5544 = vadd.f32 0.0, %v5543
      %v5545 = vpop.f32.mrf.mxu0
      %5546 = vmatprep.mubr.f32.mxu0 0.0
      %5547 = vmatmul.mubr.f32.gmra.mxu0 %v5441
      %v5548 = vpop.f32.mrf.mxu0
      %v5549 = vadd.f32 0.0, %v5548
      %v5550 = vpop.f32.mrf.mxu0
      %5551 = vmatprep.mubr.f32.mxu0 0.0
      %5552 = vmatmul.mubr.f32.gmra.mxu0 %v5444
      %v5553 = vpop.f32.mrf.mxu0
      %v5554 = vadd.f32 0.0, %v5553
      %v5555 = vpop.f32.mrf.mxu0
      %5556 = vmatprep.mubr.f32.mxu0 0.0
      %5557 = vmatmul.mubr.f32.gmra.mxu0 %v5447
      %v5558 = vpop.f32.mrf.mxu0
      %v5559 = vadd.f32 0.0, %v5558
      %v5560 = vpop.f32.mrf.mxu0
      %5561 = vmatprep.mubr.f32.mxu0 0.0
      %5562 = vmatmul.mubr.f32.gmra.mxu0 %v5450
      %v5563 = vpop.f32.mrf.mxu0
      %v5564 = vadd.f32 0.0, %v5563
      %v5565 = vpop.f32.mrf.mxu0
      %5566 = vmatprep.mubr.f32.mxu0 0.0
      %5567 = vmatmul.mubr.f32.gmra.mxu0 %v5453
      %v5568 = vpop.f32.mrf.mxu0
      %v5569 = vadd.f32 0.0, %v5568
      %v5570 = vpop.f32.mrf.mxu0
      %5571 = vmatprep.mubr.f32.mxu0 0.0
      %5572 = vmatmul.mubr.f32.gmra.mxu0 %v5456
      %v5573 = vpop.f32.mrf.mxu0
      %v5574 = vadd.f32 0.0, %v5573
      %v5575 = vpop.f32.mrf.mxu0
      %5576 = vmatprep.mubr.f32.mxu0 0.0
      %5577 = vmatmul.mubr.f32.gmra.mxu0 %v5459
      %v5578 = vpop.f32.mrf.mxu0
      %v5579 = vadd.f32 0.0, %v5578
      %v5580 = vpop.f32.mrf.mxu0
      %5581 = vmatprep.mubr.f32.mxu0 0.0
      %5582 = vmatmul.mubr.f32.gmra.mxu0 %v5462
      %v5583 = vpop.f32.mrf.mxu0
      %v5584 = vadd.f32 0.0, %v5583
      %v5585 = vpop.f32.mrf.mxu0
      %5586 = vmatprep.mubr.f32.mxu0 0.0
      %5587 = vmatmul.mubr.f32.gmra.mxu0 %v5465
      %v5588 = vpop.f32.mrf.mxu0
      %v5589 = vadd.f32 0.0, %v5588
      %v5590 = vpop.f32.mrf.mxu0
      %5591 = vdwg.mxu0
      %5592 = vrot.lane.b32.xlu0 %v4480, 112
      %v5593 = vpop.permute.xlu0 %5592
      %5594 = vrot.lane.b32.xlu0 %v4481, 112
      %v5595 = vpop.permute.xlu0 %5594
      %5596 = vrot.lane.b32.xlu0 %v4482, 112
      %v5597 = vpop.permute.xlu0 %5596
      %5598 = vrot.lane.b32.xlu0 %v4483, 112
      %v5599 = vpop.permute.xlu0 %5598
      %5600 = vrot.lane.b32.xlu0 %v4484, 112
      %v5601 = vpop.permute.xlu0 %5600
      %5602 = vrot.lane.b32.xlu0 %v4485, 112
      %v5603 = vpop.permute.xlu0 %5602
      %5604 = vrot.lane.b32.xlu0 %v4486, 112
      %v5605 = vpop.permute.xlu0 %5604
      %5606 = vrot.lane.b32.xlu0 %v4487, 112
      %v5607 = vpop.permute.xlu0 %5606
      %5608 = vrot.lane.b32.xlu0 %v4488, 112
      %v5609 = vpop.permute.xlu0 %5608
      %5610 = vrot.lane.b32.xlu0 %v4489, 112
      %v5611 = vpop.permute.xlu0 %5610
      %5612 = vrot.lane.b32.xlu0 %v4490, 112
      %v5613 = vpop.permute.xlu0 %5612
      %5614 = vrot.lane.b32.xlu0 %v4491, 112
      %v5615 = vpop.permute.xlu0 %5614
      %5616 = vrot.lane.b32.xlu0 %v4422, 80
      %v5617 = vpop.permute.xlu0 %5616
      %5618 = vrot.lane.b32.xlu0 %v4427, 80
      %v5619 = vpop.permute.xlu0 %5618
      %5620 = vrot.lane.b32.xlu0 %v4432, 80
      %v5621 = vpop.permute.xlu0 %5620
      %5622 = vrot.lane.b32.xlu0 %v4437, 80
      %v5623 = vpop.permute.xlu0 %5622
      %5624 = vrot.lane.b32.xlu0 %v4442, 80
      %v5625 = vpop.permute.xlu0 %5624
      %5626 = vrot.lane.b32.xlu0 %v4447, 80
      %v5627 = vpop.permute.xlu0 %5626
      %5628 = vrot.lane.b32.xlu0 %v4452, 80
      %v5629 = vpop.permute.xlu0 %5628
      %5630 = vrot.lane.b32.xlu0 %v4457, 80
      %v5631 = vpop.permute.xlu0 %5630
      %5632 = vrot.lane.b32.xlu0 %v4462, 80
      %v5633 = vpop.permute.xlu0 %5632
      %5634 = vrot.lane.b32.xlu0 %v4467, 80
      %v5635 = vpop.permute.xlu0 %5634
      %5636 = vrot.lane.b32.xlu0 %v4472, 80
      %v5637 = vpop.permute.xlu0 %5636
      %5638 = vrot.lane.b32.xlu0 %v4477, 80
      %v5639 = vpop.permute.xlu0 %5638
      %v5640 = vsel %vm993, %v5593, 0
      %v5642 = vsel %vm993, %v5595, 0
      %v5644 = vsel %vm993, %v5597, 0
      %v5646 = vsel %vm993, %v5599, 0
      %v5648 = vsel %vm993, %v5601, 0
      %v5650 = vsel %vm993, %v5603, 0
      %v5652 = vsel %vm993, %v5605, 0
      %v5654 = vsel %vm993, %v5607, 0
      %v5656 = vsel %vm993, %v5609, 0
      %v5658 = vsel %vm993, %v5611, 0
      %v5660 = vsel %vm993, %v5613, 0
      %v5662 = vsel %vm993, %v5615, 0
      %v5664 = vsel %vm993, %v5617, 0
      %v5666 = vsel %vm993, %v5619, 0
      %v5668 = vsel %vm993, %v5621, 0
      %v5670 = vsel %vm993, %v5623, 0
      %v5672 = vsel %vm993, %v5625, 0
      %v5674 = vsel %vm993, %v5627, 0
      %v5676 = vsel %vm993, %v5629, 0
      %v5678 = vsel %vm993, %v5631, 0
      %v5680 = vsel %vm993, %v5633, 0
      %v5682 = vsel %vm993, %v5635, 0
      %v5684 = vsel %vm993, %v5637, 0
      %v5686 = vsel %vm993, %v5639, 0
      %5688 = vmatprep.subr.mxu0 0.0
      %5689 = vmatpush1.xpose.msra.mxu0 0.0
      %5690 = vmatprep.subr.mxu0 0.0
      %5691 = vmatpush1.xpose.msra.mxu0 0.0
      %5692 = vmatprep.subr.mxu0 0.0
      %5693 = vmatpush1.xpose.msra.mxu0 0.0
      %5694 = vmatprep.subr.mxu0 0.0
      %5695 = vmatpush1.xpose.msra.mxu0 0.0
      %5696 = vmatprep.subr.mxu0 0.0
      %5697 = vmatpush1.xpose.msra.mxu0 %v5686
      %5698 = vmatprep.subr.mxu0 0.0
      %5699 = vmatpush1.xpose.msra.mxu0 %v5684
      %5700 = vmatprep.subr.mxu0 0.0
      %5701 = vmatpush1.xpose.msra.mxu0 %v5682
      %5702 = vmatprep.subr.mxu0 0.0
      %5703 = vmatpush1.xpose.msra.mxu0 %v5680
      %5704 = vmatprep.subr.mxu0 0.0
      %5705 = vmatpush1.xpose.msra.mxu0 %v5678
      %5706 = vmatprep.subr.mxu0 0.0
      %5707 = vmatpush1.xpose.msra.mxu0 %v5676
      %5708 = vmatprep.subr.mxu0 0.0
      %5709 = vmatpush1.xpose.msra.mxu0 %v5674
      %5710 = vmatprep.subr.mxu0 0.0
      %5711 = vmatpush1.xpose.msra.mxu0 %v5672
      %5712 = vmatprep.subr.mxu0 0.0
      %5713 = vmatpush1.xpose.msra.mxu0 %v5670
      %5714 = vmatprep.subr.mxu0 0.0
      %5715 = vmatpush1.xpose.msra.mxu0 %v5668
      %5716 = vmatprep.subr.mxu0 0.0
      %5717 = vmatpush1.xpose.msra.mxu0 %v5666
      %5718 = vmatprep.subr.mxu0 0.0
      %5719 = vmatpush1.xpose.msra.mxu0 %v5664
      %5720 = vmatprep.subr.mxu0 0.0
      %5721 = vmatpush2.xpose.msra.mxu0 0.0
      %5722 = vmatprep.subr.mxu0 0.0
      %5723 = vmatpush2.xpose.msra.mxu0 0.0
      %5724 = vmatprep.subr.mxu0 0.0
      %5725 = vmatpush2.xpose.msra.mxu0 0.0
      %5726 = vmatprep.subr.mxu0 0.0
      %5727 = vmatpush2.xpose.msra.mxu0 0.0
      %5728 = vmatprep.subr.mxu0 0.0
      %5729 = vmatpush2.xpose.msra.mxu0 0.0
      %5730 = vmatprep.subr.mxu0 0.0
      %5731 = vmatpush2.xpose.msra.mxu0 0.0
      %5732 = vmatprep.subr.mxu0 0.0
      %5733 = vmatpush2.xpose.msra.mxu0 0.0
      %5734 = vmatprep.subr.mxu0 0.0
      %5735 = vmatpush2.xpose.msra.mxu0 0.0
      %5736 = vmatprep.subr.mxu0 0.0
      %5737 = vmatpush2.xpose.msra.mxu0 0.0
      %5738 = vmatprep.subr.mxu0 0.0
      %5739 = vmatpush2.xpose.msra.mxu0 0.0
      %5740 = vmatprep.subr.mxu0 0.0
      %5741 = vmatpush2.xpose.msra.mxu0 0.0
      %5742 = vmatprep.subr.mxu0 0.0
      %5743 = vmatpush2.xpose.msra.mxu0 0.0
      %5744 = vmatprep.subr.mxu0 0.0
      %5745 = vmatpush2.xpose.msra.mxu0 0.0
      %5746 = vmatprep.subr.mxu0 0.0
      %5747 = vmatpush2.xpose.msra.mxu0 0.0
      %5748 = vmatprep.subr.mxu0 0.0
      %5749 = vmatpush2.xpose.msra.mxu0 0.0
      %5750 = vmatprep.subr.mxu0 0.0
      %5751 = vmatpush2.xpose.msra.mxu0 0.0
      %5752 = vmatprep.mubr.f32.mxu0 0.0
      %5753 = vmatmul.mubr.f32.gmra.mxu0 %v5640
      %v5754 = vpop.f32.mrf.mxu0
      %v5755 = vadd.f32 %v571, %v5754
      %v5756 = vpop.f32.mrf.mxu0
      %5757 = vmatprep.mubr.f32.mxu0 0.0
      %5758 = vmatmul.mubr.f32.gmra.mxu0 %v5642
      %v5759 = vpop.f32.mrf.mxu0
      %v5760 = vadd.f32 %v572, %v5759
      %v5761 = vpop.f32.mrf.mxu0
      %5762 = vmatprep.mubr.f32.mxu0 0.0
      %5763 = vmatmul.mubr.f32.gmra.mxu0 %v5644
      %v5764 = vpop.f32.mrf.mxu0
      %v5765 = vadd.f32 %v573, %v5764
      %v5766 = vpop.f32.mrf.mxu0
      %5767 = vmatprep.mubr.f32.mxu0 0.0
      %5768 = vmatmul.mubr.f32.gmra.mxu0 %v5646
      %v5769 = vpop.f32.mrf.mxu0
      %v5770 = vadd.f32 %v574, %v5769
      %v5771 = vpop.f32.mrf.mxu0
      %5772 = vmatprep.mubr.f32.mxu0 0.0
      %5773 = vmatmul.mubr.f32.gmra.mxu0 %v5648
      %v5774 = vpop.f32.mrf.mxu0
      %v5775 = vadd.f32 %v575, %v5774
      %v5776 = vpop.f32.mrf.mxu0
      %5777 = vmatprep.mubr.f32.mxu0 0.0
      %5778 = vmatmul.mubr.f32.gmra.mxu0 %v5650
      %v5779 = vpop.f32.mrf.mxu0
      %v5780 = vadd.f32 %v576, %v5779
      %v5781 = vpop.f32.mrf.mxu0
      %5782 = vmatprep.mubr.f32.mxu0 0.0
      %5783 = vmatmul.mubr.f32.gmra.mxu0 %v5652
      %v5784 = vpop.f32.mrf.mxu0
      %v5785 = vadd.f32 %v577, %v5784
      %v5786 = vpop.f32.mrf.mxu0
      %5787 = vmatprep.mubr.f32.mxu0 0.0
      %5788 = vmatmul.mubr.f32.gmra.mxu0 %v5654
      %v5789 = vpop.f32.mrf.mxu0
      %v5790 = vadd.f32 %v578, %v5789
      %v5791 = vpop.f32.mrf.mxu0
      %5792 = vmatprep.mubr.f32.mxu0 0.0
      %5793 = vmatmul.mubr.f32.gmra.mxu0 %v5656
      %v5794 = vpop.f32.mrf.mxu0
      %v5795 = vadd.f32 %v579, %v5794
      %v5796 = vpop.f32.mrf.mxu0
      %5797 = vmatprep.mubr.f32.mxu0 0.0
      %5798 = vmatmul.mubr.f32.gmra.mxu0 %v5658
      %v5799 = vpop.f32.mrf.mxu0
      %v5800 = vadd.f32 %v580, %v5799
      %v5801 = vpop.f32.mrf.mxu0
      %5802 = vmatprep.mubr.f32.mxu0 0.0
      %5803 = vmatmul.mubr.f32.gmra.mxu0 %v5660
      %v5804 = vpop.f32.mrf.mxu0
      %v5805 = vadd.f32 %v581, %v5804
      %v5806 = vpop.f32.mrf.mxu0
      %5807 = vmatprep.mubr.f32.mxu0 0.0
      %5808 = vmatmul.mubr.f32.gmra.mxu0 %v5662
      %v5809 = vpop.f32.mrf.mxu0
      %v5810 = vadd.f32 %v582, %v5809
      %v5811 = vpop.f32.mrf.mxu0
      %5812 = vdwg.mxu0
      %v5813 = vsel %vm1179, %v5755, -inf
      %5814 = vmax.xlane.f32.xlu0 %v5813
      %v5815 = vpop.xlane.xlu0 %5814
      %v5816 = vsel %vm1179, %v5760, -inf
      %5817 = vmax.xlane.f32.xlu0 %v5816
      %v5818 = vpop.xlane.xlu0 %5817
      %v5819 = vsel %vm1179, %v5765, -inf
      %5820 = vmax.xlane.f32.xlu0 %v5819
      %v5821 = vpop.xlane.xlu0 %5820
      %v5822 = vsel %vm1179, %v5770, -inf
      %5823 = vmax.xlane.f32.xlu0 %v5822
      %v5824 = vpop.xlane.xlu0 %5823
      %v5825 = vsel %vm1179, %v5775, -inf
      %5826 = vmax.xlane.f32.xlu0 %v5825
      %v5827 = vpop.xlane.xlu0 %5826
      %v5828 = vsel %vm1179, %v5780, -inf
      %5829 = vmax.xlane.f32.xlu0 %v5828
      %v5830 = vpop.xlane.xlu0 %5829
      %v5831 = vsel %vm1179, %v5785, -inf
      %5832 = vmax.xlane.f32.xlu0 %v5831
      %v5833 = vpop.xlane.xlu0 %5832
      %v5834 = vsel %vm1179, %v5790, -inf
      %5835 = vmax.xlane.f32.xlu0 %v5834
      %v5836 = vpop.xlane.xlu0 %5835
      %v5837 = vsel %vm1179, %v5795, -inf
      %5838 = vmax.xlane.f32.xlu0 %v5837
      %v5839 = vpop.xlane.xlu0 %5838
      %v5840 = vsel %vm1179, %v5800, -inf
      %5841 = vmax.xlane.f32.xlu0 %v5840
      %v5842 = vpop.xlane.xlu0 %5841
      %v5843 = vsel %vm1179, %v5805, -inf
      %5844 = vmax.xlane.f32.xlu0 %v5843
      %v5845 = vpop.xlane.xlu0 %5844
      %v5846 = vsel %vm1179, %v5810, -inf
      %5847 = vmax.xlane.f32.xlu0 %v5846
      %v5848 = vpop.xlane.xlu0 %5847
      %v5849 = vsub.f32 %v5755, %v5815
      %v5850 = vsub.f32 %v5760, %v5818
      %v5851 = vsub.f32 %v5765, %v5821
      %v5852 = vsub.f32 %v5770, %v5824
      %v5853 = vsub.f32 %v5775, %v5827
      %v5854 = vsub.f32 %v5780, %v5830
      %v5855 = vsub.f32 %v5785, %v5833
      %v5856 = vsub.f32 %v5790, %v5836
      %v5857 = vsub.f32 %v5795, %v5839
      %v5858 = vsub.f32 %v5800, %v5842
      %v5859 = vsub.f32 %v5805, %v5845
      %v5860 = vsub.f32 %v5810, %v5848
      %v5861 = vmul.f32 %v5849, 1.442695
      %v5862 = vpow.pop %v5861
      %v5863 = vmul.f32 %v5850, 1.442695
      %v5864 = vpow.pop %v5863
      %v5865 = vmul.f32 %v5851, 1.442695
      %v5866 = vpow.pop %v5865
      %v5867 = vmul.f32 %v5852, 1.442695
      %v5868 = vpow.pop %v5867
      %v5869 = vmul.f32 %v5853, 1.442695
      %v5870 = vpow.pop %v5869
      %v5871 = vmul.f32 %v5854, 1.442695
      %v5872 = vpow.pop %v5871
      %v5873 = vmul.f32 %v5855, 1.442695
      %v5874 = vpow.pop %v5873
      %v5875 = vmul.f32 %v5856, 1.442695
      %v5876 = vpow.pop %v5875
      %v5877 = vmul.f32 %v5857, 1.442695
      %v5878 = vpow.pop %v5877
      %v5879 = vmul.f32 %v5858, 1.442695
      %v5880 = vpow.pop %v5879
      %v5881 = vmul.f32 %v5859, 1.442695
      %v5882 = vpow.pop %v5881
      %v5883 = vmul.f32 %v5860, 1.442695
      %v5884 = vpow.pop %v5883
      %v5885 = vsel %vm1179, %v5862, 0.0
      %5886 = vadd.xlane.f32.xlu0 %v5885
      %v5887 = vpop.xlane.xlu0 %5886
      %v5888 = vsel %vm1179, %v5864, 0.0
      %5889 = vadd.xlane.f32.xlu0 %v5888
      %v5890 = vpop.xlane.xlu0 %5889
      %v5891 = vsel %vm1179, %v5866, 0.0
      %5892 = vadd.xlane.f32.xlu0 %v5891
      %v5893 = vpop.xlane.xlu0 %5892
      %v5894 = vsel %vm1179, %v5868, 0.0
      %5895 = vadd.xlane.f32.xlu0 %v5894
      %v5896 = vpop.xlane.xlu0 %5895
      %v5897 = vsel %vm1179, %v5870, 0.0
      %5898 = vadd.xlane.f32.xlu0 %v5897
      %v5899 = vpop.xlane.xlu0 %5898
      %v5900 = vsel %vm1179, %v5872, 0.0
      %5901 = vadd.xlane.f32.xlu0 %v5900
      %v5902 = vpop.xlane.xlu0 %5901
      %v5903 = vsel %vm1179, %v5874, 0.0
      %5904 = vadd.xlane.f32.xlu0 %v5903
      %v5905 = vpop.xlane.xlu0 %5904
      %v5906 = vsel %vm1179, %v5876, 0.0
      %5907 = vadd.xlane.f32.xlu0 %v5906
      %v5908 = vpop.xlane.xlu0 %5907
      %v5909 = vsel %vm1179, %v5878, 0.0
      %5910 = vadd.xlane.f32.xlu0 %v5909
      %v5911 = vpop.xlane.xlu0 %5910
      %v5912 = vsel %vm1179, %v5880, 0.0
      %5913 = vadd.xlane.f32.xlu0 %v5912
      %v5914 = vpop.xlane.xlu0 %5913
      %v5915 = vsel %vm1179, %v5882, 0.0
      %5916 = vadd.xlane.f32.xlu0 %v5915
      %v5917 = vpop.xlane.xlu0 %5916
      %v5918 = vsel %vm1179, %v5884, 0.0
      %5919 = vadd.xlane.f32.xlu0 %v5918
      %v5920 = vpop.xlane.xlu0 %5919
      %v5921 = vrcp.pop %v5887
      %v5922 = vmul.f32 %v5862, %v5921
      %v5923 = vrcp.pop %v5890
      %v5924 = vmul.f32 %v5864, %v5923
      %v5925 = vrcp.pop %v5893
      %v5926 = vmul.f32 %v5866, %v5925
      %v5927 = vrcp.pop %v5896
      %v5928 = vmul.f32 %v5868, %v5927
      %v5929 = vrcp.pop %v5899
      %v5930 = vmul.f32 %v5870, %v5929
      %v5931 = vrcp.pop %v5902
      %v5932 = vmul.f32 %v5872, %v5931
      %v5933 = vrcp.pop %v5905
      %v5934 = vmul.f32 %v5874, %v5933
      %v5935 = vrcp.pop %v5908
      %v5936 = vmul.f32 %v5876, %v5935
      %v5937 = vrcp.pop %v5911
      %v5938 = vmul.f32 %v5878, %v5937
      %v5939 = vrcp.pop %v5914
      %v5940 = vmul.f32 %v5880, %v5939
      %v5941 = vrcp.pop %v5917
      %v5942 = vmul.f32 %v5882, %v5941
      %v5943 = vrcp.pop %v5920
      %v5944 = vmul.f32 %v5884, %v5943
      %5945 = vrot.lane.b32.xlu0 %v4422, 48
      %v5946 = vpop.permute.xlu0 %5945
      %5947 = vrot.lane.b32.xlu0 %v4427, 48
      %v5948 = vpop.permute.xlu0 %5947
      %5949 = vrot.lane.b32.xlu0 %v4432, 48
      %v5950 = vpop.permute.xlu0 %5949
      %5951 = vrot.lane.b32.xlu0 %v4437, 48
      %v5952 = vpop.permute.xlu0 %5951
      %5953 = vrot.lane.b32.xlu0 %v4442, 48
      %v5954 = vpop.permute.xlu0 %5953
      %5955 = vrot.lane.b32.xlu0 %v4447, 48
      %v5956 = vpop.permute.xlu0 %5955
      %5957 = vrot.lane.b32.xlu0 %v4452, 48
      %v5958 = vpop.permute.xlu0 %5957
      %5959 = vrot.lane.b32.xlu0 %v4457, 48
      %v5960 = vpop.permute.xlu0 %5959
      %5961 = vrot.lane.b32.xlu0 %v4462, 48
      %v5962 = vpop.permute.xlu0 %5961
      %5963 = vrot.lane.b32.xlu0 %v4467, 48
      %v5964 = vpop.permute.xlu0 %5963
      %5965 = vrot.lane.b32.xlu0 %v4472, 48
      %v5966 = vpop.permute.xlu0 %5965
      %5967 = vrot.lane.b32.xlu0 %v4477, 48
      %v5968 = vpop.permute.xlu0 %5967
      %v5982 = vsel %vm1179, %v5922, 0
      %v5985 = vsel %vm1179, %v5924, 0
      %v5988 = vsel %vm1179, %v5926, 0
      %v5991 = vsel %vm1179, %v5928, 0
      %v5994 = vsel %vm1179, %v5930, 0
      %v5997 = vsel %vm1179, %v5932, 0
      %v6000 = vsel %vm1179, %v5934, 0
      %v6003 = vsel %vm1179, %v5936, 0
      %v6006 = vsel %vm1179, %v5938, 0
      %v6009 = vsel %vm1179, %v5940, 0
      %v6012 = vsel %vm1179, %v5942, 0
      %v6015 = vsel %vm1179, %v5944, 0
      %6017 = vmatprep.subr.mxu0 0.0
      %6018 = vmatpush1.msra.mxu0 0.0
      %6019 = vmatprep.subr.mxu0 0.0
      %6020 = vmatpush1.msra.mxu0 0.0
      %6021 = vmatprep.subr.mxu0 0.0
      %6022 = vmatpush1.msra.mxu0 0.0
      %6023 = vmatprep.subr.mxu0 0.0
      %6024 = vmatpush1.msra.mxu0 0.0
      %6025 = vmatprep.subr.mxu0 0.0
      %6026 = vmatpush1.msra.mxu0 %v5968
      %6027 = vmatprep.subr.mxu0 0.0
      %6028 = vmatpush1.msra.mxu0 %v5966
      %6029 = vmatprep.subr.mxu0 0.0
      %6030 = vmatpush1.msra.mxu0 %v5964
      %6031 = vmatprep.subr.mxu0 0.0
      %6032 = vmatpush1.msra.mxu0 %v5962
      %6033 = vmatprep.subr.mxu0 0.0
      %6034 = vmatpush1.msra.mxu0 %v5960
      %6035 = vmatprep.subr.mxu0 0.0
      %6036 = vmatpush1.msra.mxu0 %v5958
      %6037 = vmatprep.subr.mxu0 0.0
      %6038 = vmatpush1.msra.mxu0 %v5956
      %6039 = vmatprep.subr.mxu0 0.0
      %6040 = vmatpush1.msra.mxu0 %v5954
      %6041 = vmatprep.subr.mxu0 0.0
      %6042 = vmatpush1.msra.mxu0 %v5952
      %6043 = vmatprep.subr.mxu0 0.0
      %6044 = vmatpush1.msra.mxu0 %v5950
      %6045 = vmatprep.subr.mxu0 0.0
      %6046 = vmatpush1.msra.mxu0 %v5948
      %6047 = vmatprep.subr.mxu0 0.0
      %6048 = vmatpush1.msra.mxu0 %v5946
      %6049 = vmatprep.subr.mxu0 0.0
      %6050 = vmatpush2.msra.mxu0 0.0
      %6051 = vmatprep.subr.mxu0 0.0
      %6052 = vmatpush2.msra.mxu0 0.0
      %6053 = vmatprep.subr.mxu0 0.0
      %6054 = vmatpush2.msra.mxu0 0.0
      %6055 = vmatprep.subr.mxu0 0.0
      %6056 = vmatpush2.msra.mxu0 0.0
      %6057 = vmatprep.subr.mxu0 0.0
      %6058 = vmatpush2.msra.mxu0 0.0
      %6059 = vmatprep.subr.mxu0 0.0
      %6060 = vmatpush2.msra.mxu0 0.0
      %6061 = vmatprep.subr.mxu0 0.0
      %6062 = vmatpush2.msra.mxu0 0.0
      %6063 = vmatprep.subr.mxu0 0.0
      %6064 = vmatpush2.msra.mxu0 0.0
      %6065 = vmatprep.subr.mxu0 0.0
      %6066 = vmatpush2.msra.mxu0 0.0
      %6067 = vmatprep.subr.mxu0 0.0
      %6068 = vmatpush2.msra.mxu0 0.0
      %6069 = vmatprep.subr.mxu0 0.0
      %6070 = vmatpush2.msra.mxu0 0.0
      %6071 = vmatprep.subr.mxu0 0.0
      %6072 = vmatpush2.msra.mxu0 0.0
      %6073 = vmatprep.subr.mxu0 0.0
      %6074 = vmatpush2.msra.mxu0 0.0
      %6075 = vmatprep.subr.mxu0 0.0
      %6076 = vmatpush2.msra.mxu0 0.0
      %6077 = vmatprep.subr.mxu0 0.0
      %6078 = vmatpush2.msra.mxu0 0.0
      %6079 = vmatprep.subr.mxu0 0.0
      %6080 = vmatpush2.msra.mxu0 0.0
      %6081 = vmatprep.mubr.f32.mxu0 0.0
      %6082 = vmatmul.mubr.f32.gmra.mxu0 %v5982
      %v6083 = vpop.f32.mrf.mxu0
      %v6084 = vadd.f32 0.0, %v6083
      %v6085 = vpop.f32.mrf.mxu0
      %6086 = vmatprep.mubr.f32.mxu0 0.0
      %6087 = vmatmul.mubr.f32.gmra.mxu0 %v5985
      %v6088 = vpop.f32.mrf.mxu0
      %v6089 = vadd.f32 0.0, %v6088
      %v6090 = vpop.f32.mrf.mxu0
      %6091 = vmatprep.mubr.f32.mxu0 0.0
      %6092 = vmatmul.mubr.f32.gmra.mxu0 %v5988
      %v6093 = vpop.f32.mrf.mxu0
      %v6094 = vadd.f32 0.0, %v6093
      %v6095 = vpop.f32.mrf.mxu0
      %6096 = vmatprep.mubr.f32.mxu0 0.0
      %6097 = vmatmul.mubr.f32.gmra.mxu0 %v5991
      %v6098 = vpop.f32.mrf.mxu0
      %v6099 = vadd.f32 0.0, %v6098
      %v6100 = vpop.f32.mrf.mxu0
      %6101 = vmatprep.mubr.f32.mxu0 0.0
      %6102 = vmatmul.mubr.f32.gmra.mxu0 %v5994
      %v6103 = vpop.f32.mrf.mxu0
      %v6104 = vadd.f32 0.0, %v6103
      %v6105 = vpop.f32.mrf.mxu0
      %6106 = vmatprep.mubr.f32.mxu0 0.0
      %6107 = vmatmul.mubr.f32.gmra.mxu0 %v5997
      %v6108 = vpop.f32.mrf.mxu0
      %v6109 = vadd.f32 0.0, %v6108
      %v6110 = vpop.f32.mrf.mxu0
      %6111 = vmatprep.mubr.f32.mxu0 0.0
      %6112 = vmatmul.mubr.f32.gmra.mxu0 %v6000
      %v6113 = vpop.f32.mrf.mxu0
      %v6114 = vadd.f32 0.0, %v6113
      %v6115 = vpop.f32.mrf.mxu0
      %6116 = vmatprep.mubr.f32.mxu0 0.0
      %6117 = vmatmul.mubr.f32.gmra.mxu0 %v6003
      %v6118 = vpop.f32.mrf.mxu0
      %v6119 = vadd.f32 0.0, %v6118
      %v6120 = vpop.f32.mrf.mxu0
      %6121 = vmatprep.mubr.f32.mxu0 0.0
      %6122 = vmatmul.mubr.f32.gmra.mxu0 %v6006
      %v6123 = vpop.f32.mrf.mxu0
      %v6124 = vadd.f32 0.0, %v6123
      %v6125 = vpop.f32.mrf.mxu0
      %6126 = vmatprep.mubr.f32.mxu0 0.0
      %6127 = vmatmul.mubr.f32.gmra.mxu0 %v6009
      %v6128 = vpop.f32.mrf.mxu0
      %v6129 = vadd.f32 0.0, %v6128
      %v6130 = vpop.f32.mrf.mxu0
      %6131 = vmatprep.mubr.f32.mxu0 0.0
      %6132 = vmatmul.mubr.f32.gmra.mxu0 %v6012
      %v6133 = vpop.f32.mrf.mxu0
      %v6134 = vadd.f32 0.0, %v6133
      %v6135 = vpop.f32.mrf.mxu0
      %6136 = vmatprep.mubr.f32.mxu0 0.0
      %6137 = vmatmul.mubr.f32.gmra.mxu0 %v6015
      %v6138 = vpop.f32.mrf.mxu0
      %v6139 = vadd.f32 0.0, %v6138
      %v6140 = vpop.f32.mrf.mxu0
      %6141 = vdwg.mxu0
      %6142 = vrot.lane.b32.xlu0 %v4480, 104
      %v6143 = vpop.permute.xlu0 %6142
      %6144 = vrot.lane.b32.xlu0 %v4481, 104
      %v6145 = vpop.permute.xlu0 %6144
      %6146 = vrot.lane.b32.xlu0 %v4482, 104
      %v6147 = vpop.permute.xlu0 %6146
      %6148 = vrot.lane.b32.xlu0 %v4483, 104
      %v6149 = vpop.permute.xlu0 %6148
      %6150 = vrot.lane.b32.xlu0 %v4484, 104
      %v6151 = vpop.permute.xlu0 %6150
      %6152 = vrot.lane.b32.xlu0 %v4485, 104
      %v6153 = vpop.permute.xlu0 %6152
      %6154 = vrot.lane.b32.xlu0 %v4486, 104
      %v6155 = vpop.permute.xlu0 %6154
      %6156 = vrot.lane.b32.xlu0 %v4487, 104
      %v6157 = vpop.permute.xlu0 %6156
      %6158 = vrot.lane.b32.xlu0 %v4488, 104
      %v6159 = vpop.permute.xlu0 %6158
      %6160 = vrot.lane.b32.xlu0 %v4489, 104
      %v6161 = vpop.permute.xlu0 %6160
      %6162 = vrot.lane.b32.xlu0 %v4490, 104
      %v6163 = vpop.permute.xlu0 %6162
      %6164 = vrot.lane.b32.xlu0 %v4491, 104
      %v6165 = vpop.permute.xlu0 %6164
      %6166 = vrot.lane.b32.xlu0 %v4422, 72
      %v6167 = vpop.permute.xlu0 %6166
      %6168 = vrot.lane.b32.xlu0 %v4427, 72
      %v6169 = vpop.permute.xlu0 %6168
      %6170 = vrot.lane.b32.xlu0 %v4432, 72
      %v6171 = vpop.permute.xlu0 %6170
      %6172 = vrot.lane.b32.xlu0 %v4437, 72
      %v6173 = vpop.permute.xlu0 %6172
      %6174 = vrot.lane.b32.xlu0 %v4442, 72
      %v6175 = vpop.permute.xlu0 %6174
      %6176 = vrot.lane.b32.xlu0 %v4447, 72
      %v6177 = vpop.permute.xlu0 %6176
      %6178 = vrot.lane.b32.xlu0 %v4452, 72
      %v6179 = vpop.permute.xlu0 %6178
      %6180 = vrot.lane.b32.xlu0 %v4457, 72
      %v6181 = vpop.permute.xlu0 %6180
      %6182 = vrot.lane.b32.xlu0 %v4462, 72
      %v6183 = vpop.permute.xlu0 %6182
      %6184 = vrot.lane.b32.xlu0 %v4467, 72
      %v6185 = vpop.permute.xlu0 %6184
      %6186 = vrot.lane.b32.xlu0 %v4472, 72
      %v6187 = vpop.permute.xlu0 %6186
      %6188 = vrot.lane.b32.xlu0 %v4477, 72
      %v6189 = vpop.permute.xlu0 %6188
      %v6190 = vsel %vm993, %v6143, 0
      %v6192 = vsel %vm993, %v6145, 0
      %v6194 = vsel %vm993, %v6147, 0
      %v6196 = vsel %vm993, %v6149, 0
      %v6198 = vsel %vm993, %v6151, 0
      %v6200 = vsel %vm993, %v6153, 0
      %v6202 = vsel %vm993, %v6155, 0
      %v6204 = vsel %vm993, %v6157, 0
      %v6206 = vsel %vm993, %v6159, 0
      %v6208 = vsel %vm993, %v6161, 0
      %v6210 = vsel %vm993, %v6163, 0
      %v6212 = vsel %vm993, %v6165, 0
      %v6214 = vsel %vm993, %v6167, 0
      %v6216 = vsel %vm993, %v6169, 0
      %v6218 = vsel %vm993, %v6171, 0
      %v6220 = vsel %vm993, %v6173, 0
      %v6222 = vsel %vm993, %v6175, 0
      %v6224 = vsel %vm993, %v6177, 0
      %v6226 = vsel %vm993, %v6179, 0
      %v6228 = vsel %vm993, %v6181, 0
      %v6230 = vsel %vm993, %v6183, 0
      %v6232 = vsel %vm993, %v6185, 0
      %v6234 = vsel %vm993, %v6187, 0
      %v6236 = vsel %vm993, %v6189, 0
      %6238 = vmatprep.subr.mxu0 0.0
      %6239 = vmatpush1.xpose.msra.mxu0 0.0
      %6240 = vmatprep.subr.mxu0 0.0
      %6241 = vmatpush1.xpose.msra.mxu0 0.0
      %6242 = vmatprep.subr.mxu0 0.0
      %6243 = vmatpush1.xpose.msra.mxu0 0.0
      %6244 = vmatprep.subr.mxu0 0.0
      %6245 = vmatpush1.xpose.msra.mxu0 0.0
      %6246 = vmatprep.subr.mxu0 0.0
      %6247 = vmatpush1.xpose.msra.mxu0 %v6236
      %6248 = vmatprep.subr.mxu0 0.0
      %6249 = vmatpush1.xpose.msra.mxu0 %v6234
      %6250 = vmatprep.subr.mxu0 0.0
      %6251 = vmatpush1.xpose.msra.mxu0 %v6232
      %6252 = vmatprep.subr.mxu0 0.0
      %6253 = vmatpush1.xpose.msra.mxu0 %v6230
      %6254 = vmatprep.subr.mxu0 0.0
      %6255 = vmatpush1.xpose.msra.mxu0 %v6228
      %6256 = vmatprep.subr.mxu0 0.0
      %6257 = vmatpush1.xpose.msra.mxu0 %v6226
      %6258 = vmatprep.subr.mxu0 0.0
      %6259 = vmatpush1.xpose.msra.mxu0 %v6224
      %6260 = vmatprep.subr.mxu0 0.0
      %6261 = vmatpush1.xpose.msra.mxu0 %v6222
      %6262 = vmatprep.subr.mxu0 0.0
      %6263 = vmatpush1.xpose.msra.mxu0 %v6220
      %6264 = vmatprep.subr.mxu0 0.0
      %6265 = vmatpush1.xpose.msra.mxu0 %v6218
      %6266 = vmatprep.subr.mxu0 0.0
      %6267 = vmatpush1.xpose.msra.mxu0 %v6216
      %6268 = vmatprep.subr.mxu0 0.0
      %6269 = vmatpush1.xpose.msra.mxu0 %v6214
      %6270 = vmatprep.subr.mxu0 0.0
      %6271 = vmatpush2.xpose.msra.mxu0 0.0
      %6272 = vmatprep.subr.mxu0 0.0
      %6273 = vmatpush2.xpose.msra.mxu0 0.0
      %6274 = vmatprep.subr.mxu0 0.0
      %6275 = vmatpush2.xpose.msra.mxu0 0.0
      %6276 = vmatprep.subr.mxu0 0.0
      %6277 = vmatpush2.xpose.msra.mxu0 0.0
      %6278 = vmatprep.subr.mxu0 0.0
      %6279 = vmatpush2.xpose.msra.mxu0 0.0
      %6280 = vmatprep.subr.mxu0 0.0
      %6281 = vmatpush2.xpose.msra.mxu0 0.0
      %6282 = vmatprep.subr.mxu0 0.0
      %6283 = vmatpush2.xpose.msra.mxu0 0.0
      %6284 = vmatprep.subr.mxu0 0.0
      %6285 = vmatpush2.xpose.msra.mxu0 0.0
      %6286 = vmatprep.subr.mxu0 0.0
      %6287 = vmatpush2.xpose.msra.mxu0 0.0
      %6288 = vmatprep.subr.mxu0 0.0
      %6289 = vmatpush2.xpose.msra.mxu0 0.0
      %6290 = vmatprep.subr.mxu0 0.0
      %6291 = vmatpush2.xpose.msra.mxu0 0.0
      %6292 = vmatprep.subr.mxu0 0.0
      %6293 = vmatpush2.xpose.msra.mxu0 0.0
      %6294 = vmatprep.subr.mxu0 0.0
      %6295 = vmatpush2.xpose.msra.mxu0 0.0
      %6296 = vmatprep.subr.mxu0 0.0
      %6297 = vmatpush2.xpose.msra.mxu0 0.0
      %6298 = vmatprep.subr.mxu0 0.0
      %6299 = vmatpush2.xpose.msra.mxu0 0.0
      %6300 = vmatprep.subr.mxu0 0.0
      %6301 = vmatpush2.xpose.msra.mxu0 0.0
      %6302 = vmatprep.mubr.f32.mxu0 0.0
      %6303 = vmatmul.mubr.f32.gmra.mxu0 %v6190
      %v6304 = vpop.f32.mrf.mxu0
      %v6305 = vadd.f32 %v571, %v6304
      %v6306 = vpop.f32.mrf.mxu0
      %6307 = vmatprep.mubr.f32.mxu0 0.0
      %6308 = vmatmul.mubr.f32.gmra.mxu0 %v6192
      %v6309 = vpop.f32.mrf.mxu0
      %v6310 = vadd.f32 %v572, %v6309
      %v6311 = vpop.f32.mrf.mxu0
      %6312 = vmatprep.mubr.f32.mxu0 0.0
      %6313 = vmatmul.mubr.f32.gmra.mxu0 %v6194
      %v6314 = vpop.f32.mrf.mxu0
      %v6315 = vadd.f32 %v573, %v6314
      %v6316 = vpop.f32.mrf.mxu0
      %6317 = vmatprep.mubr.f32.mxu0 0.0
      %6318 = vmatmul.mubr.f32.gmra.mxu0 %v6196
      %v6319 = vpop.f32.mrf.mxu0
      %v6320 = vadd.f32 %v574, %v6319
      %v6321 = vpop.f32.mrf.mxu0
      %6322 = vmatprep.mubr.f32.mxu0 0.0
      %6323 = vmatmul.mubr.f32.gmra.mxu0 %v6198
      %v6324 = vpop.f32.mrf.mxu0
      %v6325 = vadd.f32 %v575, %v6324
      %v6326 = vpop.f32.mrf.mxu0
      %6327 = vmatprep.mubr.f32.mxu0 0.0
      %6328 = vmatmul.mubr.f32.gmra.mxu0 %v6200
      %v6329 = vpop.f32.mrf.mxu0
      %v6330 = vadd.f32 %v576, %v6329
      %v6331 = vpop.f32.mrf.mxu0
      %6332 = vmatprep.mubr.f32.mxu0 0.0
      %6333 = vmatmul.mubr.f32.gmra.mxu0 %v6202
      %v6334 = vpop.f32.mrf.mxu0
      %v6335 = vadd.f32 %v577, %v6334
      %v6336 = vpop.f32.mrf.mxu0
      %6337 = vmatprep.mubr.f32.mxu0 0.0
      %6338 = vmatmul.mubr.f32.gmra.mxu0 %v6204
      %v6339 = vpop.f32.mrf.mxu0
      %v6340 = vadd.f32 %v578, %v6339
      %v6341 = vpop.f32.mrf.mxu0
      %6342 = vmatprep.mubr.f32.mxu0 0.0
      %6343 = vmatmul.mubr.f32.gmra.mxu0 %v6206
      %v6344 = vpop.f32.mrf.mxu0
      %v6345 = vadd.f32 %v579, %v6344
      %v6346 = vpop.f32.mrf.mxu0
      %6347 = vmatprep.mubr.f32.mxu0 0.0
      %6348 = vmatmul.mubr.f32.gmra.mxu0 %v6208
      %v6349 = vpop.f32.mrf.mxu0
      %v6350 = vadd.f32 %v580, %v6349
      %v6351 = vpop.f32.mrf.mxu0
      %6352 = vmatprep.mubr.f32.mxu0 0.0
      %6353 = vmatmul.mubr.f32.gmra.mxu0 %v6210
      %v6354 = vpop.f32.mrf.mxu0
      %v6355 = vadd.f32 %v581, %v6354
      %v6356 = vpop.f32.mrf.mxu0
      %6357 = vmatprep.mubr.f32.mxu0 0.0
      %6358 = vmatmul.mubr.f32.gmra.mxu0 %v6212
      %v6359 = vpop.f32.mrf.mxu0
      %v6360 = vadd.f32 %v582, %v6359
      %v6361 = vpop.f32.mrf.mxu0
      %6362 = vdwg.mxu0
      %v6363 = vsel %vm1179, %v6305, -inf
      %6364 = vmax.xlane.f32.xlu0 %v6363
      %v6365 = vpop.xlane.xlu0 %6364
      %v6366 = vsel %vm1179, %v6310, -inf
      %6367 = vmax.xlane.f32.xlu0 %v6366
      %v6368 = vpop.xlane.xlu0 %6367
      %v6369 = vsel %vm1179, %v6315, -inf
      %6370 = vmax.xlane.f32.xlu0 %v6369
      %v6371 = vpop.xlane.xlu0 %6370
      %v6372 = vsel %vm1179, %v6320, -inf
      %6373 = vmax.xlane.f32.xlu0 %v6372
      %v6374 = vpop.xlane.xlu0 %6373
      %v6375 = vsel %vm1179, %v6325, -inf
      %6376 = vmax.xlane.f32.xlu0 %v6375
      %v6377 = vpop.xlane.xlu0 %6376
      %v6378 = vsel %vm1179, %v6330, -inf
      %6379 = vmax.xlane.f32.xlu0 %v6378
      %v6380 = vpop.xlane.xlu0 %6379
      %v6381 = vsel %vm1179, %v6335, -inf
      %6382 = vmax.xlane.f32.xlu0 %v6381
      %v6383 = vpop.xlane.xlu0 %6382
      %v6384 = vsel %vm1179, %v6340, -inf
      %6385 = vmax.xlane.f32.xlu0 %v6384
      %v6386 = vpop.xlane.xlu0 %6385
      %v6387 = vsel %vm1179, %v6345, -inf
      %6388 = vmax.xlane.f32.xlu0 %v6387
      %v6389 = vpop.xlane.xlu0 %6388
      %v6390 = vsel %vm1179, %v6350, -inf
      %6391 = vmax.xlane.f32.xlu0 %v6390
      %v6392 = vpop.xlane.xlu0 %6391
      %v6393 = vsel %vm1179, %v6355, -inf
      %6394 = vmax.xlane.f32.xlu0 %v6393
      %v6395 = vpop.xlane.xlu0 %6394
      %v6396 = vsel %vm1179, %v6360, -inf
      %6397 = vmax.xlane.f32.xlu0 %v6396
      %v6398 = vpop.xlane.xlu0 %6397
      %v6399 = vsub.f32 %v6305, %v6365
      %v6400 = vsub.f32 %v6310, %v6368
      %v6401 = vsub.f32 %v6315, %v6371
      %v6402 = vsub.f32 %v6320, %v6374
      %v6403 = vsub.f32 %v6325, %v6377
      %v6404 = vsub.f32 %v6330, %v6380
      %v6405 = vsub.f32 %v6335, %v6383
      %v6406 = vsub.f32 %v6340, %v6386
      %v6407 = vsub.f32 %v6345, %v6389
      %v6408 = vsub.f32 %v6350, %v6392
      %v6409 = vsub.f32 %v6355, %v6395
      %v6410 = vsub.f32 %v6360, %v6398
      %v6411 = vmul.f32 %v6399, 1.442695
      %v6412 = vpow.pop %v6411
      %v6413 = vmul.f32 %v6400, 1.442695
      %v6414 = vpow.pop %v6413
      %v6415 = vmul.f32 %v6401, 1.442695
      %v6416 = vpow.pop %v6415
      %v6417 = vmul.f32 %v6402, 1.442695
      %v6418 = vpow.pop %v6417
      %v6419 = vmul.f32 %v6403, 1.442695
      %v6420 = vpow.pop %v6419
      %v6421 = vmul.f32 %v6404, 1.442695
      %v6422 = vpow.pop %v6421
      %v6423 = vmul.f32 %v6405, 1.442695
      %v6424 = vpow.pop %v6423
      %v6425 = vmul.f32 %v6406, 1.442695
      %v6426 = vpow.pop %v6425
      %v6427 = vmul.f32 %v6407, 1.442695
      %v6428 = vpow.pop %v6427
      %v6429 = vmul.f32 %v6408, 1.442695
      %v6430 = vpow.pop %v6429
      %v6431 = vmul.f32 %v6409, 1.442695
      %v6432 = vpow.pop %v6431
      %v6433 = vmul.f32 %v6410, 1.442695
      %v6434 = vpow.pop %v6433
      %v6435 = vsel %vm1179, %v6412, 0.0
      %6436 = vadd.xlane.f32.xlu0 %v6435
      %v6437 = vpop.xlane.xlu0 %6436
      %v6438 = vsel %vm1179, %v6414, 0.0
      %6439 = vadd.xlane.f32.xlu0 %v6438
      %v6440 = vpop.xlane.xlu0 %6439
      %v6441 = vsel %vm1179, %v6416, 0.0
      %6442 = vadd.xlane.f32.xlu0 %v6441
      %v6443 = vpop.xlane.xlu0 %6442
      %v6444 = vsel %vm1179, %v6418, 0.0
      %6445 = vadd.xlane.f32.xlu0 %v6444
      %v6446 = vpop.xlane.xlu0 %6445
      %v6447 = vsel %vm1179, %v6420, 0.0
      %6448 = vadd.xlane.f32.xlu0 %v6447
      %v6449 = vpop.xlane.xlu0 %6448
      %v6450 = vsel %vm1179, %v6422, 0.0
      %6451 = vadd.xlane.f32.xlu0 %v6450
      %v6452 = vpop.xlane.xlu0 %6451
      %v6453 = vsel %vm1179, %v6424, 0.0
      %6454 = vadd.xlane.f32.xlu0 %v6453
      %v6455 = vpop.xlane.xlu0 %6454
      %v6456 = vsel %vm1179, %v6426, 0.0
      %6457 = vadd.xlane.f32.xlu0 %v6456
      %v6458 = vpop.xlane.xlu0 %6457
      %v6459 = vsel %vm1179, %v6428, 0.0
      %6460 = vadd.xlane.f32.xlu0 %v6459
      %v6461 = vpop.xlane.xlu0 %6460
      %v6462 = vsel %vm1179, %v6430, 0.0
      %6463 = vadd.xlane.f32.xlu0 %v6462
      %v6464 = vpop.xlane.xlu0 %6463
      %v6465 = vsel %vm1179, %v6432, 0.0
      %6466 = vadd.xlane.f32.xlu0 %v6465
      %v6467 = vpop.xlane.xlu0 %6466
      %v6468 = vsel %vm1179, %v6434, 0.0
      %6469 = vadd.xlane.f32.xlu0 %v6468
      %v6470 = vpop.xlane.xlu0 %6469
      %v6471 = vrcp.pop %v6437
      %v6472 = vmul.f32 %v6412, %v6471
      %v6473 = vrcp.pop %v6440
      %v6474 = vmul.f32 %v6414, %v6473
      %v6475 = vrcp.pop %v6443
      %v6476 = vmul.f32 %v6416, %v6475
      %v6477 = vrcp.pop %v6446
      %v6478 = vmul.f32 %v6418, %v6477
      %v6479 = vrcp.pop %v6449
      %v6480 = vmul.f32 %v6420, %v6479
      %v6481 = vrcp.pop %v6452
      %v6482 = vmul.f32 %v6422, %v6481
      %v6483 = vrcp.pop %v6455
      %v6484 = vmul.f32 %v6424, %v6483
      %v6485 = vrcp.pop %v6458
      %v6486 = vmul.f32 %v6426, %v6485
      %v6487 = vrcp.pop %v6461
      %v6488 = vmul.f32 %v6428, %v6487
      %v6489 = vrcp.pop %v6464
      %v6490 = vmul.f32 %v6430, %v6489
      %v6491 = vrcp.pop %v6467
      %v6492 = vmul.f32 %v6432, %v6491
      %v6493 = vrcp.pop %v6470
      %v6494 = vmul.f32 %v6434, %v6493
      %6495 = vrot.lane.b32.xlu0 %v4422, 40
      %v6496 = vpop.permute.xlu0 %6495
      %6497 = vrot.lane.b32.xlu0 %v4427, 40
      %v6498 = vpop.permute.xlu0 %6497
      %6499 = vrot.lane.b32.xlu0 %v4432, 40
      %v6500 = vpop.permute.xlu0 %6499
      %6501 = vrot.lane.b32.xlu0 %v4437, 40
      %v6502 = vpop.permute.xlu0 %6501
      %6503 = vrot.lane.b32.xlu0 %v4442, 40
      %v6504 = vpop.permute.xlu0 %6503
      %6505 = vrot.lane.b32.xlu0 %v4447, 40
      %v6506 = vpop.permute.xlu0 %6505
      %6507 = vrot.lane.b32.xlu0 %v4452, 40
      %v6508 = vpop.permute.xlu0 %6507
      %6509 = vrot.lane.b32.xlu0 %v4457, 40
      %v6510 = vpop.permute.xlu0 %6509
      %6511 = vrot.lane.b32.xlu0 %v4462, 40
      %v6512 = vpop.permute.xlu0 %6511
      %6513 = vrot.lane.b32.xlu0 %v4467, 40
      %v6514 = vpop.permute.xlu0 %6513
      %6515 = vrot.lane.b32.xlu0 %v4472, 40
      %v6516 = vpop.permute.xlu0 %6515
      %6517 = vrot.lane.b32.xlu0 %v4477, 40
      %v6518 = vpop.permute.xlu0 %6517
      %v6532 = vsel %vm1179, %v6472, 0
      %v6535 = vsel %vm1179, %v6474, 0
      %v6538 = vsel %vm1179, %v6476, 0
      %v6541 = vsel %vm1179, %v6478, 0
      %v6544 = vsel %vm1179, %v6480, 0
      %v6547 = vsel %vm1179, %v6482, 0
      %v6550 = vsel %vm1179, %v6484, 0
      %v6553 = vsel %vm1179, %v6486, 0
      %v6556 = vsel %vm1179, %v6488, 0
      %v6559 = vsel %vm1179, %v6490, 0
      %v6562 = vsel %vm1179, %v6492, 0
      %v6565 = vsel %vm1179, %v6494, 0
      %6567 = vmatprep.subr.mxu0 0.0
      %6568 = vmatpush1.msra.mxu0 0.0
      %6569 = vmatprep.subr.mxu0 0.0
      %6570 = vmatpush1.msra.mxu0 0.0
      %6571 = vmatprep.subr.mxu0 0.0
      %6572 = vmatpush1.msra.mxu0 0.0
      %6573 = vmatprep.subr.mxu0 0.0
      %6574 = vmatpush1.msra.mxu0 0.0
      %6575 = vmatprep.subr.mxu0 0.0
      %6576 = vmatpush1.msra.mxu0 %v6518
      %6577 = vmatprep.subr.mxu0 0.0
      %6578 = vmatpush1.msra.mxu0 %v6516
      %6579 = vmatprep.subr.mxu0 0.0
      %6580 = vmatpush1.msra.mxu0 %v6514
      %6581 = vmatprep.subr.mxu0 0.0
      %6582 = vmatpush1.msra.mxu0 %v6512
      %6583 = vmatprep.subr.mxu0 0.0
      %6584 = vmatpush1.msra.mxu0 %v6510
      %6585 = vmatprep.subr.mxu0 0.0
      %6586 = vmatpush1.msra.mxu0 %v6508
      %6587 = vmatprep.subr.mxu0 0.0
      %6588 = vmatpush1.msra.mxu0 %v6506
      %6589 = vmatprep.subr.mxu0 0.0
      %6590 = vmatpush1.msra.mxu0 %v6504
      %6591 = vmatprep.subr.mxu0 0.0
      %6592 = vmatpush1.msra.mxu0 %v6502
      %6593 = vmatprep.subr.mxu0 0.0
      %6594 = vmatpush1.msra.mxu0 %v6500
      %6595 = vmatprep.subr.mxu0 0.0
      %6596 = vmatpush1.msra.mxu0 %v6498
      %6597 = vmatprep.subr.mxu0 0.0
      %6598 = vmatpush1.msra.mxu0 %v6496
      %6599 = vmatprep.subr.mxu0 0.0
      %6600 = vmatpush2.msra.mxu0 0.0
      %6601 = vmatprep.subr.mxu0 0.0
      %6602 = vmatpush2.msra.mxu0 0.0
      %6603 = vmatprep.subr.mxu0 0.0
      %6604 = vmatpush2.msra.mxu0 0.0
      %6605 = vmatprep.subr.mxu0 0.0
      %6606 = vmatpush2.msra.mxu0 0.0
      %6607 = vmatprep.subr.mxu0 0.0
      %6608 = vmatpush2.msra.mxu0 0.0
      %6609 = vmatprep.subr.mxu0 0.0
      %6610 = vmatpush2.msra.mxu0 0.0
      %6611 = vmatprep.subr.mxu0 0.0
      %6612 = vmatpush2.msra.mxu0 0.0
      %6613 = vmatprep.subr.mxu0 0.0
      %6614 = vmatpush2.msra.mxu0 0.0
      %6615 = vmatprep.subr.mxu0 0.0
      %6616 = vmatpush2.msra.mxu0 0.0
      %6617 = vmatprep.subr.mxu0 0.0
      %6618 = vmatpush2.msra.mxu0 0.0
      %6619 = vmatprep.subr.mxu0 0.0
      %6620 = vmatpush2.msra.mxu0 0.0
      %6621 = vmatprep.subr.mxu0 0.0
      %6622 = vmatpush2.msra.mxu0 0.0
      %6623 = vmatprep.subr.mxu0 0.0
      %6624 = vmatpush2.msra.mxu0 0.0
      %6625 = vmatprep.subr.mxu0 0.0
      %6626 = vmatpush2.msra.mxu0 0.0
      %6627 = vmatprep.subr.mxu0 0.0
      %6628 = vmatpush2.msra.mxu0 0.0
      %6629 = vmatprep.subr.mxu0 0.0
      %6630 = vmatpush2.msra.mxu0 0.0
      %6631 = vmatprep.mubr.f32.mxu0 0.0
      %6632 = vmatmul.mubr.f32.gmra.mxu0 %v6532
      %v6633 = vpop.f32.mrf.mxu0
      %v6634 = vadd.f32 0.0, %v6633
      %v6635 = vpop.f32.mrf.mxu0
      %6636 = vmatprep.mubr.f32.mxu0 0.0
      %6637 = vmatmul.mubr.f32.gmra.mxu0 %v6535
      %v6638 = vpop.f32.mrf.mxu0
      %v6639 = vadd.f32 0.0, %v6638
      %v6640 = vpop.f32.mrf.mxu0
      %6641 = vmatprep.mubr.f32.mxu0 0.0
      %6642 = vmatmul.mubr.f32.gmra.mxu0 %v6538
      %v6643 = vpop.f32.mrf.mxu0
      %v6644 = vadd.f32 0.0, %v6643
      %v6645 = vpop.f32.mrf.mxu0
      %6646 = vmatprep.mubr.f32.mxu0 0.0
      %6647 = vmatmul.mubr.f32.gmra.mxu0 %v6541
      %v6648 = vpop.f32.mrf.mxu0
      %v6649 = vadd.f32 0.0, %v6648
      %v6650 = vpop.f32.mrf.mxu0
      %6651 = vmatprep.mubr.f32.mxu0 0.0
      %6652 = vmatmul.mubr.f32.gmra.mxu0 %v6544
      %v6653 = vpop.f32.mrf.mxu0
      %v6654 = vadd.f32 0.0, %v6653
      %v6655 = vpop.f32.mrf.mxu0
      %6656 = vmatprep.mubr.f32.mxu0 0.0
      %6657 = vmatmul.mubr.f32.gmra.mxu0 %v6547
      %v6658 = vpop.f32.mrf.mxu0
      %v6659 = vadd.f32 0.0, %v6658
      %v6660 = vpop.f32.mrf.mxu0
      %6661 = vmatprep.mubr.f32.mxu0 0.0
      %6662 = vmatmul.mubr.f32.gmra.mxu0 %v6550
      %v6663 = vpop.f32.mrf.mxu0
      %v6664 = vadd.f32 0.0, %v6663
      %v6665 = vpop.f32.mrf.mxu0
      %6666 = vmatprep.mubr.f32.mxu0 0.0
      %6667 = vmatmul.mubr.f32.gmra.mxu0 %v6553
      %v6668 = vpop.f32.mrf.mxu0
      %v6669 = vadd.f32 0.0, %v6668
      %v6670 = vpop.f32.mrf.mxu0
      %6671 = vmatprep.mubr.f32.mxu0 0.0
      %6672 = vmatmul.mubr.f32.gmra.mxu0 %v6556
      %v6673 = vpop.f32.mrf.mxu0
      %v6674 = vadd.f32 0.0, %v6673
      %v6675 = vpop.f32.mrf.mxu0
      %6676 = vmatprep.mubr.f32.mxu0 0.0
      %6677 = vmatmul.mubr.f32.gmra.mxu0 %v6559
      %v6678 = vpop.f32.mrf.mxu0
      %v6679 = vadd.f32 0.0, %v6678
      %v6680 = vpop.f32.mrf.mxu0
      %6681 = vmatprep.mubr.f32.mxu0 0.0
      %6682 = vmatmul.mubr.f32.gmra.mxu0 %v6562
      %v6683 = vpop.f32.mrf.mxu0
      %v6684 = vadd.f32 0.0, %v6683
      %v6685 = vpop.f32.mrf.mxu0
      %6686 = vmatprep.mubr.f32.mxu0 0.0
      %6687 = vmatmul.mubr.f32.gmra.mxu0 %v6565
      %v6688 = vpop.f32.mrf.mxu0
      %v6689 = vadd.f32 0.0, %v6688
      %v6690 = vpop.f32.mrf.mxu0
      %6691 = vdwg.mxu0
      %6704 = vrot.lane.b32.xlu0 %v5534, 8
      %v6705 = vpop.permute.xlu0 %6704
      %6706 = vrot.lane.b32.xlu0 %v5539, 8
      %v6707 = vpop.permute.xlu0 %6706
      %6708 = vrot.lane.b32.xlu0 %v5544, 8
      %v6709 = vpop.permute.xlu0 %6708
      %6710 = vrot.lane.b32.xlu0 %v5549, 8
      %v6711 = vpop.permute.xlu0 %6710
      %6712 = vrot.lane.b32.xlu0 %v5554, 8
      %v6713 = vpop.permute.xlu0 %6712
      %6714 = vrot.lane.b32.xlu0 %v5559, 8
      %v6715 = vpop.permute.xlu0 %6714
      %6716 = vrot.lane.b32.xlu0 %v5564, 8
      %v6717 = vpop.permute.xlu0 %6716
      %6718 = vrot.lane.b32.xlu0 %v5569, 8
      %v6719 = vpop.permute.xlu0 %6718
      %6720 = vrot.lane.b32.xlu0 %v5574, 8
      %v6721 = vpop.permute.xlu0 %6720
      %6722 = vrot.lane.b32.xlu0 %v5579, 8
      %v6723 = vpop.permute.xlu0 %6722
      %6724 = vrot.lane.b32.xlu0 %v5584, 8
      %v6725 = vpop.permute.xlu0 %6724
      %6726 = vrot.lane.b32.xlu0 %v5589, 8
      %v6727 = vpop.permute.xlu0 %6726
      %6752 = vrot.lane.b32.xlu0 %v6084, 16
      %v6753 = vpop.permute.xlu0 %6752
      %6754 = vrot.lane.b32.xlu0 %v6089, 16
      %v6755 = vpop.permute.xlu0 %6754
      %6756 = vrot.lane.b32.xlu0 %v6094, 16
      %v6757 = vpop.permute.xlu0 %6756
      %6758 = vrot.lane.b32.xlu0 %v6099, 16
      %v6759 = vpop.permute.xlu0 %6758
      %6760 = vrot.lane.b32.xlu0 %v6104, 16
      %v6761 = vpop.permute.xlu0 %6760
      %6762 = vrot.lane.b32.xlu0 %v6109, 16
      %v6763 = vpop.permute.xlu0 %6762
      %6764 = vrot.lane.b32.xlu0 %v6114, 16
      %v6765 = vpop.permute.xlu0 %6764
      %6766 = vrot.lane.b32.xlu0 %v6119, 16
      %v6767 = vpop.permute.xlu0 %6766
      %6768 = vrot.lane.b32.xlu0 %v6124, 16
      %v6769 = vpop.permute.xlu0 %6768
      %6770 = vrot.lane.b32.xlu0 %v6129, 16
      %v6771 = vpop.permute.xlu0 %6770
      %6772 = vrot.lane.b32.xlu0 %v6134, 16
      %v6773 = vpop.permute.xlu0 %6772
      %6774 = vrot.lane.b32.xlu0 %v6139, 16
      %v6775 = vpop.permute.xlu0 %6774
      %6800 = vrot.lane.b32.xlu0 %v6634, 24
      %v6801 = vpop.permute.xlu0 %6800
      %6802 = vrot.lane.b32.xlu0 %v6639, 24
      %v6803 = vpop.permute.xlu0 %6802
      %6804 = vrot.lane.b32.xlu0 %v6644, 24
      %v6805 = vpop.permute.xlu0 %6804
      %6806 = vrot.lane.b32.xlu0 %v6649, 24
      %v6807 = vpop.permute.xlu0 %6806
      %6808 = vrot.lane.b32.xlu0 %v6654, 24
      %v6809 = vpop.permute.xlu0 %6808
      %6810 = vrot.lane.b32.xlu0 %v6659, 24
      %v6811 = vpop.permute.xlu0 %6810
      %6812 = vrot.lane.b32.xlu0 %v6664, 24
      %v6813 = vpop.permute.xlu0 %6812
      %6814 = vrot.lane.b32.xlu0 %v6669, 24
      %v6815 = vpop.permute.xlu0 %6814
      %6816 = vrot.lane.b32.xlu0 %v6674, 24
      %v6817 = vpop.permute.xlu0 %6816
      %6818 = vrot.lane.b32.xlu0 %v6679, 24
      %v6819 = vpop.permute.xlu0 %6818
      %6820 = vrot.lane.b32.xlu0 %v6684, 24
      %v6821 = vpop.permute.xlu0 %6820
      %6822 = vrot.lane.b32.xlu0 %v6689, 24
      %v6823 = vpop.permute.xlu0 %6822
      %v6836 = vsel %vm993, %v4984, %v6705
      %v6837 = vsel %vm993, %v4989, %v6707
      %v6838 = vsel %vm993, %v4994, %v6709
      %v6839 = vsel %vm993, %v4999, %v6711
      %v6840 = vsel %vm993, %v5004, %v6713
      %v6841 = vsel %vm993, %v5009, %v6715
      %v6842 = vsel %vm993, %v5014, %v6717
      %v6843 = vsel %vm993, %v5019, %v6719
      %v6844 = vsel %vm993, %v5024, %v6721
      %v6845 = vsel %vm993, %v5029, %v6723
      %v6846 = vsel %vm993, %v5034, %v6725
      %v6847 = vsel %vm993, %v5039, %v6727
      %v6848 = vsel %vm3315, %v6836, %v6753
      %v6849 = vsel %vm3315, %v6837, %v6755
      %v6850 = vsel %vm3315, %v6838, %v6757
      %v6851 = vsel %vm3315, %v6839, %v6759
      %v6852 = vsel %vm3315, %v6840, %v6761
      %v6853 = vsel %vm3315, %v6841, %v6763
      %v6854 = vsel %vm3315, %v6842, %v6765
      %v6855 = vsel %vm3315, %v6843, %v6767
      %v6856 = vsel %vm3315, %v6844, %v6769
      %v6857 = vsel %vm3315, %v6845, %v6771
      %v6858 = vsel %vm3315, %v6846, %v6773
      %v6859 = vsel %vm3315, %v6847, %v6775
      %v6860 = vsel %vm3328, %v6848, %v6801
      %v6861 = vsel %vm3328, %v6849, %v6803
      %v6862 = vsel %vm3328, %v6850, %v6805
      %v6863 = vsel %vm3328, %v6851, %v6807
      %v6864 = vsel %vm3328, %v6852, %v6809
      %v6865 = vsel %vm3328, %v6853, %v6811
      %v6866 = vsel %vm3328, %v6854, %v6813
      %v6867 = vsel %vm3328, %v6855, %v6815
      %v6868 = vsel %vm3328, %v6856, %v6817
      %v6869 = vsel %vm3328, %v6857, %v6819
      %v6870 = vsel %vm3328, %v6858, %v6821
      %v6871 = vsel %vm3328, %v6859, %v6823
      %s6872 = scalar_lea.vmem %s5, 32
      %v6873 = vld [vmem:[%s6872] sm:$0xff]
      %v6874 = vld [vmem:[%s6872 + $0x8] sm:$0xff]
      %v6875 = vld [vmem:[%s6872 + $0x10] sm:$0xff]
      %v6876 = vld [vmem:[%s6872 + $0x18] sm:$0xff]
      %v6878 = vsel %vm546, %v6860, 0
      %v6881 = vsel %vm546, %v6861, 0
      %v6884 = vsel %vm546, %v6862, 0
      %v6887 = vsel %vm546, %v6863, 0
      %v6890 = vsel %vm546, %v6864, 0
      %v6893 = vsel %vm546, %v6865, 0
      %v6896 = vsel %vm546, %v6866, 0
      %v6899 = vsel %vm546, %v6867, 0
      %v6902 = vsel %vm546, %v6868, 0
      %v6905 = vsel %vm546, %v6869, 0
      %v6908 = vsel %vm546, %v6870, 0
      %v6911 = vsel %vm546, %v6871, 0
      %6913 = vmatprep.subr.mxu0 0.0
      %6914 = vmatpush1.msra.mxu0 0.0
      %6915 = vmatprep.subr.mxu0 0.0
      %6916 = vmatpush1.msra.mxu0 0.0
      %6917 = vmatprep.subr.mxu0 0.0
      %6918 = vmatpush1.msra.mxu0 0.0
      %6919 = vmatprep.subr.mxu0 0.0
      %6920 = vmatpush1.msra.mxu0 0.0
      %6921 = vmatprep.subr.mxu0 0.0
      %6922 = vmatpush1.msra.mxu0 0.0
      %6923 = vmatprep.subr.mxu0 0.0
      %6924 = vmatpush1.msra.mxu0 0.0
      %6925 = vmatprep.subr.mxu0 0.0
      %6926 = vmatpush1.msra.mxu0 0.0
      %6927 = vmatprep.subr.mxu0 0.0
      %6928 = vmatpush1.msra.mxu0 0.0
      %6929 = vmatprep.subr.mxu0 0.0
      %6930 = vmatpush1.msra.mxu0 0.0
      %6931 = vmatprep.subr.mxu0 0.0
      %6932 = vmatpush1.msra.mxu0 0.0
      %6933 = vmatprep.subr.mxu0 0.0
      %6934 = vmatpush1.msra.mxu0 0.0
      %6935 = vmatprep.subr.mxu0 0.0
      %6936 = vmatpush1.msra.mxu0 0.0
      %6937 = vmatprep.subr.mxu0 0.0
      %6938 = vmatpush1.msra.mxu0 %v6876
      %6939 = vmatprep.subr.mxu0 0.0
      %6940 = vmatpush1.msra.mxu0 %v6875
      %6941 = vmatprep.subr.mxu0 0.0
      %6942 = vmatpush1.msra.mxu0 %v6874
      %6943 = vmatprep.subr.mxu0 0.0
      %6944 = vmatpush1.msra.mxu0 %v6873
      %6945 = vmatprep.subr.mxu0 0.0
      %6946 = vmatpush2.msra.mxu0 0.0
      %6947 = vmatprep.subr.mxu0 0.0
      %6948 = vmatpush2.msra.mxu0 0.0
      %6949 = vmatprep.subr.mxu0 0.0
      %6950 = vmatpush2.msra.mxu0 0.0
      %6951 = vmatprep.subr.mxu0 0.0
      %6952 = vmatpush2.msra.mxu0 0.0
      %6953 = vmatprep.subr.mxu0 0.0
      %6954 = vmatpush2.msra.mxu0 0.0
      %6955 = vmatprep.subr.mxu0 0.0
      %6956 = vmatpush2.msra.mxu0 0.0
      %6957 = vmatprep.subr.mxu0 0.0
      %6958 = vmatpush2.msra.mxu0 0.0
      %6959 = vmatprep.subr.mxu0 0.0
      %6960 = vmatpush2.msra.mxu0 0.0
      %6961 = vmatprep.subr.mxu0 0.0
      %6962 = vmatpush2.msra.mxu0 0.0
      %6963 = vmatprep.subr.mxu0 0.0
      %6964 = vmatpush2.msra.mxu0 0.0
      %6965 = vmatprep.subr.mxu0 0.0
      %6966 = vmatpush2.msra.mxu0 0.0
      %6967 = vmatprep.subr.mxu0 0.0
      %6968 = vmatpush2.msra.mxu0 0.0
      %6969 = vmatprep.subr.mxu0 0.0
      %6970 = vmatpush2.msra.mxu0 0.0
      %6971 = vmatprep.subr.mxu0 0.0
      %6972 = vmatpush2.msra.mxu0 0.0
      %6973 = vmatprep.subr.mxu0 0.0
      %6974 = vmatpush2.msra.mxu0 0.0
      %6975 = vmatprep.subr.mxu0 0.0
      %6976 = vmatpush2.msra.mxu0 0.0
      %6977 = vmatprep.mubr.f32.mxu0 0.0
      %6978 = vmatmul.mubr.f32.gmra.mxu0 %v6878
      %v6979 = vpop.f32.mrf.mxu0
      %v6980 = vadd.f32 0.0, %v6979
      %v6981 = vpop.f32.mrf.mxu0
      %6982 = vmatprep.mubr.f32.mxu0 0.0
      %6983 = vmatmul.mubr.f32.gmra.mxu0 %v6881
      %v6984 = vpop.f32.mrf.mxu0
      %v6985 = vadd.f32 0.0, %v6984
      %v6986 = vpop.f32.mrf.mxu0
      %6987 = vmatprep.mubr.f32.mxu0 0.0
      %6988 = vmatmul.mubr.f32.gmra.mxu0 %v6884
      %v6989 = vpop.f32.mrf.mxu0
      %v6990 = vadd.f32 0.0, %v6989
      %v6991 = vpop.f32.mrf.mxu0
      %6992 = vmatprep.mubr.f32.mxu0 0.0
      %6993 = vmatmul.mubr.f32.gmra.mxu0 %v6887
      %v6994 = vpop.f32.mrf.mxu0
      %v6995 = vadd.f32 0.0, %v6994
      %v6996 = vpop.f32.mrf.mxu0
      %6997 = vmatprep.mubr.f32.mxu0 0.0
      %6998 = vmatmul.mubr.f32.gmra.mxu0 %v6890
      %v6999 = vpop.f32.mrf.mxu0
      %v7000 = vadd.f32 0.0, %v6999
      %v7001 = vpop.f32.mrf.mxu0
      %7002 = vmatprep.mubr.f32.mxu0 0.0
      %7003 = vmatmul.mubr.f32.gmra.mxu0 %v6893
      %v7004 = vpop.f32.mrf.mxu0
      %v7005 = vadd.f32 0.0, %v7004
      %v7006 = vpop.f32.mrf.mxu0
      %7007 = vmatprep.mubr.f32.mxu0 0.0
      %7008 = vmatmul.mubr.f32.gmra.mxu0 %v6896
      %v7009 = vpop.f32.mrf.mxu0
      %v7010 = vadd.f32 0.0, %v7009
      %v7011 = vpop.f32.mrf.mxu0
      %7012 = vmatprep.mubr.f32.mxu0 0.0
      %7013 = vmatmul.mubr.f32.gmra.mxu0 %v6899
      %v7014 = vpop.f32.mrf.mxu0
      %v7015 = vadd.f32 0.0, %v7014
      %v7016 = vpop.f32.mrf.mxu0
      %7017 = vmatprep.mubr.f32.mxu0 0.0
      %7018 = vmatmul.mubr.f32.gmra.mxu0 %v6902
      %v7019 = vpop.f32.mrf.mxu0
      %v7020 = vadd.f32 0.0, %v7019
      %v7021 = vpop.f32.mrf.mxu0
      %7022 = vmatprep.mubr.f32.mxu0 0.0
      %7023 = vmatmul.mubr.f32.gmra.mxu0 %v6905
      %v7024 = vpop.f32.mrf.mxu0
      %v7025 = vadd.f32 0.0, %v7024
      %v7026 = vpop.f32.mrf.mxu0
      %7027 = vmatprep.mubr.f32.mxu0 0.0
      %7028 = vmatmul.mubr.f32.gmra.mxu0 %v6908
      %v7029 = vpop.f32.mrf.mxu0
      %v7030 = vadd.f32 0.0, %v7029
      %v7031 = vpop.f32.mrf.mxu0
      %7032 = vmatprep.mubr.f32.mxu0 0.0
      %7033 = vmatmul.mubr.f32.gmra.mxu0 %v6911
      %v7034 = vpop.f32.mrf.mxu0
      %v7035 = vadd.f32 0.0, %v7034
      %v7036 = vpop.f32.mrf.mxu0
      %7037 = vdwg.mxu0
      %v7038 = vadd.f32 %v4106, %v6980
      %v7039 = vadd.f32 %v4107, %v6985
      %v7040 = vadd.f32 %v4108, %v6990
      %v7041 = vadd.f32 %v4109, %v6995
      %v7042 = vadd.f32 %v4110, %v7000
      %v7043 = vadd.f32 %v4111, %v7005
      %v7044 = vadd.f32 %v4112, %v7010
      %v7045 = vadd.f32 %v4113, %v7015
      %v7046 = vadd.f32 %v4114, %v7020
      %v7047 = vadd.f32 %v4115, %v7025
      %v7048 = vadd.f32 %v4116, %v7030
      %v7049 = vadd.f32 %v4117, %v7035
      %7051 = vrot.lane.b32.xlu0 %v4318, 32
      %v7052 = vpop.permute.xlu0 %7051
      %v7054 = vadd.f32 %v7038, %v7052
      %v7055 = vadd.f32 %v7039, %v7052
      %v7056 = vadd.f32 %v7040, %v7052
      %v7057 = vadd.f32 %v7041, %v7052
      %v7058 = vadd.f32 %v7042, %v7052
      %v7059 = vadd.f32 %v7043, %v7052
      %v7060 = vadd.f32 %v7044, %v7052
      %v7061 = vadd.f32 %v7045, %v7052
      %v7062 = vadd.f32 %v7046, %v7052
      %v7063 = vadd.f32 %v7047, %v7052
      %v7064 = vadd.f32 %v7048, %v7052
      %v7065 = vadd.f32 %v7049, %v7052
      %v7066 = vsel %vm546, %v7054, 0.0
      %7067 = vadd.xlane.f32.xlu0 %v7066
      %v7068 = vpop.xlane.xlu0 %7067
      %v7069 = vsel %vm546, %v7055, 0.0
      %7070 = vadd.xlane.f32.xlu0 %v7069
      %v7071 = vpop.xlane.xlu0 %7070
      %v7072 = vsel %vm546, %v7056, 0.0
      %7073 = vadd.xlane.f32.xlu0 %v7072
      %v7074 = vpop.xlane.xlu0 %7073
      %v7075 = vsel %vm546, %v7057, 0.0
      %7076 = vadd.xlane.f32.xlu0 %v7075
      %v7077 = vpop.xlane.xlu0 %7076
      %v7078 = vsel %vm546, %v7058, 0.0
      %7079 = vadd.xlane.f32.xlu0 %v7078
      %v7080 = vpop.xlane.xlu0 %7079
      %v7081 = vsel %vm546, %v7059, 0.0
      %7082 = vadd.xlane.f32.xlu0 %v7081
      %v7083 = vpop.xlane.xlu0 %7082
      %v7084 = vsel %vm546, %v7060, 0.0
      %7085 = vadd.xlane.f32.xlu0 %v7084
      %v7086 = vpop.xlane.xlu0 %7085
      %v7087 = vsel %vm546, %v7061, 0.0
      %7088 = vadd.xlane.f32.xlu0 %v7087
      %v7089 = vpop.xlane.xlu0 %7088
      %v7090 = vsel %vm546, %v7062, 0.0
      %7091 = vadd.xlane.f32.xlu0 %v7090
      %v7092 = vpop.xlane.xlu0 %7091
      %v7093 = vsel %vm546, %v7063, 0.0
      %7094 = vadd.xlane.f32.xlu0 %v7093
      %v7095 = vpop.xlane.xlu0 %7094
      %v7096 = vsel %vm546, %v7064, 0.0
      %7097 = vadd.xlane.f32.xlu0 %v7096
      %v7098 = vpop.xlane.xlu0 %7097
      %v7099 = vsel %vm546, %v7065, 0.0
      %7100 = vadd.xlane.f32.xlu0 %v7099
      %v7101 = vpop.xlane.xlu0 %7100
      %v7102 = vmul.f32 %v7068, %v623
      %v7103 = vmul.f32 %v7071, %v623
      %v7104 = vmul.f32 %v7074, %v623
      %v7105 = vmul.f32 %v7077, %v623
      %v7106 = vmul.f32 %v7080, %v623
      %v7107 = vmul.f32 %v7083, %v623
      %v7108 = vmul.f32 %v7086, %v623
      %v7109 = vmul.f32 %v7089, %v623
      %v7110 = vmul.f32 %v7092, %v623
      %v7111 = vmul.f32 %v7095, %v623
      %v7112 = vmul.f32 %v7098, %v623
      %v7113 = vmul.f32 %v7101, %v623
      %v7114 = vsub.f32 %v7054, %v7102
      %v7115 = vsub.f32 %v7055, %v7103
      %v7116 = vsub.f32 %v7056, %v7104
      %v7117 = vsub.f32 %v7057, %v7105
      %v7118 = vsub.f32 %v7058, %v7106
      %v7119 = vsub.f32 %v7059, %v7107
      %v7120 = vsub.f32 %v7060, %v7108
      %v7121 = vsub.f32 %v7061, %v7109
      %v7122 = vsub.f32 %v7062, %v7110
      %v7123 = vsub.f32 %v7063, %v7111
      %v7124 = vsub.f32 %v7064, %v7112
      %v7125 = vsub.f32 %v7065, %v7113
      %v7126 = vmul.f32 %v7114, %v7114
      %v7127 = vmul.f32 %v7115, %v7115
      %v7128 = vmul.f32 %v7116, %v7116
      %v7129 = vmul.f32 %v7117, %v7117
      %v7130 = vmul.f32 %v7118, %v7118
      %v7131 = vmul.f32 %v7119, %v7119
      %v7132 = vmul.f32 %v7120, %v7120
      %v7133 = vmul.f32 %v7121, %v7121
      %v7134 = vmul.f32 %v7122, %v7122
      %v7135 = vmul.f32 %v7123, %v7123
      %v7136 = vmul.f32 %v7124, %v7124
      %v7137 = vmul.f32 %v7125, %v7125
      %v7138 = vsel %vm546, %v7126, 0.0
      %7139 = vadd.xlane.f32.xlu0 %v7138
      %v7140 = vpop.xlane.xlu0 %7139
      %v7141 = vsel %vm546, %v7127, 0.0
      %7142 = vadd.xlane.f32.xlu0 %v7141
      %v7143 = vpop.xlane.xlu0 %7142
      %v7144 = vsel %vm546, %v7128, 0.0
      %7145 = vadd.xlane.f32.xlu0 %v7144
      %v7146 = vpop.xlane.xlu0 %7145
      %v7147 = vsel %vm546, %v7129, 0.0
      %7148 = vadd.xlane.f32.xlu0 %v7147
      %v7149 = vpop.xlane.xlu0 %7148
      %v7150 = vsel %vm546, %v7130, 0.0
      %7151 = vadd.xlane.f32.xlu0 %v7150
      %v7152 = vpop.xlane.xlu0 %7151
      %v7153 = vsel %vm546, %v7131, 0.0
      %7154 = vadd.xlane.f32.xlu0 %v7153
      %v7155 = vpop.xlane.xlu0 %7154
      %v7156 = vsel %vm546, %v7132, 0.0
      %7157 = vadd.xlane.f32.xlu0 %v7156
      %v7158 = vpop.xlane.xlu0 %7157
      %v7159 = vsel %vm546, %v7133, 0.0
      %7160 = vadd.xlane.f32.xlu0 %v7159
      %v7161 = vpop.xlane.xlu0 %7160
      %v7162 = vsel %vm546, %v7134, 0.0
      %7163 = vadd.xlane.f32.xlu0 %v7162
      %v7164 = vpop.xlane.xlu0 %7163
      %v7165 = vsel %vm546, %v7135, 0.0
      %7166 = vadd.xlane.f32.xlu0 %v7165
      %v7167 = vpop.xlane.xlu0 %7166
      %v7168 = vsel %vm546, %v7136, 0.0
      %7169 = vadd.xlane.f32.xlu0 %v7168
      %v7170 = vpop.xlane.xlu0 %7169
      %v7171 = vsel %vm546, %v7137, 0.0
      %7172 = vadd.xlane.f32.xlu0 %v7171
      %v7173 = vpop.xlane.xlu0 %7172
      %v7174 = vmul.f32 %v7140, %v623
      %v7175 = vmul.f32 %v7143, %v623
      %v7176 = vmul.f32 %v7146, %v623
      %v7177 = vmul.f32 %v7149, %v623
      %v7178 = vmul.f32 %v7152, %v623
      %v7179 = vmul.f32 %v7155, %v623
      %v7180 = vmul.f32 %v7158, %v623
      %v7181 = vmul.f32 %v7161, %v623
      %v7182 = vmul.f32 %v7164, %v623
      %v7183 = vmul.f32 %v7167, %v623
      %v7184 = vmul.f32 %v7170, %v623
      %v7185 = vmul.f32 %v7173, %v623
      %v7186 = vadd.f32 %v7174, 1e-06
      %v7187 = vadd.f32 %v7175, 1e-06
      %v7188 = vadd.f32 %v7176, 1e-06
      %v7189 = vadd.f32 %v7177, 1e-06
      %v7190 = vadd.f32 %v7178, 1e-06
      %v7191 = vadd.f32 %v7179, 1e-06
      %v7192 = vadd.f32 %v7180, 1e-06
      %v7193 = vadd.f32 %v7181, 1e-06
      %v7194 = vadd.f32 %v7182, 1e-06
      %v7195 = vadd.f32 %v7183, 1e-06
      %v7196 = vadd.f32 %v7184, 1e-06
      %v7197 = vadd.f32 %v7185, 1e-06
      %v7198 = vrsqrt.pop %v7186
      %v7199 = vrsqrt.pop %v7187
      %v7200 = vrsqrt.pop %v7188
      %v7201 = vrsqrt.pop %v7189
      %v7202 = vrsqrt.pop %v7190
      %v7203 = vrsqrt.pop %v7191
      %v7204 = vrsqrt.pop %v7192
      %v7205 = vrsqrt.pop %v7193
      %v7206 = vrsqrt.pop %v7194
      %v7207 = vrsqrt.pop %v7195
      %v7208 = vrsqrt.pop %v7196
      %v7209 = vrsqrt.pop %v7197
      %v7210 = vmul.f32 %v7114, %v7198
      %v7211 = vmul.f32 %v7115, %v7199
      %v7212 = vmul.f32 %v7116, %v7200
      %v7213 = vmul.f32 %v7117, %v7201
      %v7214 = vmul.f32 %v7118, %v7202
      %v7215 = vmul.f32 %v7119, %v7203
      %v7216 = vmul.f32 %v7120, %v7204
      %v7217 = vmul.f32 %v7121, %v7205
      %v7218 = vmul.f32 %v7122, %v7206
      %v7219 = vmul.f32 %v7123, %v7207
      %v7220 = vmul.f32 %v7124, %v7208
      %v7221 = vmul.f32 %v7125, %v7209
      %7222 = vrot.lane.b32.xlu0 %v4281, 64
      %v7223 = vpop.permute.xlu0 %7222
      %v7225 = vmul.f32 %v7210, %v7223
      %v7226 = vmul.f32 %v7211, %v7223
      %v7227 = vmul.f32 %v7212, %v7223
      %v7228 = vmul.f32 %v7213, %v7223
      %v7229 = vmul.f32 %v7214, %v7223
      %v7230 = vmul.f32 %v7215, %v7223
      %v7231 = vmul.f32 %v7216, %v7223
      %v7232 = vmul.f32 %v7217, %v7223
      %v7233 = vmul.f32 %v7218, %v7223
      %v7234 = vmul.f32 %v7219, %v7223
      %v7235 = vmul.f32 %v7220, %v7223
      %v7236 = vmul.f32 %v7221, %v7223
      %7237 = vrot.lane.b32.xlu0 %v4281, 32
      %v7238 = vpop.permute.xlu0 %7237
      %v7240 = vadd.f32 %v7225, %v7238
      %v7241 = vadd.f32 %v7226, %v7238
      %v7242 = vadd.f32 %v7227, %v7238
      %v7243 = vadd.f32 %v7228, %v7238
      %v7244 = vadd.f32 %v7229, %v7238
      %v7245 = vadd.f32 %v7230, %v7238
      %v7246 = vadd.f32 %v7231, %v7238
      %v7247 = vadd.f32 %v7232, %v7238
      %v7248 = vadd.f32 %v7233, %v7238
      %v7249 = vadd.f32 %v7234, %v7238
      %v7250 = vadd.f32 %v7235, %v7238
      %v7251 = vadd.f32 %v7236, %v7238
      %s7252 = scalar_lea.vmem %s6, 32
      %v7253 = vld [vmem:[%s7252] sm:$0xff]
      %v7254 = vld [vmem:[%s7252 + $0x8] sm:$0xff]
      %v7255 = vld [vmem:[%s7252 + $0x10] sm:$0xff]
      %v7256 = vld [vmem:[%s7252 + $0x18] sm:$0xff]
      %v7257 = vlaneseq
      %v7258 = vshrl.u32 %v7257, 7
      %v7259 = vsub.s32 0, %v7258
      %v7260 = vrot.slane %v4120, %v7259
      %v7262 = vsel %vm546, %v7240, 0
      %v7265 = vsel %vm546, %v7241, 0
      %v7268 = vsel %vm546, %v7242, 0
      %v7271 = vsel %vm546, %v7243, 0
      %v7274 = vsel %vm546, %v7244, 0
      %v7277 = vsel %vm546, %v7245, 0
      %v7280 = vsel %vm546, %v7246, 0
      %v7283 = vsel %vm546, %v7247, 0
      %v7286 = vsel %vm546, %v7248, 0
      %v7289 = vsel %vm546, %v7249, 0
      %v7292 = vsel %vm546, %v7250, 0
      %v7295 = vsel %vm546, %v7251, 0
      %7297 = vmatprep.subr.mxu0 0.0
      %7298 = vmatpush1.msra.mxu0 0.0
      %7299 = vmatprep.subr.mxu0 0.0
      %7300 = vmatpush1.msra.mxu0 0.0
      %7301 = vmatprep.subr.mxu0 0.0
      %7302 = vmatpush1.msra.mxu0 0.0
      %7303 = vmatprep.subr.mxu0 0.0
      %7304 = vmatpush1.msra.mxu0 0.0
      %7305 = vmatprep.subr.mxu0 0.0
      %7306 = vmatpush1.msra.mxu0 0.0
      %7307 = vmatprep.subr.mxu0 0.0
      %7308 = vmatpush1.msra.mxu0 0.0
      %7309 = vmatprep.subr.mxu0 0.0
      %7310 = vmatpush1.msra.mxu0 0.0
      %7311 = vmatprep.subr.mxu0 0.0
      %7312 = vmatpush1.msra.mxu0 0.0
      %7313 = vmatprep.subr.mxu0 0.0
      %7314 = vmatpush1.msra.mxu0 0.0
      %7315 = vmatprep.subr.mxu0 0.0
      %7316 = vmatpush1.msra.mxu0 0.0
      %7317 = vmatprep.subr.mxu0 0.0
      %7318 = vmatpush1.msra.mxu0 0.0
      %7319 = vmatprep.subr.mxu0 0.0
      %7320 = vmatpush1.msra.mxu0 0.0
      %7321 = vmatprep.subr.mxu0 0.0
      %7322 = vmatpush1.msra.mxu0 %v7256
      %7323 = vmatprep.subr.mxu0 0.0
      %7324 = vmatpush1.msra.mxu0 %v7255
      %7325 = vmatprep.subr.mxu0 0.0
      %7326 = vmatpush1.msra.mxu0 %v7254
      %7327 = vmatprep.subr.mxu0 0.0
      %7328 = vmatpush1.msra.mxu0 %v7253
      %7329 = vmatprep.subr.mxu0 0.0
      %7330 = vmatpush2.msra.mxu0 0.0
      %7331 = vmatprep.subr.mxu0 0.0
      %7332 = vmatpush2.msra.mxu0 0.0
      %7333 = vmatprep.subr.mxu0 0.0
      %7334 = vmatpush2.msra.mxu0 0.0
      %7335 = vmatprep.subr.mxu0 0.0
      %7336 = vmatpush2.msra.mxu0 0.0
      %7337 = vmatprep.subr.mxu0 0.0
      %7338 = vmatpush2.msra.mxu0 0.0
      %7339 = vmatprep.subr.mxu0 0.0
      %7340 = vmatpush2.msra.mxu0 0.0
      %7341 = vmatprep.subr.mxu0 0.0
      %7342 = vmatpush2.msra.mxu0 0.0
      %7343 = vmatprep.subr.mxu0 0.0
      %7344 = vmatpush2.msra.mxu0 0.0
      %7345 = vmatprep.subr.mxu0 0.0
      %7346 = vmatpush2.msra.mxu0 0.0
      %7347 = vmatprep.subr.mxu0 0.0
      %7348 = vmatpush2.msra.mxu0 0.0
      %7349 = vmatprep.subr.mxu0 0.0
      %7350 = vmatpush2.msra.mxu0 0.0
      %7351 = vmatprep.subr.mxu0 0.0
      %7352 = vmatpush2.msra.mxu0 0.0
      %7353 = vmatprep.subr.mxu0 0.0
      %7354 = vmatpush2.msra.mxu0 0.0
      %7355 = vmatprep.subr.mxu0 0.0
      %7356 = vmatpush2.msra.mxu0 0.0
      %7357 = vmatprep.subr.mxu0 0.0
      %7358 = vmatpush2.msra.mxu0 0.0
      %7359 = vmatprep.subr.mxu0 0.0
      %7360 = vmatpush2.msra.mxu0 0.0
      %7361 = vmatprep.mubr.f32.mxu0 0.0
      %7362 = vmatmul.mubr.f32.gmra.mxu0 %v7262
      %v7363 = vpop.f32.mrf.mxu0
      %v7364 = vadd.f32 %v7260, %v7363
      %v7365 = vpop.f32.mrf.mxu0
      %7366 = vmatprep.mubr.f32.mxu0 0.0
      %7367 = vmatmul.mubr.f32.gmra.mxu0 %v7265
      %v7368 = vpop.f32.mrf.mxu0
      %v7369 = vadd.f32 %v7260, %v7368
      %v7370 = vpop.f32.mrf.mxu0
      %7371 = vmatprep.mubr.f32.mxu0 0.0
      %7372 = vmatmul.mubr.f32.gmra.mxu0 %v7268
      %v7373 = vpop.f32.mrf.mxu0
      %v7374 = vadd.f32 %v7260, %v7373
      %v7375 = vpop.f32.mrf.mxu0
      %7376 = vmatprep.mubr.f32.mxu0 0.0
      %7377 = vmatmul.mubr.f32.gmra.mxu0 %v7271
      %v7378 = vpop.f32.mrf.mxu0
      %v7379 = vadd.f32 %v7260, %v7378
      %v7380 = vpop.f32.mrf.mxu0
      %7381 = vmatprep.mubr.f32.mxu0 0.0
      %7382 = vmatmul.mubr.f32.gmra.mxu0 %v7274
      %v7383 = vpop.f32.mrf.mxu0
      %v7384 = vadd.f32 %v7260, %v7383
      %v7385 = vpop.f32.mrf.mxu0
      %7386 = vmatprep.mubr.f32.mxu0 0.0
      %7387 = vmatmul.mubr.f32.gmra.mxu0 %v7277
      %v7388 = vpop.f32.mrf.mxu0
      %v7389 = vadd.f32 %v7260, %v7388
      %v7390 = vpop.f32.mrf.mxu0
      %7391 = vmatprep.mubr.f32.mxu0 0.0
      %7392 = vmatmul.mubr.f32.gmra.mxu0 %v7280
      %v7393 = vpop.f32.mrf.mxu0
      %v7394 = vadd.f32 %v7260, %v7393
      %v7395 = vpop.f32.mrf.mxu0
      %7396 = vmatprep.mubr.f32.mxu0 0.0
      %7397 = vmatmul.mubr.f32.gmra.mxu0 %v7283
      %v7398 = vpop.f32.mrf.mxu0
      %v7399 = vadd.f32 %v7260, %v7398
      %v7400 = vpop.f32.mrf.mxu0
      %7401 = vmatprep.mubr.f32.mxu0 0.0
      %7402 = vmatmul.mubr.f32.gmra.mxu0 %v7286
      %v7403 = vpop.f32.mrf.mxu0
      %v7404 = vadd.f32 %v7260, %v7403
      %v7405 = vpop.f32.mrf.mxu0
      %7406 = vmatprep.mubr.f32.mxu0 0.0
      %7407 = vmatmul.mubr.f32.gmra.mxu0 %v7289
      %v7408 = vpop.f32.mrf.mxu0
      %v7409 = vadd.f32 %v7260, %v7408
      %v7410 = vpop.f32.mrf.mxu0
      %7411 = vmatprep.mubr.f32.mxu0 0.0
      %7412 = vmatmul.mubr.f32.gmra.mxu0 %v7292
      %v7413 = vpop.f32.mrf.mxu0
      %v7414 = vadd.f32 %v7260, %v7413
      %v7415 = vpop.f32.mrf.mxu0
      %7416 = vmatprep.mubr.f32.mxu0 0.0
      %7417 = vmatmul.mubr.f32.gmra.mxu0 %v7295
      %v7418 = vpop.f32.mrf.mxu0
      %v7419 = vadd.f32 %v7260, %v7418
      %v7420 = vpop.f32.mrf.mxu0
      %7421 = vdwg.mxu0
      %v7422 = vmul.f32 %v7364, 0.5
      %v7423 = vmul.f32 %v7369, 0.5
      %v7424 = vmul.f32 %v7374, 0.5
      %v7425 = vmul.f32 %v7379, 0.5
      %v7426 = vmul.f32 %v7384, 0.5
      %v7427 = vmul.f32 %v7389, 0.5
      %v7428 = vmul.f32 %v7394, 0.5
      %v7429 = vmul.f32 %v7399, 0.5
      %v7430 = vmul.f32 %v7404, 0.5
      %v7431 = vmul.f32 %v7409, 0.5
      %v7432 = vmul.f32 %v7414, 0.5
      %v7433 = vmul.f32 %v7419, 0.5
      %v7434 = vmul.f32 %v7364, 0.70710677
      %v7435 = vmul.f32 %v7369, 0.70710677
      %v7436 = vmul.f32 %v7374, 0.70710677
      %v7437 = vmul.f32 %v7379, 0.70710677
      %v7438 = vmul.f32 %v7384, 0.70710677
      %v7439 = vmul.f32 %v7389, 0.70710677
      %v7440 = vmul.f32 %v7394, 0.70710677
      %v7441 = vmul.f32 %v7399, 0.70710677
      %v7442 = vmul.f32 %v7404, 0.70710677
      %v7443 = vmul.f32 %v7409, 0.70710677
      %v7444 = vmul.f32 %v7414, 0.70710677
      %v7445 = vmul.f32 %v7419, 0.70710677
      %v7446 = verf.f32.pop %v7434
      %v7447 = verf.f32.pop %v7435
      %v7448 = verf.f32.pop %v7436
      %v7449 = verf.f32.pop %v7437
      %v7450 = verf.f32.pop %v7438
      %v7451 = verf.f32.pop %v7439
      %v7452 = verf.f32.pop %v7440
      %v7453 = verf.f32.pop %v7441
      %v7454 = verf.f32.pop %v7442
      %v7455 = verf.f32.pop %v7443
      %v7456 = verf.f32.pop %v7444
      %v7457 = verf.f32.pop %v7445
      %v7458 = vadd.f32 %v7446, 1.0
      %v7459 = vadd.f32 %v7447, 1.0
      %v7460 = vadd.f32 %v7448, 1.0
      %v7461 = vadd.f32 %v7449, 1.0
      %v7462 = vadd.f32 %v7450, 1.0
      %v7463 = vadd.f32 %v7451, 1.0
      %v7464 = vadd.f32 %v7452, 1.0
      %v7465 = vadd.f32 %v7453, 1.0
      %v7466 = vadd.f32 %v7454, 1.0
      %v7467 = vadd.f32 %v7455, 1.0
      %v7468 = vadd.f32 %v7456, 1.0
      %v7469 = vadd.f32 %v7457, 1.0
      %v7470 = vmul.f32 %v7422, %v7458
      %v7471 = vmul.f32 %v7423, %v7459
      %v7472 = vmul.f32 %v7424, %v7460
      %v7473 = vmul.f32 %v7425, %v7461
      %v7474 = vmul.f32 %v7426, %v7462
      %v7475 = vmul.f32 %v7427, %v7463
      %v7476 = vmul.f32 %v7428, %v7464
      %v7477 = vmul.f32 %v7429, %v7465
      %v7478 = vmul.f32 %v7430, %v7466
      %v7479 = vmul.f32 %v7431, %v7467
      %v7480 = vmul.f32 %v7432, %v7468
      %v7481 = vmul.f32 %v7433, %v7469
      %s7482 = scalar_lea.vmem %s7, 128
      %v7483 = vld [vmem:[%s7482] sm:$0xff]
      %v7484 = vld [vmem:[%s7482 + $0x8] sm:$0xff]
      %v7485 = vld [vmem:[%s7482 + $0x10] sm:$0xff]
      %v7486 = vld [vmem:[%s7482 + $0x18] sm:$0xff]
      %v7487 = vld [vmem:[%s7482 + $0x20] sm:$0xff]
      %v7488 = vld [vmem:[%s7482 + $0x28] sm:$0xff]
      %v7489 = vld [vmem:[%s7482 + $0x30] sm:$0xff]
      %v7490 = vld [vmem:[%s7482 + $0x38] sm:$0xff]
      %v7491 = vld [vmem:[%s7482 + $0x40] sm:$0xff]
      %v7492 = vld [vmem:[%s7482 + $0x48] sm:$0xff]
      %v7493 = vld [vmem:[%s7482 + $0x50] sm:$0xff]
      %v7494 = vld [vmem:[%s7482 + $0x58] sm:$0xff]
      %v7495 = vld [vmem:[%s7482 + $0x60] sm:$0xff]
      %v7496 = vld [vmem:[%s7482 + $0x68] sm:$0xff]
      %v7497 = vld [vmem:[%s7482 + $0x70] sm:$0xff]
      %v7498 = vld [vmem:[%s7482 + $0x78] sm:$0xff]
      %7499 = vmatprep.subr.mxu0 0.0
      %7500 = vmatpush1.msra.mxu0 %v7498
      %7501 = vmatprep.subr.mxu0 0.0
      %7502 = vmatpush1.msra.mxu0 %v7497
      %7503 = vmatprep.subr.mxu0 0.0
      %7504 = vmatpush1.msra.mxu0 %v7496
      %7505 = vmatprep.subr.mxu0 0.0
      %7506 = vmatpush1.msra.mxu0 %v7495
      %7507 = vmatprep.subr.mxu0 0.0
      %7508 = vmatpush1.msra.mxu0 %v7494
      %7509 = vmatprep.subr.mxu0 0.0
      %7510 = vmatpush1.msra.mxu0 %v7493
      %7511 = vmatprep.subr.mxu0 0.0
      %7512 = vmatpush1.msra.mxu0 %v7492
      %7513 = vmatprep.subr.mxu0 0.0
      %7514 = vmatpush1.msra.mxu0 %v7491
      %7515 = vmatprep.subr.mxu0 0.0
      %7516 = vmatpush1.msra.mxu0 %v7490
      %7517 = vmatprep.subr.mxu0 0.0
      %7518 = vmatpush1.msra.mxu0 %v7489
      %7519 = vmatprep.subr.mxu0 0.0
      %7520 = vmatpush1.msra.mxu0 %v7488
      %7521 = vmatprep.subr.mxu0 0.0
      %7522 = vmatpush1.msra.mxu0 %v7487
      %7523 = vmatprep.subr.mxu0 0.0
      %7524 = vmatpush1.msra.mxu0 %v7486
      %7525 = vmatprep.subr.mxu0 0.0
      %7526 = vmatpush1.msra.mxu0 %v7485
      %7527 = vmatprep.subr.mxu0 0.0
      %7528 = vmatpush1.msra.mxu0 %v7484
      %7529 = vmatprep.subr.mxu0 0.0
      %7530 = vmatpush1.msra.mxu0 %v7483
      %7531 = vmatprep.subr.mxu0 0.0
      %7532 = vmatpush2.msra.mxu0 0.0
      %7533 = vmatprep.subr.mxu0 0.0
      %7534 = vmatpush2.msra.mxu0 0.0
      %7535 = vmatprep.subr.mxu0 0.0
      %7536 = vmatpush2.msra.mxu0 0.0
      %7537 = vmatprep.subr.mxu0 0.0
      %7538 = vmatpush2.msra.mxu0 0.0
      %7539 = vmatprep.subr.mxu0 0.0
      %7540 = vmatpush2.msra.mxu0 0.0
      %7541 = vmatprep.subr.mxu0 0.0
      %7542 = vmatpush2.msra.mxu0 0.0
      %7543 = vmatprep.subr.mxu0 0.0
      %7544 = vmatpush2.msra.mxu0 0.0
      %7545 = vmatprep.subr.mxu0 0.0
      %7546 = vmatpush2.msra.mxu0 0.0
      %7547 = vmatprep.subr.mxu0 0.0
      %7548 = vmatpush2.msra.mxu0 0.0
      %7549 = vmatprep.subr.mxu0 0.0
      %7550 = vmatpush2.msra.mxu0 0.0
      %7551 = vmatprep.subr.mxu0 0.0
      %7552 = vmatpush2.msra.mxu0 0.0
      %7553 = vmatprep.subr.mxu0 0.0
      %7554 = vmatpush2.msra.mxu0 0.0
      %7555 = vmatprep.subr.mxu0 0.0
      %7556 = vmatpush2.msra.mxu0 0.0
      %7557 = vmatprep.subr.mxu0 0.0
      %7558 = vmatpush2.msra.mxu0 0.0
      %7559 = vmatprep.subr.mxu0 0.0
      %7560 = vmatpush2.msra.mxu0 0.0
      %7561 = vmatprep.subr.mxu0 0.0
      %7562 = vmatpush2.msra.mxu0 0.0
      %7563 = vmatprep.mubr.f32.mxu0 0.0
      %7564 = vmatmul.mubr.f32.gmra.mxu0 %v7470
      %v7565 = vpop.f32.mrf.mxu0
      %v7566 = vadd.f32 0.0, %v7565
      %v7567 = vpop.f32.mrf.mxu0
      %7568 = vmatprep.mubr.f32.mxu0 0.0
      %7569 = vmatmul.mubr.f32.gmra.mxu0 %v7471
      %v7570 = vpop.f32.mrf.mxu0
      %v7571 = vadd.f32 0.0, %v7570
      %v7572 = vpop.f32.mrf.mxu0
      %7573 = vmatprep.mubr.f32.mxu0 0.0
      %7574 = vmatmul.mubr.f32.gmra.mxu0 %v7472
      %v7575 = vpop.f32.mrf.mxu0
      %v7576 = vadd.f32 0.0, %v7575
      %v7577 = vpop.f32.mrf.mxu0
      %7578 = vmatprep.mubr.f32.mxu0 0.0
      %7579 = vmatmul.mubr.f32.gmra.mxu0 %v7473
      %v7580 = vpop.f32.mrf.mxu0
      %v7581 = vadd.f32 0.0, %v7580
      %v7582 = vpop.f32.mrf.mxu0
      %7583 = vmatprep.mubr.f32.mxu0 0.0
      %7584 = vmatmul.mubr.f32.gmra.mxu0 %v7474
      %v7585 = vpop.f32.mrf.mxu0
      %v7586 = vadd.f32 0.0, %v7585
      %v7587 = vpop.f32.mrf.mxu0
      %7588 = vmatprep.mubr.f32.mxu0 0.0
      %7589 = vmatmul.mubr.f32.gmra.mxu0 %v7475
      %v7590 = vpop.f32.mrf.mxu0
      %v7591 = vadd.f32 0.0, %v7590
      %v7592 = vpop.f32.mrf.mxu0
      %7593 = vmatprep.mubr.f32.mxu0 0.0
      %7594 = vmatmul.mubr.f32.gmra.mxu0 %v7476
      %v7595 = vpop.f32.mrf.mxu0
      %v7596 = vadd.f32 0.0, %v7595
      %v7597 = vpop.f32.mrf.mxu0
      %7598 = vmatprep.mubr.f32.mxu0 0.0
      %7599 = vmatmul.mubr.f32.gmra.mxu0 %v7477
      %v7600 = vpop.f32.mrf.mxu0
      %v7601 = vadd.f32 0.0, %v7600
      %v7602 = vpop.f32.mrf.mxu0
      %7603 = vmatprep.mubr.f32.mxu0 0.0
      %7604 = vmatmul.mubr.f32.gmra.mxu0 %v7478
      %v7605 = vpop.f32.mrf.mxu0
      %v7606 = vadd.f32 0.0, %v7605
      %v7607 = vpop.f32.mrf.mxu0
      %7608 = vmatprep.mubr.f32.mxu0 0.0
      %7609 = vmatmul.mubr.f32.gmra.mxu0 %v7479
      %v7610 = vpop.f32.mrf.mxu0
      %v7611 = vadd.f32 0.0, %v7610
      %v7612 = vpop.f32.mrf.mxu0
      %7613 = vmatprep.mubr.f32.mxu0 0.0
      %7614 = vmatmul.mubr.f32.gmra.mxu0 %v7480
      %v7615 = vpop.f32.mrf.mxu0
      %v7616 = vadd.f32 0.0, %v7615
      %v7617 = vpop.f32.mrf.mxu0
      %7618 = vmatprep.mubr.f32.mxu0 0.0
      %7619 = vmatmul.mubr.f32.gmra.mxu0 %v7481
      %v7620 = vpop.f32.mrf.mxu0
      %v7621 = vadd.f32 0.0, %v7620
      %v7622 = vpop.f32.mrf.mxu0
      %7623 = vdwg.mxu0
      %v7624 = vadd.f32 %v7054, %v7566
      %v7625 = vadd.f32 %v7055, %v7571
      %v7626 = vadd.f32 %v7056, %v7576
      %v7627 = vadd.f32 %v7057, %v7581
      %v7628 = vadd.f32 %v7058, %v7586
      %v7629 = vadd.f32 %v7059, %v7591
      %v7630 = vadd.f32 %v7060, %v7596
      %v7631 = vadd.f32 %v7061, %v7601
      %v7632 = vadd.f32 %v7062, %v7606
      %v7633 = vadd.f32 %v7063, %v7611
      %v7634 = vadd.f32 %v7064, %v7616
      %v7635 = vadd.f32 %v7065, %v7621
      %v7636 = vlaneseq
      %v7637 = vshrl.u32 %v7636, 7
      %v7638 = vsub.s32 0, %v7637
      %v7639 = vrot.slane %v4121, %v7638
      %v7640 = vadd.f32 %v7624, %v7639
      %v7641 = vadd.f32 %v7625, %v7639
      %v7642 = vadd.f32 %v7626, %v7639
      %v7643 = vadd.f32 %v7627, %v7639
      %v7644 = vadd.f32 %v7628, %v7639
      %v7645 = vadd.f32 %v7629, %v7639
      %v7646 = vadd.f32 %v7630, %v7639
      %v7647 = vadd.f32 %v7631, %v7639
      %v7648 = vadd.f32 %v7632, %v7639
      %v7649 = vadd.f32 %v7633, %v7639
      %v7650 = vadd.f32 %v7634, %v7639
      %v7651 = vadd.f32 %v7635, %v7639
      %v7652 = vld [vmem:[%s9 + $0x8] sm:$0x1]
      %v7653 = vsel %vm546, %v7640, 0.0
      %7654 = vadd.xlane.f32.xlu0 %v7653
      %v7655 = vpop.xlane.xlu0 %7654
      %v7656 = vsel %vm546, %v7641, 0.0
      %7657 = vadd.xlane.f32.xlu0 %v7656
      %v7658 = vpop.xlane.xlu0 %7657
      %v7659 = vsel %vm546, %v7642, 0.0
      %7660 = vadd.xlane.f32.xlu0 %v7659
      %v7661 = vpop.xlane.xlu0 %7660
      %v7662 = vsel %vm546, %v7643, 0.0
      %7663 = vadd.xlane.f32.xlu0 %v7662
      %v7664 = vpop.xlane.xlu0 %7663
      %v7665 = vsel %vm546, %v7644, 0.0
      %7666 = vadd.xlane.f32.xlu0 %v7665
      %v7667 = vpop.xlane.xlu0 %7666
      %v7668 = vsel %vm546, %v7645, 0.0
      %7669 = vadd.xlane.f32.xlu0 %v7668
      %v7670 = vpop.xlane.xlu0 %7669
      %v7671 = vsel %vm546, %v7646, 0.0
      %7672 = vadd.xlane.f32.xlu0 %v7671
      %v7673 = vpop.xlane.xlu0 %7672
      %v7674 = vsel %vm546, %v7647, 0.0
      %7675 = vadd.xlane.f32.xlu0 %v7674
      %v7676 = vpop.xlane.xlu0 %7675
      %v7677 = vsel %vm546, %v7648, 0.0
      %7678 = vadd.xlane.f32.xlu0 %v7677
      %v7679 = vpop.xlane.xlu0 %7678
      %v7680 = vsel %vm546, %v7649, 0.0
      %7681 = vadd.xlane.f32.xlu0 %v7680
      %v7682 = vpop.xlane.xlu0 %7681
      %v7683 = vsel %vm546, %v7650, 0.0
      %7684 = vadd.xlane.f32.xlu0 %v7683
      %v7685 = vpop.xlane.xlu0 %7684
      %v7686 = vsel %vm546, %v7651, 0.0
      %7687 = vadd.xlane.f32.xlu0 %v7686
      %v7688 = vpop.xlane.xlu0 %7687
      %v7689 = vmul.f32 %v7655, %v623
      %v7690 = vmul.f32 %v7658, %v623
      %v7691 = vmul.f32 %v7661, %v623
      %v7692 = vmul.f32 %v7664, %v623
      %v7693 = vmul.f32 %v7667, %v623
      %v7694 = vmul.f32 %v7670, %v623
      %v7695 = vmul.f32 %v7673, %v623
      %v7696 = vmul.f32 %v7676, %v623
      %v7697 = vmul.f32 %v7679, %v623
      %v7698 = vmul.f32 %v7682, %v623
      %v7699 = vmul.f32 %v7685, %v623
      %v7700 = vmul.f32 %v7688, %v623
      %v7701 = vsub.f32 %v7640, %v7689
      %v7702 = vsub.f32 %v7641, %v7690
      %v7703 = vsub.f32 %v7642, %v7691
      %v7704 = vsub.f32 %v7643, %v7692
      %v7705 = vsub.f32 %v7644, %v7693
      %v7706 = vsub.f32 %v7645, %v7694
      %v7707 = vsub.f32 %v7646, %v7695
      %v7708 = vsub.f32 %v7647, %v7696
      %v7709 = vsub.f32 %v7648, %v7697
      %v7710 = vsub.f32 %v7649, %v7698
      %v7711 = vsub.f32 %v7650, %v7699
      %v7712 = vsub.f32 %v7651, %v7700
      %v7713 = vmul.f32 %v7701, %v7701
      %v7714 = vmul.f32 %v7702, %v7702
      %v7715 = vmul.f32 %v7703, %v7703
      %v7716 = vmul.f32 %v7704, %v7704
      %v7717 = vmul.f32 %v7705, %v7705
      %v7718 = vmul.f32 %v7706, %v7706
      %v7719 = vmul.f32 %v7707, %v7707
      %v7720 = vmul.f32 %v7708, %v7708
      %v7721 = vmul.f32 %v7709, %v7709
      %v7722 = vmul.f32 %v7710, %v7710
      %v7723 = vmul.f32 %v7711, %v7711
      %v7724 = vmul.f32 %v7712, %v7712
      %v7725 = vsel %vm546, %v7713, 0.0
      %7726 = vadd.xlane.f32.xlu0 %v7725
      %v7727 = vpop.xlane.xlu0 %7726
      %v7728 = vsel %vm546, %v7714, 0.0
      %7729 = vadd.xlane.f32.xlu0 %v7728
      %v7730 = vpop.xlane.xlu0 %7729
      %v7731 = vsel %vm546, %v7715, 0.0
      %7732 = vadd.xlane.f32.xlu0 %v7731
      %v7733 = vpop.xlane.xlu0 %7732
      %v7734 = vsel %vm546, %v7716, 0.0
      %7735 = vadd.xlane.f32.xlu0 %v7734
      %v7736 = vpop.xlane.xlu0 %7735
      %v7737 = vsel %vm546, %v7717, 0.0
      %7738 = vadd.xlane.f32.xlu0 %v7737
      %v7739 = vpop.xlane.xlu0 %7738
      %v7740 = vsel %vm546, %v7718, 0.0
      %7741 = vadd.xlane.f32.xlu0 %v7740
      %v7742 = vpop.xlane.xlu0 %7741
      %v7743 = vsel %vm546, %v7719, 0.0
      %7744 = vadd.xlane.f32.xlu0 %v7743
      %v7745 = vpop.xlane.xlu0 %7744
      %v7746 = vsel %vm546, %v7720, 0.0
      %7747 = vadd.xlane.f32.xlu0 %v7746
      %v7748 = vpop.xlane.xlu0 %7747
      %v7749 = vsel %vm546, %v7721, 0.0
      %7750 = vadd.xlane.f32.xlu0 %v7749
      %v7751 = vpop.xlane.xlu0 %7750
      %v7752 = vsel %vm546, %v7722, 0.0
      %7753 = vadd.xlane.f32.xlu0 %v7752
      %v7754 = vpop.xlane.xlu0 %7753
      %v7755 = vsel %vm546, %v7723, 0.0
      %7756 = vadd.xlane.f32.xlu0 %v7755
      %v7757 = vpop.xlane.xlu0 %7756
      %v7758 = vsel %vm546, %v7724, 0.0
      %7759 = vadd.xlane.f32.xlu0 %v7758
      %v7760 = vpop.xlane.xlu0 %7759
      %v7761 = vmul.f32 %v7727, %v623
      %v7762 = vmul.f32 %v7730, %v623
      %v7763 = vmul.f32 %v7733, %v623
      %v7764 = vmul.f32 %v7736, %v623
      %v7765 = vmul.f32 %v7739, %v623
      %v7766 = vmul.f32 %v7742, %v623
      %v7767 = vmul.f32 %v7745, %v623
      %v7768 = vmul.f32 %v7748, %v623
      %v7769 = vmul.f32 %v7751, %v623
      %v7770 = vmul.f32 %v7754, %v623
      %v7771 = vmul.f32 %v7757, %v623
      %v7772 = vmul.f32 %v7760, %v623
      %v7773 = vadd.f32 %v7761, 1e-06
      %v7774 = vadd.f32 %v7762, 1e-06
      %v7775 = vadd.f32 %v7763, 1e-06
      %v7776 = vadd.f32 %v7764, 1e-06
      %v7777 = vadd.f32 %v7765, 1e-06
      %v7778 = vadd.f32 %v7766, 1e-06
      %v7779 = vadd.f32 %v7767, 1e-06
      %v7780 = vadd.f32 %v7768, 1e-06
      %v7781 = vadd.f32 %v7769, 1e-06
      %v7782 = vadd.f32 %v7770, 1e-06
      %v7783 = vadd.f32 %v7771, 1e-06
      %v7784 = vadd.f32 %v7772, 1e-06
      %v7785 = vrsqrt.pop %v7773
      %v7786 = vrsqrt.pop %v7774
      %v7787 = vrsqrt.pop %v7775
      %v7788 = vrsqrt.pop %v7776
      %v7789 = vrsqrt.pop %v7777
      %v7790 = vrsqrt.pop %v7778
      %v7791 = vrsqrt.pop %v7779
      %v7792 = vrsqrt.pop %v7780
      %v7793 = vrsqrt.pop %v7781
      %v7794 = vrsqrt.pop %v7782
      %v7795 = vrsqrt.pop %v7783
      %v7796 = vrsqrt.pop %v7784
      %v7797 = vmul.f32 %v7701, %v7785
      %v7798 = vmul.f32 %v7702, %v7786
      %v7799 = vmul.f32 %v7703, %v7787
      %v7800 = vmul.f32 %v7704, %v7788
      %v7801 = vmul.f32 %v7705, %v7789
      %v7802 = vmul.f32 %v7706, %v7790
      %v7803 = vmul.f32 %v7707, %v7791
      %v7804 = vmul.f32 %v7708, %v7792
      %v7805 = vmul.f32 %v7709, %v7793
      %v7806 = vmul.f32 %v7710, %v7794
      %v7807 = vmul.f32 %v7711, %v7795
      %v7808 = vmul.f32 %v7712, %v7796
      %v7809 = vlaneseq
      %v7810 = vshrl.u32 %v7809, 7
      %v7811 = vsub.s32 0, %v7810
      %v7812 = vrot.slane %v7652, %v7811
      %v7813 = vmul.f32 %v7797, %v7812
      %v7814 = vmul.f32 %v7798, %v7812
      %v7815 = vmul.f32 %v7799, %v7812
      %v7816 = vmul.f32 %v7800, %v7812
      %v7817 = vmul.f32 %v7801, %v7812
      %v7818 = vmul.f32 %v7802, %v7812
      %v7819 = vmul.f32 %v7803, %v7812
      %v7820 = vmul.f32 %v7804, %v7812
      %v7821 = vmul.f32 %v7805, %v7812
      %v7822 = vmul.f32 %v7806, %v7812
      %v7823 = vmul.f32 %v7807, %v7812
      %v7824 = vmul.f32 %v7808, %v7812
      %7826 = vrot.lane.b32.xlu0 %v7812, 96
      %v7827 = vpop.permute.xlu0 %7826
      %v7829 = vadd.f32 %v7813, %v7827
      %v7830 = vadd.f32 %v7814, %v7827
      %v7831 = vadd.f32 %v7815, %v7827
      %v7832 = vadd.f32 %v7816, %v7827
      %v7833 = vadd.f32 %v7817, %v7827
      %v7834 = vadd.f32 %v7818, %v7827
      %v7835 = vadd.f32 %v7819, %v7827
      %v7836 = vadd.f32 %v7820, %v7827
      %v7837 = vadd.f32 %v7821, %v7827
      %v7838 = vadd.f32 %v7822, %v7827
      %v7839 = vadd.f32 %v7823, %v7827
      %v7840 = vadd.f32 %v7824, %v7827
      %v7841 = vld [vmem:[%s8] sm:$0xff]
      %v7842 = vld [vmem:[%s8 + $0x8] sm:$0xff]
      %v7843 = vld [vmem:[%s8 + $0x10] sm:$0xff]
      %v7844 = vld [vmem:[%s8 + $0x18] sm:$0xff]
      %7845 = vrot.lane.b32.xlu0 %v7812, 64
      %v7846 = vpop.permute.xlu0 %7845
      %v7849 = vsel %vm546, %v7829, 0
      %v7852 = vsel %vm546, %v7830, 0
      %v7855 = vsel %vm546, %v7831, 0
      %v7858 = vsel %vm546, %v7832, 0
      %v7861 = vsel %vm546, %v7833, 0
      %v7864 = vsel %vm546, %v7834, 0
      %v7867 = vsel %vm546, %v7835, 0
      %v7870 = vsel %vm546, %v7836, 0
      %v7873 = vsel %vm546, %v7837, 0
      %v7876 = vsel %vm546, %v7838, 0
      %v7879 = vsel %vm546, %v7839, 0
      %v7882 = vsel %vm546, %v7840, 0
      %7884 = vmatprep.subr.mxu0 0.0
      %7885 = vmatpush1.msra.mxu0 0.0
      %7886 = vmatprep.subr.mxu0 0.0
      %7887 = vmatpush1.msra.mxu0 0.0
      %7888 = vmatprep.subr.mxu0 0.0
      %7889 = vmatpush1.msra.mxu0 0.0
      %7890 = vmatprep.subr.mxu0 0.0
      %7891 = vmatpush1.msra.mxu0 0.0
      %7892 = vmatprep.subr.mxu0 0.0
      %7893 = vmatpush1.msra.mxu0 0.0
      %7894 = vmatprep.subr.mxu0 0.0
      %7895 = vmatpush1.msra.mxu0 0.0
      %7896 = vmatprep.subr.mxu0 0.0
      %7897 = vmatpush1.msra.mxu0 0.0
      %7898 = vmatprep.subr.mxu0 0.0
      %7899 = vmatpush1.msra.mxu0 0.0
      %7900 = vmatprep.subr.mxu0 0.0
      %7901 = vmatpush1.msra.mxu0 0.0
      %7902 = vmatprep.subr.mxu0 0.0
      %7903 = vmatpush1.msra.mxu0 0.0
      %7904 = vmatprep.subr.mxu0 0.0
      %7905 = vmatpush1.msra.mxu0 0.0
      %7906 = vmatprep.subr.mxu0 0.0
      %7907 = vmatpush1.msra.mxu0 0.0
      %7908 = vmatprep.subr.mxu0 0.0
      %7909 = vmatpush1.msra.mxu0 %v7844
      %7910 = vmatprep.subr.mxu0 0.0
      %7911 = vmatpush1.msra.mxu0 %v7843
      %7912 = vmatprep.subr.mxu0 0.0
      %7913 = vmatpush1.msra.mxu0 %v7842
      %7914 = vmatprep.subr.mxu0 0.0
      %7915 = vmatpush1.msra.mxu0 %v7841
      %7916 = vmatprep.subr.mxu0 0.0
      %7917 = vmatpush2.msra.mxu0 0.0
      %7918 = vmatprep.subr.mxu0 0.0
      %7919 = vmatpush2.msra.mxu0 0.0
      %7920 = vmatprep.subr.mxu0 0.0
      %7921 = vmatpush2.msra.mxu0 0.0
      %7922 = vmatprep.subr.mxu0 0.0
      %7923 = vmatpush2.msra.mxu0 0.0
      %7924 = vmatprep.subr.mxu0 0.0
      %7925 = vmatpush2.msra.mxu0 0.0
      %7926 = vmatprep.subr.mxu0 0.0
      %7927 = vmatpush2.msra.mxu0 0.0
      %7928 = vmatprep.subr.mxu0 0.0
      %7929 = vmatpush2.msra.mxu0 0.0
      %7930 = vmatprep.subr.mxu0 0.0
      %7931 = vmatpush2.msra.mxu0 0.0
      %7932 = vmatprep.subr.mxu0 0.0
      %7933 = vmatpush2.msra.mxu0 0.0
      %7934 = vmatprep.subr.mxu0 0.0
      %7935 = vmatpush2.msra.mxu0 0.0
      %7936 = vmatprep.subr.mxu0 0.0
      %7937 = vmatpush2.msra.mxu0 0.0
      %7938 = vmatprep.subr.mxu0 0.0
      %7939 = vmatpush2.msra.mxu0 0.0
      %7940 = vmatprep.subr.mxu0 0.0
      %7941 = vmatpush2.msra.mxu0 0.0
      %7942 = vmatprep.subr.mxu0 0.0
      %7943 = vmatpush2.msra.mxu0 0.0
      %7944 = vmatprep.subr.mxu0 0.0
      %7945 = vmatpush2.msra.mxu0 0.0
      %7946 = vmatprep.subr.mxu0 0.0
      %7947 = vmatpush2.msra.mxu0 0.0
      %7948 = vmatprep.mubr.f32.mxu0 0.0
      %7949 = vmatmul.mubr.f32.gmra.mxu0 %v7849
      %v7950 = vpop.f32.mrf.mxu0
      %v7951 = vadd.f32 %v7846, %v7950
      %v7952 = vpop.f32.mrf.mxu0
      %7953 = vmatprep.mubr.f32.mxu0 0.0
      %7954 = vmatmul.mubr.f32.gmra.mxu0 %v7852
      %v7955 = vpop.f32.mrf.mxu0
      %v7956 = vadd.f32 %v7846, %v7955
      %v7957 = vpop.f32.mrf.mxu0
      %7958 = vmatprep.mubr.f32.mxu0 0.0
      %7959 = vmatmul.mubr.f32.gmra.mxu0 %v7855
      %v7960 = vpop.f32.mrf.mxu0
      %v7961 = vadd.f32 %v7846, %v7960
      %v7962 = vpop.f32.mrf.mxu0
      %7963 = vmatprep.mubr.f32.mxu0 0.0
      %7964 = vmatmul.mubr.f32.gmra.mxu0 %v7858
      %v7965 = vpop.f32.mrf.mxu0
      %v7966 = vadd.f32 %v7846, %v7965
      %v7967 = vpop.f32.mrf.mxu0
      %7968 = vmatprep.mubr.f32.mxu0 0.0
      %7969 = vmatmul.mubr.f32.gmra.mxu0 %v7861
      %v7970 = vpop.f32.mrf.mxu0
      %v7971 = vadd.f32 %v7846, %v7970
      %v7972 = vpop.f32.mrf.mxu0
      %7973 = vmatprep.mubr.f32.mxu0 0.0
      %7974 = vmatmul.mubr.f32.gmra.mxu0 %v7864
      %v7975 = vpop.f32.mrf.mxu0
      %v7976 = vadd.f32 %v7846, %v7975
      %v7977 = vpop.f32.mrf.mxu0
      %7978 = vmatprep.mubr.f32.mxu0 0.0
      %7979 = vmatmul.mubr.f32.gmra.mxu0 %v7867
      %v7980 = vpop.f32.mrf.mxu0
      %v7981 = vadd.f32 %v7846, %v7980
      %v7982 = vpop.f32.mrf.mxu0
      %7983 = vmatprep.mubr.f32.mxu0 0.0
      %7984 = vmatmul.mubr.f32.gmra.mxu0 %v7870
      %v7985 = vpop.f32.mrf.mxu0
      %v7986 = vadd.f32 %v7846, %v7985
      %v7987 = vpop.f32.mrf.mxu0
      %7988 = vmatprep.mubr.f32.mxu0 0.0
      %7989 = vmatmul.mubr.f32.gmra.mxu0 %v7873
      %v7990 = vpop.f32.mrf.mxu0
      %v7991 = vadd.f32 %v7846, %v7990
      %v7992 = vpop.f32.mrf.mxu0
      %7993 = vmatprep.mubr.f32.mxu0 0.0
      %7994 = vmatmul.mubr.f32.gmra.mxu0 %v7876
      %v7995 = vpop.f32.mrf.mxu0
      %v7996 = vadd.f32 %v7846, %v7995
      %v7997 = vpop.f32.mrf.mxu0
      %7998 = vmatprep.mubr.f32.mxu0 0.0
      %7999 = vmatmul.mubr.f32.gmra.mxu0 %v7879
      %v8000 = vpop.f32.mrf.mxu0
      %v8001 = vadd.f32 %v7846, %v8000
      %v8002 = vpop.f32.mrf.mxu0
      %8003 = vmatprep.mubr.f32.mxu0 0.0
      %8004 = vmatmul.mubr.f32.gmra.mxu0 %v7882
      %v8005 = vpop.f32.mrf.mxu0
      %v8006 = vadd.f32 %v7846, %v8005
      %v8007 = vpop.f32.mrf.mxu0
      %8008 = vdwg.mxu0
      %8009 = vst.msk [vmem:[%s364] sm:$0xff] %vm993, %v7951
      %8010 = vst.msk [vmem:[%s364 + $0x8] sm:$0xff] %vm993, %v7956
      %8011 = vst.msk [vmem:[%s364 + $0x10] sm:$0xff] %vm993, %v7961
      %8012 = vst.msk [vmem:[%s364 + $0x18] sm:$0xff] %vm993, %v7966
      %8013 = vst.msk [vmem:[%s364 + $0x20] sm:$0xff] %vm993, %v7971
      %8014 = vst.msk [vmem:[%s364 + $0x28] sm:$0xff] %vm993, %v7976
      %8015 = vst.msk [vmem:[%s364 + $0x30] sm:$0xff] %vm993, %v7981
      %8016 = vst.msk [vmem:[%s364 + $0x38] sm:$0xff] %vm993, %v7986
      %8017 = vst.msk [vmem:[%s364 + $0x40] sm:$0xff] %vm993, %v7991
      %8018 = vst.msk [vmem:[%s364 + $0x48] sm:$0xff] %vm993, %v7996
      %8019 = vst.msk [vmem:[%s364 + $0x50] sm:$0xff] %vm993, %v8001
      %8020 = vst.msk [vmem:[%s364 + $0x58] sm:$0xff] %vm993, %v8006
      %p8021 = scmp.lt.s32.totalorder %s21, 1
      %s8022 = scalar_select %p8021, %s21, 1
      %s8023 = smul.addr %s8022, 12
      %s8024 = smul.addr %s8023, 8
      %s8025 = scalar_lea.vmem %s10, %s8024
      // Predicated region
      $region61: #{spectrogram_vit_forward.1} parent=59 // pred_check
        %p8026 = pneg %p254
      $region62: #{spectrogram_vit_forward.1} parent=59 // pred_check_branch
        %8028 = sbr.rel (%p8026) target = $region64
      $region63: #{spectrogram_vit_forward.1} parent=59 // pred_region
        _
      $region64: #{spectrogram_vit_forward.1} parent=59 // pred_fallthru
        _
    $region60: #{spectrogram_vit_forward.1} parent=5 // pred_fallthru
      _
    %p8029 = scmp.le.s32.totalorder 2, %s16
    // Predicated region
    $region65: #{spectrogram_vit_forward.1} parent=5 // pred_check
      %p8030 = pneg %p8029
    $region66: #{spectrogram_vit_forward.1} parent=5 // pred_check_branch
      %8032 = sbr.rel (%p8030) target = $region68
    $region67: #{spectrogram_vit_forward.1} parent=5 // pred_region
      %s8033 = ssub.s32 %s16, 2
      // Predicated region
      $region69: #{spectrogram_vit_forward.1} parent=67 // pred_check
        %p8034 = pneg %p260
      $region70: #{spectrogram_vit_forward.1} parent=67 // pred_check_branch
        %8036 = sbr.rel (%p8034) target = $region72
      $region71: #{spectrogram_vit_forward.1} parent=67 // pred_region
        %p8037 = scmp.lt.s32.totalorder %s22, 1
        %s8038 = scalar_select %p8037, %s22, 1
        %s8039 = smul.addr %s8038, 12
        %s8040 = smul.addr %s8039, 8
        %s8041 = scalar_lea.vmem %s10, %s8040
      $region72: #{spectrogram_vit_forward.1} parent=67 // pred_fallthru
        _
    $region68: #{spectrogram_vit_forward.1} parent=5 // pred_fallthru
      _
  $region6: #{spectrogram_vit_forward.1} parent=0 // loop_footer
    %s20 = sadd.s32 1, %s16
  $region7: #{spectrogram_vit_forward.1} parent=0 // loop_footer_branch
    %15 = sbr.rel target = $region3
  $region8: #{spectrogram_vit_forward.1} parent=0 // loop_exit
    _

</llo_original>
